<compile_context>
chip_gen: v7x
topology: tpu7x:2x2x1
jax: 0.10.0
libtpu: 0.0.40
codegen_flags: <defaults>
</compile_context>

<pallas_src>
import math

import jax
import jax.numpy as jnp
from jax.experimental import pallas as pl
from jax.experimental.pallas import tpu as pltpu


def _round_up(x, m):
    return (x + m - 1) // m * m


# ----------------------------------------------------------------------------
# Fused "conv A -> ReLU -> conv B (-> ReLU)" pair on one spatial grid.
# ----------------------------------------------------------------------------
def fused_pair(x, shifts_a, wa_flat, ba, shifts_b, wb_flat, bb, relu_b=True):
    """x: (Cin, N, H, W). Two chained convolutions (1-px zero padding each) on
    the same (H, W) grid, expressed as stacked-K shifted GEMMs.
    wa_flat: (Cmid_p, Ta*Cin_p) bf16, wb_flat: (Cout_p, Tb*Cmid_p) bf16.
    Returns (Cout_p, N, H, W) bf16."""
    cin, n, h, w = x.shape
    ta, tb = len(shifts_a), len(shifts_b)
    cmid, ka = wa_flat.shape
    cop, kb = wb_flat.shape
    cipa = ka // ta
    if kb != tb * cmid:
        raise ValueError("pair channel mismatch")

    hp, wp = h + 2, w + 2
    mimg = hp * wp                                  # flattened padded grid
    max_abs = wp + 1                                # largest |tap shift|
    lin = _round_up(2 * max_abs + mimg, 128)        # padded-flat input width
    lout = _round_up(mimg, 128)                     # lane-dense output width
    offs_a = tuple(int(max_abs + s) for s in shifts_a)
    offs_b = tuple(int(max_abs + s) for s in shifts_b)

    # Padded-flat input (N, Cin_p, lin); image region at [max_abs, max_abs+mimg)
    xp = jnp.pad(x.astype(jnp.bfloat16),
                 ((0, cipa - cin), (0, 0), (1, 1), (1, 1)))
    xf = jnp.transpose(xp.reshape(cipa, n, mimg), (1, 0, 2))
    xbuf = jnp.pad(xf, ((0, 0), (0, 0), (max_abs, lin - max_abs - mimg)))

    # Interior mask: 1 on real pixels, 0 on the 1-px zero border.
    mask = (jnp.zeros((hp, wp), jnp.float32).at[1:-1, 1:-1].set(1.0)
            .reshape(1, mimg))

    # Biases padded to the rounded channel counts, pre-broadcast to 128 lanes.
    ba_b = jnp.broadcast_to(
        jnp.pad(ba.astype(jnp.float32), (0, cmid - ba.shape[0]))[:, None],
        (cmid, 128))
    bb_b = jnp.broadcast_to(
        jnp.pad(bb.astype(jnp.float32), (0, cop - bb.shape[0]))[:, None],
        (cop, 128))

    def _lane_pad(v, width):
        pad = width - v.shape[1]
        if pad == 0:
            return v
        return jnp.concatenate(
            [v, jnp.zeros((v.shape[0], pad), v.dtype)], axis=1)

    def kernel(x_ref, wa_ref, ba_ref, wb_ref, bb_ref, m_ref, o_ref):
        xw = x_ref[0]                                          # (Cin_p, lin)
        # --- conv A: single stacked-K GEMM over all taps --------------------
        opa = jnp.concatenate([xw[:, o:o + mimg] for o in offs_a], axis=0)
        ya = jnp.dot(wa_ref[...], opa, preferred_element_type=jnp.float32)
        ya = jnp.maximum(ya + ba_ref[:, 0:1], 0.0) * m_ref[...]
        # Re-pad to the flat layout (zero border/halo) for conv B's taps.
        xm = jnp.concatenate(
            [jnp.zeros((cmid, max_abs), jnp.bfloat16),
             ya.astype(jnp.bfloat16),
             jnp.zeros((cmid, lin - max_abs - mimg), jnp.bfloat16)], axis=1)
        # --- conv B ----------------------------------------------------------
        opb = jnp.concatenate([xm[:, o:o + mimg] for o in offs_b], axis=0)
        yb = jnp.dot(wb_ref[...], opb, preferred_element_type=jnp.float32)
        yb = yb + bb_ref[:, 0:1]
        if relu_b:
            yb = jnp.maximum(yb, 0.0)
        o_ref[0] = _lane_pad(yb.astype(jnp.bfloat16), lout)

    flops = 2 * n * mimg * (cmid * ka + cop * kb)
    bytes_acc = (2 * n * cipa * lin + 2 * n * cop * lout
                 + 2 * (cmid * ka + cop * kb) + 4 * 128 * (cmid + cop)
                 + 4 * mimg)
    out = pl.pallas_call(
        kernel,
        out_shape=jax.ShapeDtypeStruct((n, cop, lout), jnp.bfloat16),
        grid=(n,),
        in_specs=[
            pl.BlockSpec((1, cipa, lin), lambda i: (i, 0, 0)),   # activations
            pl.BlockSpec((cmid, ka), lambda i: (0, 0)),          # W_A stacked
            pl.BlockSpec((cmid, 128), lambda i: (0, 0)),         # bias A
            pl.BlockSpec((cop, kb), lambda i: (0, 0)),           # W_B stacked
            pl.BlockSpec((cop, 128), lambda i: (0, 0)),          # bias B
            pl.BlockSpec((1, mimg), lambda i: (0, 0)),           # border mask
        ],
        out_specs=pl.BlockSpec((1, cop, lout), lambda i: (i, 0, 0)),
        compiler_params=pltpu.CompilerParams(
            dimension_semantics=("parallel",),
            vmem_limit_bytes=32 * 1024 * 1024),
        cost_estimate=pl.CostEstimate(flops=flops, transcendentals=0,
                                      bytes_accessed=bytes_acc),
    )(xbuf, wa_flat, ba_b, wb_flat, bb_b, mask)

    out = jnp.transpose(out[:, :, :mimg], (1, 0, 2)).reshape(cop, n, hp, wp)
    return out[:, :, 1:-1, 1:-1]


# ----------------------------------------------------------------------------
# Weight packing: PyTorch-layout weights -> stacked-K tap matrices (bf16)
# ----------------------------------------------------------------------------
def _pack_conv_s1(w, wp):
    """w: (Cout, Cin, 3, 3) Conv2d, stride 1, pad 1; wp = padded grid width."""
    cout, cin = w.shape[:2]
    cop, cip = _round_up(cout, 16), _round_up(cin, 16)
    shifts, mats = [], []
    for dy in range(3):
        for dx in range(3):
            shifts.append((dy - 1) * wp + (dx - 1))
            m = jnp.zeros((cop, cip), jnp.float32)
            mats.append(m.at[:cout, :cin].set(w[:, :, dy, dx]))
    return tuple(shifts), jnp.concatenate(mats, axis=1).astype(jnp.bfloat16)


def _pack_conv_s2(w, wp):
    """Stride-2 conv over space-to-depth'd input (channels = (py,px,ci))."""
    cout, cin = w.shape[:2]
    cop, cip = _round_up(cout, 16), _round_up(4 * cin, 16)
    kmap = {(-1, 1): 0, (0, 0): 1, (0, 1): 2}      # (coarse shift, phase) -> k
    shifts, mats = [], []
    for di in (-1, 0):
        for dj in (-1, 0):
            m = jnp.zeros((cop, cip), jnp.float32)
            for py in (0, 1):
                ky = kmap.get((di, py))
                if ky is None:
                    continue
                for px in (0, 1):
                    kx = kmap.get((dj, px))
                    if kx is None:
                        continue
                    c0 = (py * 2 + px) * cin
                    m = m.at[:cout, c0:c0 + cin].set(w[:, :, ky, kx])
            shifts.append(di * wp + dj)
            mats.append(m)
    return tuple(shifts), jnp.concatenate(mats, axis=1).astype(jnp.bfloat16)


def _pack_tconv_s2(w, wp):
    """Stride-2 ConvTranspose (pad 1, out_pad 1), w: (Cin, Cout, 3, 3).
    Output phases (py,px) packed into channels (sub-pixel decomposition)."""
    cin, cout = w.shape[:2]
    cop, cip = _round_up(4 * cout, 16), _round_up(cin, 16)
    shifts, mats = [], []
    for dy in (0, 1):
        for dx in (0, 1):
            m = jnp.zeros((cop, cip), jnp.float32)
            for py in (0, 1):
                ky = py + 1 - 2 * dy
                if not 0 <= ky <= 2:
                    continue
                for px in (0, 1):
                    kx = px + 1 - 2 * dx
                    if not 0 <= kx <= 2:
                        continue
                    r0 = (py * 2 + px) * cout
                    m = m.at[r0:r0 + cout, :cin].set(w[:, :, ky, kx].T)
            shifts.append(dy * wp + dx)
            mats.append(m)
    return tuple(shifts), jnp.concatenate(mats, axis=1).astype(jnp.bfloat16)


def _space_to_depth(x):
    c, n, h, w = x.shape
    x = x.reshape(c, n, h // 2, 2, w // 2, 2)
    x = jnp.transpose(x, (3, 5, 0, 1, 2, 4))       # (py, px, C, N, H/2, W/2)
    return x.reshape(4 * c, n, h // 2, w // 2)


def _depth_to_space(y, cout):
    _, n, h, w = y.shape
    y = y[:4 * cout].reshape(2, 2, cout, n, h, w)
    y = jnp.transpose(y, (2, 3, 4, 0, 5, 1))       # (C, N, H, py, W, px)
    return y.reshape(cout, n, 2 * h, 2 * w)


# ----------------------------------------------------------------------------
# Parameters (deterministic synthetic init, PyTorch layouts) and forward pass
# ----------------------------------------------------------------------------
def init_params(key, channels):
    c0, c1, c2, c3, c4, c5 = channels
    specs = {
        "enc0_": ("conv", 3, c0),  "enc0b": ("conv", c0, c0),
        "enc1_": ("conv", c0, c1), "enc1b": ("conv", c1, c1),
        "enc2_": ("conv", c1, c2), "enc2b": ("conv", c2, c2),
        "enc3_": ("conv", c2, c3), "enc3b": ("conv", c3, c3),
        "enc4_": ("conv", c3, c4), "enc4b": ("conv", c4, c4),
        "enc5_": ("conv", c4, c5), "enc5b": ("conv", c5, c5),
        "dec5b": ("tconv", c5, c5), "dec5_": ("tconv", c5, c4),
        "dec4b": ("tconv", c4, c4), "dec4_": ("tconv", c4, c3),
        "dec3b": ("tconv", c3, c3), "dec3_": ("tconv", c3, c2),
        "dec2b": ("tconv", c2, c2), "dec2_": ("tconv", c2, c1),
        "dec1b": ("tconv", c1, c1), "dec1_": ("tconv", c1, c0),
        "dec0b": ("tconv", c0, c0), "dec0_": ("conv", c0, 3),
    }
    params = {}
    keys = jax.random.split(key, len(specs))
    for k_, (name, (kind, cin, cout)) in zip(keys, specs.items()):
        wk, bk = jax.random.split(k_)
        scale = 1.0 / math.sqrt(cin * 9)
        if kind == "conv":
            w = jax.random.normal(wk, (cout, cin, 3, 3), jnp.float32) * scale
        else:  # ConvTranspose2d weight layout
            w = jax.random.normal(wk, (cin, cout, 3, 3), jnp.float32) * scale
        b = jax.random.normal(bk, (cout,), jnp.float32) * 0.01
        params[name] = (w, b)
    return params


def forward(params, x_nchw):
    x = jnp.transpose(x_nchw, (1, 0, 2, 3)).astype(jnp.bfloat16)  # (C,N,H,W)

    def enc_pair_s1(na, nb, v):                     # conv s1 + conv s1
        wa, ba = params[na]
        wb, bb = params[nb]
        wp = v.shape[3] + 2
        sa, wfa = _pack_conv_s1(wa, wp)
        sb, wfb = _pack_conv_s1(wb, wp)
        return fused_pair(v, sa, wfa, ba, sb, wfb, bb)[:wb.shape[0]]

    def enc_pair_s2(na, nb, v):                     # conv s2 + conv s1
        wa, ba = params[na]
        wb, bb = params[nb]
        vs = _space_to_depth(v)
        wp = vs.shape[3] + 2
        sa, wfa = _pack_conv_s2(wa, wp)
        sb, wfb = _pack_conv_s1(wb, wp)
        return fused_pair(vs, sa, wfa, ba, sb, wfb, bb)[:wb.shape[0]]

    def dec_pair(na, nb, v):                        # tconv s1 + tconv s2
        wta, ba = params[na]
        wtb, bb = params[nb]
        wp = v.shape[3] + 2
        wa_conv = jnp.transpose(wta, (1, 0, 2, 3))[:, :, ::-1, ::-1]
        sa, wfa = _pack_conv_s1(wa_conv, wp)
        sb, wfb = _pack_tconv_s2(wtb, wp)
        cout = wtb.shape[1]
        out = fused_pair(v, sa, wfa, ba, sb, wfb, jnp.tile(bb, 4))
        return _depth_to_space(out, cout)

    def out_pair(na, nb, v):                        # tconv s1 + conv s1 (no act)
        wta, ba = params[na]
        wb, bb = params[nb]
        wp = v.shape[3] + 2
        wa_conv = jnp.transpose(wta, (1, 0, 2, 3))[:, :, ::-1, ::-1]
        sa, wfa = _pack_conv_s1(wa_conv, wp)
        sb, wfb = _pack_conv_s1(wb, wp)
        return fused_pair(v, sa, wfa, ba, sb, wfb, bb,
                          relu_b=False)[:wb.shape[0]]

    # Encoder
    x0 = enc_pair_s1("enc0_", "enc0b", x)
    x1 = enc_pair_s2("enc1_", "enc1b", x0)
    x2 = enc_pair_s2("enc2_", "enc2b", x1)
    x3 = enc_pair_s2("enc3_", "enc3b", x2)
    x4 = enc_pair_s2("enc4_", "enc4b", x3)
    x5 = enc_pair_s2("enc5_", "enc5b", x4)

    # Decoder with additive skips (skip added after the pair, as in reference)
    y4 = x4 + dec_pair("dec5b", "dec5_", x5)
    y3 = x3 + dec_pair("dec4b", "dec4_", y4)
    y2 = x2 + dec_pair("dec3b", "dec3_", y3)
    y1 = x1 + dec_pair("dec2b", "dec2_", y2)
    y0 = x0 + dec_pair("dec1b", "dec1_", y1)

    # Output head: TransposeConvBlock + OutputBlock (plain conv, no activation)
    y = out_pair("dec0b", "dec0_", y0)
    return jnp.transpose(y, (1, 0, 2, 3)).astype(jnp.float32)  # -> NCHW f32


if __name__ == "__main__":
    # 5 stride-2 levels => spatial must be divisible by 32; keep it small.
    N, H, W = 2, 32, 32
    channels = (4, 8, 8, 16, 16, 16)

    key = jax.random.PRNGKey(0)
    x = jax.random.normal(key, (N, 3, H, W), jnp.float32)   # NCHW like PyTorch
    params = init_params(jax.random.PRNGKey(1), channels)

    fwd = jax.jit(forward)
    y = jax.block_until_ready(fwd(params, x))
    assert y.shape == (N, 3, H, W), y.shape
    assert bool(jnp.all(jnp.isfinite(y)))
    print("KERNEL_OK")
</pallas_src>

<mosaic_0001>
module attributes {stable_mosaic.version = 11 : i64} {
  func.func @kernel(%arg0: i32, %arg1: memref<1x16x1280xbf16, #tpu.memory_space<vmem>>, %arg2: memref<16x144xbf16, #tpu.memory_space<vmem>>, %arg3: memref<16x128xf32, #tpu.memory_space<vmem>>, %arg4: memref<16x144xbf16, #tpu.memory_space<vmem>>, %arg5: memref<16x128xf32, #tpu.memory_space<vmem>>, %arg6: memref<1x1156xf32, #tpu.memory_space<vmem>>, %arg7: memref<1x16x1280xbf16, #tpu.memory_space<vmem>>) attributes {dimension_semantics = [#tpu.dimension_semantics<parallel>], iteration_bounds = array<i64: 2>, scalar_prefetch = 0 : i64, scratch_operands = 0 : i64, tpu.core_type = #tpu.core_type<tc>, window_params = [{transform_indices = @transform_0, window_bounds = array<i64: 1, 16, 1280>}, {pipeline_mode = #tpu.pipeline_mode<synchronous>, transform_indices = @transform_1, window_bounds = array<i64: 16, 144>}, {pipeline_mode = #tpu.pipeline_mode<synchronous>, transform_indices = @transform_2, window_bounds = array<i64: 16, 128>}, {pipeline_mode = #tpu.pipeline_mode<synchronous>, transform_indices = @transform_3, window_bounds = array<i64: 16, 144>}, {pipeline_mode = #tpu.pipeline_mode<synchronous>, transform_indices = @transform_4, window_bounds = array<i64: 16, 128>}, {pipeline_mode = #tpu.pipeline_mode<synchronous>, transform_indices = @transform_5, window_bounds = array<i64: 1, 1156>}, {transform_indices = @transform_6, window_bounds = array<i64: 1, 16, 1280>}]} {
    %c0 = arith.constant 0 : index
    %c0_0 = arith.constant 0 : index
    %c0_1 = arith.constant 0 : index
    %0 = vector.load %arg1[%c0, %c0_0, %c0_1] : memref<1x16x1280xbf16, #tpu.memory_space<vmem>>, vector<1x16x1280xbf16>
    %1 = vector.shape_cast %0 : vector<1x16x1280xbf16> to vector<16x1280xbf16>
    %2 = vector.extract_strided_slice %1 {offsets = [0, 0], sizes = [16, 1156], strides = [1, 1]} : vector<16x1280xbf16> to vector<16x1156xbf16>
    %3 = vector.extract_strided_slice %1 {offsets = [0, 1], sizes = [16, 1156], strides = [1, 1]} : vector<16x1280xbf16> to vector<16x1156xbf16>
    %4 = vector.extract_strided_slice %1 {offsets = [0, 2], sizes = [16, 1156], strides = [1, 1]} : vector<16x1280xbf16> to vector<16x1156xbf16>
    %5 = vector.extract_strided_slice %1 {offsets = [0, 34], sizes = [16, 1156], strides = [1, 1]} : vector<16x1280xbf16> to vector<16x1156xbf16>
    %6 = vector.extract_strided_slice %1 {offsets = [0, 35], sizes = [16, 1156], strides = [1, 1]} : vector<16x1280xbf16> to vector<16x1156xbf16>
    %7 = vector.extract_strided_slice %1 {offsets = [0, 36], sizes = [16, 1156], strides = [1, 1]} : vector<16x1280xbf16> to vector<16x1156xbf16>
    %8 = vector.extract_strided_slice %1 {offsets = [0, 68], sizes = [16, 1156], strides = [1, 1]} : vector<16x1280xbf16> to vector<16x1156xbf16>
    %9 = vector.extract_strided_slice %1 {offsets = [0, 69], sizes = [16, 1156], strides = [1, 1]} : vector<16x1280xbf16> to vector<16x1156xbf16>
    %10 = vector.extract_strided_slice %1 {offsets = [0, 70], sizes = [16, 1156], strides = [1, 1]} : vector<16x1280xbf16> to vector<16x1156xbf16>
    %11 = tpu.concatenate %2, %3, %4, %5, %6, %7, %8, %9, %10 in 0 : vector<16x1156xbf16>, vector<16x1156xbf16>, vector<16x1156xbf16>, vector<16x1156xbf16>, vector<16x1156xbf16>, vector<16x1156xbf16>, vector<16x1156xbf16>, vector<16x1156xbf16>, vector<16x1156xbf16> -> vector<144x1156xbf16>
    %c0_2 = arith.constant 0 : index
    %c0_3 = arith.constant 0 : index
    %12 = vector.load %arg2[%c0_2, %c0_3] : memref<16x144xbf16, #tpu.memory_space<vmem>>, vector<16x144xbf16>
    %cst = arith.constant dense<0.000000e+00> : vector<16x1156xf32>
    %13 = tpu.matmul %12, %11, %cst {dimension_numbers = #tpu.dot_dimension_numbers<[1], [0], [0], [1], [0, 0, 1, 1], [], []>} : vector<16x144xbf16>, vector<144x1156xbf16>, vector<16x1156xf32> -> vector<16x1156xf32>
    %c0_4 = arith.constant 0 : index
    %c0_5 = arith.constant 0 : index
    %14 = vector.load %arg3[%c0_4, %c0_5] : memref<16x128xf32, #tpu.memory_space<vmem>>, vector<16x1xf32>
    %15 = vector.broadcast %14 : vector<16x1xf32> to vector<16x1156xf32>
    %16 = arith.addf %13, %15 : vector<16x1156xf32>
    %cst_6 = arith.constant 0.000000e+00 : f32
    %17 = vector.broadcast %cst_6 : f32 to vector<16x1156xf32>
    %18 = arith.maximumf %16, %17 : vector<16x1156xf32>
    %c0_7 = arith.constant 0 : index
    %c0_8 = arith.constant 0 : index
    %19 = vector.load %arg6[%c0_7, %c0_8] : memref<1x1156xf32, #tpu.memory_space<vmem>>, vector<1x1156xf32>
    %20 = vector.broadcast %19 : vector<1x1156xf32> to vector<16x1156xf32>
    %21 = arith.mulf %18, %20 : vector<16x1156xf32>
    %cst_9 = arith.constant 0.000000e+00 : bf16
    %22 = vector.broadcast %cst_9 : bf16 to vector<16x35xbf16>
    %23 = arith.truncf %21 : vector<16x1156xf32> to vector<16x1156xbf16>
    %cst_10 = arith.constant 0.000000e+00 : bf16
    %24 = vector.broadcast %cst_10 : bf16 to vector<16x89xbf16>
    %25 = tpu.concatenate %22, %23, %24 in 1 : vector<16x35xbf16>, vector<16x1156xbf16>, vector<16x89xbf16> -> vector<16x1280xbf16>
    %26 = vector.extract_strided_slice %25 {offsets = [0, 0], sizes = [16, 1156], strides = [1, 1]} : vector<16x1280xbf16> to vector<16x1156xbf16>
    %27 = vector.extract_strided_slice %25 {offsets = [0, 1], sizes = [16, 1156], strides = [1, 1]} : vector<16x1280xbf16> to vector<16x1156xbf16>
    %28 = vector.extract_strided_slice %25 {offsets = [0, 2], sizes = [16, 1156], strides = [1, 1]} : vector<16x1280xbf16> to vector<16x1156xbf16>
    %29 = vector.extract_strided_slice %25 {offsets = [0, 34], sizes = [16, 1156], strides = [1, 1]} : vector<16x1280xbf16> to vector<16x1156xbf16>
    %30 = vector.extract_strided_slice %25 {offsets = [0, 35], sizes = [16, 1156], strides = [1, 1]} : vector<16x1280xbf16> to vector<16x1156xbf16>
    %31 = vector.extract_strided_slice %25 {offsets = [0, 36], sizes = [16, 1156], strides = [1, 1]} : vector<16x1280xbf16> to vector<16x1156xbf16>
    %32 = vector.extract_strided_slice %25 {offsets = [0, 68], sizes = [16, 1156], strides = [1, 1]} : vector<16x1280xbf16> to vector<16x1156xbf16>
    %33 = vector.extract_strided_slice %25 {offsets = [0, 69], sizes = [16, 1156], strides = [1, 1]} : vector<16x1280xbf16> to vector<16x1156xbf16>
    %34 = vector.extract_strided_slice %25 {offsets = [0, 70], sizes = [16, 1156], strides = [1, 1]} : vector<16x1280xbf16> to vector<16x1156xbf16>
    %35 = tpu.concatenate %26, %27, %28, %29, %30, %31, %32, %33, %34 in 0 : vector<16x1156xbf16>, vector<16x1156xbf16>, vector<16x1156xbf16>, vector<16x1156xbf16>, vector<16x1156xbf16>, vector<16x1156xbf16>, vector<16x1156xbf16>, vector<16x1156xbf16>, vector<16x1156xbf16> -> vector<144x1156xbf16>
    %c0_11 = arith.constant 0 : index
    %c0_12 = arith.constant 0 : index
    %36 = vector.load %arg4[%c0_11, %c0_12] : memref<16x144xbf16, #tpu.memory_space<vmem>>, vector<16x144xbf16>
    %cst_13 = arith.constant dense<0.000000e+00> : vector<16x1156xf32>
    %37 = tpu.matmul %36, %35, %cst_13 {dimension_numbers = #tpu.dot_dimension_numbers<[1], [0], [0], [1], [0, 0, 1, 1], [], []>} : vector<16x144xbf16>, vector<144x1156xbf16>, vector<16x1156xf32> -> vector<16x1156xf32>
    %c0_14 = arith.constant 0 : index
    %c0_15 = arith.constant 0 : index
    %38 = vector.load %arg5[%c0_14, %c0_15] : memref<16x128xf32, #tpu.memory_space<vmem>>, vector<16x1xf32>
    %39 = vector.broadcast %38 : vector<16x1xf32> to vector<16x1156xf32>
    %40 = arith.addf %37, %39 : vector<16x1156xf32>
    %cst_16 = arith.constant 0.000000e+00 : f32
    %41 = vector.broadcast %cst_16 : f32 to vector<16x1156xf32>
    %42 = arith.maximumf %40, %41 : vector<16x1156xf32>
    %43 = arith.truncf %42 : vector<16x1156xf32> to vector<16x1156xbf16>
    %cst_17 = arith.constant 0.000000e+00 : bf16
    %44 = vector.broadcast %cst_17 : bf16 to vector<16x124xbf16>
    %45 = tpu.concatenate %43, %44 in 1 : vector<16x1156xbf16>, vector<16x124xbf16> -> vector<16x1280xbf16>
    %c0_18 = arith.constant 0 : index
    %c0_19 = arith.constant 0 : index
    %c0_20 = arith.constant 0 : index
    %46 = vector.load %arg7[%c0_18, %c0_19, %c0_20] : memref<1x16x1280xbf16, #tpu.memory_space<vmem>>, vector<1x16x1280xbf16>
    %47 = vector.shape_cast %46 : vector<1x16x1280xbf16> to vector<16x1280xbf16>
    %48 = vector.shape_cast %45 : vector<16x1280xbf16> to vector<1x16x1280xbf16>
    tpu.vector_store %arg7[%c0_18, %c0_19, %c0_20], %48 {strides = array<i32>} : memref<1x16x1280xbf16, #tpu.memory_space<vmem>>, vector<1x16x1280xbf16>,
    return
  }
  func.func @transform_0(%arg0: i32) -> (i32, i32, i32) {
    %c0_i32 = arith.constant 0 : i32
    %c0_i32_0 = arith.constant 0 : i32
    %c0_i32_1 = arith.constant 0 : i32
    return %arg0, %c0_i32, %c0_i32_0 : i32, i32, i32
  }
  func.func @transform_1(%arg0: i32) -> (i32, i32) {
    %c0_i32 = arith.constant 0 : i32
    %c0_i32_0 = arith.constant 0 : i32
    %c0_i32_1 = arith.constant 0 : i32
    return %c0_i32, %c0_i32_0 : i32, i32
  }
  func.func @transform_2(%arg0: i32) -> (i32, i32) {
    %c0_i32 = arith.constant 0 : i32
    %c0_i32_0 = arith.constant 0 : i32
    %c0_i32_1 = arith.constant 0 : i32
    return %c0_i32, %c0_i32_0 : i32, i32
  }
  func.func @transform_3(%arg0: i32) -> (i32, i32) {
    %c0_i32 = arith.constant 0 : i32
    %c0_i32_0 = arith.constant 0 : i32
    %c0_i32_1 = arith.constant 0 : i32
    return %c0_i32, %c0_i32_0 : i32, i32
  }
  func.func @transform_4(%arg0: i32) -> (i32, i32) {
    %c0_i32 = arith.constant 0 : i32
    %c0_i32_0 = arith.constant 0 : i32
    %c0_i32_1 = arith.constant 0 : i32
    return %c0_i32, %c0_i32_0 : i32, i32
  }
  func.func @transform_5(%arg0: i32) -> (i32, i32) {
    %c0_i32 = arith.constant 0 : i32
    %c0_i32_0 = arith.constant 0 : i32
    %c0_i32_1 = arith.constant 0 : i32
    return %c0_i32, %c0_i32_0 : i32, i32
  }
  func.func @transform_6(%arg0: i32) -> (i32, i32, i32) {
    %c0_i32 = arith.constant 0 : i32
    %c0_i32_0 = arith.constant 0 : i32
    %c0_i32_1 = arith.constant 0 : i32
    return %arg0, %c0_i32, %c0_i32_0 : i32, i32, i32
  }
}

module attributes {stable_mosaic.version = 11 : i64} {
  func.func @kernel(%arg0: i32, %arg1: memref<1x16x384xbf16, #tpu.memory_space<vmem>>, %arg2: memref<16x64xbf16, #tpu.memory_space<vmem>>, %arg3: memref<16x128xf32, #tpu.memory_space<vmem>>, %arg4: memref<16x144xbf16, #tpu.memory_space<vmem>>, %arg5: memref<16x128xf32, #tpu.memory_space<vmem>>, %arg6: memref<1x324xf32, #tpu.memory_space<vmem>>, %arg7: memref<1x16x384xbf16, #tpu.memory_space<vmem>>) attributes {dimension_semantics = [#tpu.dimension_semantics<parallel>], iteration_bounds = array<i64: 2>, scalar_prefetch = 0 : i64, scratch_operands = 0 : i64, tpu.core_type = #tpu.core_type<tc>, window_params = [{transform_indices = @transform_0, window_bounds = array<i64: 1, 16, 384>}, {pipeline_mode = #tpu.pipeline_mode<synchronous>, transform_indices = @transform_1, window_bounds = array<i64: 16, 64>}, {pipeline_mode = #tpu.pipeline_mode<synchronous>, transform_indices = @transform_2, window_bounds = array<i64: 16, 128>}, {pipeline_mode = #tpu.pipeline_mode<synchronous>, transform_indices = @transform_3, window_bounds = array<i64: 16, 144>}, {pipeline_mode = #tpu.pipeline_mode<synchronous>, transform_indices = @transform_4, window_bounds = array<i64: 16, 128>}, {pipeline_mode = #tpu.pipeline_mode<synchronous>, transform_indices = @transform_5, window_bounds = array<i64: 1, 324>}, {transform_indices = @transform_6, window_bounds = array<i64: 1, 16, 384>}]} {
    %c0 = arith.constant 0 : index
    %c0_0 = arith.constant 0 : index
    %c0_1 = arith.constant 0 : index
    %0 = vector.load %arg1[%c0, %c0_0, %c0_1] : memref<1x16x384xbf16, #tpu.memory_space<vmem>>, vector<1x16x384xbf16>
    %1 = vector.shape_cast %0 : vector<1x16x384xbf16> to vector<16x384xbf16>
    %2 = vector.extract_strided_slice %1 {offsets = [0, 0], sizes = [16, 324], strides = [1, 1]} : vector<16x384xbf16> to vector<16x324xbf16>
    %3 = vector.extract_strided_slice %1 {offsets = [0, 1], sizes = [16, 324], strides = [1, 1]} : vector<16x384xbf16> to vector<16x324xbf16>
    %4 = vector.extract_strided_slice %1 {offsets = [0, 18], sizes = [16, 324], strides = [1, 1]} : vector<16x384xbf16> to vector<16x324xbf16>
    %5 = vector.extract_strided_slice %1 {offsets = [0, 19], sizes = [16, 324], strides = [1, 1]} : vector<16x384xbf16> to vector<16x324xbf16>
    %6 = tpu.concatenate %2, %3, %4, %5 in 0 : vector<16x324xbf16>, vector<16x324xbf16>, vector<16x324xbf16>, vector<16x324xbf16> -> vector<64x324xbf16>
    %c0_2 = arith.constant 0 : index
    %c0_3 = arith.constant 0 : index
    %7 = vector.load %arg2[%c0_2, %c0_3] : memref<16x64xbf16, #tpu.memory_space<vmem>>, vector<16x64xbf16>
    %cst = arith.constant dense<0.000000e+00> : vector<16x324xf32>
    %8 = tpu.matmul %7, %6, %cst {dimension_numbers = #tpu.dot_dimension_numbers<[1], [0], [0], [1], [0, 0, 1, 1], [], []>} : vector<16x64xbf16>, vector<64x324xbf16>, vector<16x324xf32> -> vector<16x324xf32>
    %c0_4 = arith.constant 0 : index
    %c0_5 = arith.constant 0 : index
    %9 = vector.load %arg3[%c0_4, %c0_5] : memref<16x128xf32, #tpu.memory_space<vmem>>, vector<16x1xf32>
    %10 = vector.broadcast %9 : vector<16x1xf32> to vector<16x324xf32>
    %11 = arith.addf %8, %10 : vector<16x324xf32>
    %cst_6 = arith.constant 0.000000e+00 : f32
    %12 = vector.broadcast %cst_6 : f32 to vector<16x324xf32>
    %13 = arith.maximumf %11, %12 : vector<16x324xf32>
    %c0_7 = arith.constant 0 : index
    %c0_8 = arith.constant 0 : index
    %14 = vector.load %arg6[%c0_7, %c0_8] : memref<1x324xf32, #tpu.memory_space<vmem>>, vector<1x324xf32>
    %15 = vector.broadcast %14 : vector<1x324xf32> to vector<16x324xf32>
    %16 = arith.mulf %13, %15 : vector<16x324xf32>
    %cst_9 = arith.constant 0.000000e+00 : bf16
    %17 = vector.broadcast %cst_9 : bf16 to vector<16x19xbf16>
    %18 = arith.truncf %16 : vector<16x324xf32> to vector<16x324xbf16>
    %cst_10 = arith.constant 0.000000e+00 : bf16
    %19 = vector.broadcast %cst_10 : bf16 to vector<16x41xbf16>
    %20 = tpu.concatenate %17, %18, %19 in 1 : vector<16x19xbf16>, vector<16x324xbf16>, vector<16x41xbf16> -> vector<16x384xbf16>
    %21 = vector.extract_strided_slice %20 {offsets = [0, 0], sizes = [16, 324], strides = [1, 1]} : vector<16x384xbf16> to vector<16x324xbf16>
    %22 = vector.extract_strided_slice %20 {offsets = [0, 1], sizes = [16, 324], strides = [1, 1]} : vector<16x384xbf16> to vector<16x324xbf16>
    %23 = vector.extract_strided_slice %20 {offsets = [0, 2], sizes = [16, 324], strides = [1, 1]} : vector<16x384xbf16> to vector<16x324xbf16>
    %24 = vector.extract_strided_slice %20 {offsets = [0, 18], sizes = [16, 324], strides = [1, 1]} : vector<16x384xbf16> to vector<16x324xbf16>
    %25 = vector.extract_strided_slice %20 {offsets = [0, 19], sizes = [16, 324], strides = [1, 1]} : vector<16x384xbf16> to vector<16x324xbf16>
    %26 = vector.extract_strided_slice %20 {offsets = [0, 20], sizes = [16, 324], strides = [1, 1]} : vector<16x384xbf16> to vector<16x324xbf16>
    %27 = vector.extract_strided_slice %20 {offsets = [0, 36], sizes = [16, 324], strides = [1, 1]} : vector<16x384xbf16> to vector<16x324xbf16>
    %28 = vector.extract_strided_slice %20 {offsets = [0, 37], sizes = [16, 324], strides = [1, 1]} : vector<16x384xbf16> to vector<16x324xbf16>
    %29 = vector.extract_strided_slice %20 {offsets = [0, 38], sizes = [16, 324], strides = [1, 1]} : vector<16x384xbf16> to vector<16x324xbf16>
    %30 = tpu.concatenate %21, %22, %23, %24, %25, %26, %27, %28, %29 in 0 : vector<16x324xbf16>, vector<16x324xbf16>, vector<16x324xbf16>, vector<16x324xbf16>, vector<16x324xbf16>, vector<16x324xbf16>, vector<16x324xbf16>, vector<16x324xbf16>, vector<16x324xbf16> -> vector<144x324xbf16>
    %c0_11 = arith.constant 0 : index
    %c0_12 = arith.constant 0 : index
    %31 = vector.load %arg4[%c0_11, %c0_12] : memref<16x144xbf16, #tpu.memory_space<vmem>>, vector<16x144xbf16>
    %cst_13 = arith.constant dense<0.000000e+00> : vector<16x324xf32>
    %32 = tpu.matmul %31, %30, %cst_13 {dimension_numbers = #tpu.dot_dimension_numbers<[1], [0], [0], [1], [0, 0, 1, 1], [], []>} : vector<16x144xbf16>, vector<144x324xbf16>, vector<16x324xf32> -> vector<16x324xf32>
    %c0_14 = arith.constant 0 : index
    %c0_15 = arith.constant 0 : index
    %33 = vector.load %arg5[%c0_14, %c0_15] : memref<16x128xf32, #tpu.memory_space<vmem>>, vector<16x1xf32>
    %34 = vector.broadcast %33 : vector<16x1xf32> to vector<16x324xf32>
    %35 = arith.addf %32, %34 : vector<16x324xf32>
    %cst_16 = arith.constant 0.000000e+00 : f32
    %36 = vector.broadcast %cst_16 : f32 to vector<16x324xf32>
    %37 = arith.maximumf %35, %36 : vector<16x324xf32>
    %38 = arith.truncf %37 : vector<16x324xf32> to vector<16x324xbf16>
    %cst_17 = arith.constant 0.000000e+00 : bf16
    %39 = vector.broadcast %cst_17 : bf16 to vector<16x60xbf16>
    %40 = tpu.concatenate %38, %39 in 1 : vector<16x324xbf16>, vector<16x60xbf16> -> vector<16x384xbf16>
    %c0_18 = arith.constant 0 : index
    %c0_19 = arith.constant 0 : index
    %c0_20 = arith.constant 0 : index
    %41 = vector.load %arg7[%c0_18, %c0_19, %c0_20] : memref<1x16x384xbf16, #tpu.memory_space<vmem>>, vector<1x16x384xbf16>
    %42 = vector.shape_cast %41 : vector<1x16x384xbf16> to vector<16x384xbf16>
    %43 = vector.shape_cast %40 : vector<16x384xbf16> to vector<1x16x384xbf16>
    tpu.vector_store %arg7[%c0_18, %c0_19, %c0_20], %43 {strides = array<i32>} : memref<1x16x384xbf16, #tpu.memory_space<vmem>>, vector<1x16x384xbf16>,
    return
  }
  func.func @transform_0(%arg0: i32) -> (i32, i32, i32) {
    %c0_i32 = arith.constant 0 : i32
    %c0_i32_0 = arith.constant 0 : i32
    %c0_i32_1 = arith.constant 0 : i32
    return %arg0, %c0_i32, %c0_i32_0 : i32, i32, i32
  }
  func.func @transform_1(%arg0: i32) -> (i32, i32) {
    %c0_i32 = arith.constant 0 : i32
    %c0_i32_0 = arith.constant 0 : i32
    %c0_i32_1 = arith.constant 0 : i32
    return %c0_i32, %c0_i32_0 : i32, i32
  }
  func.func @transform_2(%arg0: i32) -> (i32, i32) {
    %c0_i32 = arith.constant 0 : i32
    %c0_i32_0 = arith.constant 0 : i32
    %c0_i32_1 = arith.constant 0 : i32
    return %c0_i32, %c0_i32_0 : i32, i32
  }
  func.func @transform_3(%arg0: i32) -> (i32, i32) {
    %c0_i32 = arith.constant 0 : i32
    %c0_i32_0 = arith.constant 0 : i32
    %c0_i32_1 = arith.constant 0 : i32
    return %c0_i32, %c0_i32_0 : i32, i32
  }
  func.func @transform_4(%arg0: i32) -> (i32, i32) {
    %c0_i32 = arith.constant 0 : i32
    %c0_i32_0 = arith.constant 0 : i32
    %c0_i32_1 = arith.constant 0 : i32
    return %c0_i32, %c0_i32_0 : i32, i32
  }
  func.func @transform_5(%arg0: i32) -> (i32, i32) {
    %c0_i32 = arith.constant 0 : i32
    %c0_i32_0 = arith.constant 0 : i32
    %c0_i32_1 = arith.constant 0 : i32
    return %c0_i32, %c0_i32_0 : i32, i32
  }
  func.func @transform_6(%arg0: i32) -> (i32, i32, i32) {
    %c0_i32 = arith.constant 0 : i32
    %c0_i32_0 = arith.constant 0 : i32
    %c0_i32_1 = arith.constant 0 : i32
    return %arg0, %c0_i32, %c0_i32_0 : i32, i32, i32
  }
}

module attributes {stable_mosaic.version = 11 : i64} {
  func.func @kernel(%arg0: i32, %arg1: memref<1x32x128xbf16, #tpu.memory_space<vmem>>, %arg2: memref<16x128xbf16, #tpu.memory_space<vmem>>, %arg3: memref<16x128xf32, #tpu.memory_space<vmem>>, %arg4: memref<16x144xbf16, #tpu.memory_space<vmem>>, %arg5: memref<16x128xf32, #tpu.memory_space<vmem>>, %arg6: memref<1x100xf32, #tpu.memory_space<vmem>>, %arg7: memref<1x16x128xbf16, #tpu.memory_space<vmem>>) attributes {dimension_semantics = [#tpu.dimension_semantics<parallel>], iteration_bounds = array<i64: 2>, scalar_prefetch = 0 : i64, scratch_operands = 0 : i64, tpu.core_type = #tpu.core_type<tc>, window_params = [{transform_indices = @transform_0, window_bounds = array<i64: 1, 32, 128>}, {pipeline_mode = #tpu.pipeline_mode<synchronous>, transform_indices = @transform_1, window_bounds = array<i64: 16, 128>}, {pipeline_mode = #tpu.pipeline_mode<synchronous>, transform_indices = @transform_2, window_bounds = array<i64: 16, 128>}, {pipeline_mode = #tpu.pipeline_mode<synchronous>, transform_indices = @transform_3, window_bounds = array<i64: 16, 144>}, {pipeline_mode = #tpu.pipeline_mode<synchronous>, transform_indices = @transform_4, window_bounds = array<i64: 16, 128>}, {pipeline_mode = #tpu.pipeline_mode<synchronous>, transform_indices = @transform_5, window_bounds = array<i64: 1, 100>}, {transform_indices = @transform_6, window_bounds = array<i64: 1, 16, 128>}]} {
    %c0 = arith.constant 0 : index
    %c0_0 = arith.constant 0 : index
    %c0_1 = arith.constant 0 : index
    %0 = vector.load %arg1[%c0, %c0_0, %c0_1] : memref<1x32x128xbf16, #tpu.memory_space<vmem>>, vector<1x32x128xbf16>
    %1 = vector.shape_cast %0 : vector<1x32x128xbf16> to vector<32x128xbf16>
    %2 = vector.extract_strided_slice %1 {offsets = [0, 0], sizes = [32, 100], strides = [1, 1]} : vector<32x128xbf16> to vector<32x100xbf16>
    %3 = vector.extract_strided_slice %1 {offsets = [0, 1], sizes = [32, 100], strides = [1, 1]} : vector<32x128xbf16> to vector<32x100xbf16>
    %4 = vector.extract_strided_slice %1 {offsets = [0, 10], sizes = [32, 100], strides = [1, 1]} : vector<32x128xbf16> to vector<32x100xbf16>
    %5 = vector.extract_strided_slice %1 {offsets = [0, 11], sizes = [32, 100], strides = [1, 1]} : vector<32x128xbf16> to vector<32x100xbf16>
    %6 = tpu.concatenate %2, %3, %4, %5 in 0 : vector<32x100xbf16>, vector<32x100xbf16>, vector<32x100xbf16>, vector<32x100xbf16> -> vector<128x100xbf16>
    %c0_2 = arith.constant 0 : index
    %c0_3 = arith.constant 0 : index
    %7 = vector.load %arg2[%c0_2, %c0_3] : memref<16x128xbf16, #tpu.memory_space<vmem>>, vector<16x128xbf16>
    %cst = arith.constant dense<0.000000e+00> : vector<16x100xf32>
    %8 = tpu.matmul %7, %6, %cst {dimension_numbers = #tpu.dot_dimension_numbers<[1], [0], [0], [1], [0, 0, 1, 1], [], []>} : vector<16x128xbf16>, vector<128x100xbf16>, vector<16x100xf32> -> vector<16x100xf32>
    %c0_4 = arith.constant 0 : index
    %c0_5 = arith.constant 0 : index
    %9 = vector.load %arg3[%c0_4, %c0_5] : memref<16x128xf32, #tpu.memory_space<vmem>>, vector<16x1xf32>
    %10 = vector.broadcast %9 : vector<16x1xf32> to vector<16x100xf32>
    %11 = arith.addf %8, %10 : vector<16x100xf32>
    %cst_6 = arith.constant 0.000000e+00 : f32
    %12 = vector.broadcast %cst_6 : f32 to vector<16x100xf32>
    %13 = arith.maximumf %11, %12 : vector<16x100xf32>
    %c0_7 = arith.constant 0 : index
    %c0_8 = arith.constant 0 : index
    %14 = vector.load %arg6[%c0_7, %c0_8] : memref<1x100xf32, #tpu.memory_space<vmem>>, vector<1x100xf32>
    %15 = vector.broadcast %14 : vector<1x100xf32> to vector<16x100xf32>
    %16 = arith.mulf %13, %15 : vector<16x100xf32>
    %cst_9 = arith.constant 0.000000e+00 : bf16
    %17 = vector.broadcast %cst_9 : bf16 to vector<16x11xbf16>
    %18 = arith.truncf %16 : vector<16x100xf32> to vector<16x100xbf16>
    %cst_10 = arith.constant 0.000000e+00 : bf16
    %19 = vector.broadcast %cst_10 : bf16 to vector<16x17xbf16>
    %20 = tpu.concatenate %17, %18, %19 in 1 : vector<16x11xbf16>, vector<16x100xbf16>, vector<16x17xbf16> -> vector<16x128xbf16>
    %21 = vector.extract_strided_slice %20 {offsets = [0, 0], sizes = [16, 100], strides = [1, 1]} : vector<16x128xbf16> to vector<16x100xbf16>
    %22 = vector.extract_strided_slice %20 {offsets = [0, 1], sizes = [16, 100], strides = [1, 1]} : vector<16x128xbf16> to vector<16x100xbf16>
    %23 = vector.extract_strided_slice %20 {offsets = [0, 2], sizes = [16, 100], strides = [1, 1]} : vector<16x128xbf16> to vector<16x100xbf16>
    %24 = vector.extract_strided_slice %20 {offsets = [0, 10], sizes = [16, 100], strides = [1, 1]} : vector<16x128xbf16> to vector<16x100xbf16>
    %25 = vector.extract_strided_slice %20 {offsets = [0, 11], sizes = [16, 100], strides = [1, 1]} : vector<16x128xbf16> to vector<16x100xbf16>
    %26 = vector.extract_strided_slice %20 {offsets = [0, 12], sizes = [16, 100], strides = [1, 1]} : vector<16x128xbf16> to vector<16x100xbf16>
    %27 = vector.extract_strided_slice %20 {offsets = [0, 20], sizes = [16, 100], strides = [1, 1]} : vector<16x128xbf16> to vector<16x100xbf16>
    %28 = vector.extract_strided_slice %20 {offsets = [0, 21], sizes = [16, 100], strides = [1, 1]} : vector<16x128xbf16> to vector<16x100xbf16>
    %29 = vector.extract_strided_slice %20 {offsets = [0, 22], sizes = [16, 100], strides = [1, 1]} : vector<16x128xbf16> to vector<16x100xbf16>
    %30 = tpu.concatenate %21, %22, %23, %24, %25, %26, %27, %28, %29 in 0 : vector<16x100xbf16>, vector<16x100xbf16>, vector<16x100xbf16>, vector<16x100xbf16>, vector<16x100xbf16>, vector<16x100xbf16>, vector<16x100xbf16>, vector<16x100xbf16>, vector<16x100xbf16> -> vector<144x100xbf16>
    %c0_11 = arith.constant 0 : index
    %c0_12 = arith.constant 0 : index
    %31 = vector.load %arg4[%c0_11, %c0_12] : memref<16x144xbf16, #tpu.memory_space<vmem>>, vector<16x144xbf16>
    %cst_13 = arith.constant dense<0.000000e+00> : vector<16x100xf32>
    %32 = tpu.matmul %31, %30, %cst_13 {dimension_numbers = #tpu.dot_dimension_numbers<[1], [0], [0], [1], [0, 0, 1, 1], [], []>} : vector<16x144xbf16>, vector<144x100xbf16>, vector<16x100xf32> -> vector<16x100xf32>
    %c0_14 = arith.constant 0 : index
    %c0_15 = arith.constant 0 : index
    %33 = vector.load %arg5[%c0_14, %c0_15] : memref<16x128xf32, #tpu.memory_space<vmem>>, vector<16x1xf32>
    %34 = vector.broadcast %33 : vector<16x1xf32> to vector<16x100xf32>
    %35 = arith.addf %32, %34 : vector<16x100xf32>
    %cst_16 = arith.constant 0.000000e+00 : f32
    %36 = vector.broadcast %cst_16 : f32 to vector<16x100xf32>
    %37 = arith.maximumf %35, %36 : vector<16x100xf32>
    %38 = arith.truncf %37 : vector<16x100xf32> to vector<16x100xbf16>
    %cst_17 = arith.constant 0.000000e+00 : bf16
    %39 = vector.broadcast %cst_17 : bf16 to vector<16x28xbf16>
    %40 = tpu.concatenate %38, %39 in 1 : vector<16x100xbf16>, vector<16x28xbf16> -> vector<16x128xbf16>
    %c0_18 = arith.constant 0 : index
    %c0_19 = arith.constant 0 : index
    %c0_20 = arith.constant 0 : index
    %41 = vector.load %arg7[%c0_18, %c0_19, %c0_20] : memref<1x16x128xbf16, #tpu.memory_space<vmem>>, vector<1x16x128xbf16>
    %42 = vector.shape_cast %41 : vector<1x16x128xbf16> to vector<16x128xbf16>
    %43 = vector.shape_cast %40 : vector<16x128xbf16> to vector<1x16x128xbf16>
    tpu.vector_store %arg7[%c0_18, %c0_19, %c0_20], %43 {strides = array<i32>} : memref<1x16x128xbf16, #tpu.memory_space<vmem>>, vector<1x16x128xbf16>,
    return
  }
  func.func @transform_0(%arg0: i32) -> (i32, i32, i32) {
    %c0_i32 = arith.constant 0 : i32
    %c0_i32_0 = arith.constant 0 : i32
    %c0_i32_1 = arith.constant 0 : i32
    return %arg0, %c0_i32, %c0_i32_0 : i32, i32, i32
  }
  func.func @transform_1(%arg0: i32) -> (i32, i32) {
    %c0_i32 = arith.constant 0 : i32
    %c0_i32_0 = arith.constant 0 : i32
    %c0_i32_1 = arith.constant 0 : i32
    return %c0_i32, %c0_i32_0 : i32, i32
  }
  func.func @transform_2(%arg0: i32) -> (i32, i32) {
    %c0_i32 = arith.constant 0 : i32
    %c0_i32_0 = arith.constant 0 : i32
    %c0_i32_1 = arith.constant 0 : i32
    return %c0_i32, %c0_i32_0 : i32, i32
  }
  func.func @transform_3(%arg0: i32) -> (i32, i32) {
    %c0_i32 = arith.constant 0 : i32
    %c0_i32_0 = arith.constant 0 : i32
    %c0_i32_1 = arith.constant 0 : i32
    return %c0_i32, %c0_i32_0 : i32, i32
  }
  func.func @transform_4(%arg0: i32) -> (i32, i32) {
    %c0_i32 = arith.constant 0 : i32
    %c0_i32_0 = arith.constant 0 : i32
    %c0_i32_1 = arith.constant 0 : i32
    return %c0_i32, %c0_i32_0 : i32, i32
  }
  func.func @transform_5(%arg0: i32) -> (i32, i32) {
    %c0_i32 = arith.constant 0 : i32
    %c0_i32_0 = arith.constant 0 : i32
    %c0_i32_1 = arith.constant 0 : i32
    return %c0_i32, %c0_i32_0 : i32, i32
  }
  func.func @transform_6(%arg0: i32) -> (i32, i32, i32) {
    %c0_i32 = arith.constant 0 : i32
    %c0_i32_0 = arith.constant 0 : i32
    %c0_i32_1 = arith.constant 0 : i32
    return %arg0, %c0_i32, %c0_i32_0 : i32, i32, i32
  }
}

module attributes {stable_mosaic.version = 11 : i64} {
  func.func @kernel(%arg0: i32, %arg1: memref<1x32x128xbf16, #tpu.memory_space<vmem>>, %arg2: memref<16x128xbf16, #tpu.memory_space<vmem>>, %arg3: memref<16x128xf32, #tpu.memory_space<vmem>>, %arg4: memref<16x144xbf16, #tpu.memory_space<vmem>>, %arg5: memref<16x128xf32, #tpu.memory_space<vmem>>, %arg6: memref<1x36xf32, #tpu.memory_space<vmem>>, %arg7: memref<1x16x128xbf16, #tpu.memory_space<vmem>>) attributes {dimension_semantics = [#tpu.dimension_semantics<parallel>], iteration_bounds = array<i64: 2>, scalar_prefetch = 0 : i64, scratch_operands = 0 : i64, tpu.core_type = #tpu.core_type<tc>, window_params = [{transform_indices = @transform_0, window_bounds = array<i64: 1, 32, 128>}, {pipeline_mode = #tpu.pipeline_mode<synchronous>, transform_indices = @transform_1, window_bounds = array<i64: 16, 128>}, {pipeline_mode = #tpu.pipeline_mode<synchronous>, transform_indices = @transform_2, window_bounds = array<i64: 16, 128>}, {pipeline_mode = #tpu.pipeline_mode<synchronous>, transform_indices = @transform_3, window_bounds = array<i64: 16, 144>}, {pipeline_mode = #tpu.pipeline_mode<synchronous>, transform_indices = @transform_4, window_bounds = array<i64: 16, 128>}, {pipeline_mode = #tpu.pipeline_mode<synchronous>, transform_indices = @transform_5, window_bounds = array<i64: 1, 36>}, {transform_indices = @transform_6, window_bounds = array<i64: 1, 16, 128>}]} {
    %c0 = arith.constant 0 : index
    %c0_0 = arith.constant 0 : index
    %c0_1 = arith.constant 0 : index
    %0 = vector.load %arg1[%c0, %c0_0, %c0_1] : memref<1x32x128xbf16, #tpu.memory_space<vmem>>, vector<1x32x128xbf16>
    %1 = vector.shape_cast %0 : vector<1x32x128xbf16> to vector<32x128xbf16>
    %2 = vector.extract_strided_slice %1 {offsets = [0, 0], sizes = [32, 36], strides = [1, 1]} : vector<32x128xbf16> to vector<32x36xbf16>
    %3 = vector.extract_strided_slice %1 {offsets = [0, 1], sizes = [32, 36], strides = [1, 1]} : vector<32x128xbf16> to vector<32x36xbf16>
    %4 = vector.extract_strided_slice %1 {offsets = [0, 6], sizes = [32, 36], strides = [1, 1]} : vector<32x128xbf16> to vector<32x36xbf16>
    %5 = vector.extract_strided_slice %1 {offsets = [0, 7], sizes = [32, 36], strides = [1, 1]} : vector<32x128xbf16> to vector<32x36xbf16>
    %6 = tpu.concatenate %2, %3, %4, %5 in 0 : vector<32x36xbf16>, vector<32x36xbf16>, vector<32x36xbf16>, vector<32x36xbf16> -> vector<128x36xbf16>
    %c0_2 = arith.constant 0 : index
    %c0_3 = arith.constant 0 : index
    %7 = vector.load %arg2[%c0_2, %c0_3] : memref<16x128xbf16, #tpu.memory_space<vmem>>, vector<16x128xbf16>
    %cst = arith.constant dense<0.000000e+00> : vector<16x36xf32>
    %8 = tpu.matmul %7, %6, %cst {dimension_numbers = #tpu.dot_dimension_numbers<[1], [0], [0], [1], [0, 0, 1, 1], [], []>} : vector<16x128xbf16>, vector<128x36xbf16>, vector<16x36xf32> -> vector<16x36xf32>
    %c0_4 = arith.constant 0 : index
    %c0_5 = arith.constant 0 : index
    %9 = vector.load %arg3[%c0_4, %c0_5] : memref<16x128xf32, #tpu.memory_space<vmem>>, vector<16x1xf32>
    %10 = vector.broadcast %9 : vector<16x1xf32> to vector<16x36xf32>
    %11 = arith.addf %8, %10 : vector<16x36xf32>
    %cst_6 = arith.constant 0.000000e+00 : f32
    %12 = vector.broadcast %cst_6 : f32 to vector<16x36xf32>
    %13 = arith.maximumf %11, %12 : vector<16x36xf32>
    %c0_7 = arith.constant 0 : index
    %c0_8 = arith.constant 0 : index
    %14 = vector.load %arg6[%c0_7, %c0_8] : memref<1x36xf32, #tpu.memory_space<vmem>>, vector<1x36xf32>
    %15 = vector.broadcast %14 : vector<1x36xf32> to vector<16x36xf32>
    %16 = arith.mulf %13, %15 : vector<16x36xf32>
    %cst_9 = arith.constant 0.000000e+00 : bf16
    %17 = vector.broadcast %cst_9 : bf16 to vector<16x7xbf16>
    %18 = arith.truncf %16 : vector<16x36xf32> to vector<16x36xbf16>
    %cst_10 = arith.constant 0.000000e+00 : bf16
    %19 = vector.broadcast %cst_10 : bf16 to vector<16x85xbf16>
    %20 = tpu.concatenate %17, %18, %19 in 1 : vector<16x7xbf16>, vector<16x36xbf16>, vector<16x85xbf16> -> vector<16x128xbf16>
    %21 = vector.extract_strided_slice %20 {offsets = [0, 0], sizes = [16, 36], strides = [1, 1]} : vector<16x128xbf16> to vector<16x36xbf16>
    %22 = vector.extract_strided_slice %20 {offsets = [0, 1], sizes = [16, 36], strides = [1, 1]} : vector<16x128xbf16> to vector<16x36xbf16>
    %23 = vector.extract_strided_slice %20 {offsets = [0, 2], sizes = [16, 36], strides = [1, 1]} : vector<16x128xbf16> to vector<16x36xbf16>
    %24 = vector.extract_strided_slice %20 {offsets = [0, 6], sizes = [16, 36], strides = [1, 1]} : vector<16x128xbf16> to vector<16x36xbf16>
    %25 = vector.extract_strided_slice %20 {offsets = [0, 7], sizes = [16, 36], strides = [1, 1]} : vector<16x128xbf16> to vector<16x36xbf16>
    %26 = vector.extract_strided_slice %20 {offsets = [0, 8], sizes = [16, 36], strides = [1, 1]} : vector<16x128xbf16> to vector<16x36xbf16>
    %27 = vector.extract_strided_slice %20 {offsets = [0, 12], sizes = [16, 36], strides = [1, 1]} : vector<16x128xbf16> to vector<16x36xbf16>
    %28 = vector.extract_strided_slice %20 {offsets = [0, 13], sizes = [16, 36], strides = [1, 1]} : vector<16x128xbf16> to vector<16x36xbf16>
    %29 = vector.extract_strided_slice %20 {offsets = [0, 14], sizes = [16, 36], strides = [1, 1]} : vector<16x128xbf16> to vector<16x36xbf16>
    %30 = tpu.concatenate %21, %22, %23, %24, %25, %26, %27, %28, %29 in 0 : vector<16x36xbf16>, vector<16x36xbf16>, vector<16x36xbf16>, vector<16x36xbf16>, vector<16x36xbf16>, vector<16x36xbf16>, vector<16x36xbf16>, vector<16x36xbf16>, vector<16x36xbf16> -> vector<144x36xbf16>
    %c0_11 = arith.constant 0 : index
    %c0_12 = arith.constant 0 : index
    %31 = vector.load %arg4[%c0_11, %c0_12] : memref<16x144xbf16, #tpu.memory_space<vmem>>, vector<16x144xbf16>
    %cst_13 = arith.constant dense<0.000000e+00> : vector<16x36xf32>
    %32 = tpu.matmul %31, %30, %cst_13 {dimension_numbers = #tpu.dot_dimension_numbers<[1], [0], [0], [1], [0, 0, 1, 1], [], []>} : vector<16x144xbf16>, vector<144x36xbf16>, vector<16x36xf32> -> vector<16x36xf32>
    %c0_14 = arith.constant 0 : index
    %c0_15 = arith.constant 0 : index
    %33 = vector.load %arg5[%c0_14, %c0_15] : memref<16x128xf32, #tpu.memory_space<vmem>>, vector<16x1xf32>
    %34 = vector.broadcast %33 : vector<16x1xf32> to vector<16x36xf32>
    %35 = arith.addf %32, %34 : vector<16x36xf32>
    %cst_16 = arith.constant 0.000000e+00 : f32
    %36 = vector.broadcast %cst_16 : f32 to vector<16x36xf32>
    %37 = arith.maximumf %35, %36 : vector<16x36xf32>
    %38 = arith.truncf %37 : vector<16x36xf32> to vector<16x36xbf16>
    %cst_17 = arith.constant 0.000000e+00 : bf16
    %39 = vector.broadcast %cst_17 : bf16 to vector<16x92xbf16>
    %40 = tpu.concatenate %38, %39 in 1 : vector<16x36xbf16>, vector<16x92xbf16> -> vector<16x128xbf16>
    %c0_18 = arith.constant 0 : index
    %c0_19 = arith.constant 0 : index
    %c0_20 = arith.constant 0 : index
    %41 = vector.load %arg7[%c0_18, %c0_19, %c0_20] : memref<1x16x128xbf16, #tpu.memory_space<vmem>>, vector<1x16x128xbf16>
    %42 = vector.shape_cast %41 : vector<1x16x128xbf16> to vector<16x128xbf16>
    %43 = vector.shape_cast %40 : vector<16x128xbf16> to vector<1x16x128xbf16>
    tpu.vector_store %arg7[%c0_18, %c0_19, %c0_20], %43 {strides = array<i32>} : memref<1x16x128xbf16, #tpu.memory_space<vmem>>, vector<1x16x128xbf16>,
    return
  }
  func.func @transform_0(%arg0: i32) -> (i32, i32, i32) {
    %c0_i32 = arith.constant 0 : i32
    %c0_i32_0 = arith.constant 0 : i32
    %c0_i32_1 = arith.constant 0 : i32
    return %arg0, %c0_i32, %c0_i32_0 : i32, i32, i32
  }
  func.func @transform_1(%arg0: i32) -> (i32, i32) {
    %c0_i32 = arith.constant 0 : i32
    %c0_i32_0 = arith.constant 0 : i32
    %c0_i32_1 = arith.constant 0 : i32
    return %c0_i32, %c0_i32_0 : i32, i32
  }
  func.func @transform_2(%arg0: i32) -> (i32, i32) {
    %c0_i32 = arith.constant 0 : i32
    %c0_i32_0 = arith.constant 0 : i32
    %c0_i32_1 = arith.constant 0 : i32
    return %c0_i32, %c0_i32_0 : i32, i32
  }
  func.func @transform_3(%arg0: i32) -> (i32, i32) {
    %c0_i32 = arith.constant 0 : i32
    %c0_i32_0 = arith.constant 0 : i32
    %c0_i32_1 = arith.constant 0 : i32
    return %c0_i32, %c0_i32_0 : i32, i32
  }
  func.func @transform_4(%arg0: i32) -> (i32, i32) {
    %c0_i32 = arith.constant 0 : i32
    %c0_i32_0 = arith.constant 0 : i32
    %c0_i32_1 = arith.constant 0 : i32
    return %c0_i32, %c0_i32_0 : i32, i32
  }
  func.func @transform_5(%arg0: i32) -> (i32, i32) {
    %c0_i32 = arith.constant 0 : i32
    %c0_i32_0 = arith.constant 0 : i32
    %c0_i32_1 = arith.constant 0 : i32
    return %c0_i32, %c0_i32_0 : i32, i32
  }
  func.func @transform_6(%arg0: i32) -> (i32, i32, i32) {
    %c0_i32 = arith.constant 0 : i32
    %c0_i32_0 = arith.constant 0 : i32
    %c0_i32_1 = arith.constant 0 : i32
    return %arg0, %c0_i32, %c0_i32_0 : i32, i32, i32
  }
}

module attributes {stable_mosaic.version = 11 : i64} {
  func.func @kernel(%arg0: i32, %arg1: memref<1x64x128xbf16, #tpu.memory_space<vmem>>, %arg2: memref<16x256xbf16, #tpu.memory_space<vmem>>, %arg3: memref<16x128xf32, #tpu.memory_space<vmem>>, %arg4: memref<16x144xbf16, #tpu.memory_space<vmem>>, %arg5: memref<16x128xf32, #tpu.memory_space<vmem>>, %arg6: memref<1x16xf32, #tpu.memory_space<vmem>>, %arg7: memref<1x16x128xbf16, #tpu.memory_space<vmem>>) attributes {dimension_semantics = [#tpu.dimension_semantics<parallel>], iteration_bounds = array<i64: 2>, scalar_prefetch = 0 : i64, scratch_operands = 0 : i64, tpu.core_type = #tpu.core_type<tc>, window_params = [{transform_indices = @transform_0, window_bounds = array<i64: 1, 64, 128>}, {pipeline_mode = #tpu.pipeline_mode<synchronous>, transform_indices = @transform_1, window_bounds = array<i64: 16, 256>}, {pipeline_mode = #tpu.pipeline_mode<synchronous>, transform_indices = @transform_2, window_bounds = array<i64: 16, 128>}, {pipeline_mode = #tpu.pipeline_mode<synchronous>, transform_indices = @transform_3, window_bounds = array<i64: 16, 144>}, {pipeline_mode = #tpu.pipeline_mode<synchronous>, transform_indices = @transform_4, window_bounds = array<i64: 16, 128>}, {pipeline_mode = #tpu.pipeline_mode<synchronous>, transform_indices = @transform_5, window_bounds = array<i64: 1, 16>}, {transform_indices = @transform_6, window_bounds = array<i64: 1, 16, 128>}]} {
    %c0 = arith.constant 0 : index
    %c0_0 = arith.constant 0 : index
    %c0_1 = arith.constant 0 : index
    %0 = vector.load %arg1[%c0, %c0_0, %c0_1] : memref<1x64x128xbf16, #tpu.memory_space<vmem>>, vector<1x64x128xbf16>
    %1 = vector.shape_cast %0 : vector<1x64x128xbf16> to vector<64x128xbf16>
    %2 = vector.extract_strided_slice %1 {offsets = [0, 0], sizes = [64, 16], strides = [1, 1]} : vector<64x128xbf16> to vector<64x16xbf16>
    %3 = vector.extract_strided_slice %1 {offsets = [0, 1], sizes = [64, 16], strides = [1, 1]} : vector<64x128xbf16> to vector<64x16xbf16>
    %4 = vector.extract_strided_slice %1 {offsets = [0, 4], sizes = [64, 16], strides = [1, 1]} : vector<64x128xbf16> to vector<64x16xbf16>
    %5 = vector.extract_strided_slice %1 {offsets = [0, 5], sizes = [64, 16], strides = [1, 1]} : vector<64x128xbf16> to vector<64x16xbf16>
    %6 = tpu.concatenate %2, %3, %4, %5 in 0 : vector<64x16xbf16>, vector<64x16xbf16>, vector<64x16xbf16>, vector<64x16xbf16> -> vector<256x16xbf16>
    %c0_2 = arith.constant 0 : index
    %c0_3 = arith.constant 0 : index
    %7 = vector.load %arg2[%c0_2, %c0_3] : memref<16x256xbf16, #tpu.memory_space<vmem>>, vector<16x256xbf16>
    %cst = arith.constant dense<0.000000e+00> : vector<16x16xf32>
    %8 = tpu.matmul %7, %6, %cst {dimension_numbers = #tpu.dot_dimension_numbers<[1], [0], [0], [1], [0, 0, 1, 1], [], []>} : vector<16x256xbf16>, vector<256x16xbf16>, vector<16x16xf32> -> vector<16x16xf32>
    %c0_4 = arith.constant 0 : index
    %c0_5 = arith.constant 0 : index
    %9 = vector.load %arg3[%c0_4, %c0_5] : memref<16x128xf32, #tpu.memory_space<vmem>>, vector<16x1xf32>
    %10 = vector.broadcast %9 : vector<16x1xf32> to vector<16x16xf32>
    %11 = arith.addf %8, %10 : vector<16x16xf32>
    %cst_6 = arith.constant 0.000000e+00 : f32
    %12 = vector.broadcast %cst_6 : f32 to vector<16x16xf32>
    %13 = arith.maximumf %11, %12 : vector<16x16xf32>
    %c0_7 = arith.constant 0 : index
    %c0_8 = arith.constant 0 : index
    %14 = vector.load %arg6[%c0_7, %c0_8] : memref<1x16xf32, #tpu.memory_space<vmem>>, vector<1x16xf32>
    %15 = vector.broadcast %14 : vector<1x16xf32> to vector<16x16xf32>
    %16 = arith.mulf %13, %15 : vector<16x16xf32>
    %cst_9 = arith.constant 0.000000e+00 : bf16
    %17 = vector.broadcast %cst_9 : bf16 to vector<16x5xbf16>
    %18 = arith.truncf %16 : vector<16x16xf32> to vector<16x16xbf16>
    %cst_10 = arith.constant 0.000000e+00 : bf16
    %19 = vector.broadcast %cst_10 : bf16 to vector<16x107xbf16>
    %20 = tpu.concatenate %17, %18, %19 in 1 : vector<16x5xbf16>, vector<16x16xbf16>, vector<16x107xbf16> -> vector<16x128xbf16>
    %21 = vector.extract_strided_slice %20 {offsets = [0, 0], sizes = [16, 16], strides = [1, 1]} : vector<16x128xbf16> to vector<16x16xbf16>
    %22 = vector.extract_strided_slice %20 {offsets = [0, 1], sizes = [16, 16], strides = [1, 1]} : vector<16x128xbf16> to vector<16x16xbf16>
    %23 = vector.extract_strided_slice %20 {offsets = [0, 2], sizes = [16, 16], strides = [1, 1]} : vector<16x128xbf16> to vector<16x16xbf16>
    %24 = vector.extract_strided_slice %20 {offsets = [0, 4], sizes = [16, 16], strides = [1, 1]} : vector<16x128xbf16> to vector<16x16xbf16>
    %25 = vector.extract_strided_slice %20 {offsets = [0, 5], sizes = [16, 16], strides = [1, 1]} : vector<16x128xbf16> to vector<16x16xbf16>
    %26 = vector.extract_strided_slice %20 {offsets = [0, 6], sizes = [16, 16], strides = [1, 1]} : vector<16x128xbf16> to vector<16x16xbf16>
    %27 = vector.extract_strided_slice %20 {offsets = [0, 8], sizes = [16, 16], strides = [1, 1]} : vector<16x128xbf16> to vector<16x16xbf16>
    %28 = vector.extract_strided_slice %20 {offsets = [0, 9], sizes = [16, 16], strides = [1, 1]} : vector<16x128xbf16> to vector<16x16xbf16>
    %29 = vector.extract_strided_slice %20 {offsets = [0, 10], sizes = [16, 16], strides = [1, 1]} : vector<16x128xbf16> to vector<16x16xbf16>
    %30 = tpu.concatenate %21, %22, %23, %24, %25, %26, %27, %28, %29 in 0 : vector<16x16xbf16>, vector<16x16xbf16>, vector<16x16xbf16>, vector<16x16xbf16>, vector<16x16xbf16>, vector<16x16xbf16>, vector<16x16xbf16>, vector<16x16xbf16>, vector<16x16xbf16> -> vector<144x16xbf16>
    %c0_11 = arith.constant 0 : index
    %c0_12 = arith.constant 0 : index
    %31 = vector.load %arg4[%c0_11, %c0_12] : memref<16x144xbf16, #tpu.memory_space<vmem>>, vector<16x144xbf16>
    %cst_13 = arith.constant dense<0.000000e+00> : vector<16x16xf32>
    %32 = tpu.matmul %31, %30, %cst_13 {dimension_numbers = #tpu.dot_dimension_numbers<[1], [0], [0], [1], [0, 0, 1, 1], [], []>} : vector<16x144xbf16>, vector<144x16xbf16>, vector<16x16xf32> -> vector<16x16xf32>
    %c0_14 = arith.constant 0 : index
    %c0_15 = arith.constant 0 : index
    %33 = vector.load %arg5[%c0_14, %c0_15] : memref<16x128xf32, #tpu.memory_space<vmem>>, vector<16x1xf32>
    %34 = vector.broadcast %33 : vector<16x1xf32> to vector<16x16xf32>
    %35 = arith.addf %32, %34 : vector<16x16xf32>
    %cst_16 = arith.constant 0.000000e+00 : f32
    %36 = vector.broadcast %cst_16 : f32 to vector<16x16xf32>
    %37 = arith.maximumf %35, %36 : vector<16x16xf32>
    %38 = arith.truncf %37 : vector<16x16xf32> to vector<16x16xbf16>
    %cst_17 = arith.constant 0.000000e+00 : bf16
    %39 = vector.broadcast %cst_17 : bf16 to vector<16x112xbf16>
    %40 = tpu.concatenate %38, %39 in 1 : vector<16x16xbf16>, vector<16x112xbf16> -> vector<16x128xbf16>
    %c0_18 = arith.constant 0 : index
    %c0_19 = arith.constant 0 : index
    %c0_20 = arith.constant 0 : index
    %41 = vector.load %arg7[%c0_18, %c0_19, %c0_20] : memref<1x16x128xbf16, #tpu.memory_space<vmem>>, vector<1x16x128xbf16>
    %42 = vector.shape_cast %41 : vector<1x16x128xbf16> to vector<16x128xbf16>
    %43 = vector.shape_cast %40 : vector<16x128xbf16> to vector<1x16x128xbf16>
    tpu.vector_store %arg7[%c0_18, %c0_19, %c0_20], %43 {strides = array<i32>} : memref<1x16x128xbf16, #tpu.memory_space<vmem>>, vector<1x16x128xbf16>,
    return
  }
  func.func @transform_0(%arg0: i32) -> (i32, i32, i32) {
    %c0_i32 = arith.constant 0 : i32
    %c0_i32_0 = arith.constant 0 : i32
    %c0_i32_1 = arith.constant 0 : i32
    return %arg0, %c0_i32, %c0_i32_0 : i32, i32, i32
  }
  func.func @transform_1(%arg0: i32) -> (i32, i32) {
    %c0_i32 = arith.constant 0 : i32
    %c0_i32_0 = arith.constant 0 : i32
    %c0_i32_1 = arith.constant 0 : i32
    return %c0_i32, %c0_i32_0 : i32, i32
  }
  func.func @transform_2(%arg0: i32) -> (i32, i32) {
    %c0_i32 = arith.constant 0 : i32
    %c0_i32_0 = arith.constant 0 : i32
    %c0_i32_1 = arith.constant 0 : i32
    return %c0_i32, %c0_i32_0 : i32, i32
  }
  func.func @transform_3(%arg0: i32) -> (i32, i32) {
    %c0_i32 = arith.constant 0 : i32
    %c0_i32_0 = arith.constant 0 : i32
    %c0_i32_1 = arith.constant 0 : i32
    return %c0_i32, %c0_i32_0 : i32, i32
  }
  func.func @transform_4(%arg0: i32) -> (i32, i32) {
    %c0_i32 = arith.constant 0 : i32
    %c0_i32_0 = arith.constant 0 : i32
    %c0_i32_1 = arith.constant 0 : i32
    return %c0_i32, %c0_i32_0 : i32, i32
  }
  func.func @transform_5(%arg0: i32) -> (i32, i32) {
    %c0_i32 = arith.constant 0 : i32
    %c0_i32_0 = arith.constant 0 : i32
    %c0_i32_1 = arith.constant 0 : i32
    return %c0_i32, %c0_i32_0 : i32, i32
  }
  func.func @transform_6(%arg0: i32) -> (i32, i32, i32) {
    %c0_i32 = arith.constant 0 : i32
    %c0_i32_0 = arith.constant 0 : i32
    %c0_i32_1 = arith.constant 0 : i32
    return %arg0, %c0_i32, %c0_i32_0 : i32, i32, i32
  }
}

module attributes {stable_mosaic.version = 11 : i64} {
  func.func @kernel(%arg0: i32, %arg1: memref<1x64x128xbf16, #tpu.memory_space<vmem>>, %arg2: memref<16x256xbf16, #tpu.memory_space<vmem>>, %arg3: memref<16x128xf32, #tpu.memory_space<vmem>>, %arg4: memref<16x144xbf16, #tpu.memory_space<vmem>>, %arg5: memref<16x128xf32, #tpu.memory_space<vmem>>, %arg6: memref<1x9xf32, #tpu.memory_space<vmem>>, %arg7: memref<1x16x128xbf16, #tpu.memory_space<vmem>>) attributes {dimension_semantics = [#tpu.dimension_semantics<parallel>], iteration_bounds = array<i64: 2>, scalar_prefetch = 0 : i64, scratch_operands = 0 : i64, tpu.core_type = #tpu.core_type<tc>, window_params = [{transform_indices = @transform_0, window_bounds = array<i64: 1, 64, 128>}, {pipeline_mode = #tpu.pipeline_mode<synchronous>, transform_indices = @transform_1, window_bounds = array<i64: 16, 256>}, {pipeline_mode = #tpu.pipeline_mode<synchronous>, transform_indices = @transform_2, window_bounds = array<i64: 16, 128>}, {pipeline_mode = #tpu.pipeline_mode<synchronous>, transform_indices = @transform_3, window_bounds = array<i64: 16, 144>}, {pipeline_mode = #tpu.pipeline_mode<synchronous>, transform_indices = @transform_4, window_bounds = array<i64: 16, 128>}, {pipeline_mode = #tpu.pipeline_mode<synchronous>, transform_indices = @transform_5, window_bounds = array<i64: 1, 9>}, {transform_indices = @transform_6, window_bounds = array<i64: 1, 16, 128>}]} {
    %c0 = arith.constant 0 : index
    %c0_0 = arith.constant 0 : index
    %c0_1 = arith.constant 0 : index
    %0 = vector.load %arg1[%c0, %c0_0, %c0_1] : memref<1x64x128xbf16, #tpu.memory_space<vmem>>, vector<1x64x128xbf16>
    %1 = vector.shape_cast %0 : vector<1x64x128xbf16> to vector<64x128xbf16>
    %2 = vector.extract_strided_slice %1 {offsets = [0, 0], sizes = [64, 9], strides = [1, 1]} : vector<64x128xbf16> to vector<64x9xbf16>
    %3 = vector.extract_strided_slice %1 {offsets = [0, 1], sizes = [64, 9], strides = [1, 1]} : vector<64x128xbf16> to vector<64x9xbf16>
    %4 = vector.extract_strided_slice %1 {offsets = [0, 3], sizes = [64, 9], strides = [1, 1]} : vector<64x128xbf16> to vector<64x9xbf16>
    %5 = vector.extract_strided_slice %1 {offsets = [0, 4], sizes = [64, 9], strides = [1, 1]} : vector<64x128xbf16> to vector<64x9xbf16>
    %6 = tpu.concatenate %2, %3, %4, %5 in 0 : vector<64x9xbf16>, vector<64x9xbf16>, vector<64x9xbf16>, vector<64x9xbf16> -> vector<256x9xbf16>
    %c0_2 = arith.constant 0 : index
    %c0_3 = arith.constant 0 : index
    %7 = vector.load %arg2[%c0_2, %c0_3] : memref<16x256xbf16, #tpu.memory_space<vmem>>, vector<16x256xbf16>
    %cst = arith.constant dense<0.000000e+00> : vector<16x9xf32>
    %8 = tpu.matmul %7, %6, %cst {dimension_numbers = #tpu.dot_dimension_numbers<[1], [0], [0], [1], [0, 0, 1, 1], [], []>} : vector<16x256xbf16>, vector<256x9xbf16>, vector<16x9xf32> -> vector<16x9xf32>
    %c0_4 = arith.constant 0 : index
    %c0_5 = arith.constant 0 : index
    %9 = vector.load %arg3[%c0_4, %c0_5] : memref<16x128xf32, #tpu.memory_space<vmem>>, vector<16x1xf32>
    %10 = vector.broadcast %9 : vector<16x1xf32> to vector<16x9xf32>
    %11 = arith.addf %8, %10 : vector<16x9xf32>
    %cst_6 = arith.constant 0.000000e+00 : f32
    %12 = vector.broadcast %cst_6 : f32 to vector<16x9xf32>
    %13 = arith.maximumf %11, %12 : vector<16x9xf32>
    %c0_7 = arith.constant 0 : index
    %c0_8 = arith.constant 0 : index
    %14 = vector.load %arg6[%c0_7, %c0_8] : memref<1x9xf32, #tpu.memory_space<vmem>>, vector<1x9xf32>
    %15 = vector.broadcast %14 : vector<1x9xf32> to vector<16x9xf32>
    %16 = arith.mulf %13, %15 : vector<16x9xf32>
    %cst_9 = arith.constant 0.000000e+00 : bf16
    %17 = vector.broadcast %cst_9 : bf16 to vector<16x4xbf16>
    %18 = arith.truncf %16 : vector<16x9xf32> to vector<16x9xbf16>
    %cst_10 = arith.constant 0.000000e+00 : bf16
    %19 = vector.broadcast %cst_10 : bf16 to vector<16x115xbf16>
    %20 = tpu.concatenate %17, %18, %19 in 1 : vector<16x4xbf16>, vector<16x9xbf16>, vector<16x115xbf16> -> vector<16x128xbf16>
    %21 = vector.extract_strided_slice %20 {offsets = [0, 0], sizes = [16, 9], strides = [1, 1]} : vector<16x128xbf16> to vector<16x9xbf16>
    %22 = vector.extract_strided_slice %20 {offsets = [0, 1], sizes = [16, 9], strides = [1, 1]} : vector<16x128xbf16> to vector<16x9xbf16>
    %23 = vector.extract_strided_slice %20 {offsets = [0, 2], sizes = [16, 9], strides = [1, 1]} : vector<16x128xbf16> to vector<16x9xbf16>
    %24 = vector.extract_strided_slice %20 {offsets = [0, 3], sizes = [16, 9], strides = [1, 1]} : vector<16x128xbf16> to vector<16x9xbf16>
    %25 = vector.extract_strided_slice %20 {offsets = [0, 4], sizes = [16, 9], strides = [1, 1]} : vector<16x128xbf16> to vector<16x9xbf16>
    %26 = vector.extract_strided_slice %20 {offsets = [0, 5], sizes = [16, 9], strides = [1, 1]} : vector<16x128xbf16> to vector<16x9xbf16>
    %27 = vector.extract_strided_slice %20 {offsets = [0, 6], sizes = [16, 9], strides = [1, 1]} : vector<16x128xbf16> to vector<16x9xbf16>
    %28 = vector.extract_strided_slice %20 {offsets = [0, 7], sizes = [16, 9], strides = [1, 1]} : vector<16x128xbf16> to vector<16x9xbf16>
    %29 = vector.extract_strided_slice %20 {offsets = [0, 8], sizes = [16, 9], strides = [1, 1]} : vector<16x128xbf16> to vector<16x9xbf16>
    %30 = tpu.concatenate %21, %22, %23, %24, %25, %26, %27, %28, %29 in 0 : vector<16x9xbf16>, vector<16x9xbf16>, vector<16x9xbf16>, vector<16x9xbf16>, vector<16x9xbf16>, vector<16x9xbf16>, vector<16x9xbf16>, vector<16x9xbf16>, vector<16x9xbf16> -> vector<144x9xbf16>
    %c0_11 = arith.constant 0 : index
    %c0_12 = arith.constant 0 : index
    %31 = vector.load %arg4[%c0_11, %c0_12] : memref<16x144xbf16, #tpu.memory_space<vmem>>, vector<16x144xbf16>
    %cst_13 = arith.constant dense<0.000000e+00> : vector<16x9xf32>
    %32 = tpu.matmul %31, %30, %cst_13 {dimension_numbers = #tpu.dot_dimension_numbers<[1], [0], [0], [1], [0, 0, 1, 1], [], []>} : vector<16x144xbf16>, vector<144x9xbf16>, vector<16x9xf32> -> vector<16x9xf32>
    %c0_14 = arith.constant 0 : index
    %c0_15 = arith.constant 0 : index
    %33 = vector.load %arg5[%c0_14, %c0_15] : memref<16x128xf32, #tpu.memory_space<vmem>>, vector<16x1xf32>
    %34 = vector.broadcast %33 : vector<16x1xf32> to vector<16x9xf32>
    %35 = arith.addf %32, %34 : vector<16x9xf32>
    %cst_16 = arith.constant 0.000000e+00 : f32
    %36 = vector.broadcast %cst_16 : f32 to vector<16x9xf32>
    %37 = arith.maximumf %35, %36 : vector<16x9xf32>
    %38 = arith.truncf %37 : vector<16x9xf32> to vector<16x9xbf16>
    %cst_17 = arith.constant 0.000000e+00 : bf16
    %39 = vector.broadcast %cst_17 : bf16 to vector<16x119xbf16>
    %40 = tpu.concatenate %38, %39 in 1 : vector<16x9xbf16>, vector<16x119xbf16> -> vector<16x128xbf16>
    %c0_18 = arith.constant 0 : index
    %c0_19 = arith.constant 0 : index
    %c0_20 = arith.constant 0 : index
    %41 = vector.load %arg7[%c0_18, %c0_19, %c0_20] : memref<1x16x128xbf16, #tpu.memory_space<vmem>>, vector<1x16x128xbf16>
    %42 = vector.shape_cast %41 : vector<1x16x128xbf16> to vector<16x128xbf16>
    %43 = vector.shape_cast %40 : vector<16x128xbf16> to vector<1x16x128xbf16>
    tpu.vector_store %arg7[%c0_18, %c0_19, %c0_20], %43 {strides = array<i32>} : memref<1x16x128xbf16, #tpu.memory_space<vmem>>, vector<1x16x128xbf16>,
    return
  }
  func.func @transform_0(%arg0: i32) -> (i32, i32, i32) {
    %c0_i32 = arith.constant 0 : i32
    %c0_i32_0 = arith.constant 0 : i32
    %c0_i32_1 = arith.constant 0 : i32
    return %arg0, %c0_i32, %c0_i32_0 : i32, i32, i32
  }
  func.func @transform_1(%arg0: i32) -> (i32, i32) {
    %c0_i32 = arith.constant 0 : i32
    %c0_i32_0 = arith.constant 0 : i32
    %c0_i32_1 = arith.constant 0 : i32
    return %c0_i32, %c0_i32_0 : i32, i32
  }
  func.func @transform_2(%arg0: i32) -> (i32, i32) {
    %c0_i32 = arith.constant 0 : i32
    %c0_i32_0 = arith.constant 0 : i32
    %c0_i32_1 = arith.constant 0 : i32
    return %c0_i32, %c0_i32_0 : i32, i32
  }
  func.func @transform_3(%arg0: i32) -> (i32, i32) {
    %c0_i32 = arith.constant 0 : i32
    %c0_i32_0 = arith.constant 0 : i32
    %c0_i32_1 = arith.constant 0 : i32
    return %c0_i32, %c0_i32_0 : i32, i32
  }
  func.func @transform_4(%arg0: i32) -> (i32, i32) {
    %c0_i32 = arith.constant 0 : i32
    %c0_i32_0 = arith.constant 0 : i32
    %c0_i32_1 = arith.constant 0 : i32
    return %c0_i32, %c0_i32_0 : i32, i32
  }
  func.func @transform_5(%arg0: i32) -> (i32, i32) {
    %c0_i32 = arith.constant 0 : i32
    %c0_i32_0 = arith.constant 0 : i32
    %c0_i32_1 = arith.constant 0 : i32
    return %c0_i32, %c0_i32_0 : i32, i32
  }
  func.func @transform_6(%arg0: i32) -> (i32, i32, i32) {
    %c0_i32 = arith.constant 0 : i32
    %c0_i32_0 = arith.constant 0 : i32
    %c0_i32_1 = arith.constant 0 : i32
    return %arg0, %c0_i32, %c0_i32_0 : i32, i32, i32
  }
}

module attributes {stable_mosaic.version = 11 : i64} {
  func.func @kernel(%arg0: i32, %arg1: memref<1x16x128xbf16, #tpu.memory_space<vmem>>, %arg2: memref<16x144xbf16, #tpu.memory_space<vmem>>, %arg3: memref<16x128xf32, #tpu.memory_space<vmem>>, %arg4: memref<64x64xbf16, #tpu.memory_space<vmem>>, %arg5: memref<64x128xf32, #tpu.memory_space<vmem>>, %arg6: memref<1x9xf32, #tpu.memory_space<vmem>>, %arg7: memref<1x64x128xbf16, #tpu.memory_space<vmem>>) attributes {dimension_semantics = [#tpu.dimension_semantics<parallel>], iteration_bounds = array<i64: 2>, scalar_prefetch = 0 : i64, scratch_operands = 0 : i64, tpu.core_type = #tpu.core_type<tc>, window_params = [{transform_indices = @transform_0, window_bounds = array<i64: 1, 16, 128>}, {pipeline_mode = #tpu.pipeline_mode<synchronous>, transform_indices = @transform_1, window_bounds = array<i64: 16, 144>}, {pipeline_mode = #tpu.pipeline_mode<synchronous>, transform_indices = @transform_2, window_bounds = array<i64: 16, 128>}, {pipeline_mode = #tpu.pipeline_mode<synchronous>, transform_indices = @transform_3, window_bounds = array<i64: 64, 64>}, {pipeline_mode = #tpu.pipeline_mode<synchronous>, transform_indices = @transform_4, window_bounds = array<i64: 64, 128>}, {pipeline_mode = #tpu.pipeline_mode<synchronous>, transform_indices = @transform_5, window_bounds = array<i64: 1, 9>}, {transform_indices = @transform_6, window_bounds = array<i64: 1, 64, 128>}]} {
    %c0 = arith.constant 0 : index
    %c0_0 = arith.constant 0 : index
    %c0_1 = arith.constant 0 : index
    %0 = vector.load %arg1[%c0, %c0_0, %c0_1] : memref<1x16x128xbf16, #tpu.memory_space<vmem>>, vector<1x16x128xbf16>
    %1 = vector.shape_cast %0 : vector<1x16x128xbf16> to vector<16x128xbf16>
    %2 = vector.extract_strided_slice %1 {offsets = [0, 0], sizes = [16, 9], strides = [1, 1]} : vector<16x128xbf16> to vector<16x9xbf16>
    %3 = vector.extract_strided_slice %1 {offsets = [0, 1], sizes = [16, 9], strides = [1, 1]} : vector<16x128xbf16> to vector<16x9xbf16>
    %4 = vector.extract_strided_slice %1 {offsets = [0, 2], sizes = [16, 9], strides = [1, 1]} : vector<16x128xbf16> to vector<16x9xbf16>
    %5 = vector.extract_strided_slice %1 {offsets = [0, 3], sizes = [16, 9], strides = [1, 1]} : vector<16x128xbf16> to vector<16x9xbf16>
    %6 = vector.extract_strided_slice %1 {offsets = [0, 4], sizes = [16, 9], strides = [1, 1]} : vector<16x128xbf16> to vector<16x9xbf16>
    %7 = vector.extract_strided_slice %1 {offsets = [0, 5], sizes = [16, 9], strides = [1, 1]} : vector<16x128xbf16> to vector<16x9xbf16>
    %8 = vector.extract_strided_slice %1 {offsets = [0, 6], sizes = [16, 9], strides = [1, 1]} : vector<16x128xbf16> to vector<16x9xbf16>
    %9 = vector.extract_strided_slice %1 {offsets = [0, 7], sizes = [16, 9], strides = [1, 1]} : vector<16x128xbf16> to vector<16x9xbf16>
    %10 = vector.extract_strided_slice %1 {offsets = [0, 8], sizes = [16, 9], strides = [1, 1]} : vector<16x128xbf16> to vector<16x9xbf16>
    %11 = tpu.concatenate %2, %3, %4, %5, %6, %7, %8, %9, %10 in 0 : vector<16x9xbf16>, vector<16x9xbf16>, vector<16x9xbf16>, vector<16x9xbf16>, vector<16x9xbf16>, vector<16x9xbf16>, vector<16x9xbf16>, vector<16x9xbf16>, vector<16x9xbf16> -> vector<144x9xbf16>
    %c0_2 = arith.constant 0 : index
    %c0_3 = arith.constant 0 : index
    %12 = vector.load %arg2[%c0_2, %c0_3] : memref<16x144xbf16, #tpu.memory_space<vmem>>, vector<16x144xbf16>
    %cst = arith.constant dense<0.000000e+00> : vector<16x9xf32>
    %13 = tpu.matmul %12, %11, %cst {dimension_numbers = #tpu.dot_dimension_numbers<[1], [0], [0], [1], [0, 0, 1, 1], [], []>} : vector<16x144xbf16>, vector<144x9xbf16>, vector<16x9xf32> -> vector<16x9xf32>
    %c0_4 = arith.constant 0 : index
    %c0_5 = arith.constant 0 : index
    %14 = vector.load %arg3[%c0_4, %c0_5] : memref<16x128xf32, #tpu.memory_space<vmem>>, vector<16x1xf32>
    %15 = vector.broadcast %14 : vector<16x1xf32> to vector<16x9xf32>
    %16 = arith.addf %13, %15 : vector<16x9xf32>
    %cst_6 = arith.constant 0.000000e+00 : f32
    %17 = vector.broadcast %cst_6 : f32 to vector<16x9xf32>
    %18 = arith.maximumf %16, %17 : vector<16x9xf32>
    %c0_7 = arith.constant 0 : index
    %c0_8 = arith.constant 0 : index
    %19 = vector.load %arg6[%c0_7, %c0_8] : memref<1x9xf32, #tpu.memory_space<vmem>>, vector<1x9xf32>
    %20 = vector.broadcast %19 : vector<1x9xf32> to vector<16x9xf32>
    %21 = arith.mulf %18, %20 : vector<16x9xf32>
    %cst_9 = arith.constant 0.000000e+00 : bf16
    %22 = vector.broadcast %cst_9 : bf16 to vector<16x4xbf16>
    %23 = arith.truncf %21 : vector<16x9xf32> to vector<16x9xbf16>
    %cst_10 = arith.constant 0.000000e+00 : bf16
    %24 = vector.broadcast %cst_10 : bf16 to vector<16x115xbf16>
    %25 = tpu.concatenate %22, %23, %24 in 1 : vector<16x4xbf16>, vector<16x9xbf16>, vector<16x115xbf16> -> vector<16x128xbf16>
    %26 = vector.extract_strided_slice %25 {offsets = [0, 4], sizes = [16, 9], strides = [1, 1]} : vector<16x128xbf16> to vector<16x9xbf16>
    %27 = vector.extract_strided_slice %25 {offsets = [0, 5], sizes = [16, 9], strides = [1, 1]} : vector<16x128xbf16> to vector<16x9xbf16>
    %28 = vector.extract_strided_slice %25 {offsets = [0, 7], sizes = [16, 9], strides = [1, 1]} : vector<16x128xbf16> to vector<16x9xbf16>
    %29 = vector.extract_strided_slice %25 {offsets = [0, 8], sizes = [16, 9], strides = [1, 1]} : vector<16x128xbf16> to vector<16x9xbf16>
    %30 = tpu.concatenate %26, %27, %28, %29 in 0 : vector<16x9xbf16>, vector<16x9xbf16>, vector<16x9xbf16>, vector<16x9xbf16> -> vector<64x9xbf16>
    %c0_11 = arith.constant 0 : index
    %c0_12 = arith.constant 0 : index
    %31 = vector.load %arg4[%c0_11, %c0_12] : memref<64x64xbf16, #tpu.memory_space<vmem>>, vector<64x64xbf16>
    %cst_13 = arith.constant dense<0.000000e+00> : vector<64x9xf32>
    %32 = tpu.matmul %31, %30, %cst_13 {dimension_numbers = #tpu.dot_dimension_numbers<[1], [0], [0], [1], [0, 0, 1, 1], [], []>} : vector<64x64xbf16>, vector<64x9xbf16>, vector<64x9xf32> -> vector<64x9xf32>
    %c0_14 = arith.constant 0 : index
    %c0_15 = arith.constant 0 : index
    %33 = vector.load %arg5[%c0_14, %c0_15] : memref<64x128xf32, #tpu.memory_space<vmem>>, vector<64x1xf32>
    %34 = vector.broadcast %33 : vector<64x1xf32> to vector<64x9xf32>
    %35 = arith.addf %32, %34 : vector<64x9xf32>
    %cst_16 = arith.constant 0.000000e+00 : f32
    %36 = vector.broadcast %cst_16 : f32 to vector<64x9xf32>
    %37 = arith.maximumf %35, %36 : vector<64x9xf32>
    %38 = arith.truncf %37 : vector<64x9xf32> to vector<64x9xbf16>
    %cst_17 = arith.constant 0.000000e+00 : bf16
    %39 = vector.broadcast %cst_17 : bf16 to vector<64x119xbf16>
    %40 = tpu.concatenate %38, %39 in 1 : vector<64x9xbf16>, vector<64x119xbf16> -> vector<64x128xbf16>
    %c0_18 = arith.constant 0 : index
    %c0_19 = arith.constant 0 : index
    %c0_20 = arith.constant 0 : index
    %41 = vector.load %arg7[%c0_18, %c0_19, %c0_20] : memref<1x64x128xbf16, #tpu.memory_space<vmem>>, vector<1x64x128xbf16>
    %42 = vector.shape_cast %41 : vector<1x64x128xbf16> to vector<64x128xbf16>
    %43 = vector.shape_cast %40 : vector<64x128xbf16> to vector<1x64x128xbf16>
    tpu.vector_store %arg7[%c0_18, %c0_19, %c0_20], %43 {strides = array<i32>} : memref<1x64x128xbf16, #tpu.memory_space<vmem>>, vector<1x64x128xbf16>,
    return
  }
  func.func @transform_0(%arg0: i32) -> (i32, i32, i32) {
    %c0_i32 = arith.constant 0 : i32
    %c0_i32_0 = arith.constant 0 : i32
    %c0_i32_1 = arith.constant 0 : i32
    return %arg0, %c0_i32, %c0_i32_0 : i32, i32, i32
  }
  func.func @transform_1(%arg0: i32) -> (i32, i32) {
    %c0_i32 = arith.constant 0 : i32
    %c0_i32_0 = arith.constant 0 : i32
    %c0_i32_1 = arith.constant 0 : i32
    return %c0_i32, %c0_i32_0 : i32, i32
  }
  func.func @transform_2(%arg0: i32) -> (i32, i32) {
    %c0_i32 = arith.constant 0 : i32
    %c0_i32_0 = arith.constant 0 : i32
    %c0_i32_1 = arith.constant 0 : i32
    return %c0_i32, %c0_i32_0 : i32, i32
  }
  func.func @transform_3(%arg0: i32) -> (i32, i32) {
    %c0_i32 = arith.constant 0 : i32
    %c0_i32_0 = arith.constant 0 : i32
    %c0_i32_1 = arith.constant 0 : i32
    return %c0_i32, %c0_i32_0 : i32, i32
  }
  func.func @transform_4(%arg0: i32) -> (i32, i32) {
    %c0_i32 = arith.constant 0 : i32
    %c0_i32_0 = arith.constant 0 : i32
    %c0_i32_1 = arith.constant 0 : i32
    return %c0_i32, %c0_i32_0 : i32, i32
  }
  func.func @transform_5(%arg0: i32) -> (i32, i32) {
    %c0_i32 = arith.constant 0 : i32
    %c0_i32_0 = arith.constant 0 : i32
    %c0_i32_1 = arith.constant 0 : i32
    return %c0_i32, %c0_i32_0 : i32, i32
  }
  func.func @transform_6(%arg0: i32) -> (i32, i32, i32) {
    %c0_i32 = arith.constant 0 : i32
    %c0_i32_0 = arith.constant 0 : i32
    %c0_i32_1 = arith.constant 0 : i32
    return %arg0, %c0_i32, %c0_i32_0 : i32, i32, i32
  }
}

module attributes {stable_mosaic.version = 11 : i64} {
  func.func @kernel(%arg0: i32, %arg1: memref<1x16x128xbf16, #tpu.memory_space<vmem>>, %arg2: memref<16x144xbf16, #tpu.memory_space<vmem>>, %arg3: memref<16x128xf32, #tpu.memory_space<vmem>>, %arg4: memref<64x64xbf16, #tpu.memory_space<vmem>>, %arg5: memref<64x128xf32, #tpu.memory_space<vmem>>, %arg6: memref<1x16xf32, #tpu.memory_space<vmem>>, %arg7: memref<1x64x128xbf16, #tpu.memory_space<vmem>>) attributes {dimension_semantics = [#tpu.dimension_semantics<parallel>], iteration_bounds = array<i64: 2>, scalar_prefetch = 0 : i64, scratch_operands = 0 : i64, tpu.core_type = #tpu.core_type<tc>, window_params = [{transform_indices = @transform_0, window_bounds = array<i64: 1, 16, 128>}, {pipeline_mode = #tpu.pipeline_mode<synchronous>, transform_indices = @transform_1, window_bounds = array<i64: 16, 144>}, {pipeline_mode = #tpu.pipeline_mode<synchronous>, transform_indices = @transform_2, window_bounds = array<i64: 16, 128>}, {pipeline_mode = #tpu.pipeline_mode<synchronous>, transform_indices = @transform_3, window_bounds = array<i64: 64, 64>}, {pipeline_mode = #tpu.pipeline_mode<synchronous>, transform_indices = @transform_4, window_bounds = array<i64: 64, 128>}, {pipeline_mode = #tpu.pipeline_mode<synchronous>, transform_indices = @transform_5, window_bounds = array<i64: 1, 16>}, {transform_indices = @transform_6, window_bounds = array<i64: 1, 64, 128>}]} {
    %c0 = arith.constant 0 : index
    %c0_0 = arith.constant 0 : index
    %c0_1 = arith.constant 0 : index
    %0 = vector.load %arg1[%c0, %c0_0, %c0_1] : memref<1x16x128xbf16, #tpu.memory_space<vmem>>, vector<1x16x128xbf16>
    %1 = vector.shape_cast %0 : vector<1x16x128xbf16> to vector<16x128xbf16>
    %2 = vector.extract_strided_slice %1 {offsets = [0, 0], sizes = [16, 16], strides = [1, 1]} : vector<16x128xbf16> to vector<16x16xbf16>
    %3 = vector.extract_strided_slice %1 {offsets = [0, 1], sizes = [16, 16], strides = [1, 1]} : vector<16x128xbf16> to vector<16x16xbf16>
    %4 = vector.extract_strided_slice %1 {offsets = [0, 2], sizes = [16, 16], strides = [1, 1]} : vector<16x128xbf16> to vector<16x16xbf16>
    %5 = vector.extract_strided_slice %1 {offsets = [0, 4], sizes = [16, 16], strides = [1, 1]} : vector<16x128xbf16> to vector<16x16xbf16>
    %6 = vector.extract_strided_slice %1 {offsets = [0, 5], sizes = [16, 16], strides = [1, 1]} : vector<16x128xbf16> to vector<16x16xbf16>
    %7 = vector.extract_strided_slice %1 {offsets = [0, 6], sizes = [16, 16], strides = [1, 1]} : vector<16x128xbf16> to vector<16x16xbf16>
    %8 = vector.extract_strided_slice %1 {offsets = [0, 8], sizes = [16, 16], strides = [1, 1]} : vector<16x128xbf16> to vector<16x16xbf16>
    %9 = vector.extract_strided_slice %1 {offsets = [0, 9], sizes = [16, 16], strides = [1, 1]} : vector<16x128xbf16> to vector<16x16xbf16>
    %10 = vector.extract_strided_slice %1 {offsets = [0, 10], sizes = [16, 16], strides = [1, 1]} : vector<16x128xbf16> to vector<16x16xbf16>
    %11 = tpu.concatenate %2, %3, %4, %5, %6, %7, %8, %9, %10 in 0 : vector<16x16xbf16>, vector<16x16xbf16>, vector<16x16xbf16>, vector<16x16xbf16>, vector<16x16xbf16>, vector<16x16xbf16>, vector<16x16xbf16>, vector<16x16xbf16>, vector<16x16xbf16> -> vector<144x16xbf16>
    %c0_2 = arith.constant 0 : index
    %c0_3 = arith.constant 0 : index
    %12 = vector.load %arg2[%c0_2, %c0_3] : memref<16x144xbf16, #tpu.memory_space<vmem>>, vector<16x144xbf16>
    %cst = arith.constant dense<0.000000e+00> : vector<16x16xf32>
    %13 = tpu.matmul %12, %11, %cst {dimension_numbers = #tpu.dot_dimension_numbers<[1], [0], [0], [1], [0, 0, 1, 1], [], []>} : vector<16x144xbf16>, vector<144x16xbf16>, vector<16x16xf32> -> vector<16x16xf32>
    %c0_4 = arith.constant 0 : index
    %c0_5 = arith.constant 0 : index
    %14 = vector.load %arg3[%c0_4, %c0_5] : memref<16x128xf32, #tpu.memory_space<vmem>>, vector<16x1xf32>
    %15 = vector.broadcast %14 : vector<16x1xf32> to vector<16x16xf32>
    %16 = arith.addf %13, %15 : vector<16x16xf32>
    %cst_6 = arith.constant 0.000000e+00 : f32
    %17 = vector.broadcast %cst_6 : f32 to vector<16x16xf32>
    %18 = arith.maximumf %16, %17 : vector<16x16xf32>
    %c0_7 = arith.constant 0 : index
    %c0_8 = arith.constant 0 : index
    %19 = vector.load %arg6[%c0_7, %c0_8] : memref<1x16xf32, #tpu.memory_space<vmem>>, vector<1x16xf32>
    %20 = vector.broadcast %19 : vector<1x16xf32> to vector<16x16xf32>
    %21 = arith.mulf %18, %20 : vector<16x16xf32>
    %cst_9 = arith.constant 0.000000e+00 : bf16
    %22 = vector.broadcast %cst_9 : bf16 to vector<16x5xbf16>
    %23 = arith.truncf %21 : vector<16x16xf32> to vector<16x16xbf16>
    %cst_10 = arith.constant 0.000000e+00 : bf16
    %24 = vector.broadcast %cst_10 : bf16 to vector<16x107xbf16>
    %25 = tpu.concatenate %22, %23, %24 in 1 : vector<16x5xbf16>, vector<16x16xbf16>, vector<16x107xbf16> -> vector<16x128xbf16>
    %26 = vector.extract_strided_slice %25 {offsets = [0, 5], sizes = [16, 16], strides = [1, 1]} : vector<16x128xbf16> to vector<16x16xbf16>
    %27 = vector.extract_strided_slice %25 {offsets = [0, 6], sizes = [16, 16], strides = [1, 1]} : vector<16x128xbf16> to vector<16x16xbf16>
    %28 = vector.extract_strided_slice %25 {offsets = [0, 9], sizes = [16, 16], strides = [1, 1]} : vector<16x128xbf16> to vector<16x16xbf16>
    %29 = vector.extract_strided_slice %25 {offsets = [0, 10], sizes = [16, 16], strides = [1, 1]} : vector<16x128xbf16> to vector<16x16xbf16>
    %30 = tpu.concatenate %26, %27, %28, %29 in 0 : vector<16x16xbf16>, vector<16x16xbf16>, vector<16x16xbf16>, vector<16x16xbf16> -> vector<64x16xbf16>
    %c0_11 = arith.constant 0 : index
    %c0_12 = arith.constant 0 : index
    %31 = vector.load %arg4[%c0_11, %c0_12] : memref<64x64xbf16, #tpu.memory_space<vmem>>, vector<64x64xbf16>
    %cst_13 = arith.constant dense<0.000000e+00> : vector<64x16xf32>
    %32 = tpu.matmul %31, %30, %cst_13 {dimension_numbers = #tpu.dot_dimension_numbers<[1], [0], [0], [1], [0, 0, 1, 1], [], []>} : vector<64x64xbf16>, vector<64x16xbf16>, vector<64x16xf32> -> vector<64x16xf32>
    %c0_14 = arith.constant 0 : index
    %c0_15 = arith.constant 0 : index
    %33 = vector.load %arg5[%c0_14, %c0_15] : memref<64x128xf32, #tpu.memory_space<vmem>>, vector<64x1xf32>
    %34 = vector.broadcast %33 : vector<64x1xf32> to vector<64x16xf32>
    %35 = arith.addf %32, %34 : vector<64x16xf32>
    %cst_16 = arith.constant 0.000000e+00 : f32
    %36 = vector.broadcast %cst_16 : f32 to vector<64x16xf32>
    %37 = arith.maximumf %35, %36 : vector<64x16xf32>
    %38 = arith.truncf %37 : vector<64x16xf32> to vector<64x16xbf16>
    %cst_17 = arith.constant 0.000000e+00 : bf16
    %39 = vector.broadcast %cst_17 : bf16 to vector<64x112xbf16>
    %40 = tpu.concatenate %38, %39 in 1 : vector<64x16xbf16>, vector<64x112xbf16> -> vector<64x128xbf16>
    %c0_18 = arith.constant 0 : index
    %c0_19 = arith.constant 0 : index
    %c0_20 = arith.constant 0 : index
    %41 = vector.load %arg7[%c0_18, %c0_19, %c0_20] : memref<1x64x128xbf16, #tpu.memory_space<vmem>>, vector<1x64x128xbf16>
    %42 = vector.shape_cast %41 : vector<1x64x128xbf16> to vector<64x128xbf16>
    %43 = vector.shape_cast %40 : vector<64x128xbf16> to vector<1x64x128xbf16>
    tpu.vector_store %arg7[%c0_18, %c0_19, %c0_20], %43 {strides = array<i32>} : memref<1x64x128xbf16, #tpu.memory_space<vmem>>, vector<1x64x128xbf16>,
    return
  }
  func.func @transform_0(%arg0: i32) -> (i32, i32, i32) {
    %c0_i32 = arith.constant 0 : i32
    %c0_i32_0 = arith.constant 0 : i32
    %c0_i32_1 = arith.constant 0 : i32
    return %arg0, %c0_i32, %c0_i32_0 : i32, i32, i32
  }
  func.func @transform_1(%arg0: i32) -> (i32, i32) {
    %c0_i32 = arith.constant 0 : i32
    %c0_i32_0 = arith.constant 0 : i32
    %c0_i32_1 = arith.constant 0 : i32
    return %c0_i32, %c0_i32_0 : i32, i32
  }
  func.func @transform_2(%arg0: i32) -> (i32, i32) {
    %c0_i32 = arith.constant 0 : i32
    %c0_i32_0 = arith.constant 0 : i32
    %c0_i32_1 = arith.constant 0 : i32
    return %c0_i32, %c0_i32_0 : i32, i32
  }
  func.func @transform_3(%arg0: i32) -> (i32, i32) {
    %c0_i32 = arith.constant 0 : i32
    %c0_i32_0 = arith.constant 0 : i32
    %c0_i32_1 = arith.constant 0 : i32
    return %c0_i32, %c0_i32_0 : i32, i32
  }
  func.func @transform_4(%arg0: i32) -> (i32, i32) {
    %c0_i32 = arith.constant 0 : i32
    %c0_i32_0 = arith.constant 0 : i32
    %c0_i32_1 = arith.constant 0 : i32
    return %c0_i32, %c0_i32_0 : i32, i32
  }
  func.func @transform_5(%arg0: i32) -> (i32, i32) {
    %c0_i32 = arith.constant 0 : i32
    %c0_i32_0 = arith.constant 0 : i32
    %c0_i32_1 = arith.constant 0 : i32
    return %c0_i32, %c0_i32_0 : i32, i32
  }
  func.func @transform_6(%arg0: i32) -> (i32, i32, i32) {
    %c0_i32 = arith.constant 0 : i32
    %c0_i32_0 = arith.constant 0 : i32
    %c0_i32_1 = arith.constant 0 : i32
    return %arg0, %c0_i32, %c0_i32_0 : i32, i32, i32
  }
}

module attributes {stable_mosaic.version = 11 : i64} {
  func.func @kernel(%arg0: i32, %arg1: memref<1x16x128xbf16, #tpu.memory_space<vmem>>, %arg2: memref<16x144xbf16, #tpu.memory_space<vmem>>, %arg3: memref<16x128xf32, #tpu.memory_space<vmem>>, %arg4: memref<32x64xbf16, #tpu.memory_space<vmem>>, %arg5: memref<32x128xf32, #tpu.memory_space<vmem>>, %arg6: memref<1x36xf32, #tpu.memory_space<vmem>>, %arg7: memref<1x32x128xbf16, #tpu.memory_space<vmem>>) attributes {dimension_semantics = [#tpu.dimension_semantics<parallel>], iteration_bounds = array<i64: 2>, scalar_prefetch = 0 : i64, scratch_operands = 0 : i64, tpu.core_type = #tpu.core_type<tc>, window_params = [{transform_indices = @transform_0, window_bounds = array<i64: 1, 16, 128>}, {pipeline_mode = #tpu.pipeline_mode<synchronous>, transform_indices = @transform_1, window_bounds = array<i64: 16, 144>}, {pipeline_mode = #tpu.pipeline_mode<synchronous>, transform_indices = @transform_2, window_bounds = array<i64: 16, 128>}, {pipeline_mode = #tpu.pipeline_mode<synchronous>, transform_indices = @transform_3, window_bounds = array<i64: 32, 64>}, {pipeline_mode = #tpu.pipeline_mode<synchronous>, transform_indices = @transform_4, window_bounds = array<i64: 32, 128>}, {pipeline_mode = #tpu.pipeline_mode<synchronous>, transform_indices = @transform_5, window_bounds = array<i64: 1, 36>}, {transform_indices = @transform_6, window_bounds = array<i64: 1, 32, 128>}]} {
    %c0 = arith.constant 0 : index
    %c0_0 = arith.constant 0 : index
    %c0_1 = arith.constant 0 : index
    %0 = vector.load %arg1[%c0, %c0_0, %c0_1] : memref<1x16x128xbf16, #tpu.memory_space<vmem>>, vector<1x16x128xbf16>
    %1 = vector.shape_cast %0 : vector<1x16x128xbf16> to vector<16x128xbf16>
    %2 = vector.extract_strided_slice %1 {offsets = [0, 0], sizes = [16, 36], strides = [1, 1]} : vector<16x128xbf16> to vector<16x36xbf16>
    %3 = vector.extract_strided_slice %1 {offsets = [0, 1], sizes = [16, 36], strides = [1, 1]} : vector<16x128xbf16> to vector<16x36xbf16>
    %4 = vector.extract_strided_slice %1 {offsets = [0, 2], sizes = [16, 36], strides = [1, 1]} : vector<16x128xbf16> to vector<16x36xbf16>
    %5 = vector.extract_strided_slice %1 {offsets = [0, 6], sizes = [16, 36], strides = [1, 1]} : vector<16x128xbf16> to vector<16x36xbf16>
    %6 = vector.extract_strided_slice %1 {offsets = [0, 7], sizes = [16, 36], strides = [1, 1]} : vector<16x128xbf16> to vector<16x36xbf16>
    %7 = vector.extract_strided_slice %1 {offsets = [0, 8], sizes = [16, 36], strides = [1, 1]} : vector<16x128xbf16> to vector<16x36xbf16>
    %8 = vector.extract_strided_slice %1 {offsets = [0, 12], sizes = [16, 36], strides = [1, 1]} : vector<16x128xbf16> to vector<16x36xbf16>
    %9 = vector.extract_strided_slice %1 {offsets = [0, 13], sizes = [16, 36], strides = [1, 1]} : vector<16x128xbf16> to vector<16x36xbf16>
    %10 = vector.extract_strided_slice %1 {offsets = [0, 14], sizes = [16, 36], strides = [1, 1]} : vector<16x128xbf16> to vector<16x36xbf16>
    %11 = tpu.concatenate %2, %3, %4, %5, %6, %7, %8, %9, %10 in 0 : vector<16x36xbf16>, vector<16x36xbf16>, vector<16x36xbf16>, vector<16x36xbf16>, vector<16x36xbf16>, vector<16x36xbf16>, vector<16x36xbf16>, vector<16x36xbf16>, vector<16x36xbf16> -> vector<144x36xbf16>
    %c0_2 = arith.constant 0 : index
    %c0_3 = arith.constant 0 : index
    %12 = vector.load %arg2[%c0_2, %c0_3] : memref<16x144xbf16, #tpu.memory_space<vmem>>, vector<16x144xbf16>
    %cst = arith.constant dense<0.000000e+00> : vector<16x36xf32>
    %13 = tpu.matmul %12, %11, %cst {dimension_numbers = #tpu.dot_dimension_numbers<[1], [0], [0], [1], [0, 0, 1, 1], [], []>} : vector<16x144xbf16>, vector<144x36xbf16>, vector<16x36xf32> -> vector<16x36xf32>
    %c0_4 = arith.constant 0 : index
    %c0_5 = arith.constant 0 : index
    %14 = vector.load %arg3[%c0_4, %c0_5] : memref<16x128xf32, #tpu.memory_space<vmem>>, vector<16x1xf32>
    %15 = vector.broadcast %14 : vector<16x1xf32> to vector<16x36xf32>
    %16 = arith.addf %13, %15 : vector<16x36xf32>
    %cst_6 = arith.constant 0.000000e+00 : f32
    %17 = vector.broadcast %cst_6 : f32 to vector<16x36xf32>
    %18 = arith.maximumf %16, %17 : vector<16x36xf32>
    %c0_7 = arith.constant 0 : index
    %c0_8 = arith.constant 0 : index
    %19 = vector.load %arg6[%c0_7, %c0_8] : memref<1x36xf32, #tpu.memory_space<vmem>>, vector<1x36xf32>
    %20 = vector.broadcast %19 : vector<1x36xf32> to vector<16x36xf32>
    %21 = arith.mulf %18, %20 : vector<16x36xf32>
    %cst_9 = arith.constant 0.000000e+00 : bf16
    %22 = vector.broadcast %cst_9 : bf16 to vector<16x7xbf16>
    %23 = arith.truncf %21 : vector<16x36xf32> to vector<16x36xbf16>
    %cst_10 = arith.constant 0.000000e+00 : bf16
    %24 = vector.broadcast %cst_10 : bf16 to vector<16x85xbf16>
    %25 = tpu.concatenate %22, %23, %24 in 1 : vector<16x7xbf16>, vector<16x36xbf16>, vector<16x85xbf16> -> vector<16x128xbf16>
    %26 = vector.extract_strided_slice %25 {offsets = [0, 7], sizes = [16, 36], strides = [1, 1]} : vector<16x128xbf16> to vector<16x36xbf16>
    %27 = vector.extract_strided_slice %25 {offsets = [0, 8], sizes = [16, 36], strides = [1, 1]} : vector<16x128xbf16> to vector<16x36xbf16>
    %28 = vector.extract_strided_slice %25 {offsets = [0, 13], sizes = [16, 36], strides = [1, 1]} : vector<16x128xbf16> to vector<16x36xbf16>
    %29 = vector.extract_strided_slice %25 {offsets = [0, 14], sizes = [16, 36], strides = [1, 1]} : vector<16x128xbf16> to vector<16x36xbf16>
    %30 = tpu.concatenate %26, %27, %28, %29 in 0 : vector<16x36xbf16>, vector<16x36xbf16>, vector<16x36xbf16>, vector<16x36xbf16> -> vector<64x36xbf16>
    %c0_11 = arith.constant 0 : index
    %c0_12 = arith.constant 0 : index
    %31 = vector.load %arg4[%c0_11, %c0_12] : memref<32x64xbf16, #tpu.memory_space<vmem>>, vector<32x64xbf16>
    %cst_13 = arith.constant dense<0.000000e+00> : vector<32x36xf32>
    %32 = tpu.matmul %31, %30, %cst_13 {dimension_numbers = #tpu.dot_dimension_numbers<[1], [0], [0], [1], [0, 0, 1, 1], [], []>} : vector<32x64xbf16>, vector<64x36xbf16>, vector<32x36xf32> -> vector<32x36xf32>
    %c0_14 = arith.constant 0 : index
    %c0_15 = arith.constant 0 : index
    %33 = vector.load %arg5[%c0_14, %c0_15] : memref<32x128xf32, #tpu.memory_space<vmem>>, vector<32x1xf32>
    %34 = vector.broadcast %33 : vector<32x1xf32> to vector<32x36xf32>
    %35 = arith.addf %32, %34 : vector<32x36xf32>
    %cst_16 = arith.constant 0.000000e+00 : f32
    %36 = vector.broadcast %cst_16 : f32 to vector<32x36xf32>
    %37 = arith.maximumf %35, %36 : vector<32x36xf32>
    %38 = arith.truncf %37 : vector<32x36xf32> to vector<32x36xbf16>
    %cst_17 = arith.constant 0.000000e+00 : bf16
    %39 = vector.broadcast %cst_17 : bf16 to vector<32x92xbf16>
    %40 = tpu.concatenate %38, %39 in 1 : vector<32x36xbf16>, vector<32x92xbf16> -> vector<32x128xbf16>
    %c0_18 = arith.constant 0 : index
    %c0_19 = arith.constant 0 : index
    %c0_20 = arith.constant 0 : index
    %41 = vector.load %arg7[%c0_18, %c0_19, %c0_20] : memref<1x32x128xbf16, #tpu.memory_space<vmem>>, vector<1x32x128xbf16>
    %42 = vector.shape_cast %41 : vector<1x32x128xbf16> to vector<32x128xbf16>
    %43 = vector.shape_cast %40 : vector<32x128xbf16> to vector<1x32x128xbf16>
    tpu.vector_store %arg7[%c0_18, %c0_19, %c0_20], %43 {strides = array<i32>} : memref<1x32x128xbf16, #tpu.memory_space<vmem>>, vector<1x32x128xbf16>,
    return
  }
  func.func @transform_0(%arg0: i32) -> (i32, i32, i32) {
    %c0_i32 = arith.constant 0 : i32
    %c0_i32_0 = arith.constant 0 : i32
    %c0_i32_1 = arith.constant 0 : i32
    return %arg0, %c0_i32, %c0_i32_0 : i32, i32, i32
  }
  func.func @transform_1(%arg0: i32) -> (i32, i32) {
    %c0_i32 = arith.constant 0 : i32
    %c0_i32_0 = arith.constant 0 : i32
    %c0_i32_1 = arith.constant 0 : i32
    return %c0_i32, %c0_i32_0 : i32, i32
  }
  func.func @transform_2(%arg0: i32) -> (i32, i32) {
    %c0_i32 = arith.constant 0 : i32
    %c0_i32_0 = arith.constant 0 : i32
    %c0_i32_1 = arith.constant 0 : i32
    return %c0_i32, %c0_i32_0 : i32, i32
  }
  func.func @transform_3(%arg0: i32) -> (i32, i32) {
    %c0_i32 = arith.constant 0 : i32
    %c0_i32_0 = arith.constant 0 : i32
    %c0_i32_1 = arith.constant 0 : i32
    return %c0_i32, %c0_i32_0 : i32, i32
  }
  func.func @transform_4(%arg0: i32) -> (i32, i32) {
    %c0_i32 = arith.constant 0 : i32
    %c0_i32_0 = arith.constant 0 : i32
    %c0_i32_1 = arith.constant 0 : i32
    return %c0_i32, %c0_i32_0 : i32, i32
  }
  func.func @transform_5(%arg0: i32) -> (i32, i32) {
    %c0_i32 = arith.constant 0 : i32
    %c0_i32_0 = arith.constant 0 : i32
    %c0_i32_1 = arith.constant 0 : i32
    return %c0_i32, %c0_i32_0 : i32, i32
  }
  func.func @transform_6(%arg0: i32) -> (i32, i32, i32) {
    %c0_i32 = arith.constant 0 : i32
    %c0_i32_0 = arith.constant 0 : i32
    %c0_i32_1 = arith.constant 0 : i32
    return %arg0, %c0_i32, %c0_i32_0 : i32, i32, i32
  }
}

module attributes {stable_mosaic.version = 11 : i64} {
  func.func @kernel(%arg0: i32, %arg1: memref<1x16x128xbf16, #tpu.memory_space<vmem>>, %arg2: memref<16x144xbf16, #tpu.memory_space<vmem>>, %arg3: memref<16x128xf32, #tpu.memory_space<vmem>>, %arg4: memref<32x64xbf16, #tpu.memory_space<vmem>>, %arg5: memref<32x128xf32, #tpu.memory_space<vmem>>, %arg6: memref<1x100xf32, #tpu.memory_space<vmem>>, %arg7: memref<1x32x128xbf16, #tpu.memory_space<vmem>>) attributes {dimension_semantics = [#tpu.dimension_semantics<parallel>], iteration_bounds = array<i64: 2>, scalar_prefetch = 0 : i64, scratch_operands = 0 : i64, tpu.core_type = #tpu.core_type<tc>, window_params = [{transform_indices = @transform_0, window_bounds = array<i64: 1, 16, 128>}, {pipeline_mode = #tpu.pipeline_mode<synchronous>, transform_indices = @transform_1, window_bounds = array<i64: 16, 144>}, {pipeline_mode = #tpu.pipeline_mode<synchronous>, transform_indices = @transform_2, window_bounds = array<i64: 16, 128>}, {pipeline_mode = #tpu.pipeline_mode<synchronous>, transform_indices = @transform_3, window_bounds = array<i64: 32, 64>}, {pipeline_mode = #tpu.pipeline_mode<synchronous>, transform_indices = @transform_4, window_bounds = array<i64: 32, 128>}, {pipeline_mode = #tpu.pipeline_mode<synchronous>, transform_indices = @transform_5, window_bounds = array<i64: 1, 100>}, {transform_indices = @transform_6, window_bounds = array<i64: 1, 32, 128>}]} {
    %c0 = arith.constant 0 : index
    %c0_0 = arith.constant 0 : index
    %c0_1 = arith.constant 0 : index
    %0 = vector.load %arg1[%c0, %c0_0, %c0_1] : memref<1x16x128xbf16, #tpu.memory_space<vmem>>, vector<1x16x128xbf16>
    %1 = vector.shape_cast %0 : vector<1x16x128xbf16> to vector<16x128xbf16>
    %2 = vector.extract_strided_slice %1 {offsets = [0, 0], sizes = [16, 100], strides = [1, 1]} : vector<16x128xbf16> to vector<16x100xbf16>
    %3 = vector.extract_strided_slice %1 {offsets = [0, 1], sizes = [16, 100], strides = [1, 1]} : vector<16x128xbf16> to vector<16x100xbf16>
    %4 = vector.extract_strided_slice %1 {offsets = [0, 2], sizes = [16, 100], strides = [1, 1]} : vector<16x128xbf16> to vector<16x100xbf16>
    %5 = vector.extract_strided_slice %1 {offsets = [0, 10], sizes = [16, 100], strides = [1, 1]} : vector<16x128xbf16> to vector<16x100xbf16>
    %6 = vector.extract_strided_slice %1 {offsets = [0, 11], sizes = [16, 100], strides = [1, 1]} : vector<16x128xbf16> to vector<16x100xbf16>
    %7 = vector.extract_strided_slice %1 {offsets = [0, 12], sizes = [16, 100], strides = [1, 1]} : vector<16x128xbf16> to vector<16x100xbf16>
    %8 = vector.extract_strided_slice %1 {offsets = [0, 20], sizes = [16, 100], strides = [1, 1]} : vector<16x128xbf16> to vector<16x100xbf16>
    %9 = vector.extract_strided_slice %1 {offsets = [0, 21], sizes = [16, 100], strides = [1, 1]} : vector<16x128xbf16> to vector<16x100xbf16>
    %10 = vector.extract_strided_slice %1 {offsets = [0, 22], sizes = [16, 100], strides = [1, 1]} : vector<16x128xbf16> to vector<16x100xbf16>
    %11 = tpu.concatenate %2, %3, %4, %5, %6, %7, %8, %9, %10 in 0 : vector<16x100xbf16>, vector<16x100xbf16>, vector<16x100xbf16>, vector<16x100xbf16>, vector<16x100xbf16>, vector<16x100xbf16>, vector<16x100xbf16>, vector<16x100xbf16>, vector<16x100xbf16> -> vector<144x100xbf16>
    %c0_2 = arith.constant 0 : index
    %c0_3 = arith.constant 0 : index
    %12 = vector.load %arg2[%c0_2, %c0_3] : memref<16x144xbf16, #tpu.memory_space<vmem>>, vector<16x144xbf16>
    %cst = arith.constant dense<0.000000e+00> : vector<16x100xf32>
    %13 = tpu.matmul %12, %11, %cst {dimension_numbers = #tpu.dot_dimension_numbers<[1], [0], [0], [1], [0, 0, 1, 1], [], []>} : vector<16x144xbf16>, vector<144x100xbf16>, vector<16x100xf32> -> vector<16x100xf32>
    %c0_4 = arith.constant 0 : index
    %c0_5 = arith.constant 0 : index
    %14 = vector.load %arg3[%c0_4, %c0_5] : memref<16x128xf32, #tpu.memory_space<vmem>>, vector<16x1xf32>
    %15 = vector.broadcast %14 : vector<16x1xf32> to vector<16x100xf32>
    %16 = arith.addf %13, %15 : vector<16x100xf32>
    %cst_6 = arith.constant 0.000000e+00 : f32
    %17 = vector.broadcast %cst_6 : f32 to vector<16x100xf32>
    %18 = arith.maximumf %16, %17 : vector<16x100xf32>
    %c0_7 = arith.constant 0 : index
    %c0_8 = arith.constant 0 : index
    %19 = vector.load %arg6[%c0_7, %c0_8] : memref<1x100xf32, #tpu.memory_space<vmem>>, vector<1x100xf32>
    %20 = vector.broadcast %19 : vector<1x100xf32> to vector<16x100xf32>
    %21 = arith.mulf %18, %20 : vector<16x100xf32>
    %cst_9 = arith.constant 0.000000e+00 : bf16
    %22 = vector.broadcast %cst_9 : bf16 to vector<16x11xbf16>
    %23 = arith.truncf %21 : vector<16x100xf32> to vector<16x100xbf16>
    %cst_10 = arith.constant 0.000000e+00 : bf16
    %24 = vector.broadcast %cst_10 : bf16 to vector<16x17xbf16>
    %25 = tpu.concatenate %22, %23, %24 in 1 : vector<16x11xbf16>, vector<16x100xbf16>, vector<16x17xbf16> -> vector<16x128xbf16>
    %26 = vector.extract_strided_slice %25 {offsets = [0, 11], sizes = [16, 100], strides = [1, 1]} : vector<16x128xbf16> to vector<16x100xbf16>
    %27 = vector.extract_strided_slice %25 {offsets = [0, 12], sizes = [16, 100], strides = [1, 1]} : vector<16x128xbf16> to vector<16x100xbf16>
    %28 = vector.extract_strided_slice %25 {offsets = [0, 21], sizes = [16, 100], strides = [1, 1]} : vector<16x128xbf16> to vector<16x100xbf16>
    %29 = vector.extract_strided_slice %25 {offsets = [0, 22], sizes = [16, 100], strides = [1, 1]} : vector<16x128xbf16> to vector<16x100xbf16>
    %30 = tpu.concatenate %26, %27, %28, %29 in 0 : vector<16x100xbf16>, vector<16x100xbf16>, vector<16x100xbf16>, vector<16x100xbf16> -> vector<64x100xbf16>
    %c0_11 = arith.constant 0 : index
    %c0_12 = arith.constant 0 : index
    %31 = vector.load %arg4[%c0_11, %c0_12] : memref<32x64xbf16, #tpu.memory_space<vmem>>, vector<32x64xbf16>
    %cst_13 = arith.constant dense<0.000000e+00> : vector<32x100xf32>
    %32 = tpu.matmul %31, %30, %cst_13 {dimension_numbers = #tpu.dot_dimension_numbers<[1], [0], [0], [1], [0, 0, 1, 1], [], []>} : vector<32x64xbf16>, vector<64x100xbf16>, vector<32x100xf32> -> vector<32x100xf32>
    %c0_14 = arith.constant 0 : index
    %c0_15 = arith.constant 0 : index
    %33 = vector.load %arg5[%c0_14, %c0_15] : memref<32x128xf32, #tpu.memory_space<vmem>>, vector<32x1xf32>
    %34 = vector.broadcast %33 : vector<32x1xf32> to vector<32x100xf32>
    %35 = arith.addf %32, %34 : vector<32x100xf32>
    %cst_16 = arith.constant 0.000000e+00 : f32
    %36 = vector.broadcast %cst_16 : f32 to vector<32x100xf32>
    %37 = arith.maximumf %35, %36 : vector<32x100xf32>
    %38 = arith.truncf %37 : vector<32x100xf32> to vector<32x100xbf16>
    %cst_17 = arith.constant 0.000000e+00 : bf16
    %39 = vector.broadcast %cst_17 : bf16 to vector<32x28xbf16>
    %40 = tpu.concatenate %38, %39 in 1 : vector<32x100xbf16>, vector<32x28xbf16> -> vector<32x128xbf16>
    %c0_18 = arith.constant 0 : index
    %c0_19 = arith.constant 0 : index
    %c0_20 = arith.constant 0 : index
    %41 = vector.load %arg7[%c0_18, %c0_19, %c0_20] : memref<1x32x128xbf16, #tpu.memory_space<vmem>>, vector<1x32x128xbf16>
    %42 = vector.shape_cast %41 : vector<1x32x128xbf16> to vector<32x128xbf16>
    %43 = vector.shape_cast %40 : vector<32x128xbf16> to vector<1x32x128xbf16>
    tpu.vector_store %arg7[%c0_18, %c0_19, %c0_20], %43 {strides = array<i32>} : memref<1x32x128xbf16, #tpu.memory_space<vmem>>, vector<1x32x128xbf16>,
    return
  }
  func.func @transform_0(%arg0: i32) -> (i32, i32, i32) {
    %c0_i32 = arith.constant 0 : i32
    %c0_i32_0 = arith.constant 0 : i32
    %c0_i32_1 = arith.constant 0 : i32
    return %arg0, %c0_i32, %c0_i32_0 : i32, i32, i32
  }
  func.func @transform_1(%arg0: i32) -> (i32, i32) {
    %c0_i32 = arith.constant 0 : i32
    %c0_i32_0 = arith.constant 0 : i32
    %c0_i32_1 = arith.constant 0 : i32
    return %c0_i32, %c0_i32_0 : i32, i32
  }
  func.func @transform_2(%arg0: i32) -> (i32, i32) {
    %c0_i32 = arith.constant 0 : i32
    %c0_i32_0 = arith.constant 0 : i32
    %c0_i32_1 = arith.constant 0 : i32
    return %c0_i32, %c0_i32_0 : i32, i32
  }
  func.func @transform_3(%arg0: i32) -> (i32, i32) {
    %c0_i32 = arith.constant 0 : i32
    %c0_i32_0 = arith.constant 0 : i32
    %c0_i32_1 = arith.constant 0 : i32
    return %c0_i32, %c0_i32_0 : i32, i32
  }
  func.func @transform_4(%arg0: i32) -> (i32, i32) {
    %c0_i32 = arith.constant 0 : i32
    %c0_i32_0 = arith.constant 0 : i32
    %c0_i32_1 = arith.constant 0 : i32
    return %c0_i32, %c0_i32_0 : i32, i32
  }
  func.func @transform_5(%arg0: i32) -> (i32, i32) {
    %c0_i32 = arith.constant 0 : i32
    %c0_i32_0 = arith.constant 0 : i32
    %c0_i32_1 = arith.constant 0 : i32
    return %c0_i32, %c0_i32_0 : i32, i32
  }
  func.func @transform_6(%arg0: i32) -> (i32, i32, i32) {
    %c0_i32 = arith.constant 0 : i32
    %c0_i32_0 = arith.constant 0 : i32
    %c0_i32_1 = arith.constant 0 : i32
    return %arg0, %c0_i32, %c0_i32_0 : i32, i32, i32
  }
}

module attributes {stable_mosaic.version = 11 : i64} {
  func.func @kernel(%arg0: i32, %arg1: memref<1x16x384xbf16, #tpu.memory_space<vmem>>, %arg2: memref<16x144xbf16, #tpu.memory_space<vmem>>, %arg3: memref<16x128xf32, #tpu.memory_space<vmem>>, %arg4: memref<16x64xbf16, #tpu.memory_space<vmem>>, %arg5: memref<16x128xf32, #tpu.memory_space<vmem>>, %arg6: memref<1x324xf32, #tpu.memory_space<vmem>>, %arg7: memref<1x16x384xbf16, #tpu.memory_space<vmem>>) attributes {dimension_semantics = [#tpu.dimension_semantics<parallel>], iteration_bounds = array<i64: 2>, scalar_prefetch = 0 : i64, scratch_operands = 0 : i64, tpu.core_type = #tpu.core_type<tc>, window_params = [{transform_indices = @transform_0, window_bounds = array<i64: 1, 16, 384>}, {pipeline_mode = #tpu.pipeline_mode<synchronous>, transform_indices = @transform_1, window_bounds = array<i64: 16, 144>}, {pipeline_mode = #tpu.pipeline_mode<synchronous>, transform_indices = @transform_2, window_bounds = array<i64: 16, 128>}, {pipeline_mode = #tpu.pipeline_mode<synchronous>, transform_indices = @transform_3, window_bounds = array<i64: 16, 64>}, {pipeline_mode = #tpu.pipeline_mode<synchronous>, transform_indices = @transform_4, window_bounds = array<i64: 16, 128>}, {pipeline_mode = #tpu.pipeline_mode<synchronous>, transform_indices = @transform_5, window_bounds = array<i64: 1, 324>}, {transform_indices = @transform_6, window_bounds = array<i64: 1, 16, 384>}]} {
    %c0 = arith.constant 0 : index
    %c0_0 = arith.constant 0 : index
    %c0_1 = arith.constant 0 : index
    %0 = vector.load %arg1[%c0, %c0_0, %c0_1] : memref<1x16x384xbf16, #tpu.memory_space<vmem>>, vector<1x16x384xbf16>
    %1 = vector.shape_cast %0 : vector<1x16x384xbf16> to vector<16x384xbf16>
    %2 = vector.extract_strided_slice %1 {offsets = [0, 0], sizes = [16, 324], strides = [1, 1]} : vector<16x384xbf16> to vector<16x324xbf16>
    %3 = vector.extract_strided_slice %1 {offsets = [0, 1], sizes = [16, 324], strides = [1, 1]} : vector<16x384xbf16> to vector<16x324xbf16>
    %4 = vector.extract_strided_slice %1 {offsets = [0, 2], sizes = [16, 324], strides = [1, 1]} : vector<16x384xbf16> to vector<16x324xbf16>
    %5 = vector.extract_strided_slice %1 {offsets = [0, 18], sizes = [16, 324], strides = [1, 1]} : vector<16x384xbf16> to vector<16x324xbf16>
    %6 = vector.extract_strided_slice %1 {offsets = [0, 19], sizes = [16, 324], strides = [1, 1]} : vector<16x384xbf16> to vector<16x324xbf16>
    %7 = vector.extract_strided_slice %1 {offsets = [0, 20], sizes = [16, 324], strides = [1, 1]} : vector<16x384xbf16> to vector<16x324xbf16>
    %8 = vector.extract_strided_slice %1 {offsets = [0, 36], sizes = [16, 324], strides = [1, 1]} : vector<16x384xbf16> to vector<16x324xbf16>
    %9 = vector.extract_strided_slice %1 {offsets = [0, 37], sizes = [16, 324], strides = [1, 1]} : vector<16x384xbf16> to vector<16x324xbf16>
    %10 = vector.extract_strided_slice %1 {offsets = [0, 38], sizes = [16, 324], strides = [1, 1]} : vector<16x384xbf16> to vector<16x324xbf16>
    %11 = tpu.concatenate %2, %3, %4, %5, %6, %7, %8, %9, %10 in 0 : vector<16x324xbf16>, vector<16x324xbf16>, vector<16x324xbf16>, vector<16x324xbf16>, vector<16x324xbf16>, vector<16x324xbf16>, vector<16x324xbf16>, vector<16x324xbf16>, vector<16x324xbf16> -> vector<144x324xbf16>
    %c0_2 = arith.constant 0 : index
    %c0_3 = arith.constant 0 : index
    %12 = vector.load %arg2[%c0_2, %c0_3] : memref<16x144xbf16, #tpu.memory_space<vmem>>, vector<16x144xbf16>
    %cst = arith.constant dense<0.000000e+00> : vector<16x324xf32>
    %13 = tpu.matmul %12, %11, %cst {dimension_numbers = #tpu.dot_dimension_numbers<[1], [0], [0], [1], [0, 0, 1, 1], [], []>} : vector<16x144xbf16>, vector<144x324xbf16>, vector<16x324xf32> -> vector<16x324xf32>
    %c0_4 = arith.constant 0 : index
    %c0_5 = arith.constant 0 : index
    %14 = vector.load %arg3[%c0_4, %c0_5] : memref<16x128xf32, #tpu.memory_space<vmem>>, vector<16x1xf32>
    %15 = vector.broadcast %14 : vector<16x1xf32> to vector<16x324xf32>
    %16 = arith.addf %13, %15 : vector<16x324xf32>
    %cst_6 = arith.constant 0.000000e+00 : f32
    %17 = vector.broadcast %cst_6 : f32 to vector<16x324xf32>
    %18 = arith.maximumf %16, %17 : vector<16x324xf32>
    %c0_7 = arith.constant 0 : index
    %c0_8 = arith.constant 0 : index
    %19 = vector.load %arg6[%c0_7, %c0_8] : memref<1x324xf32, #tpu.memory_space<vmem>>, vector<1x324xf32>
    %20 = vector.broadcast %19 : vector<1x324xf32> to vector<16x324xf32>
    %21 = arith.mulf %18, %20 : vector<16x324xf32>
    %cst_9 = arith.constant 0.000000e+00 : bf16
    %22 = vector.broadcast %cst_9 : bf16 to vector<16x19xbf16>
    %23 = arith.truncf %21 : vector<16x324xf32> to vector<16x324xbf16>
    %cst_10 = arith.constant 0.000000e+00 : bf16
    %24 = vector.broadcast %cst_10 : bf16 to vector<16x41xbf16>
    %25 = tpu.concatenate %22, %23, %24 in 1 : vector<16x19xbf16>, vector<16x324xbf16>, vector<16x41xbf16> -> vector<16x384xbf16>
    %26 = vector.extract_strided_slice %25 {offsets = [0, 19], sizes = [16, 324], strides = [1, 1]} : vector<16x384xbf16> to vector<16x324xbf16>
    %27 = vector.extract_strided_slice %25 {offsets = [0, 20], sizes = [16, 324], strides = [1, 1]} : vector<16x384xbf16> to vector<16x324xbf16>
    %28 = vector.extract_strided_slice %25 {offsets = [0, 37], sizes = [16, 324], strides = [1, 1]} : vector<16x384xbf16> to vector<16x324xbf16>
    %29 = vector.extract_strided_slice %25 {offsets = [0, 38], sizes = [16, 324], strides = [1, 1]} : vector<16x384xbf16> to vector<16x324xbf16>
    %30 = tpu.concatenate %26, %27, %28, %29 in 0 : vector<16x324xbf16>, vector<16x324xbf16>, vector<16x324xbf16>, vector<16x324xbf16> -> vector<64x324xbf16>
    %c0_11 = arith.constant 0 : index
    %c0_12 = arith.constant 0 : index
    %31 = vector.load %arg4[%c0_11, %c0_12] : memref<16x64xbf16, #tpu.memory_space<vmem>>, vector<16x64xbf16>
    %cst_13 = arith.constant dense<0.000000e+00> : vector<16x324xf32>
    %32 = tpu.matmul %31, %30, %cst_13 {dimension_numbers = #tpu.dot_dimension_numbers<[1], [0], [0], [1], [0, 0, 1, 1], [], []>} : vector<16x64xbf16>, vector<64x324xbf16>, vector<16x324xf32> -> vector<16x324xf32>
    %c0_14 = arith.constant 0 : index
    %c0_15 = arith.constant 0 : index
    %33 = vector.load %arg5[%c0_14, %c0_15] : memref<16x128xf32, #tpu.memory_space<vmem>>, vector<16x1xf32>
    %34 = vector.broadcast %33 : vector<16x1xf32> to vector<16x324xf32>
    %35 = arith.addf %32, %34 : vector<16x324xf32>
    %cst_16 = arith.constant 0.000000e+00 : f32
    %36 = vector.broadcast %cst_16 : f32 to vector<16x324xf32>
    %37 = arith.maximumf %35, %36 : vector<16x324xf32>
    %38 = arith.truncf %37 : vector<16x324xf32> to vector<16x324xbf16>
    %cst_17 = arith.constant 0.000000e+00 : bf16
    %39 = vector.broadcast %cst_17 : bf16 to vector<16x60xbf16>
    %40 = tpu.concatenate %38, %39 in 1 : vector<16x324xbf16>, vector<16x60xbf16> -> vector<16x384xbf16>
    %c0_18 = arith.constant 0 : index
    %c0_19 = arith.constant 0 : index
    %c0_20 = arith.constant 0 : index
    %41 = vector.load %arg7[%c0_18, %c0_19, %c0_20] : memref<1x16x384xbf16, #tpu.memory_space<vmem>>, vector<1x16x384xbf16>
    %42 = vector.shape_cast %41 : vector<1x16x384xbf16> to vector<16x384xbf16>
    %43 = vector.shape_cast %40 : vector<16x384xbf16> to vector<1x16x384xbf16>
    tpu.vector_store %arg7[%c0_18, %c0_19, %c0_20], %43 {strides = array<i32>} : memref<1x16x384xbf16, #tpu.memory_space<vmem>>, vector<1x16x384xbf16>,
    return
  }
  func.func @transform_0(%arg0: i32) -> (i32, i32, i32) {
    %c0_i32 = arith.constant 0 : i32
    %c0_i32_0 = arith.constant 0 : i32
    %c0_i32_1 = arith.constant 0 : i32
    return %arg0, %c0_i32, %c0_i32_0 : i32, i32, i32
  }
  func.func @transform_1(%arg0: i32) -> (i32, i32) {
    %c0_i32 = arith.constant 0 : i32
    %c0_i32_0 = arith.constant 0 : i32
    %c0_i32_1 = arith.constant 0 : i32
    return %c0_i32, %c0_i32_0 : i32, i32
  }
  func.func @transform_2(%arg0: i32) -> (i32, i32) {
    %c0_i32 = arith.constant 0 : i32
    %c0_i32_0 = arith.constant 0 : i32
    %c0_i32_1 = arith.constant 0 : i32
    return %c0_i32, %c0_i32_0 : i32, i32
  }
  func.func @transform_3(%arg0: i32) -> (i32, i32) {
    %c0_i32 = arith.constant 0 : i32
    %c0_i32_0 = arith.constant 0 : i32
    %c0_i32_1 = arith.constant 0 : i32
    return %c0_i32, %c0_i32_0 : i32, i32
  }
  func.func @transform_4(%arg0: i32) -> (i32, i32) {
    %c0_i32 = arith.constant 0 : i32
    %c0_i32_0 = arith.constant 0 : i32
    %c0_i32_1 = arith.constant 0 : i32
    return %c0_i32, %c0_i32_0 : i32, i32
  }
  func.func @transform_5(%arg0: i32) -> (i32, i32) {
    %c0_i32 = arith.constant 0 : i32
    %c0_i32_0 = arith.constant 0 : i32
    %c0_i32_1 = arith.constant 0 : i32
    return %c0_i32, %c0_i32_0 : i32, i32
  }
  func.func @transform_6(%arg0: i32) -> (i32, i32, i32) {
    %c0_i32 = arith.constant 0 : i32
    %c0_i32_0 = arith.constant 0 : i32
    %c0_i32_1 = arith.constant 0 : i32
    return %arg0, %c0_i32, %c0_i32_0 : i32, i32, i32
  }
}

module attributes {stable_mosaic.version = 11 : i64} {
  func.func @kernel(%arg0: i32, %arg1: memref<1x16x1280xbf16, #tpu.memory_space<vmem>>, %arg2: memref<16x144xbf16, #tpu.memory_space<vmem>>, %arg3: memref<16x128xf32, #tpu.memory_space<vmem>>, %arg4: memref<16x144xbf16, #tpu.memory_space<vmem>>, %arg5: memref<16x128xf32, #tpu.memory_space<vmem>>, %arg6: memref<1x1156xf32, #tpu.memory_space<vmem>>, %arg7: memref<1x16x1280xbf16, #tpu.memory_space<vmem>>) attributes {dimension_semantics = [#tpu.dimension_semantics<parallel>], iteration_bounds = array<i64: 2>, scalar_prefetch = 0 : i64, scratch_operands = 0 : i64, tpu.core_type = #tpu.core_type<tc>, window_params = [{transform_indices = @transform_0, window_bounds = array<i64: 1, 16, 1280>}, {pipeline_mode = #tpu.pipeline_mode<synchronous>, transform_indices = @transform_1, window_bounds = array<i64: 16, 144>}, {pipeline_mode = #tpu.pipeline_mode<synchronous>, transform_indices = @transform_2, window_bounds = array<i64: 16, 128>}, {pipeline_mode = #tpu.pipeline_mode<synchronous>, transform_indices = @transform_3, window_bounds = array<i64: 16, 144>}, {pipeline_mode = #tpu.pipeline_mode<synchronous>, transform_indices = @transform_4, window_bounds = array<i64: 16, 128>}, {pipeline_mode = #tpu.pipeline_mode<synchronous>, transform_indices = @transform_5, window_bounds = array<i64: 1, 1156>}, {transform_indices = @transform_6, window_bounds = array<i64: 1, 16, 1280>}]} {
    %c0 = arith.constant 0 : index
    %c0_0 = arith.constant 0 : index
    %c0_1 = arith.constant 0 : index
    %0 = vector.load %arg1[%c0, %c0_0, %c0_1] : memref<1x16x1280xbf16, #tpu.memory_space<vmem>>, vector<1x16x1280xbf16>
    %1 = vector.shape_cast %0 : vector<1x16x1280xbf16> to vector<16x1280xbf16>
    %2 = vector.extract_strided_slice %1 {offsets = [0, 0], sizes = [16, 1156], strides = [1, 1]} : vector<16x1280xbf16> to vector<16x1156xbf16>
    %3 = vector.extract_strided_slice %1 {offsets = [0, 1], sizes = [16, 1156], strides = [1, 1]} : vector<16x1280xbf16> to vector<16x1156xbf16>
    %4 = vector.extract_strided_slice %1 {offsets = [0, 2], sizes = [16, 1156], strides = [1, 1]} : vector<16x1280xbf16> to vector<16x1156xbf16>
    %5 = vector.extract_strided_slice %1 {offsets = [0, 34], sizes = [16, 1156], strides = [1, 1]} : vector<16x1280xbf16> to vector<16x1156xbf16>
    %6 = vector.extract_strided_slice %1 {offsets = [0, 35], sizes = [16, 1156], strides = [1, 1]} : vector<16x1280xbf16> to vector<16x1156xbf16>
    %7 = vector.extract_strided_slice %1 {offsets = [0, 36], sizes = [16, 1156], strides = [1, 1]} : vector<16x1280xbf16> to vector<16x1156xbf16>
    %8 = vector.extract_strided_slice %1 {offsets = [0, 68], sizes = [16, 1156], strides = [1, 1]} : vector<16x1280xbf16> to vector<16x1156xbf16>
    %9 = vector.extract_strided_slice %1 {offsets = [0, 69], sizes = [16, 1156], strides = [1, 1]} : vector<16x1280xbf16> to vector<16x1156xbf16>
    %10 = vector.extract_strided_slice %1 {offsets = [0, 70], sizes = [16, 1156], strides = [1, 1]} : vector<16x1280xbf16> to vector<16x1156xbf16>
    %11 = tpu.concatenate %2, %3, %4, %5, %6, %7, %8, %9, %10 in 0 : vector<16x1156xbf16>, vector<16x1156xbf16>, vector<16x1156xbf16>, vector<16x1156xbf16>, vector<16x1156xbf16>, vector<16x1156xbf16>, vector<16x1156xbf16>, vector<16x1156xbf16>, vector<16x1156xbf16> -> vector<144x1156xbf16>
    %c0_2 = arith.constant 0 : index
    %c0_3 = arith.constant 0 : index
    %12 = vector.load %arg2[%c0_2, %c0_3] : memref<16x144xbf16, #tpu.memory_space<vmem>>, vector<16x144xbf16>
    %cst = arith.constant dense<0.000000e+00> : vector<16x1156xf32>
    %13 = tpu.matmul %12, %11, %cst {dimension_numbers = #tpu.dot_dimension_numbers<[1], [0], [0], [1], [0, 0, 1, 1], [], []>} : vector<16x144xbf16>, vector<144x1156xbf16>, vector<16x1156xf32> -> vector<16x1156xf32>
    %c0_4 = arith.constant 0 : index
    %c0_5 = arith.constant 0 : index
    %14 = vector.load %arg3[%c0_4, %c0_5] : memref<16x128xf32, #tpu.memory_space<vmem>>, vector<16x1xf32>
    %15 = vector.broadcast %14 : vector<16x1xf32> to vector<16x1156xf32>
    %16 = arith.addf %13, %15 : vector<16x1156xf32>
    %cst_6 = arith.constant 0.000000e+00 : f32
    %17 = vector.broadcast %cst_6 : f32 to vector<16x1156xf32>
    %18 = arith.maximumf %16, %17 : vector<16x1156xf32>
    %c0_7 = arith.constant 0 : index
    %c0_8 = arith.constant 0 : index
    %19 = vector.load %arg6[%c0_7, %c0_8] : memref<1x1156xf32, #tpu.memory_space<vmem>>, vector<1x1156xf32>
    %20 = vector.broadcast %19 : vector<1x1156xf32> to vector<16x1156xf32>
    %21 = arith.mulf %18, %20 : vector<16x1156xf32>
    %cst_9 = arith.constant 0.000000e+00 : bf16
    %22 = vector.broadcast %cst_9 : bf16 to vector<16x35xbf16>
    %23 = arith.truncf %21 : vector<16x1156xf32> to vector<16x1156xbf16>
    %cst_10 = arith.constant 0.000000e+00 : bf16
    %24 = vector.broadcast %cst_10 : bf16 to vector<16x89xbf16>
    %25 = tpu.concatenate %22, %23, %24 in 1 : vector<16x35xbf16>, vector<16x1156xbf16>, vector<16x89xbf16> -> vector<16x1280xbf16>
    %26 = vector.extract_strided_slice %25 {offsets = [0, 0], sizes = [16, 1156], strides = [1, 1]} : vector<16x1280xbf16> to vector<16x1156xbf16>
    %27 = vector.extract_strided_slice %25 {offsets = [0, 1], sizes = [16, 1156], strides = [1, 1]} : vector<16x1280xbf16> to vector<16x1156xbf16>
    %28 = vector.extract_strided_slice %25 {offsets = [0, 2], sizes = [16, 1156], strides = [1, 1]} : vector<16x1280xbf16> to vector<16x1156xbf16>
    %29 = vector.extract_strided_slice %25 {offsets = [0, 34], sizes = [16, 1156], strides = [1, 1]} : vector<16x1280xbf16> to vector<16x1156xbf16>
    %30 = vector.extract_strided_slice %25 {offsets = [0, 35], sizes = [16, 1156], strides = [1, 1]} : vector<16x1280xbf16> to vector<16x1156xbf16>
    %31 = vector.extract_strided_slice %25 {offsets = [0, 36], sizes = [16, 1156], strides = [1, 1]} : vector<16x1280xbf16> to vector<16x1156xbf16>
    %32 = vector.extract_strided_slice %25 {offsets = [0, 68], sizes = [16, 1156], strides = [1, 1]} : vector<16x1280xbf16> to vector<16x1156xbf16>
    %33 = vector.extract_strided_slice %25 {offsets = [0, 69], sizes = [16, 1156], strides = [1, 1]} : vector<16x1280xbf16> to vector<16x1156xbf16>
    %34 = vector.extract_strided_slice %25 {offsets = [0, 70], sizes = [16, 1156], strides = [1, 1]} : vector<16x1280xbf16> to vector<16x1156xbf16>
    %35 = tpu.concatenate %26, %27, %28, %29, %30, %31, %32, %33, %34 in 0 : vector<16x1156xbf16>, vector<16x1156xbf16>, vector<16x1156xbf16>, vector<16x1156xbf16>, vector<16x1156xbf16>, vector<16x1156xbf16>, vector<16x1156xbf16>, vector<16x1156xbf16>, vector<16x1156xbf16> -> vector<144x1156xbf16>
    %c0_11 = arith.constant 0 : index
    %c0_12 = arith.constant 0 : index
    %36 = vector.load %arg4[%c0_11, %c0_12] : memref<16x144xbf16, #tpu.memory_space<vmem>>, vector<16x144xbf16>
    %cst_13 = arith.constant dense<0.000000e+00> : vector<16x1156xf32>
    %37 = tpu.matmul %36, %35, %cst_13 {dimension_numbers = #tpu.dot_dimension_numbers<[1], [0], [0], [1], [0, 0, 1, 1], [], []>} : vector<16x144xbf16>, vector<144x1156xbf16>, vector<16x1156xf32> -> vector<16x1156xf32>
    %c0_14 = arith.constant 0 : index
    %c0_15 = arith.constant 0 : index
    %38 = vector.load %arg5[%c0_14, %c0_15] : memref<16x128xf32, #tpu.memory_space<vmem>>, vector<16x1xf32>
    %39 = vector.broadcast %38 : vector<16x1xf32> to vector<16x1156xf32>
    %40 = arith.addf %37, %39 : vector<16x1156xf32>
    %41 = arith.truncf %40 : vector<16x1156xf32> to vector<16x1156xbf16>
    %cst_16 = arith.constant 0.000000e+00 : bf16
    %42 = vector.broadcast %cst_16 : bf16 to vector<16x124xbf16>
    %43 = tpu.concatenate %41, %42 in 1 : vector<16x1156xbf16>, vector<16x124xbf16> -> vector<16x1280xbf16>
    %c0_17 = arith.constant 0 : index
    %c0_18 = arith.constant 0 : index
    %c0_19 = arith.constant 0 : index
    %44 = vector.load %arg7[%c0_17, %c0_18, %c0_19] : memref<1x16x1280xbf16, #tpu.memory_space<vmem>>, vector<1x16x1280xbf16>
    %45 = vector.shape_cast %44 : vector<1x16x1280xbf16> to vector<16x1280xbf16>
    %46 = vector.shape_cast %43 : vector<16x1280xbf16> to vector<1x16x1280xbf16>
    tpu.vector_store %arg7[%c0_17, %c0_18, %c0_19], %46 {strides = array<i32>} : memref<1x16x1280xbf16, #tpu.memory_space<vmem>>, vector<1x16x1280xbf16>,
    return
  }
  func.func @transform_0(%arg0: i32) -> (i32, i32, i32) {
    %c0_i32 = arith.constant 0 : i32
    %c0_i32_0 = arith.constant 0 : i32
    %c0_i32_1 = arith.constant 0 : i32
    return %arg0, %c0_i32, %c0_i32_0 : i32, i32, i32
  }
  func.func @transform_1(%arg0: i32) -> (i32, i32) {
    %c0_i32 = arith.constant 0 : i32
    %c0_i32_0 = arith.constant 0 : i32
    %c0_i32_1 = arith.constant 0 : i32
    return %c0_i32, %c0_i32_0 : i32, i32
  }
  func.func @transform_2(%arg0: i32) -> (i32, i32) {
    %c0_i32 = arith.constant 0 : i32
    %c0_i32_0 = arith.constant 0 : i32
    %c0_i32_1 = arith.constant 0 : i32
    return %c0_i32, %c0_i32_0 : i32, i32
  }
  func.func @transform_3(%arg0: i32) -> (i32, i32) {
    %c0_i32 = arith.constant 0 : i32
    %c0_i32_0 = arith.constant 0 : i32
    %c0_i32_1 = arith.constant 0 : i32
    return %c0_i32, %c0_i32_0 : i32, i32
  }
  func.func @transform_4(%arg0: i32) -> (i32, i32) {
    %c0_i32 = arith.constant 0 : i32
    %c0_i32_0 = arith.constant 0 : i32
    %c0_i32_1 = arith.constant 0 : i32
    return %c0_i32, %c0_i32_0 : i32, i32
  }
  func.func @transform_5(%arg0: i32) -> (i32, i32) {
    %c0_i32 = arith.constant 0 : i32
    %c0_i32_0 = arith.constant 0 : i32
    %c0_i32_1 = arith.constant 0 : i32
    return %c0_i32, %c0_i32_0 : i32, i32
  }
  func.func @transform_6(%arg0: i32) -> (i32, i32, i32) {
    %c0_i32 = arith.constant 0 : i32
    %c0_i32_0 = arith.constant 0 : i32
    %c0_i32_1 = arith.constant 0 : i32
    return %arg0, %c0_i32, %c0_i32_0 : i32, i32, i32
  }
}

</mosaic_0001>

<llo_original>
// kernel: forward.12
$region0: #{forward.12}
  #allocation0 [shape = 'u32[]', space=smem, size = 0x4, offset = 0x4, fixed_abs, tag = 'smem constant byte address 0x4 - core index']
  #allocation1 [shape = 'u32[144,128]{1,0:T(1,128)}', space=vmem, size = 0x12000, scoped, tag = 'internal scratch']
  %s0 = inlined_call_operand.vmem [shape: bf16[2,16,1280], index: 0, kind: input, shape index: {}]
  %s1 = inlined_call_operand.vmem [shape: bf16[16,144], index: 1, kind: input, shape index: {}]
  %s2 = inlined_call_operand.vmem [shape: f32[16,128], index: 2, kind: input, shape index: {}]
  %s3 = inlined_call_operand.vmem [shape: bf16[16,144], index: 3, kind: input, shape index: {}]
  %s4 = inlined_call_operand.vmem [shape: f32[16,128], index: 4, kind: input, shape index: {}]
  %s5 = inlined_call_operand.vmem [shape: f32[1,1156], index: 5, kind: input, shape index: {}]
  %s6 = inlined_call_operand.vmem [shape: bf16[2,16,1280], index: 6, kind: output, shape index: {}]
  %s7 = sld [smem:[#allocation0]]
  $region57: #{forward.12} parent=0
    _
  %s9 = ssub.s32 1, %s7
  %s10 = scalar_select 0, %s9, %s7
  loop: start=0, step=1, limit=4
  $region2: #{forward.12} parent=0 // loop_pre_header
    _
  $region3: #{forward.12} parent=0 // loop_header
    %s12 = sphi 0, %s16
    %p13 = scmp.ge.s32.totalorder %s12, 4
    %s22 = sphi 0, %s24
    %s25 = sphi 0, %s22
    %s26 = sphi 0, %s25
    %s42 = sphi 0, %s26
    %s46 = sphi 0, %s46
    %s48 = sphi 0, %s46
    %s49 = sphi 0, %s48
    %s63 = sphi 0, %s49
    %s67 = sphi 0, %s67
    %s69 = sphi 0, %s67
    %s70 = sphi 0, %s69
    %s84 = sphi 0, %s70
    %s88 = sphi 0, %s88
    %s90 = sphi 0, %s88
    %s91 = sphi 0, %s90
    %s105 = sphi 0, %s91
    %s109 = sphi 0, %s109
    %s111 = sphi 0, %s109
    %s112 = sphi 0, %s111
    %s126 = sphi 0, %s112
    %s130 = sphi 0, %s130
    %s132 = sphi 0, %s130
    %s133 = sphi 0, %s132
    %s147 = sphi 0, %s133
    %s153 = sphi 0, %s155
    %s156 = sphi 0, %s153
    %s157 = sphi 0, %s156
    %s173 = sphi 0, %s157
  $region4: #{forward.12} parent=0 // loop_header_branch
    %15 = sbr.rel (%p13) target = $region8
  $region5: #{forward.12} parent=0 // loop_body
    %s17 = ssub.s32 %s12, 1
    %s18 = ssub.s32 %s12, 2
    %s19 = sadd.s32 %s12, 1
    %s20 = ssub.s32 %s12, %s19
    %p21 = scmp.eq.s32.totalorder %s20, 0
    %s23 = sadd.s32 %s22, 1
    %s24 = scalar_select %p21, %s22, %s23
    %p27 = pneg %p21
    %p28 = scmp.eq.s32.totalorder %s12, 1
    %p29 = por %p27, %p28
    %p30 = scmp.ne.s32.totalorder %s22, %s25
    %p31 = scmp.eq.s32.totalorder %s12, 0
    %p32 = por %p30, %p31
    %p33 = scmp.ne.s32.totalorder %s22, %s25
    %p34 = scmp.eq.s32.totalorder %s17, 1
    %p35 = por %p33, %p34
    %p36 = scmp.ne.s32.totalorder %s25, %s26
    %p37 = scmp.eq.s32.totalorder %s17, 0
    %p38 = por %p36, %p37
    %p39 = scmp.ne.s32.totalorder %s25, %s26
    %p40 = scmp.eq.s32.totalorder %s18, 1
    %p41 = por %p39, %p40
    %p43 = scmp.ne.s32.totalorder %s26, %s42
    %p44 = scmp.eq.s32.totalorder %s18, 0
    %p45 = por %p43, %p44
    %s47 = sadd.s32 %s46, 1
    %p50 = scmp.eq.s32.totalorder %s12, 1
    %p51 = scmp.ne.s32.totalorder %s46, %s48
    %p52 = scmp.eq.s32.totalorder %s12, 0
    %p53 = por %p51, %p52
    %p54 = scmp.ne.s32.totalorder %s46, %s48
    %p55 = scmp.eq.s32.totalorder %s17, 1
    %p56 = por %p54, %p55
    %p57 = scmp.ne.s32.totalorder %s48, %s49
    %p58 = scmp.eq.s32.totalorder %s17, 0
    %p59 = por %p57, %p58
    %p60 = scmp.ne.s32.totalorder %s48, %s49
    %p61 = scmp.eq.s32.totalorder %s18, 1
    %p62 = por %p60, %p61
    %p64 = scmp.ne.s32.totalorder %s49, %s63
    %p65 = scmp.eq.s32.totalorder %s18, 0
    %p66 = por %p64, %p65
    %s68 = sadd.s32 %s67, 1
    %p71 = scmp.eq.s32.totalorder %s12, 1
    %p72 = scmp.ne.s32.totalorder %s67, %s69
    %p73 = scmp.eq.s32.totalorder %s12, 0
    %p74 = por %p72, %p73
    %p75 = scmp.ne.s32.totalorder %s67, %s69
    %p76 = scmp.eq.s32.totalorder %s17, 1
    %p77 = por %p75, %p76
    %p78 = scmp.ne.s32.totalorder %s69, %s70
    %p79 = scmp.eq.s32.totalorder %s17, 0
    %p80 = por %p78, %p79
    %p81 = scmp.ne.s32.totalorder %s69, %s70
    %p82 = scmp.eq.s32.totalorder %s18, 1
    %p83 = por %p81, %p82
    %p85 = scmp.ne.s32.totalorder %s70, %s84
    %p86 = scmp.eq.s32.totalorder %s18, 0
    %p87 = por %p85, %p86
    %s89 = sadd.s32 %s88, 1
    %p92 = scmp.eq.s32.totalorder %s12, 1
    %p93 = scmp.ne.s32.totalorder %s88, %s90
    %p94 = scmp.eq.s32.totalorder %s12, 0
    %p95 = por %p93, %p94
    %p96 = scmp.ne.s32.totalorder %s88, %s90
    %p97 = scmp.eq.s32.totalorder %s17, 1
    %p98 = por %p96, %p97
    %p99 = scmp.ne.s32.totalorder %s90, %s91
    %p100 = scmp.eq.s32.totalorder %s17, 0
    %p101 = por %p99, %p100
    %p102 = scmp.ne.s32.totalorder %s90, %s91
    %p103 = scmp.eq.s32.totalorder %s18, 1
    %p104 = por %p102, %p103
    %p106 = scmp.ne.s32.totalorder %s91, %s105
    %p107 = scmp.eq.s32.totalorder %s18, 0
    %p108 = por %p106, %p107
    %s110 = sadd.s32 %s109, 1
    %p113 = scmp.eq.s32.totalorder %s12, 1
    %p114 = scmp.ne.s32.totalorder %s109, %s111
    %p115 = scmp.eq.s32.totalorder %s12, 0
    %p116 = por %p114, %p115
    %p117 = scmp.ne.s32.totalorder %s109, %s111
    %p118 = scmp.eq.s32.totalorder %s17, 1
    %p119 = por %p117, %p118
    %p120 = scmp.ne.s32.totalorder %s111, %s112
    %p121 = scmp.eq.s32.totalorder %s17, 0
    %p122 = por %p120, %p121
    %p123 = scmp.ne.s32.totalorder %s111, %s112
    %p124 = scmp.eq.s32.totalorder %s18, 1
    %p125 = por %p123, %p124
    %p127 = scmp.ne.s32.totalorder %s112, %s126
    %p128 = scmp.eq.s32.totalorder %s18, 0
    %p129 = por %p127, %p128
    %s131 = sadd.s32 %s130, 1
    %p134 = scmp.eq.s32.totalorder %s12, 1
    %p135 = scmp.ne.s32.totalorder %s130, %s132
    %p136 = scmp.eq.s32.totalorder %s12, 0
    %p137 = por %p135, %p136
    %p138 = scmp.ne.s32.totalorder %s130, %s132
    %p139 = scmp.eq.s32.totalorder %s17, 1
    %p140 = por %p138, %p139
    %p141 = scmp.ne.s32.totalorder %s132, %s133
    %p142 = scmp.eq.s32.totalorder %s17, 0
    %p143 = por %p141, %p142
    %p144 = scmp.ne.s32.totalorder %s132, %s133
    %p145 = scmp.eq.s32.totalorder %s18, 1
    %p146 = por %p144, %p145
    %p148 = scmp.ne.s32.totalorder %s133, %s147
    %p149 = scmp.eq.s32.totalorder %s18, 0
    %p150 = por %p148, %p149
    %s151 = ssub.s32 %s12, %s19
    %p152 = scmp.eq.s32.totalorder %s151, 0
    %s154 = sadd.s32 %s153, 1
    %s155 = scalar_select %p152, %s153, %s154
    %p158 = pneg %p152
    %p159 = scmp.eq.s32.totalorder %s12, 1
    %p160 = por %p158, %p159
    %p161 = scmp.ne.s32.totalorder %s153, %s156
    %p162 = scmp.eq.s32.totalorder %s12, 0
    %p163 = por %p161, %p162
    %p164 = scmp.ne.s32.totalorder %s153, %s156
    %p165 = scmp.eq.s32.totalorder %s17, 1
    %p166 = por %p164, %p165
    %p167 = scmp.ne.s32.totalorder %s156, %s157
    %p168 = scmp.eq.s32.totalorder %s17, 0
    %p169 = por %p167, %p168
    %p170 = scmp.ne.s32.totalorder %s156, %s157
    %p171 = scmp.eq.s32.totalorder %s18, 1
    %p172 = por %p170, %p171
    %p174 = scmp.ne.s32.totalorder %s157, %s173
    %p175 = scmp.eq.s32.totalorder %s18, 0
    %p176 = por %p174, %p175
    %p177 = scmp.le.s32.totalorder 1, %s12
    %p178 = scmp.lt.s32.totalorder %s12, 3
    %p179 = pnand %p177, %p178
    %p180 = pneg %p179
    // Predicated region
    $region9: #{forward.12} parent=5 // pred_check
      _
    $region10: #{forward.12} parent=5 // pred_check_branch
      %182 = sbr.rel (%p179) target = $region12
    $region11: #{forward.12} parent=5 // pred_region
      %s183 = ssub.s32 %s12, 1
      // Predicated region
      $region13: #{forward.12} parent=11 // pred_check
        %p184 = pneg %p59
      $region14: #{forward.12} parent=11 // pred_check_branch
        %186 = sbr.rel (%p184) target = $region16
      $region15: #{forward.12} parent=11 // pred_region
        _
      $region16: #{forward.12} parent=11 // pred_fallthru
        _
      // Predicated region
      $region17: #{forward.12} parent=11 // pred_check
        %p187 = pneg %p80
      $region18: #{forward.12} parent=11 // pred_check_branch
        %189 = sbr.rel (%p187) target = $region20
      $region19: #{forward.12} parent=11 // pred_region
        _
      $region20: #{forward.12} parent=11 // pred_fallthru
        _
      // Predicated region
      $region21: #{forward.12} parent=11 // pred_check
        %p190 = pneg %p101
      $region22: #{forward.12} parent=11 // pred_check_branch
        %192 = sbr.rel (%p190) target = $region24
      $region23: #{forward.12} parent=11 // pred_region
        _
      $region24: #{forward.12} parent=11 // pred_fallthru
        _
      // Predicated region
      $region25: #{forward.12} parent=11 // pred_check
        %p193 = pneg %p122
      $region26: #{forward.12} parent=11 // pred_check_branch
        %195 = sbr.rel (%p193) target = $region28
      $region27: #{forward.12} parent=11 // pred_region
        _
      $region28: #{forward.12} parent=11 // pred_fallthru
        _
      // Predicated region
      $region29: #{forward.12} parent=11 // pred_check
        %p196 = pneg %p143
      $region30: #{forward.12} parent=11 // pred_check_branch
        %198 = sbr.rel (%p196) target = $region32
      $region31: #{forward.12} parent=11 // pred_region
        _
      $region32: #{forward.12} parent=11 // pred_fallthru
        _
    $region12: #{forward.12} parent=5 // pred_fallthru
      _
    %p199 = scmp.lt.s32.totalorder %s12, 2
    // Predicated region
    $region33: #{forward.12} parent=5 // pred_check
      %p200 = pneg %p199
    $region34: #{forward.12} parent=5 // pred_check_branch
      %202 = sbr.rel (%p200) target = $region36
    $region35: #{forward.12} parent=5 // pred_region
      // Predicated region
      $region37: #{forward.12} parent=35 // pred_check
        %p203 = pneg %p32
      $region38: #{forward.12} parent=35 // pred_check_branch
        %205 = sbr.rel (%p203) target = $region40
      $region39: #{forward.12} parent=35 // pred_region
        %p206 = scmp.lt.s32.totalorder %s12, 1
        %s207 = scalar_select %p206, %s12, 1
        %s208 = smul.addr %s207, 20
        %s209 = smul.addr %s208, 4
        %s210 = scalar_lea.vmem %s0, %s209
      $region40: #{forward.12} parent=35 // pred_fallthru
        _
    $region36: #{forward.12} parent=5 // pred_fallthru
      _
    %p211 = scmp.le.s32.totalorder 1, %s12
    %p212 = scmp.lt.s32.totalorder %s12, 3
    %p213 = pnand %p211, %p212
    %p214 = pneg %p213
    // Predicated region
    $region41: #{forward.12} parent=5 // pred_check
      _
    $region42: #{forward.12} parent=5 // pred_check_branch
      %216 = sbr.rel (%p213) target = $region44
    $region43: #{forward.12} parent=5 // pred_region
      %s217 = ssub.s32 %s12, 1
      %p218 = scmp.lt.s32.totalorder %s17, 1
      %s219 = scalar_select %p218, %s17, 1
      %s220 = smul.addr %s219, 20
      %s221 = smul.addr %s220, 4
      %s222 = scalar_lea.vmem %s0, %s221
      %p223 = pneg %p38
      %p224 = pneg %p35
      %p225 = pneg %p59
      %p226 = pneg %p56
      %p227 = pneg %p80
      %p228 = pneg %p77
      %p229 = pneg %p101
      %p230 = pneg %p98
      %p231 = pneg %p122
      %p232 = pneg %p119
      %p233 = pneg %p143
      %p234 = pneg %p140
      %p235 = pneg %p169
      %p236 = pneg %p166
      %p237 = scmp.lt.s32.totalorder %s17, 1
      %s238 = scalar_select %p237, %s17, 1
      %s239 = smul.addr %s238, 20
      %s240 = smul.addr %s239, 4
      %s241 = scalar_lea.vmem %s6, %s240
      %p242 = scmp.lt.s32.totalorder %s17, 1
      %s243 = scalar_select %p242, %s17, 1
      %s244 = smul.addr %s243, 20
      %s245 = smul.addr %s244, 4
      %s246 = scalar_lea.vmem %s0, %s245
      %p247 = scmp.lt.s32.totalorder %s17, 1
      %s248 = scalar_select %p247, %s17, 1
      %s249 = smul.addr %s248, 20
      %s250 = smul.addr %s249, 4
      %s251 = scalar_lea.vmem %s6, %s250
      %v253 = vld [vmem:[%s246] sm:$0xff]
      %v254 = vld [vmem:[%s246 + $0x8] sm:$0xff]
      %v255 = vld [vmem:[%s246 + $0x10] sm:$0xff]
      %v256 = vld [vmem:[%s246 + $0x18] sm:$0xff]
      %v257 = vld [vmem:[%s246 + $0x20] sm:$0xff]
      %v258 = vld [vmem:[%s246 + $0x28] sm:$0xff]
      %v259 = vld [vmem:[%s246 + $0x30] sm:$0xff]
      %v260 = vld [vmem:[%s246 + $0x38] sm:$0xff]
      %v261 = vld [vmem:[%s246 + $0x40] sm:$0xff]
      %v262 = vld [vmem:[%s246 + $0x48] sm:$0xff]
      %v273 = vunpack.c.l.b16 %v253
      %v274 = vunpack.c.h.b16 %v253
      %v275 = vunpack.c.l.b16 %v254
      %v276 = vunpack.c.h.b16 %v254
      %v277 = vunpack.c.l.b16 %v255
      %v278 = vunpack.c.h.b16 %v255
      %v279 = vunpack.c.l.b16 %v256
      %v280 = vunpack.c.h.b16 %v256
      %v281 = vunpack.c.l.b16 %v257
      %v282 = vunpack.c.h.b16 %v257
      %v283 = vunpack.c.l.b16 %v258
      %v284 = vunpack.c.h.b16 %v258
      %v285 = vunpack.c.l.b16 %v259
      %v286 = vunpack.c.h.b16 %v259
      %v287 = vunpack.c.l.b16 %v260
      %v288 = vunpack.c.h.b16 %v260
      %v289 = vunpack.c.l.b16 %v261
      %v290 = vunpack.c.h.b16 %v261
      %v291 = vunpack.c.l.b16 %v262
      %v292 = vunpack.c.h.b16 %v262
      %v293 = vpack.c.b16 %v283, %v273
      %v294 = vpack.c.b16 %v284, %v274
      %v295 = vpack.c.b16 %v285, %v275
      %v296 = vpack.c.b16 %v286, %v276
      %v297 = vpack.c.b16 %v287, %v277
      %v298 = vpack.c.b16 %v288, %v278
      %v299 = vpack.c.b16 %v289, %v279
      %v300 = vpack.c.b16 %v290, %v280
      %v301 = vpack.c.b16 %v291, %v281
      %v302 = vpack.c.b16 %v292, %v282
      %313 = vrot.lane.b32.xlu0 %v293, 127
      %v314 = vpop.permute.xlu0 %313
      %315 = vrot.lane.b32.xlu0 %v294, 127
      %v316 = vpop.permute.xlu0 %315
      %317 = vrot.lane.b32.xlu0 %v295, 127
      %v318 = vpop.permute.xlu0 %317
      %319 = vrot.lane.b32.xlu0 %v296, 127
      %v320 = vpop.permute.xlu0 %319
      %321 = vrot.lane.b32.xlu0 %v297, 127
      %v322 = vpop.permute.xlu0 %321
      %323 = vrot.lane.b32.xlu0 %v298, 127
      %v324 = vpop.permute.xlu0 %323
      %325 = vrot.lane.b32.xlu0 %v299, 127
      %v326 = vpop.permute.xlu0 %325
      %327 = vrot.lane.b32.xlu0 %v300, 127
      %v328 = vpop.permute.xlu0 %327
      %329 = vrot.lane.b32.xlu0 %v301, 127
      %v330 = vpop.permute.xlu0 %329
      %331 = vrot.lane.b32.xlu0 %v302, 127
      %v332 = vpop.permute.xlu0 %331
      %vm333 = vcmask 1039360
      %v334 = vsel %vm333, %v314, %v316
      %v335 = vsel %vm333, %v316, %v318
      %v336 = vsel %vm333, %v318, %v320
      %v337 = vsel %vm333, %v320, %v322
      %v338 = vsel %vm333, %v322, %v324
      %v339 = vsel %vm333, %v324, %v326
      %v340 = vsel %vm333, %v326, %v328
      %v341 = vsel %vm333, %v328, %v330
      %v342 = vsel %vm333, %v330, %v332
      %353 = vrot.lane.b32.xlu0 %v293, 126
      %v354 = vpop.permute.xlu0 %353
      %355 = vrot.lane.b32.xlu0 %v294, 126
      %v356 = vpop.permute.xlu0 %355
      %357 = vrot.lane.b32.xlu0 %v295, 126
      %v358 = vpop.permute.xlu0 %357
      %359 = vrot.lane.b32.xlu0 %v296, 126
      %v360 = vpop.permute.xlu0 %359
      %361 = vrot.lane.b32.xlu0 %v297, 126
      %v362 = vpop.permute.xlu0 %361
      %363 = vrot.lane.b32.xlu0 %v298, 126
      %v364 = vpop.permute.xlu0 %363
      %365 = vrot.lane.b32.xlu0 %v299, 126
      %v366 = vpop.permute.xlu0 %365
      %367 = vrot.lane.b32.xlu0 %v300, 126
      %v368 = vpop.permute.xlu0 %367
      %369 = vrot.lane.b32.xlu0 %v301, 126
      %v370 = vpop.permute.xlu0 %369
      %371 = vrot.lane.b32.xlu0 %v302, 126
      %v372 = vpop.permute.xlu0 %371
      %vm373 = vcmask 1031168
      %v374 = vsel %vm373, %v354, %v356
      %v375 = vsel %vm373, %v356, %v358
      %v376 = vsel %vm373, %v358, %v360
      %v377 = vsel %vm373, %v360, %v362
      %v378 = vsel %vm373, %v362, %v364
      %v379 = vsel %vm373, %v364, %v366
      %v380 = vsel %vm373, %v366, %v368
      %v381 = vsel %vm373, %v368, %v370
      %v382 = vsel %vm373, %v370, %v372
      %393 = vrot.lane.b32.xlu0 %v293, 94
      %v394 = vpop.permute.xlu0 %393
      %395 = vrot.lane.b32.xlu0 %v294, 94
      %v396 = vpop.permute.xlu0 %395
      %397 = vrot.lane.b32.xlu0 %v295, 94
      %v398 = vpop.permute.xlu0 %397
      %399 = vrot.lane.b32.xlu0 %v296, 94
      %v400 = vpop.permute.xlu0 %399
      %401 = vrot.lane.b32.xlu0 %v297, 94
      %v402 = vpop.permute.xlu0 %401
      %403 = vrot.lane.b32.xlu0 %v298, 94
      %v404 = vpop.permute.xlu0 %403
      %405 = vrot.lane.b32.xlu0 %v299, 94
      %v406 = vpop.permute.xlu0 %405
      %407 = vrot.lane.b32.xlu0 %v300, 94
      %v408 = vpop.permute.xlu0 %407
      %409 = vrot.lane.b32.xlu0 %v301, 94
      %v410 = vpop.permute.xlu0 %409
      %411 = vrot.lane.b32.xlu0 %v302, 94
      %v412 = vpop.permute.xlu0 %411
      %vm413 = vcmask 769024
      %v414 = vsel %vm413, %v394, %v396
      %v415 = vsel %vm413, %v396, %v398
      %v416 = vsel %vm413, %v398, %v400
      %v417 = vsel %vm413, %v400, %v402
      %v418 = vsel %vm413, %v402, %v404
      %v419 = vsel %vm413, %v404, %v406
      %v420 = vsel %vm413, %v406, %v408
      %v421 = vsel %vm413, %v408, %v410
      %v422 = vsel %vm413, %v410, %v412
      %433 = vrot.lane.b32.xlu0 %v293, 93
      %v434 = vpop.permute.xlu0 %433
      %435 = vrot.lane.b32.xlu0 %v294, 93
      %v436 = vpop.permute.xlu0 %435
      %437 = vrot.lane.b32.xlu0 %v295, 93
      %v438 = vpop.permute.xlu0 %437
      %439 = vrot.lane.b32.xlu0 %v296, 93
      %v440 = vpop.permute.xlu0 %439
      %441 = vrot.lane.b32.xlu0 %v297, 93
      %v442 = vpop.permute.xlu0 %441
      %443 = vrot.lane.b32.xlu0 %v298, 93
      %v444 = vpop.permute.xlu0 %443
      %445 = vrot.lane.b32.xlu0 %v299, 93
      %v446 = vpop.permute.xlu0 %445
      %447 = vrot.lane.b32.xlu0 %v300, 93
      %v448 = vpop.permute.xlu0 %447
      %449 = vrot.lane.b32.xlu0 %v301, 93
      %v450 = vpop.permute.xlu0 %449
      %451 = vrot.lane.b32.xlu0 %v302, 93
      %v452 = vpop.permute.xlu0 %451
      %vm453 = vcmask 760832
      %v454 = vsel %vm453, %v434, %v436
      %v455 = vsel %vm453, %v436, %v438
      %v456 = vsel %vm453, %v438, %v440
      %v457 = vsel %vm453, %v440, %v442
      %v458 = vsel %vm453, %v442, %v444
      %v459 = vsel %vm453, %v444, %v446
      %v460 = vsel %vm453, %v446, %v448
      %v461 = vsel %vm453, %v448, %v450
      %v462 = vsel %vm453, %v450, %v452
      %473 = vrot.lane.b32.xlu0 %v293, 92
      %v474 = vpop.permute.xlu0 %473
      %475 = vrot.lane.b32.xlu0 %v294, 92
      %v476 = vpop.permute.xlu0 %475
      %477 = vrot.lane.b32.xlu0 %v295, 92
      %v478 = vpop.permute.xlu0 %477
      %479 = vrot.lane.b32.xlu0 %v296, 92
      %v480 = vpop.permute.xlu0 %479
      %481 = vrot.lane.b32.xlu0 %v297, 92
      %v482 = vpop.permute.xlu0 %481
      %483 = vrot.lane.b32.xlu0 %v298, 92
      %v484 = vpop.permute.xlu0 %483
      %485 = vrot.lane.b32.xlu0 %v299, 92
      %v486 = vpop.permute.xlu0 %485
      %487 = vrot.lane.b32.xlu0 %v300, 92
      %v488 = vpop.permute.xlu0 %487
      %489 = vrot.lane.b32.xlu0 %v301, 92
      %v490 = vpop.permute.xlu0 %489
      %491 = vrot.lane.b32.xlu0 %v302, 92
      %v492 = vpop.permute.xlu0 %491
      %vm493 = vcmask 752640
      %v494 = vsel %vm493, %v474, %v476
      %v495 = vsel %vm493, %v476, %v478
      %v496 = vsel %vm493, %v478, %v480
      %v497 = vsel %vm493, %v480, %v482
      %v498 = vsel %vm493, %v482, %v484
      %v499 = vsel %vm493, %v484, %v486
      %v500 = vsel %vm493, %v486, %v488
      %v501 = vsel %vm493, %v488, %v490
      %v502 = vsel %vm493, %v490, %v492
      %513 = vrot.lane.b32.xlu0 %v293, 60
      %v514 = vpop.permute.xlu0 %513
      %515 = vrot.lane.b32.xlu0 %v294, 60
      %v516 = vpop.permute.xlu0 %515
      %517 = vrot.lane.b32.xlu0 %v295, 60
      %v518 = vpop.permute.xlu0 %517
      %519 = vrot.lane.b32.xlu0 %v296, 60
      %v520 = vpop.permute.xlu0 %519
      %521 = vrot.lane.b32.xlu0 %v297, 60
      %v522 = vpop.permute.xlu0 %521
      %523 = vrot.lane.b32.xlu0 %v298, 60
      %v524 = vpop.permute.xlu0 %523
      %525 = vrot.lane.b32.xlu0 %v299, 60
      %v526 = vpop.permute.xlu0 %525
      %527 = vrot.lane.b32.xlu0 %v300, 60
      %v528 = vpop.permute.xlu0 %527
      %529 = vrot.lane.b32.xlu0 %v301, 60
      %v530 = vpop.permute.xlu0 %529
      %531 = vrot.lane.b32.xlu0 %v302, 60
      %v532 = vpop.permute.xlu0 %531
      %vm533 = vcmask 490496
      %v534 = vsel %vm533, %v514, %v516
      %v535 = vsel %vm533, %v516, %v518
      %v536 = vsel %vm533, %v518, %v520
      %v537 = vsel %vm533, %v520, %v522
      %v538 = vsel %vm533, %v522, %v524
      %v539 = vsel %vm533, %v524, %v526
      %v540 = vsel %vm533, %v526, %v528
      %v541 = vsel %vm533, %v528, %v530
      %v542 = vsel %vm533, %v530, %v532
      %553 = vrot.lane.b32.xlu0 %v293, 59
      %v554 = vpop.permute.xlu0 %553
      %555 = vrot.lane.b32.xlu0 %v294, 59
      %v556 = vpop.permute.xlu0 %555
      %557 = vrot.lane.b32.xlu0 %v295, 59
      %v558 = vpop.permute.xlu0 %557
      %559 = vrot.lane.b32.xlu0 %v296, 59
      %v560 = vpop.permute.xlu0 %559
      %561 = vrot.lane.b32.xlu0 %v297, 59
      %v562 = vpop.permute.xlu0 %561
      %563 = vrot.lane.b32.xlu0 %v298, 59
      %v564 = vpop.permute.xlu0 %563
      %565 = vrot.lane.b32.xlu0 %v299, 59
      %v566 = vpop.permute.xlu0 %565
      %567 = vrot.lane.b32.xlu0 %v300, 59
      %v568 = vpop.permute.xlu0 %567
      %569 = vrot.lane.b32.xlu0 %v301, 59
      %v570 = vpop.permute.xlu0 %569
      %571 = vrot.lane.b32.xlu0 %v302, 59
      %v572 = vpop.permute.xlu0 %571
      %vm573 = vcmask 482304
      %v574 = vsel %vm573, %v554, %v556
      %v575 = vsel %vm573, %v556, %v558
      %v576 = vsel %vm573, %v558, %v560
      %v577 = vsel %vm573, %v560, %v562
      %v578 = vsel %vm573, %v562, %v564
      %v579 = vsel %vm573, %v564, %v566
      %v580 = vsel %vm573, %v566, %v568
      %v581 = vsel %vm573, %v568, %v570
      %v582 = vsel %vm573, %v570, %v572
      %593 = vrot.lane.b32.xlu0 %v293, 58
      %v594 = vpop.permute.xlu0 %593
      %595 = vrot.lane.b32.xlu0 %v294, 58
      %v596 = vpop.permute.xlu0 %595
      %597 = vrot.lane.b32.xlu0 %v295, 58
      %v598 = vpop.permute.xlu0 %597
      %599 = vrot.lane.b32.xlu0 %v296, 58
      %v600 = vpop.permute.xlu0 %599
      %601 = vrot.lane.b32.xlu0 %v297, 58
      %v602 = vpop.permute.xlu0 %601
      %603 = vrot.lane.b32.xlu0 %v298, 58
      %v604 = vpop.permute.xlu0 %603
      %605 = vrot.lane.b32.xlu0 %v299, 58
      %v606 = vpop.permute.xlu0 %605
      %607 = vrot.lane.b32.xlu0 %v300, 58
      %v608 = vpop.permute.xlu0 %607
      %609 = vrot.lane.b32.xlu0 %v301, 58
      %v610 = vpop.permute.xlu0 %609
      %611 = vrot.lane.b32.xlu0 %v302, 58
      %v612 = vpop.permute.xlu0 %611
      %vm613 = vcmask 474112
      %v614 = vsel %vm613, %v594, %v596
      %v615 = vsel %vm613, %v596, %v598
      %v616 = vsel %vm613, %v598, %v600
      %v617 = vsel %vm613, %v600, %v602
      %v618 = vsel %vm613, %v602, %v604
      %v619 = vsel %vm613, %v604, %v606
      %v620 = vsel %vm613, %v606, %v608
      %v621 = vsel %vm613, %v608, %v610
      %v622 = vsel %vm613, %v610, %v612
      %v633 = vld [vmem:[%s1] sm:$0xff]
      %v634 = vld [vmem:[%s1 + $0x8] sm:$0xff]
      %v635 = vld [vmem:[%s2] sm:$0xff]
      %v636 = vld [vmem:[%s2 + $0x8] sm:$0xff]
      %638 = vset.pattern.permute.xlu0 0
      %639 = vperm.xlu0 %638, %v635
      %v640 = vpop.permute.xlu0 %639
      %643 = vset.pattern.permute.xlu0 0
      %644 = vperm.xlu0 %643, %v636
      %v645 = vpop.permute.xlu0 %644
      %v649 = vunpack.c.l.b16 %v633
      %v650 = vunpack.c.h.b16 %v633
      %v651 = vunpack.c.l.b16 %v634
      %v652 = vunpack.c.h.b16 %v634
      %v653 = vpack.c.b16 %v651, %v649
      %v654 = vpack.c.b16 %v652, %v650
      %vm656 = vcmask 130048
      %v658 = vsel %vm656, %v654, 0
      %660 = vmatprep.subr.bf16.mxu0 %v294
      %661 = vmatpush1.bf16.msra.mxu0 %v293
      %662 = vmatprep.subr.bf16.mxu0 %v335
      %663 = vmatpush1.bf16.msra.mxu0 %v334
      %664 = vmatprep.subr.bf16.mxu0 %v375
      %665 = vmatpush1.bf16.msra.mxu0 %v374
      %666 = vmatprep.subr.bf16.mxu0 %v415
      %667 = vmatpush1.bf16.msra.mxu0 %v414
      %668 = vmatprep.subr.bf16.mxu0 %v455
      %669 = vmatpush1.bf16.msra.mxu0 %v454
      %670 = vmatprep.subr.bf16.mxu0 %v495
      %671 = vmatpush1.bf16.msra.mxu0 %v494
      %672 = vmatprep.subr.bf16.mxu0 %v535
      %673 = vmatpush1.bf16.msra.mxu0 %v534
      %674 = vmatprep.subr.bf16.mxu0 %v575
      %675 = vmatpush1.bf16.msra.mxu0 %v574
      %676 = vmatprep.subr.bf16.mxu0 %v615
      %677 = vmatpush1.bf16.msra.mxu0 %v614
      %678 = vmatprep.subr.bf16.mxu0 0
      %679 = vmatpush1.bf16.msra.mxu0 0
      %680 = vmatprep.subr.bf16.mxu0 0
      %681 = vmatpush1.bf16.msra.mxu0 0
      %682 = vmatprep.subr.bf16.mxu0 0
      %683 = vmatpush1.bf16.msra.mxu0 0
      %684 = vmatprep.subr.bf16.mxu0 0
      %685 = vmatpush1.bf16.msra.mxu0 0
      %686 = vmatprep.subr.bf16.mxu0 0
      %687 = vmatpush1.bf16.msra.mxu0 0
      %688 = vmatprep.subr.bf16.mxu0 0
      %689 = vmatpush1.bf16.msra.mxu0 0
      %690 = vmatprep.subr.bf16.mxu0 0
      %691 = vmatpush1.bf16.msra.mxu0 0
      %692 = vmatprep.mubr.bf16.mxu0 %v658
      %693 = vmatmul.mubr.bf16.gmra.mrb[0].mxu0 %v653
      %v694 = vpop.f32.mrb[0].mxu0
      %v695 = vadd.f32 %v640, %v694
      %v696 = vpop.f32.mrb[0].mxu0
      %v697 = vadd.f32 %v640, %v696
      %v698 = vpop.f32.mrb[0].mxu0
      %v699 = vadd.f32 %v645, %v698
      %v700 = vpop.f32.mrb[0].mxu0
      %v701 = vadd.f32 %v645, %v700
      %702 = vdwg.mxu0
      %703 = vmatprep.subr.bf16.mxu0 %v296
      %704 = vmatpush1.bf16.msra.mxu0 %v295
      %705 = vmatprep.subr.bf16.mxu0 %v337
      %706 = vmatpush1.bf16.msra.mxu0 %v336
      %707 = vmatprep.subr.bf16.mxu0 %v377
      %708 = vmatpush1.bf16.msra.mxu0 %v376
      %709 = vmatprep.subr.bf16.mxu0 %v417
      %710 = vmatpush1.bf16.msra.mxu0 %v416
      %711 = vmatprep.subr.bf16.mxu0 %v457
      %712 = vmatpush1.bf16.msra.mxu0 %v456
      %713 = vmatprep.subr.bf16.mxu0 %v497
      %714 = vmatpush1.bf16.msra.mxu0 %v496
      %715 = vmatprep.subr.bf16.mxu0 %v537
      %716 = vmatpush1.bf16.msra.mxu0 %v536
      %717 = vmatprep.subr.bf16.mxu0 %v577
      %718 = vmatpush1.bf16.msra.mxu0 %v576
      %719 = vmatprep.subr.bf16.mxu0 %v617
      %720 = vmatpush1.bf16.msra.mxu0 %v616
      %721 = vmatprep.subr.bf16.mxu0 0
      %722 = vmatpush1.bf16.msra.mxu0 0
      %723 = vmatprep.subr.bf16.mxu0 0
      %724 = vmatpush1.bf16.msra.mxu0 0
      %725 = vmatprep.subr.bf16.mxu0 0
      %726 = vmatpush1.bf16.msra.mxu0 0
      %727 = vmatprep.subr.bf16.mxu0 0
      %728 = vmatpush1.bf16.msra.mxu0 0
      %729 = vmatprep.subr.bf16.mxu0 0
      %730 = vmatpush1.bf16.msra.mxu0 0
      %731 = vmatprep.subr.bf16.mxu0 0
      %732 = vmatpush1.bf16.msra.mxu0 0
      %733 = vmatprep.subr.bf16.mxu0 0
      %734 = vmatpush1.bf16.msra.mxu0 0
      %735 = vmatprep.mubr.bf16.mxu0 %v658
      %736 = vmatmul.mubr.bf16.gmra.mrb[0].mxu0 %v653
      %v737 = vpop.f32.mrb[0].mxu0
      %v738 = vadd.f32 %v640, %v737
      %v739 = vpop.f32.mrb[0].mxu0
      %v740 = vadd.f32 %v640, %v739
      %v741 = vpop.f32.mrb[0].mxu0
      %v742 = vadd.f32 %v645, %v741
      %v743 = vpop.f32.mrb[0].mxu0
      %v744 = vadd.f32 %v645, %v743
      %745 = vdwg.mxu0
      %746 = vmatprep.subr.bf16.mxu0 %v298
      %747 = vmatpush1.bf16.msra.mxu0 %v297
      %748 = vmatprep.subr.bf16.mxu0 %v339
      %749 = vmatpush1.bf16.msra.mxu0 %v338
      %750 = vmatprep.subr.bf16.mxu0 %v379
      %751 = vmatpush1.bf16.msra.mxu0 %v378
      %752 = vmatprep.subr.bf16.mxu0 %v419
      %753 = vmatpush1.bf16.msra.mxu0 %v418
      %754 = vmatprep.subr.bf16.mxu0 %v459
      %755 = vmatpush1.bf16.msra.mxu0 %v458
      %756 = vmatprep.subr.bf16.mxu0 %v499
      %757 = vmatpush1.bf16.msra.mxu0 %v498
      %758 = vmatprep.subr.bf16.mxu0 %v539
      %759 = vmatpush1.bf16.msra.mxu0 %v538
      %760 = vmatprep.subr.bf16.mxu0 %v579
      %761 = vmatpush1.bf16.msra.mxu0 %v578
      %762 = vmatprep.subr.bf16.mxu0 %v619
      %763 = vmatpush1.bf16.msra.mxu0 %v618
      %764 = vmatprep.subr.bf16.mxu0 0
      %765 = vmatpush1.bf16.msra.mxu0 0
      %766 = vmatprep.subr.bf16.mxu0 0
      %767 = vmatpush1.bf16.msra.mxu0 0
      %768 = vmatprep.subr.bf16.mxu0 0
      %769 = vmatpush1.bf16.msra.mxu0 0
      %770 = vmatprep.subr.bf16.mxu0 0
      %771 = vmatpush1.bf16.msra.mxu0 0
      %772 = vmatprep.subr.bf16.mxu0 0
      %773 = vmatpush1.bf16.msra.mxu0 0
      %774 = vmatprep.subr.bf16.mxu0 0
      %775 = vmatpush1.bf16.msra.mxu0 0
      %776 = vmatprep.subr.bf16.mxu0 0
      %777 = vmatpush1.bf16.msra.mxu0 0
      %778 = vmatprep.mubr.bf16.mxu0 %v658
      %779 = vmatmul.mubr.bf16.gmra.mrb[0].mxu0 %v653
      %v780 = vpop.f32.mrb[0].mxu0
      %v781 = vadd.f32 %v640, %v780
      %v782 = vpop.f32.mrb[0].mxu0
      %v783 = vadd.f32 %v640, %v782
      %v784 = vpop.f32.mrb[0].mxu0
      %v785 = vadd.f32 %v645, %v784
      %v786 = vpop.f32.mrb[0].mxu0
      %v787 = vadd.f32 %v645, %v786
      %788 = vdwg.mxu0
      %789 = vmatprep.subr.bf16.mxu0 %v300
      %790 = vmatpush1.bf16.msra.mxu0 %v299
      %791 = vmatprep.subr.bf16.mxu0 %v341
      %792 = vmatpush1.bf16.msra.mxu0 %v340
      %793 = vmatprep.subr.bf16.mxu0 %v381
      %794 = vmatpush1.bf16.msra.mxu0 %v380
      %795 = vmatprep.subr.bf16.mxu0 %v421
      %796 = vmatpush1.bf16.msra.mxu0 %v420
      %797 = vmatprep.subr.bf16.mxu0 %v461
      %798 = vmatpush1.bf16.msra.mxu0 %v460
      %799 = vmatprep.subr.bf16.mxu0 %v501
      %800 = vmatpush1.bf16.msra.mxu0 %v500
      %801 = vmatprep.subr.bf16.mxu0 %v541
      %802 = vmatpush1.bf16.msra.mxu0 %v540
      %803 = vmatprep.subr.bf16.mxu0 %v581
      %804 = vmatpush1.bf16.msra.mxu0 %v580
      %805 = vmatprep.subr.bf16.mxu0 %v621
      %806 = vmatpush1.bf16.msra.mxu0 %v620
      %807 = vmatprep.subr.bf16.mxu0 0
      %808 = vmatpush1.bf16.msra.mxu0 0
      %809 = vmatprep.subr.bf16.mxu0 0
      %810 = vmatpush1.bf16.msra.mxu0 0
      %811 = vmatprep.subr.bf16.mxu0 0
      %812 = vmatpush1.bf16.msra.mxu0 0
      %813 = vmatprep.subr.bf16.mxu0 0
      %814 = vmatpush1.bf16.msra.mxu0 0
      %815 = vmatprep.subr.bf16.mxu0 0
      %816 = vmatpush1.bf16.msra.mxu0 0
      %817 = vmatprep.subr.bf16.mxu0 0
      %818 = vmatpush1.bf16.msra.mxu0 0
      %819 = vmatprep.subr.bf16.mxu0 0
      %820 = vmatpush1.bf16.msra.mxu0 0
      %821 = vmatprep.mubr.bf16.mxu0 %v658
      %822 = vmatmul.mubr.bf16.gmra.mrb[0].mxu0 %v653
      %v823 = vpop.f32.mrb[0].mxu0
      %v824 = vadd.f32 %v640, %v823
      %v825 = vpop.f32.mrb[0].mxu0
      %v826 = vadd.f32 %v640, %v825
      %v827 = vpop.f32.mrb[0].mxu0
      %v828 = vadd.f32 %v645, %v827
      %v829 = vpop.f32.mrb[0].mxu0
      %v830 = vadd.f32 %v645, %v829
      %831 = vdwg.mxu0
      %832 = vmatprep.subr.bf16.mxu0 %v302
      %833 = vmatpush1.bf16.msra.mxu0 %v301
      %834 = vmatprep.subr.bf16.mxu0 %v332
      %835 = vmatpush1.bf16.msra.mxu0 %v342
      %836 = vmatprep.subr.bf16.mxu0 %v372
      %837 = vmatpush1.bf16.msra.mxu0 %v382
      %838 = vmatprep.subr.bf16.mxu0 %v412
      %839 = vmatpush1.bf16.msra.mxu0 %v422
      %840 = vmatprep.subr.bf16.mxu0 %v452
      %841 = vmatpush1.bf16.msra.mxu0 %v462
      %842 = vmatprep.subr.bf16.mxu0 %v492
      %843 = vmatpush1.bf16.msra.mxu0 %v502
      %844 = vmatprep.subr.bf16.mxu0 %v532
      %845 = vmatpush1.bf16.msra.mxu0 %v542
      %846 = vmatprep.subr.bf16.mxu0 %v572
      %847 = vmatpush1.bf16.msra.mxu0 %v582
      %848 = vmatprep.subr.bf16.mxu0 %v612
      %849 = vmatpush1.bf16.msra.mxu0 %v622
      %850 = vmatprep.subr.bf16.mxu0 0
      %851 = vmatpush1.bf16.msra.mxu0 0
      %852 = vmatprep.subr.bf16.mxu0 0
      %853 = vmatpush1.bf16.msra.mxu0 0
      %854 = vmatprep.subr.bf16.mxu0 0
      %855 = vmatpush1.bf16.msra.mxu0 0
      %856 = vmatprep.subr.bf16.mxu0 0
      %857 = vmatpush1.bf16.msra.mxu0 0
      %858 = vmatprep.subr.bf16.mxu0 0
      %859 = vmatpush1.bf16.msra.mxu0 0
      %860 = vmatprep.subr.bf16.mxu0 0
      %861 = vmatpush1.bf16.msra.mxu0 0
      %862 = vmatprep.subr.bf16.mxu0 0
      %863 = vmatpush1.bf16.msra.mxu0 0
      %864 = vmatprep.mubr.bf16.mxu0 %v658
      %865 = vmatmul.mubr.bf16.gmra.mrb[0].mxu0 %v653
      %v866 = vpop.f32.mrb[0].mxu0
      %v867 = vadd.f32 %v640, %v866
      %v868 = vpop.f32.mrb[0].mxu0
      %v869 = vadd.f32 %v640, %v868
      %v870 = vpop.f32.mrb[0].mxu0
      %v871 = vadd.f32 %v645, %v870
      %v872 = vpop.f32.mrb[0].mxu0
      %v873 = vadd.f32 %v645, %v872
      %874 = vdwg.mxu0
      %v875 = vmax.f32 %v695, 0.0
      %v876 = vmax.f32 %v697, 0.0
      %v877 = vmax.f32 %v738, 0.0
      %v878 = vmax.f32 %v740, 0.0
      %v879 = vmax.f32 %v781, 0.0
      %v880 = vmax.f32 %v783, 0.0
      %v881 = vmax.f32 %v824, 0.0
      %v882 = vmax.f32 %v826, 0.0
      %v883 = vmax.f32 %v867, 0.0
      %v884 = vmax.f32 %v869, 0.0
      %v885 = vmax.f32 %v699, 0.0
      %v886 = vmax.f32 %v701, 0.0
      %v887 = vmax.f32 %v742, 0.0
      %v888 = vmax.f32 %v744, 0.0
      %v889 = vmax.f32 %v785, 0.0
      %v890 = vmax.f32 %v787, 0.0
      %v891 = vmax.f32 %v828, 0.0
      %v892 = vmax.f32 %v830, 0.0
      %v893 = vmax.f32 %v871, 0.0
      %v894 = vmax.f32 %v873, 0.0
      %v895 = vld [vmem:[%s5] sm:$0xff]
      %v896 = vld [vmem:[%s5 + $0x8] sm:$0x3]
      %v899 = vlaneseq
      %v900 = vshrl.u32 %v899, 7
      %v901 = vsub.s32 0, %v900
      %v902 = vrot.slane %v895, %v901
      %v903 = vlaneseq
      %v904 = vshrl.u32 %v903, 7
      %v905 = vsub.s32 1, %v904
      %v906 = vrot.slane %v895, %v905
      %v907 = vlaneseq
      %v908 = vshrl.u32 %v907, 7
      %v909 = vsub.s32 2, %v908
      %v910 = vrot.slane %v895, %v909
      %v911 = vlaneseq
      %v912 = vshrl.u32 %v911, 7
      %v913 = vsub.s32 3, %v912
      %v914 = vrot.slane %v895, %v913
      %v915 = vlaneseq
      %v916 = vshrl.u32 %v915, 7
      %v917 = vsub.s32 4, %v916
      %v918 = vrot.slane %v895, %v917
      %v919 = vlaneseq
      %v920 = vshrl.u32 %v919, 7
      %v921 = vsub.s32 5, %v920
      %v922 = vrot.slane %v895, %v921
      %v923 = vlaneseq
      %v924 = vshrl.u32 %v923, 7
      %v925 = vsub.s32 6, %v924
      %v926 = vrot.slane %v895, %v925
      %v927 = vlaneseq
      %v928 = vshrl.u32 %v927, 7
      %v929 = vsub.s32 7, %v928
      %v930 = vrot.slane %v895, %v929
      %v931 = vlaneseq
      %v932 = vshrl.u32 %v931, 7
      %v933 = vsub.s32 0, %v932
      %v934 = vrot.slane %v896, %v933
      %v935 = vlaneseq
      %v936 = vshrl.u32 %v935, 7
      %v937 = vsub.s32 1, %v936
      %v938 = vrot.slane %v896, %v937
      %v949 = vmul.f32 %v875, %v902
      %v950 = vmul.f32 %v876, %v906
      %v951 = vmul.f32 %v877, %v910
      %v952 = vmul.f32 %v878, %v914
      %v953 = vmul.f32 %v879, %v918
      %v954 = vmul.f32 %v880, %v922
      %v955 = vmul.f32 %v881, %v926
      %v956 = vmul.f32 %v882, %v930
      %v957 = vmul.f32 %v883, %v934
      %v958 = vmul.f32 %v884, %v938
      %v959 = vmul.f32 %v885, %v902
      %v960 = vmul.f32 %v886, %v906
      %v961 = vmul.f32 %v887, %v910
      %v962 = vmul.f32 %v888, %v914
      %v963 = vmul.f32 %v889, %v918
      %v964 = vmul.f32 %v890, %v922
      %v965 = vmul.f32 %v891, %v926
      %v966 = vmul.f32 %v892, %v930
      %v967 = vmul.f32 %v893, %v934
      %v968 = vmul.f32 %v894, %v938
      %v969 = vpack.c.bf16 %v959, %v949
      %v970 = vpack.c.bf16 %v960, %v950
      %v971 = vpack.c.bf16 %v961, %v951
      %v972 = vpack.c.bf16 %v962, %v952
      %v973 = vpack.c.bf16 %v963, %v953
      %v974 = vpack.c.bf16 %v964, %v954
      %v975 = vpack.c.bf16 %v965, %v955
      %v976 = vpack.c.bf16 %v966, %v956
      %v977 = vpack.c.bf16 %v967, %v957
      %v978 = vpack.c.bf16 %v968, %v958
      %989 = vrot.lane.b32.xlu0 %v969, 35
      %v990 = vpop.permute.xlu0 %989
      %991 = vrot.lane.b32.xlu0 %v970, 35
      %v992 = vpop.permute.xlu0 %991
      %993 = vrot.lane.b32.xlu0 %v971, 35
      %v994 = vpop.permute.xlu0 %993
      %995 = vrot.lane.b32.xlu0 %v972, 35
      %v996 = vpop.permute.xlu0 %995
      %997 = vrot.lane.b32.xlu0 %v973, 35
      %v998 = vpop.permute.xlu0 %997
      %999 = vrot.lane.b32.xlu0 %v974, 35
      %v1000 = vpop.permute.xlu0 %999
      %1001 = vrot.lane.b32.xlu0 %v975, 35
      %v1002 = vpop.permute.xlu0 %1001
      %1003 = vrot.lane.b32.xlu0 %v976, 35
      %v1004 = vpop.permute.xlu0 %1003
      %1005 = vrot.lane.b32.xlu0 %v977, 35
      %v1006 = vpop.permute.xlu0 %1005
      %1007 = vrot.lane.b32.xlu0 %v978, 35
      %v1008 = vpop.permute.xlu0 %1007
      %vm1009 = vcmask 285696
      %v1010 = vsel %vm1009, %v990, %v992
      %v1011 = vsel %vm1009, %v992, %v994
      %v1012 = vsel %vm1009, %v994, %v996
      %v1013 = vsel %vm1009, %v996, %v998
      %v1014 = vsel %vm1009, %v998, %v1000
      %v1015 = vsel %vm1009, %v1000, %v1002
      %v1016 = vsel %vm1009, %v1002, %v1004
      %v1017 = vsel %vm1009, %v1004, %v1006
      %v1018 = vsel %vm1009, %v1006, %v1008
      %vm1027 = vcmask 285696
      %v1030 = vsel %vm1027, 0, %v990
      %vm1032 = vcmask 318464
      %v1034 = vsel %vm1032, %v1018, 0
      %1038 = vrot.lane.b32.xlu0 %v1030, 127
      %v1039 = vpop.permute.xlu0 %1038
      %1040 = vrot.lane.b32.xlu0 %v1010, 127
      %v1041 = vpop.permute.xlu0 %1040
      %1042 = vrot.lane.b32.xlu0 %v1011, 127
      %v1043 = vpop.permute.xlu0 %1042
      %1044 = vrot.lane.b32.xlu0 %v1012, 127
      %v1045 = vpop.permute.xlu0 %1044
      %1046 = vrot.lane.b32.xlu0 %v1013, 127
      %v1047 = vpop.permute.xlu0 %1046
      %1048 = vrot.lane.b32.xlu0 %v1014, 127
      %v1049 = vpop.permute.xlu0 %1048
      %1050 = vrot.lane.b32.xlu0 %v1015, 127
      %v1051 = vpop.permute.xlu0 %1050
      %1052 = vrot.lane.b32.xlu0 %v1016, 127
      %v1053 = vpop.permute.xlu0 %1052
      %1054 = vrot.lane.b32.xlu0 %v1017, 127
      %v1055 = vpop.permute.xlu0 %1054
      %1056 = vrot.lane.b32.xlu0 %v1034, 127
      %v1057 = vpop.permute.xlu0 %1056
      %v1058 = vsel %vm333, %v1039, %v1041
      %v1059 = vsel %vm333, %v1041, %v1043
      %v1060 = vsel %vm333, %v1043, %v1045
      %v1061 = vsel %vm333, %v1045, %v1047
      %v1062 = vsel %vm333, %v1047, %v1049
      %v1063 = vsel %vm333, %v1049, %v1051
      %v1064 = vsel %vm333, %v1051, %v1053
      %v1065 = vsel %vm333, %v1053, %v1055
      %v1066 = vsel %vm333, %v1055, %v1057
      %1077 = vrot.lane.b32.xlu0 %v1030, 126
      %v1078 = vpop.permute.xlu0 %1077
      %1079 = vrot.lane.b32.xlu0 %v1010, 126
      %v1080 = vpop.permute.xlu0 %1079
      %1081 = vrot.lane.b32.xlu0 %v1011, 126
      %v1082 = vpop.permute.xlu0 %1081
      %1083 = vrot.lane.b32.xlu0 %v1012, 126
      %v1084 = vpop.permute.xlu0 %1083
      %1085 = vrot.lane.b32.xlu0 %v1013, 126
      %v1086 = vpop.permute.xlu0 %1085
      %1087 = vrot.lane.b32.xlu0 %v1014, 126
      %v1088 = vpop.permute.xlu0 %1087
      %1089 = vrot.lane.b32.xlu0 %v1015, 126
      %v1090 = vpop.permute.xlu0 %1089
      %1091 = vrot.lane.b32.xlu0 %v1016, 126
      %v1092 = vpop.permute.xlu0 %1091
      %1093 = vrot.lane.b32.xlu0 %v1017, 126
      %v1094 = vpop.permute.xlu0 %1093
      %1095 = vrot.lane.b32.xlu0 %v1034, 126
      %v1096 = vpop.permute.xlu0 %1095
      %v1097 = vsel %vm373, %v1078, %v1080
      %v1098 = vsel %vm373, %v1080, %v1082
      %v1099 = vsel %vm373, %v1082, %v1084
      %v1100 = vsel %vm373, %v1084, %v1086
      %v1101 = vsel %vm373, %v1086, %v1088
      %v1102 = vsel %vm373, %v1088, %v1090
      %v1103 = vsel %vm373, %v1090, %v1092
      %v1104 = vsel %vm373, %v1092, %v1094
      %v1105 = vsel %vm373, %v1094, %v1096
      %1116 = vrot.lane.b32.xlu0 %v1030, 94
      %v1117 = vpop.permute.xlu0 %1116
      %1118 = vrot.lane.b32.xlu0 %v1010, 94
      %v1119 = vpop.permute.xlu0 %1118
      %1120 = vrot.lane.b32.xlu0 %v1011, 94
      %v1121 = vpop.permute.xlu0 %1120
      %1122 = vrot.lane.b32.xlu0 %v1012, 94
      %v1123 = vpop.permute.xlu0 %1122
      %1124 = vrot.lane.b32.xlu0 %v1013, 94
      %v1125 = vpop.permute.xlu0 %1124
      %1126 = vrot.lane.b32.xlu0 %v1014, 94
      %v1127 = vpop.permute.xlu0 %1126
      %1128 = vrot.lane.b32.xlu0 %v1015, 94
      %v1129 = vpop.permute.xlu0 %1128
      %1130 = vrot.lane.b32.xlu0 %v1016, 94
      %v1131 = vpop.permute.xlu0 %1130
      %1132 = vrot.lane.b32.xlu0 %v1017, 94
      %v1133 = vpop.permute.xlu0 %1132
      %1134 = vrot.lane.b32.xlu0 %v1034, 94
      %v1135 = vpop.permute.xlu0 %1134
      %v1136 = vsel %vm413, %v1117, %v1119
      %v1137 = vsel %vm413, %v1119, %v1121
      %v1138 = vsel %vm413, %v1121, %v1123
      %v1139 = vsel %vm413, %v1123, %v1125
      %v1140 = vsel %vm413, %v1125, %v1127
      %v1141 = vsel %vm413, %v1127, %v1129
      %v1142 = vsel %vm413, %v1129, %v1131
      %v1143 = vsel %vm413, %v1131, %v1133
      %v1144 = vsel %vm413, %v1133, %v1135
      %1155 = vrot.lane.b32.xlu0 %v1030, 93
      %v1156 = vpop.permute.xlu0 %1155
      %1157 = vrot.lane.b32.xlu0 %v1010, 93
      %v1158 = vpop.permute.xlu0 %1157
      %1159 = vrot.lane.b32.xlu0 %v1011, 93
      %v1160 = vpop.permute.xlu0 %1159
      %1161 = vrot.lane.b32.xlu0 %v1012, 93
      %v1162 = vpop.permute.xlu0 %1161
      %1163 = vrot.lane.b32.xlu0 %v1013, 93
      %v1164 = vpop.permute.xlu0 %1163
      %1165 = vrot.lane.b32.xlu0 %v1014, 93
      %v1166 = vpop.permute.xlu0 %1165
      %1167 = vrot.lane.b32.xlu0 %v1015, 93
      %v1168 = vpop.permute.xlu0 %1167
      %1169 = vrot.lane.b32.xlu0 %v1016, 93
      %v1170 = vpop.permute.xlu0 %1169
      %1171 = vrot.lane.b32.xlu0 %v1017, 93
      %v1172 = vpop.permute.xlu0 %1171
      %1173 = vrot.lane.b32.xlu0 %v1034, 93
      %v1174 = vpop.permute.xlu0 %1173
      %v1175 = vsel %vm453, %v1156, %v1158
      %v1176 = vsel %vm453, %v1158, %v1160
      %v1177 = vsel %vm453, %v1160, %v1162
      %v1178 = vsel %vm453, %v1162, %v1164
      %v1179 = vsel %vm453, %v1164, %v1166
      %v1180 = vsel %vm453, %v1166, %v1168
      %v1181 = vsel %vm453, %v1168, %v1170
      %v1182 = vsel %vm453, %v1170, %v1172
      %v1183 = vsel %vm453, %v1172, %v1174
      %1194 = vrot.lane.b32.xlu0 %v1030, 92
      %v1195 = vpop.permute.xlu0 %1194
      %1196 = vrot.lane.b32.xlu0 %v1010, 92
      %v1197 = vpop.permute.xlu0 %1196
      %1198 = vrot.lane.b32.xlu0 %v1011, 92
      %v1199 = vpop.permute.xlu0 %1198
      %1200 = vrot.lane.b32.xlu0 %v1012, 92
      %v1201 = vpop.permute.xlu0 %1200
      %1202 = vrot.lane.b32.xlu0 %v1013, 92
      %v1203 = vpop.permute.xlu0 %1202
      %1204 = vrot.lane.b32.xlu0 %v1014, 92
      %v1205 = vpop.permute.xlu0 %1204
      %1206 = vrot.lane.b32.xlu0 %v1015, 92
      %v1207 = vpop.permute.xlu0 %1206
      %1208 = vrot.lane.b32.xlu0 %v1016, 92
      %v1209 = vpop.permute.xlu0 %1208
      %1210 = vrot.lane.b32.xlu0 %v1017, 92
      %v1211 = vpop.permute.xlu0 %1210
      %1212 = vrot.lane.b32.xlu0 %v1034, 92
      %v1213 = vpop.permute.xlu0 %1212
      %v1214 = vsel %vm493, %v1195, %v1197
      %v1215 = vsel %vm493, %v1197, %v1199
      %v1216 = vsel %vm493, %v1199, %v1201
      %v1217 = vsel %vm493, %v1201, %v1203
      %v1218 = vsel %vm493, %v1203, %v1205
      %v1219 = vsel %vm493, %v1205, %v1207
      %v1220 = vsel %vm493, %v1207, %v1209
      %v1221 = vsel %vm493, %v1209, %v1211
      %v1222 = vsel %vm493, %v1211, %v1213
      %1233 = vrot.lane.b32.xlu0 %v1030, 60
      %v1234 = vpop.permute.xlu0 %1233
      %1235 = vrot.lane.b32.xlu0 %v1010, 60
      %v1236 = vpop.permute.xlu0 %1235
      %1237 = vrot.lane.b32.xlu0 %v1011, 60
      %v1238 = vpop.permute.xlu0 %1237
      %1239 = vrot.lane.b32.xlu0 %v1012, 60
      %v1240 = vpop.permute.xlu0 %1239
      %1241 = vrot.lane.b32.xlu0 %v1013, 60
      %v1242 = vpop.permute.xlu0 %1241
      %1243 = vrot.lane.b32.xlu0 %v1014, 60
      %v1244 = vpop.permute.xlu0 %1243
      %1245 = vrot.lane.b32.xlu0 %v1015, 60
      %v1246 = vpop.permute.xlu0 %1245
      %1247 = vrot.lane.b32.xlu0 %v1016, 60
      %v1248 = vpop.permute.xlu0 %1247
      %1249 = vrot.lane.b32.xlu0 %v1017, 60
      %v1250 = vpop.permute.xlu0 %1249
      %1251 = vrot.lane.b32.xlu0 %v1034, 60
      %v1252 = vpop.permute.xlu0 %1251
      %v1253 = vsel %vm533, %v1234, %v1236
      %v1254 = vsel %vm533, %v1236, %v1238
      %v1255 = vsel %vm533, %v1238, %v1240
      %v1256 = vsel %vm533, %v1240, %v1242
      %v1257 = vsel %vm533, %v1242, %v1244
      %v1258 = vsel %vm533, %v1244, %v1246
      %v1259 = vsel %vm533, %v1246, %v1248
      %v1260 = vsel %vm533, %v1248, %v1250
      %v1261 = vsel %vm533, %v1250, %v1252
      %1272 = vrot.lane.b32.xlu0 %v1030, 59
      %v1273 = vpop.permute.xlu0 %1272
      %1274 = vrot.lane.b32.xlu0 %v1010, 59
      %v1275 = vpop.permute.xlu0 %1274
      %1276 = vrot.lane.b32.xlu0 %v1011, 59
      %v1277 = vpop.permute.xlu0 %1276
      %1278 = vrot.lane.b32.xlu0 %v1012, 59
      %v1279 = vpop.permute.xlu0 %1278
      %1280 = vrot.lane.b32.xlu0 %v1013, 59
      %v1281 = vpop.permute.xlu0 %1280
      %1282 = vrot.lane.b32.xlu0 %v1014, 59
      %v1283 = vpop.permute.xlu0 %1282
      %1284 = vrot.lane.b32.xlu0 %v1015, 59
      %v1285 = vpop.permute.xlu0 %1284
      %1286 = vrot.lane.b32.xlu0 %v1016, 59
      %v1287 = vpop.permute.xlu0 %1286
      %1288 = vrot.lane.b32.xlu0 %v1017, 59
      %v1289 = vpop.permute.xlu0 %1288
      %1290 = vrot.lane.b32.xlu0 %v1034, 59
      %v1291 = vpop.permute.xlu0 %1290
      %v1292 = vsel %vm573, %v1273, %v1275
      %v1293 = vsel %vm573, %v1275, %v1277
      %v1294 = vsel %vm573, %v1277, %v1279
      %v1295 = vsel %vm573, %v1279, %v1281
      %v1296 = vsel %vm573, %v1281, %v1283
      %v1297 = vsel %vm573, %v1283, %v1285
      %v1298 = vsel %vm573, %v1285, %v1287
      %v1299 = vsel %vm573, %v1287, %v1289
      %v1300 = vsel %vm573, %v1289, %v1291
      %1311 = vrot.lane.b32.xlu0 %v1030, 58
      %v1312 = vpop.permute.xlu0 %1311
      %1313 = vrot.lane.b32.xlu0 %v1010, 58
      %v1314 = vpop.permute.xlu0 %1313
      %1315 = vrot.lane.b32.xlu0 %v1011, 58
      %v1316 = vpop.permute.xlu0 %1315
      %1317 = vrot.lane.b32.xlu0 %v1012, 58
      %v1318 = vpop.permute.xlu0 %1317
      %1319 = vrot.lane.b32.xlu0 %v1013, 58
      %v1320 = vpop.permute.xlu0 %1319
      %1321 = vrot.lane.b32.xlu0 %v1014, 58
      %v1322 = vpop.permute.xlu0 %1321
      %1323 = vrot.lane.b32.xlu0 %v1015, 58
      %v1324 = vpop.permute.xlu0 %1323
      %1325 = vrot.lane.b32.xlu0 %v1016, 58
      %v1326 = vpop.permute.xlu0 %1325
      %1327 = vrot.lane.b32.xlu0 %v1017, 58
      %v1328 = vpop.permute.xlu0 %1327
      %1329 = vrot.lane.b32.xlu0 %v1034, 58
      %v1330 = vpop.permute.xlu0 %1329
      %v1331 = vsel %vm613, %v1312, %v1314
      %v1332 = vsel %vm613, %v1314, %v1316
      %v1333 = vsel %vm613, %v1316, %v1318
      %v1334 = vsel %vm613, %v1318, %v1320
      %v1335 = vsel %vm613, %v1320, %v1322
      %v1336 = vsel %vm613, %v1322, %v1324
      %v1337 = vsel %vm613, %v1324, %v1326
      %v1338 = vsel %vm613, %v1326, %v1328
      %v1339 = vsel %vm613, %v1328, %v1330
      %v1350 = vld [vmem:[%s3] sm:$0xff]
      %v1351 = vld [vmem:[%s3 + $0x8] sm:$0xff]
      %v1352 = vld [vmem:[%s4] sm:$0xff]
      %v1353 = vld [vmem:[%s4 + $0x8] sm:$0xff]
      %1355 = vset.pattern.permute.xlu0 0
      %1356 = vperm.xlu0 %1355, %v1352
      %v1357 = vpop.permute.xlu0 %1356
      %1360 = vset.pattern.permute.xlu0 0
      %1361 = vperm.xlu0 %1360, %v1353
      %v1362 = vpop.permute.xlu0 %1361
      %v1366 = vunpack.c.l.b16 %v1350
      %v1367 = vunpack.c.h.b16 %v1350
      %v1368 = vunpack.c.l.b16 %v1351
      %v1369 = vunpack.c.h.b16 %v1351
      %v1370 = vpack.c.b16 %v1368, %v1366
      %v1371 = vpack.c.b16 %v1369, %v1367
      %v1374 = vsel %vm656, %v1371, 0
      %1376 = vmatprep.subr.bf16.mxu0 %v1010
      %1377 = vmatpush1.bf16.msra.mxu0 %v1030
      %1378 = vmatprep.subr.bf16.mxu0 %v1059
      %1379 = vmatpush1.bf16.msra.mxu0 %v1058
      %1380 = vmatprep.subr.bf16.mxu0 %v1098
      %1381 = vmatpush1.bf16.msra.mxu0 %v1097
      %1382 = vmatprep.subr.bf16.mxu0 %v1137
      %1383 = vmatpush1.bf16.msra.mxu0 %v1136
      %1384 = vmatprep.subr.bf16.mxu0 %v1176
      %1385 = vmatpush1.bf16.msra.mxu0 %v1175
      %1386 = vmatprep.subr.bf16.mxu0 %v1215
      %1387 = vmatpush1.bf16.msra.mxu0 %v1214
      %1388 = vmatprep.subr.bf16.mxu0 %v1254
      %1389 = vmatpush1.bf16.msra.mxu0 %v1253
      %1390 = vmatprep.subr.bf16.mxu0 %v1293
      %1391 = vmatpush1.bf16.msra.mxu0 %v1292
      %1392 = vmatprep.subr.bf16.mxu0 %v1332
      %1393 = vmatpush1.bf16.msra.mxu0 %v1331
      %1394 = vmatprep.subr.bf16.mxu0 0
      %1395 = vmatpush1.bf16.msra.mxu0 0
      %1396 = vmatprep.subr.bf16.mxu0 0
      %1397 = vmatpush1.bf16.msra.mxu0 0
      %1398 = vmatprep.subr.bf16.mxu0 0
      %1399 = vmatpush1.bf16.msra.mxu0 0
      %1400 = vmatprep.subr.bf16.mxu0 0
      %1401 = vmatpush1.bf16.msra.mxu0 0
      %1402 = vmatprep.subr.bf16.mxu0 0
      %1403 = vmatpush1.bf16.msra.mxu0 0
      %1404 = vmatprep.subr.bf16.mxu0 0
      %1405 = vmatpush1.bf16.msra.mxu0 0
      %1406 = vmatprep.subr.bf16.mxu0 0
      %1407 = vmatpush1.bf16.msra.mxu0 0
      %1408 = vmatprep.mubr.bf16.mxu0 %v1374
      %1409 = vmatmul.mubr.bf16.gmra.mrb[0].mxu0 %v1370
      %v1410 = vpop.f32.mrb[0].mxu0
      %v1411 = vadd.f32 %v1357, %v1410
      %v1412 = vpop.f32.mrb[0].mxu0
      %v1413 = vadd.f32 %v1357, %v1412
      %v1414 = vpop.f32.mrb[0].mxu0
      %v1415 = vadd.f32 %v1362, %v1414
      %v1416 = vpop.f32.mrb[0].mxu0
      %v1417 = vadd.f32 %v1362, %v1416
      %1418 = vdwg.mxu0
      %1419 = vmatprep.subr.bf16.mxu0 %v1012
      %1420 = vmatpush1.bf16.msra.mxu0 %v1011
      %1421 = vmatprep.subr.bf16.mxu0 %v1061
      %1422 = vmatpush1.bf16.msra.mxu0 %v1060
      %1423 = vmatprep.subr.bf16.mxu0 %v1100
      %1424 = vmatpush1.bf16.msra.mxu0 %v1099
      %1425 = vmatprep.subr.bf16.mxu0 %v1139
      %1426 = vmatpush1.bf16.msra.mxu0 %v1138
      %1427 = vmatprep.subr.bf16.mxu0 %v1178
      %1428 = vmatpush1.bf16.msra.mxu0 %v1177
      %1429 = vmatprep.subr.bf16.mxu0 %v1217
      %1430 = vmatpush1.bf16.msra.mxu0 %v1216
      %1431 = vmatprep.subr.bf16.mxu0 %v1256
      %1432 = vmatpush1.bf16.msra.mxu0 %v1255
      %1433 = vmatprep.subr.bf16.mxu0 %v1295
      %1434 = vmatpush1.bf16.msra.mxu0 %v1294
      %1435 = vmatprep.subr.bf16.mxu0 %v1334
      %1436 = vmatpush1.bf16.msra.mxu0 %v1333
      %1437 = vmatprep.subr.bf16.mxu0 0
      %1438 = vmatpush1.bf16.msra.mxu0 0
      %1439 = vmatprep.subr.bf16.mxu0 0
      %1440 = vmatpush1.bf16.msra.mxu0 0
      %1441 = vmatprep.subr.bf16.mxu0 0
      %1442 = vmatpush1.bf16.msra.mxu0 0
      %1443 = vmatprep.subr.bf16.mxu0 0
      %1444 = vmatpush1.bf16.msra.mxu0 0
      %1445 = vmatprep.subr.bf16.mxu0 0
      %1446 = vmatpush1.bf16.msra.mxu0 0
      %1447 = vmatprep.subr.bf16.mxu0 0
      %1448 = vmatpush1.bf16.msra.mxu0 0
      %1449 = vmatprep.subr.bf16.mxu0 0
      %1450 = vmatpush1.bf16.msra.mxu0 0
      %1451 = vmatprep.mubr.bf16.mxu0 %v1374
      %1452 = vmatmul.mubr.bf16.gmra.mrb[0].mxu0 %v1370
      %v1453 = vpop.f32.mrb[0].mxu0
      %v1454 = vadd.f32 %v1357, %v1453
      %v1455 = vpop.f32.mrb[0].mxu0
      %v1456 = vadd.f32 %v1357, %v1455
      %v1457 = vpop.f32.mrb[0].mxu0
      %v1458 = vadd.f32 %v1362, %v1457
      %v1459 = vpop.f32.mrb[0].mxu0
      %v1460 = vadd.f32 %v1362, %v1459
      %1461 = vdwg.mxu0
      %1462 = vmatprep.subr.bf16.mxu0 %v1014
      %1463 = vmatpush1.bf16.msra.mxu0 %v1013
      %1464 = vmatprep.subr.bf16.mxu0 %v1063
      %1465 = vmatpush1.bf16.msra.mxu0 %v1062
      %1466 = vmatprep.subr.bf16.mxu0 %v1102
      %1467 = vmatpush1.bf16.msra.mxu0 %v1101
      %1468 = vmatprep.subr.bf16.mxu0 %v1141
      %1469 = vmatpush1.bf16.msra.mxu0 %v1140
      %1470 = vmatprep.subr.bf16.mxu0 %v1180
      %1471 = vmatpush1.bf16.msra.mxu0 %v1179
      %1472 = vmatprep.subr.bf16.mxu0 %v1219
      %1473 = vmatpush1.bf16.msra.mxu0 %v1218
      %1474 = vmatprep.subr.bf16.mxu0 %v1258
      %1475 = vmatpush1.bf16.msra.mxu0 %v1257
      %1476 = vmatprep.subr.bf16.mxu0 %v1297
      %1477 = vmatpush1.bf16.msra.mxu0 %v1296
      %1478 = vmatprep.subr.bf16.mxu0 %v1336
      %1479 = vmatpush1.bf16.msra.mxu0 %v1335
      %1480 = vmatprep.subr.bf16.mxu0 0
      %1481 = vmatpush1.bf16.msra.mxu0 0
      %1482 = vmatprep.subr.bf16.mxu0 0
      %1483 = vmatpush1.bf16.msra.mxu0 0
      %1484 = vmatprep.subr.bf16.mxu0 0
      %1485 = vmatpush1.bf16.msra.mxu0 0
      %1486 = vmatprep.subr.bf16.mxu0 0
      %1487 = vmatpush1.bf16.msra.mxu0 0
      %1488 = vmatprep.subr.bf16.mxu0 0
      %1489 = vmatpush1.bf16.msra.mxu0 0
      %1490 = vmatprep.subr.bf16.mxu0 0
      %1491 = vmatpush1.bf16.msra.mxu0 0
      %1492 = vmatprep.subr.bf16.mxu0 0
      %1493 = vmatpush1.bf16.msra.mxu0 0
      %1494 = vmatprep.mubr.bf16.mxu0 %v1374
      %1495 = vmatmul.mubr.bf16.gmra.mrb[0].mxu0 %v1370
      %v1496 = vpop.f32.mrb[0].mxu0
      %v1497 = vadd.f32 %v1357, %v1496
      %v1498 = vpop.f32.mrb[0].mxu0
      %v1499 = vadd.f32 %v1357, %v1498
      %v1500 = vpop.f32.mrb[0].mxu0
      %v1501 = vadd.f32 %v1362, %v1500
      %v1502 = vpop.f32.mrb[0].mxu0
      %v1503 = vadd.f32 %v1362, %v1502
      %1504 = vdwg.mxu0
      %1505 = vmatprep.subr.bf16.mxu0 %v1016
      %1506 = vmatpush1.bf16.msra.mxu0 %v1015
      %1507 = vmatprep.subr.bf16.mxu0 %v1065
      %1508 = vmatpush1.bf16.msra.mxu0 %v1064
      %1509 = vmatprep.subr.bf16.mxu0 %v1104
      %1510 = vmatpush1.bf16.msra.mxu0 %v1103
      %1511 = vmatprep.subr.bf16.mxu0 %v1143
      %1512 = vmatpush1.bf16.msra.mxu0 %v1142
      %1513 = vmatprep.subr.bf16.mxu0 %v1182
      %1514 = vmatpush1.bf16.msra.mxu0 %v1181
      %1515 = vmatprep.subr.bf16.mxu0 %v1221
      %1516 = vmatpush1.bf16.msra.mxu0 %v1220
      %1517 = vmatprep.subr.bf16.mxu0 %v1260
      %1518 = vmatpush1.bf16.msra.mxu0 %v1259
      %1519 = vmatprep.subr.bf16.mxu0 %v1299
      %1520 = vmatpush1.bf16.msra.mxu0 %v1298
      %1521 = vmatprep.subr.bf16.mxu0 %v1338
      %1522 = vmatpush1.bf16.msra.mxu0 %v1337
      %1523 = vmatprep.subr.bf16.mxu0 0
      %1524 = vmatpush1.bf16.msra.mxu0 0
      %1525 = vmatprep.subr.bf16.mxu0 0
      %1526 = vmatpush1.bf16.msra.mxu0 0
      %1527 = vmatprep.subr.bf16.mxu0 0
      %1528 = vmatpush1.bf16.msra.mxu0 0
      %1529 = vmatprep.subr.bf16.mxu0 0
      %1530 = vmatpush1.bf16.msra.mxu0 0
      %1531 = vmatprep.subr.bf16.mxu0 0
      %1532 = vmatpush1.bf16.msra.mxu0 0
      %1533 = vmatprep.subr.bf16.mxu0 0
      %1534 = vmatpush1.bf16.msra.mxu0 0
      %1535 = vmatprep.subr.bf16.mxu0 0
      %1536 = vmatpush1.bf16.msra.mxu0 0
      %1537 = vmatprep.mubr.bf16.mxu0 %v1374
      %1538 = vmatmul.mubr.bf16.gmra.mrb[0].mxu0 %v1370
      %v1539 = vpop.f32.mrb[0].mxu0
      %v1540 = vadd.f32 %v1357, %v1539
      %v1541 = vpop.f32.mrb[0].mxu0
      %v1542 = vadd.f32 %v1357, %v1541
      %v1543 = vpop.f32.mrb[0].mxu0
      %v1544 = vadd.f32 %v1362, %v1543
      %v1545 = vpop.f32.mrb[0].mxu0
      %v1546 = vadd.f32 %v1362, %v1545
      %1547 = vdwg.mxu0
      %1548 = vmatprep.subr.bf16.mxu0 %v1034
      %1549 = vmatpush1.bf16.msra.mxu0 %v1017
      %1550 = vmatprep.subr.bf16.mxu0 %v1057
      %1551 = vmatpush1.bf16.msra.mxu0 %v1066
      %1552 = vmatprep.subr.bf16.mxu0 %v1096
      %1553 = vmatpush1.bf16.msra.mxu0 %v1105
      %1554 = vmatprep.subr.bf16.mxu0 %v1135
      %1555 = vmatpush1.bf16.msra.mxu0 %v1144
      %1556 = vmatprep.subr.bf16.mxu0 %v1174
      %1557 = vmatpush1.bf16.msra.mxu0 %v1183
      %1558 = vmatprep.subr.bf16.mxu0 %v1213
      %1559 = vmatpush1.bf16.msra.mxu0 %v1222
      %1560 = vmatprep.subr.bf16.mxu0 %v1252
      %1561 = vmatpush1.bf16.msra.mxu0 %v1261
      %1562 = vmatprep.subr.bf16.mxu0 %v1291
      %1563 = vmatpush1.bf16.msra.mxu0 %v1300
      %1564 = vmatprep.subr.bf16.mxu0 %v1330
      %1565 = vmatpush1.bf16.msra.mxu0 %v1339
      %1566 = vmatprep.subr.bf16.mxu0 0
      %1567 = vmatpush1.bf16.msra.mxu0 0
      %1568 = vmatprep.subr.bf16.mxu0 0
      %1569 = vmatpush1.bf16.msra.mxu0 0
      %1570 = vmatprep.subr.bf16.mxu0 0
      %1571 = vmatpush1.bf16.msra.mxu0 0
      %1572 = vmatprep.subr.bf16.mxu0 0
      %1573 = vmatpush1.bf16.msra.mxu0 0
      %1574 = vmatprep.subr.bf16.mxu0 0
      %1575 = vmatpush1.bf16.msra.mxu0 0
      %1576 = vmatprep.subr.bf16.mxu0 0
      %1577 = vmatpush1.bf16.msra.mxu0 0
      %1578 = vmatprep.subr.bf16.mxu0 0
      %1579 = vmatpush1.bf16.msra.mxu0 0
      %1580 = vmatprep.mubr.bf16.mxu0 %v1374
      %1581 = vmatmul.mubr.bf16.gmra.mrb[0].mxu0 %v1370
      %v1582 = vpop.f32.mrb[0].mxu0
      %v1583 = vadd.f32 %v1357, %v1582
      %v1584 = vpop.f32.mrb[0].mxu0
      %v1585 = vadd.f32 %v1357, %v1584
      %v1586 = vpop.f32.mrb[0].mxu0
      %v1587 = vadd.f32 %v1362, %v1586
      %v1588 = vpop.f32.mrb[0].mxu0
      %v1589 = vadd.f32 %v1362, %v1588
      %1590 = vdwg.mxu0
      %v1591 = vmax.f32 %v1411, 0.0
      %v1592 = vmax.f32 %v1413, 0.0
      %v1593 = vmax.f32 %v1454, 0.0
      %v1594 = vmax.f32 %v1456, 0.0
      %v1595 = vmax.f32 %v1497, 0.0
      %v1596 = vmax.f32 %v1499, 0.0
      %v1597 = vmax.f32 %v1540, 0.0
      %v1598 = vmax.f32 %v1542, 0.0
      %v1599 = vmax.f32 %v1583, 0.0
      %v1600 = vmax.f32 %v1585, 0.0
      %v1601 = vmax.f32 %v1415, 0.0
      %v1602 = vmax.f32 %v1417, 0.0
      %v1603 = vmax.f32 %v1458, 0.0
      %v1604 = vmax.f32 %v1460, 0.0
      %v1605 = vmax.f32 %v1501, 0.0
      %v1606 = vmax.f32 %v1503, 0.0
      %v1607 = vmax.f32 %v1544, 0.0
      %v1608 = vmax.f32 %v1546, 0.0
      %v1609 = vmax.f32 %v1587, 0.0
      %v1610 = vmax.f32 %v1589, 0.0
      %v1611 = vpack.c.bf16 %v1601, %v1591
      %v1612 = vpack.c.bf16 %v1602, %v1592
      %v1613 = vpack.c.bf16 %v1603, %v1593
      %v1614 = vpack.c.bf16 %v1604, %v1594
      %v1615 = vpack.c.bf16 %v1605, %v1595
      %v1616 = vpack.c.bf16 %v1606, %v1596
      %v1617 = vpack.c.bf16 %v1607, %v1597
      %v1618 = vpack.c.bf16 %v1608, %v1598
      %v1619 = vpack.c.bf16 %v1609, %v1599
      %v1620 = vpack.c.bf16 %v1610, %v1600
      %vm1621 = vcmask 31744
      %v1623 = vsel %vm1621, %v1620, 0
      %v1634 = vunpack.c.l.b16 %v1611
      %v1635 = vunpack.c.l.b16 %v1612
      %v1636 = vunpack.c.l.b16 %v1613
      %v1637 = vunpack.c.l.b16 %v1614
      %v1638 = vunpack.c.l.b16 %v1615
      %v1639 = vunpack.c.l.b16 %v1616
      %v1640 = vunpack.c.l.b16 %v1617
      %v1641 = vunpack.c.l.b16 %v1618
      %v1642 = vunpack.c.l.b16 %v1619
      %v1643 = vunpack.c.l.b16 %v1623
      %v1644 = vunpack.c.h.b16 %v1611
      %v1645 = vunpack.c.h.b16 %v1612
      %v1646 = vunpack.c.h.b16 %v1613
      %v1647 = vunpack.c.h.b16 %v1614
      %v1648 = vunpack.c.h.b16 %v1615
      %v1649 = vunpack.c.h.b16 %v1616
      %v1650 = vunpack.c.h.b16 %v1617
      %v1651 = vunpack.c.h.b16 %v1618
      %v1652 = vunpack.c.h.b16 %v1619
      %v1653 = vunpack.c.h.b16 %v1623
      %v1654 = vpack.c.b16 %v1635, %v1634
      %v1655 = vpack.c.b16 %v1637, %v1636
      %v1656 = vpack.c.b16 %v1639, %v1638
      %v1657 = vpack.c.b16 %v1641, %v1640
      %v1658 = vpack.c.b16 %v1643, %v1642
      %v1659 = vpack.c.b16 %v1645, %v1644
      %v1660 = vpack.c.b16 %v1647, %v1646
      %v1661 = vpack.c.b16 %v1649, %v1648
      %v1662 = vpack.c.b16 %v1651, %v1650
      %v1663 = vpack.c.b16 %v1653, %v1652
      %1674 = vst [vmem:[%s251] sm:$0xff] %v1654
      %1675 = vst [vmem:[%s251 + $0x8] sm:$0xff] %v1655
      %1676 = vst [vmem:[%s251 + $0x10] sm:$0xff] %v1656
      %1677 = vst [vmem:[%s251 + $0x18] sm:$0xff] %v1657
      %1678 = vst [vmem:[%s251 + $0x20] sm:$0xff] %v1658
      %1679 = vst [vmem:[%s251 + $0x28] sm:$0xff] %v1659
      %1680 = vst [vmem:[%s251 + $0x30] sm:$0xff] %v1660
      %1681 = vst [vmem:[%s251 + $0x38] sm:$0xff] %v1661
      %1682 = vst [vmem:[%s251 + $0x40] sm:$0xff] %v1662
      %1683 = vst [vmem:[%s251 + $0x48] sm:$0xff] %v1663
      %p1684 = scmp.lt.s32.totalorder %s17, 1
      %s1685 = scalar_select %p1684, %s17, 1
      %s1686 = smul.addr %s1685, 20
      %s1687 = smul.addr %s1686, 4
      %s1688 = scalar_lea.vmem %s6, %s1687
      // Predicated region
      $region45: #{forward.12} parent=43 // pred_check
        %p1689 = pneg %p166
      $region46: #{forward.12} parent=43 // pred_check_branch
        %1691 = sbr.rel (%p1689) target = $region48
      $region47: #{forward.12} parent=43 // pred_region
        _
      $region48: #{forward.12} parent=43 // pred_fallthru
        _
    $region44: #{forward.12} parent=5 // pred_fallthru
      _
    %p1692 = scmp.le.s32.totalorder 2, %s12
    // Predicated region
    $region49: #{forward.12} parent=5 // pred_check
      %p1693 = pneg %p1692
    $region50: #{forward.12} parent=5 // pred_check_branch
      %1695 = sbr.rel (%p1693) target = $region52
    $region51: #{forward.12} parent=5 // pred_region
      %s1696 = ssub.s32 %s12, 2
      // Predicated region
      $region53: #{forward.12} parent=51 // pred_check
        %p1697 = pneg %p172
      $region54: #{forward.12} parent=51 // pred_check_branch
        %1699 = sbr.rel (%p1697) target = $region56
      $region55: #{forward.12} parent=51 // pred_region
        %p1700 = scmp.lt.s32.totalorder %s18, 1
        %s1701 = scalar_select %p1700, %s18, 1
        %s1702 = smul.addr %s1701, 20
        %s1703 = smul.addr %s1702, 4
        %s1704 = scalar_lea.vmem %s6, %s1703
      $region56: #{forward.12} parent=51 // pred_fallthru
        _
    $region52: #{forward.12} parent=5 // pred_fallthru
      _
  $region6: #{forward.12} parent=0 // loop_footer
    %s16 = sadd.s32 1, %s12
  $region7: #{forward.12} parent=0 // loop_footer_branch
    %11 = sbr.rel target = $region3
  $region8: #{forward.12} parent=0 // loop_exit
    _

// kernel: forward.13
$region0: #{forward.13}
  #allocation0 [shape = 'u32[]', space=smem, size = 0x4, offset = 0x4, fixed_abs, tag = 'smem constant byte address 0x4 - core index']
  #allocation1 [shape = 'u32[144,128]{1,0:T(1,128)}', space=vmem, size = 0x12000, scoped, tag = 'internal scratch']
  %s0 = inlined_call_operand.vmem [shape: bf16[2,16,384], index: 0, kind: input, shape index: {}]
  %s1 = inlined_call_operand.vmem [shape: bf16[16,64], index: 1, kind: input, shape index: {}]
  %s2 = inlined_call_operand.vmem [shape: f32[16,128], index: 2, kind: input, shape index: {}]
  %s3 = inlined_call_operand.vmem [shape: bf16[16,144], index: 3, kind: input, shape index: {}]
  %s4 = inlined_call_operand.vmem [shape: f32[16,128], index: 4, kind: input, shape index: {}]
  %s5 = inlined_call_operand.vmem [shape: f32[1,324], index: 5, kind: input, shape index: {}]
  %s6 = inlined_call_operand.vmem [shape: bf16[2,16,384], index: 6, kind: output, shape index: {}]
  %s7 = sld [smem:[#allocation0]]
  $region57: #{forward.13} parent=0
    _
  %s9 = ssub.s32 1, %s7
  %s10 = scalar_select 0, %s9, %s7
  loop: start=0, step=1, limit=4
  $region2: #{forward.13} parent=0 // loop_pre_header
    _
  $region3: #{forward.13} parent=0 // loop_header
    %s12 = sphi 0, %s16
    %p13 = scmp.ge.s32.totalorder %s12, 4
    %s22 = sphi 0, %s24
    %s25 = sphi 0, %s22
    %s26 = sphi 0, %s25
    %s42 = sphi 0, %s26
    %s46 = sphi 0, %s46
    %s48 = sphi 0, %s46
    %s49 = sphi 0, %s48
    %s63 = sphi 0, %s49
    %s67 = sphi 0, %s67
    %s69 = sphi 0, %s67
    %s70 = sphi 0, %s69
    %s84 = sphi 0, %s70
    %s88 = sphi 0, %s88
    %s90 = sphi 0, %s88
    %s91 = sphi 0, %s90
    %s105 = sphi 0, %s91
    %s109 = sphi 0, %s109
    %s111 = sphi 0, %s109
    %s112 = sphi 0, %s111
    %s126 = sphi 0, %s112
    %s130 = sphi 0, %s130
    %s132 = sphi 0, %s130
    %s133 = sphi 0, %s132
    %s147 = sphi 0, %s133
    %s153 = sphi 0, %s155
    %s156 = sphi 0, %s153
    %s157 = sphi 0, %s156
    %s173 = sphi 0, %s157
  $region4: #{forward.13} parent=0 // loop_header_branch
    %15 = sbr.rel (%p13) target = $region8
  $region5: #{forward.13} parent=0 // loop_body
    %s17 = ssub.s32 %s12, 1
    %s18 = ssub.s32 %s12, 2
    %s19 = sadd.s32 %s12, 1
    %s20 = ssub.s32 %s12, %s19
    %p21 = scmp.eq.s32.totalorder %s20, 0
    %s23 = sadd.s32 %s22, 1
    %s24 = scalar_select %p21, %s22, %s23
    %p27 = pneg %p21
    %p28 = scmp.eq.s32.totalorder %s12, 1
    %p29 = por %p27, %p28
    %p30 = scmp.ne.s32.totalorder %s22, %s25
    %p31 = scmp.eq.s32.totalorder %s12, 0
    %p32 = por %p30, %p31
    %p33 = scmp.ne.s32.totalorder %s22, %s25
    %p34 = scmp.eq.s32.totalorder %s17, 1
    %p35 = por %p33, %p34
    %p36 = scmp.ne.s32.totalorder %s25, %s26
    %p37 = scmp.eq.s32.totalorder %s17, 0
    %p38 = por %p36, %p37
    %p39 = scmp.ne.s32.totalorder %s25, %s26
    %p40 = scmp.eq.s32.totalorder %s18, 1
    %p41 = por %p39, %p40
    %p43 = scmp.ne.s32.totalorder %s26, %s42
    %p44 = scmp.eq.s32.totalorder %s18, 0
    %p45 = por %p43, %p44
    %s47 = sadd.s32 %s46, 1
    %p50 = scmp.eq.s32.totalorder %s12, 1
    %p51 = scmp.ne.s32.totalorder %s46, %s48
    %p52 = scmp.eq.s32.totalorder %s12, 0
    %p53 = por %p51, %p52
    %p54 = scmp.ne.s32.totalorder %s46, %s48
    %p55 = scmp.eq.s32.totalorder %s17, 1
    %p56 = por %p54, %p55
    %p57 = scmp.ne.s32.totalorder %s48, %s49
    %p58 = scmp.eq.s32.totalorder %s17, 0
    %p59 = por %p57, %p58
    %p60 = scmp.ne.s32.totalorder %s48, %s49
    %p61 = scmp.eq.s32.totalorder %s18, 1
    %p62 = por %p60, %p61
    %p64 = scmp.ne.s32.totalorder %s49, %s63
    %p65 = scmp.eq.s32.totalorder %s18, 0
    %p66 = por %p64, %p65
    %s68 = sadd.s32 %s67, 1
    %p71 = scmp.eq.s32.totalorder %s12, 1
    %p72 = scmp.ne.s32.totalorder %s67, %s69
    %p73 = scmp.eq.s32.totalorder %s12, 0
    %p74 = por %p72, %p73
    %p75 = scmp.ne.s32.totalorder %s67, %s69
    %p76 = scmp.eq.s32.totalorder %s17, 1
    %p77 = por %p75, %p76
    %p78 = scmp.ne.s32.totalorder %s69, %s70
    %p79 = scmp.eq.s32.totalorder %s17, 0
    %p80 = por %p78, %p79
    %p81 = scmp.ne.s32.totalorder %s69, %s70
    %p82 = scmp.eq.s32.totalorder %s18, 1
    %p83 = por %p81, %p82
    %p85 = scmp.ne.s32.totalorder %s70, %s84
    %p86 = scmp.eq.s32.totalorder %s18, 0
    %p87 = por %p85, %p86
    %s89 = sadd.s32 %s88, 1
    %p92 = scmp.eq.s32.totalorder %s12, 1
    %p93 = scmp.ne.s32.totalorder %s88, %s90
    %p94 = scmp.eq.s32.totalorder %s12, 0
    %p95 = por %p93, %p94
    %p96 = scmp.ne.s32.totalorder %s88, %s90
    %p97 = scmp.eq.s32.totalorder %s17, 1
    %p98 = por %p96, %p97
    %p99 = scmp.ne.s32.totalorder %s90, %s91
    %p100 = scmp.eq.s32.totalorder %s17, 0
    %p101 = por %p99, %p100
    %p102 = scmp.ne.s32.totalorder %s90, %s91
    %p103 = scmp.eq.s32.totalorder %s18, 1
    %p104 = por %p102, %p103
    %p106 = scmp.ne.s32.totalorder %s91, %s105
    %p107 = scmp.eq.s32.totalorder %s18, 0
    %p108 = por %p106, %p107
    %s110 = sadd.s32 %s109, 1
    %p113 = scmp.eq.s32.totalorder %s12, 1
    %p114 = scmp.ne.s32.totalorder %s109, %s111
    %p115 = scmp.eq.s32.totalorder %s12, 0
    %p116 = por %p114, %p115
    %p117 = scmp.ne.s32.totalorder %s109, %s111
    %p118 = scmp.eq.s32.totalorder %s17, 1
    %p119 = por %p117, %p118
    %p120 = scmp.ne.s32.totalorder %s111, %s112
    %p121 = scmp.eq.s32.totalorder %s17, 0
    %p122 = por %p120, %p121
    %p123 = scmp.ne.s32.totalorder %s111, %s112
    %p124 = scmp.eq.s32.totalorder %s18, 1
    %p125 = por %p123, %p124
    %p127 = scmp.ne.s32.totalorder %s112, %s126
    %p128 = scmp.eq.s32.totalorder %s18, 0
    %p129 = por %p127, %p128
    %s131 = sadd.s32 %s130, 1
    %p134 = scmp.eq.s32.totalorder %s12, 1
    %p135 = scmp.ne.s32.totalorder %s130, %s132
    %p136 = scmp.eq.s32.totalorder %s12, 0
    %p137 = por %p135, %p136
    %p138 = scmp.ne.s32.totalorder %s130, %s132
    %p139 = scmp.eq.s32.totalorder %s17, 1
    %p140 = por %p138, %p139
    %p141 = scmp.ne.s32.totalorder %s132, %s133
    %p142 = scmp.eq.s32.totalorder %s17, 0
    %p143 = por %p141, %p142
    %p144 = scmp.ne.s32.totalorder %s132, %s133
    %p145 = scmp.eq.s32.totalorder %s18, 1
    %p146 = por %p144, %p145
    %p148 = scmp.ne.s32.totalorder %s133, %s147
    %p149 = scmp.eq.s32.totalorder %s18, 0
    %p150 = por %p148, %p149
    %s151 = ssub.s32 %s12, %s19
    %p152 = scmp.eq.s32.totalorder %s151, 0
    %s154 = sadd.s32 %s153, 1
    %s155 = scalar_select %p152, %s153, %s154
    %p158 = pneg %p152
    %p159 = scmp.eq.s32.totalorder %s12, 1
    %p160 = por %p158, %p159
    %p161 = scmp.ne.s32.totalorder %s153, %s156
    %p162 = scmp.eq.s32.totalorder %s12, 0
    %p163 = por %p161, %p162
    %p164 = scmp.ne.s32.totalorder %s153, %s156
    %p165 = scmp.eq.s32.totalorder %s17, 1
    %p166 = por %p164, %p165
    %p167 = scmp.ne.s32.totalorder %s156, %s157
    %p168 = scmp.eq.s32.totalorder %s17, 0
    %p169 = por %p167, %p168
    %p170 = scmp.ne.s32.totalorder %s156, %s157
    %p171 = scmp.eq.s32.totalorder %s18, 1
    %p172 = por %p170, %p171
    %p174 = scmp.ne.s32.totalorder %s157, %s173
    %p175 = scmp.eq.s32.totalorder %s18, 0
    %p176 = por %p174, %p175
    %p177 = scmp.le.s32.totalorder 1, %s12
    %p178 = scmp.lt.s32.totalorder %s12, 3
    %p179 = pnand %p177, %p178
    %p180 = pneg %p179
    // Predicated region
    $region9: #{forward.13} parent=5 // pred_check
      _
    $region10: #{forward.13} parent=5 // pred_check_branch
      %182 = sbr.rel (%p179) target = $region12
    $region11: #{forward.13} parent=5 // pred_region
      %s183 = ssub.s32 %s12, 1
      // Predicated region
      $region13: #{forward.13} parent=11 // pred_check
        %p184 = pneg %p59
      $region14: #{forward.13} parent=11 // pred_check_branch
        %186 = sbr.rel (%p184) target = $region16
      $region15: #{forward.13} parent=11 // pred_region
        _
      $region16: #{forward.13} parent=11 // pred_fallthru
        _
      // Predicated region
      $region17: #{forward.13} parent=11 // pred_check
        %p187 = pneg %p80
      $region18: #{forward.13} parent=11 // pred_check_branch
        %189 = sbr.rel (%p187) target = $region20
      $region19: #{forward.13} parent=11 // pred_region
        _
      $region20: #{forward.13} parent=11 // pred_fallthru
        _
      // Predicated region
      $region21: #{forward.13} parent=11 // pred_check
        %p190 = pneg %p101
      $region22: #{forward.13} parent=11 // pred_check_branch
        %192 = sbr.rel (%p190) target = $region24
      $region23: #{forward.13} parent=11 // pred_region
        _
      $region24: #{forward.13} parent=11 // pred_fallthru
        _
      // Predicated region
      $region25: #{forward.13} parent=11 // pred_check
        %p193 = pneg %p122
      $region26: #{forward.13} parent=11 // pred_check_branch
        %195 = sbr.rel (%p193) target = $region28
      $region27: #{forward.13} parent=11 // pred_region
        _
      $region28: #{forward.13} parent=11 // pred_fallthru
        _
      // Predicated region
      $region29: #{forward.13} parent=11 // pred_check
        %p196 = pneg %p143
      $region30: #{forward.13} parent=11 // pred_check_branch
        %198 = sbr.rel (%p196) target = $region32
      $region31: #{forward.13} parent=11 // pred_region
        _
      $region32: #{forward.13} parent=11 // pred_fallthru
        _
    $region12: #{forward.13} parent=5 // pred_fallthru
      _
    %p199 = scmp.lt.s32.totalorder %s12, 2
    // Predicated region
    $region33: #{forward.13} parent=5 // pred_check
      %p200 = pneg %p199
    $region34: #{forward.13} parent=5 // pred_check_branch
      %202 = sbr.rel (%p200) target = $region36
    $region35: #{forward.13} parent=5 // pred_region
      // Predicated region
      $region37: #{forward.13} parent=35 // pred_check
        %p203 = pneg %p32
      $region38: #{forward.13} parent=35 // pred_check_branch
        %205 = sbr.rel (%p203) target = $region40
      $region39: #{forward.13} parent=35 // pred_region
        %p206 = scmp.lt.s32.totalorder %s12, 1
        %s207 = scalar_select %p206, %s12, 1
        %s208 = smul.addr %s207, 6
        %s209 = smul.addr %s208, 4
        %s210 = scalar_lea.vmem %s0, %s209
      $region40: #{forward.13} parent=35 // pred_fallthru
        _
    $region36: #{forward.13} parent=5 // pred_fallthru
      _
    %p211 = scmp.le.s32.totalorder 1, %s12
    %p212 = scmp.lt.s32.totalorder %s12, 3
    %p213 = pnand %p211, %p212
    %p214 = pneg %p213
    // Predicated region
    $region41: #{forward.13} parent=5 // pred_check
      _
    $region42: #{forward.13} parent=5 // pred_check_branch
      %216 = sbr.rel (%p213) target = $region44
    $region43: #{forward.13} parent=5 // pred_region
      %s217 = ssub.s32 %s12, 1
      %p218 = scmp.lt.s32.totalorder %s17, 1
      %s219 = scalar_select %p218, %s17, 1
      %s220 = smul.addr %s219, 6
      %s221 = smul.addr %s220, 4
      %s222 = scalar_lea.vmem %s0, %s221
      %p223 = pneg %p38
      %p224 = pneg %p35
      %p225 = pneg %p59
      %p226 = pneg %p56
      %p227 = pneg %p80
      %p228 = pneg %p77
      %p229 = pneg %p101
      %p230 = pneg %p98
      %p231 = pneg %p122
      %p232 = pneg %p119
      %p233 = pneg %p143
      %p234 = pneg %p140
      %p235 = pneg %p169
      %p236 = pneg %p166
      %p237 = scmp.lt.s32.totalorder %s17, 1
      %s238 = scalar_select %p237, %s17, 1
      %s239 = smul.addr %s238, 6
      %s240 = smul.addr %s239, 4
      %s241 = scalar_lea.vmem %s6, %s240
      %p242 = scmp.lt.s32.totalorder %s17, 1
      %s243 = scalar_select %p242, %s17, 1
      %s244 = smul.addr %s243, 6
      %s245 = smul.addr %s244, 4
      %s246 = scalar_lea.vmem %s0, %s245
      %p247 = scmp.lt.s32.totalorder %s17, 1
      %s248 = scalar_select %p247, %s17, 1
      %s249 = smul.addr %s248, 6
      %s250 = smul.addr %s249, 4
      %s251 = scalar_lea.vmem %s6, %s250
      %v253 = vld [vmem:[%s246] sm:$0xff]
      %v254 = vld [vmem:[%s246 + $0x8] sm:$0xf]
      %v255 = vld [vmem:[%s246 + $0xc] sm:$0xff]
      %v256 = vld [vmem:[%s246 + $0x14] sm:$0xf]
      %v261 = vunpack.c.l.b16 %v253
      %v262 = vunpack.c.h.b16 %v253
      %v263 = vunpack.c.l.b16 %v254
      %v264 = vunpack.c.l.b16 %v255
      %v265 = vunpack.c.h.b16 %v255
      %v266 = vunpack.c.l.b16 %v256
      %v267 = vpack.c.b16 %v264, %v261
      %v268 = vpack.c.b16 %v265, %v262
      %v269 = vpack.c.b16 %v266, %v263
      %273 = vrot.lane.b32.xlu0 %v267, 127
      %v274 = vpop.permute.xlu0 %273
      %275 = vrot.lane.b32.xlu0 %v268, 127
      %v276 = vpop.permute.xlu0 %275
      %277 = vrot.lane.b32.xlu0 %v269, 127
      %v278 = vpop.permute.xlu0 %277
      %vm279 = vcmask 1039360
      %v280 = vsel %vm279, %v274, %v276
      %v281 = vsel %vm279, %v276, %v278
      %285 = vrot.lane.b32.xlu0 %v267, 110
      %v286 = vpop.permute.xlu0 %285
      %287 = vrot.lane.b32.xlu0 %v268, 110
      %v288 = vpop.permute.xlu0 %287
      %289 = vrot.lane.b32.xlu0 %v269, 110
      %v290 = vpop.permute.xlu0 %289
      %vm291 = vcmask 900096
      %v292 = vsel %vm291, %v286, %v288
      %v293 = vsel %vm291, %v288, %v290
      %297 = vrot.lane.b32.xlu0 %v267, 109
      %v298 = vpop.permute.xlu0 %297
      %299 = vrot.lane.b32.xlu0 %v268, 109
      %v300 = vpop.permute.xlu0 %299
      %301 = vrot.lane.b32.xlu0 %v269, 109
      %v302 = vpop.permute.xlu0 %301
      %vm303 = vcmask 891904
      %v304 = vsel %vm303, %v298, %v300
      %v305 = vsel %vm303, %v300, %v302
      %v309 = vld [vmem:[%s1] sm:$0xf]
      %v310 = vld [vmem:[%s1 + $0x4] sm:$0xf]
      %v311 = vld [vmem:[%s2] sm:$0xff]
      %v312 = vld [vmem:[%s2 + $0x8] sm:$0xff]
      %314 = vset.pattern.permute.xlu0 0
      %315 = vperm.xlu0 %314, %v311
      %v316 = vpop.permute.xlu0 %315
      %319 = vset.pattern.permute.xlu0 0
      %320 = vperm.xlu0 %319, %v312
      %v321 = vpop.permute.xlu0 %320
      %v325 = vunpack.c.l.b16 %v309
      %v326 = vunpack.c.l.b16 %v310
      %v327 = vpack.c.b16 %v326, %v325
      %vm328 = vcmask 523264
      %v330 = vsel %vm328, %v327, 0
      %332 = vmatprep.subr.bf16.mxu0 %v268
      %333 = vmatpush1.bf16.msra.mxu0 %v267
      %334 = vmatprep.subr.bf16.mxu0 %v281
      %335 = vmatpush1.bf16.msra.mxu0 %v280
      %336 = vmatprep.subr.bf16.mxu0 %v293
      %337 = vmatpush1.bf16.msra.mxu0 %v292
      %338 = vmatprep.subr.bf16.mxu0 %v305
      %339 = vmatpush1.bf16.msra.mxu0 %v304
      %340 = vmatprep.subr.bf16.mxu0 0
      %341 = vmatpush1.bf16.msra.mxu0 0
      %342 = vmatprep.subr.bf16.mxu0 0
      %343 = vmatpush1.bf16.msra.mxu0 0
      %344 = vmatprep.subr.bf16.mxu0 0
      %345 = vmatpush1.bf16.msra.mxu0 0
      %346 = vmatprep.subr.bf16.mxu0 0
      %347 = vmatpush1.bf16.msra.mxu0 0
      %348 = vmatprep.subr.bf16.mxu0 0
      %349 = vmatpush1.bf16.msra.mxu0 0
      %350 = vmatprep.subr.bf16.mxu0 0
      %351 = vmatpush1.bf16.msra.mxu0 0
      %352 = vmatprep.subr.bf16.mxu0 0
      %353 = vmatpush1.bf16.msra.mxu0 0
      %354 = vmatprep.subr.bf16.mxu0 0
      %355 = vmatpush1.bf16.msra.mxu0 0
      %356 = vmatprep.subr.bf16.mxu0 0
      %357 = vmatpush1.bf16.msra.mxu0 0
      %358 = vmatprep.subr.bf16.mxu0 0
      %359 = vmatpush1.bf16.msra.mxu0 0
      %360 = vmatprep.subr.bf16.mxu0 0
      %361 = vmatpush1.bf16.msra.mxu0 0
      %362 = vmatprep.subr.bf16.mxu0 0
      %363 = vmatpush1.bf16.msra.mxu0 0
      %364 = vmatprep.mubr.bf16.mxu0 0
      %365 = vmatmul.mubr.bf16.gmra.mrb[0].mxu0 %v330
      %v366 = vpop.f32.mrb[0].mxu0
      %v367 = vadd.f32 %v316, %v366
      %v368 = vpop.f32.mrb[0].mxu0
      %v369 = vadd.f32 %v316, %v368
      %v370 = vpop.f32.mrb[0].mxu0
      %v371 = vadd.f32 %v321, %v370
      %v372 = vpop.f32.mrb[0].mxu0
      %v373 = vadd.f32 %v321, %v372
      %374 = vdwg.mxu0
      %375 = vmatprep.subr.bf16.mxu0 0
      %376 = vmatpush1.bf16.msra.mxu0 %v269
      %377 = vmatprep.subr.bf16.mxu0 0
      %378 = vmatpush1.bf16.msra.mxu0 %v278
      %379 = vmatprep.subr.bf16.mxu0 0
      %380 = vmatpush1.bf16.msra.mxu0 %v290
      %381 = vmatprep.subr.bf16.mxu0 0
      %382 = vmatpush1.bf16.msra.mxu0 %v302
      %383 = vmatprep.subr.bf16.mxu0 0
      %384 = vmatpush1.bf16.msra.mxu0 0
      %385 = vmatprep.subr.bf16.mxu0 0
      %386 = vmatpush1.bf16.msra.mxu0 0
      %387 = vmatprep.subr.bf16.mxu0 0
      %388 = vmatpush1.bf16.msra.mxu0 0
      %389 = vmatprep.subr.bf16.mxu0 0
      %390 = vmatpush1.bf16.msra.mxu0 0
      %391 = vmatprep.subr.bf16.mxu0 0
      %392 = vmatpush1.bf16.msra.mxu0 0
      %393 = vmatprep.subr.bf16.mxu0 0
      %394 = vmatpush1.bf16.msra.mxu0 0
      %395 = vmatprep.subr.bf16.mxu0 0
      %396 = vmatpush1.bf16.msra.mxu0 0
      %397 = vmatprep.subr.bf16.mxu0 0
      %398 = vmatpush1.bf16.msra.mxu0 0
      %399 = vmatprep.subr.bf16.mxu0 0
      %400 = vmatpush1.bf16.msra.mxu0 0
      %401 = vmatprep.subr.bf16.mxu0 0
      %402 = vmatpush1.bf16.msra.mxu0 0
      %403 = vmatprep.subr.bf16.mxu0 0
      %404 = vmatpush1.bf16.msra.mxu0 0
      %405 = vmatprep.subr.bf16.mxu0 0
      %406 = vmatpush1.bf16.msra.mxu0 0
      %407 = vmatprep.mubr.bf16.mxu0 0
      %408 = vmatmul.mubr.bf16.gmra.mrb[0].mxu0 %v330
      %v409 = vpop.f32.mrb[0].mxu0
      %v410 = vadd.f32 %v316, %v409
      %v411 = vpop.f32.mrb[0].mxu0
      %v412 = vpop.f32.mrb[0].mxu0
      %v413 = vadd.f32 %v321, %v412
      %v414 = vpop.f32.mrb[0].mxu0
      %415 = vdwg.mxu0
      %v416 = vmax.f32 %v367, 0.0
      %v417 = vmax.f32 %v369, 0.0
      %v418 = vmax.f32 %v410, 0.0
      %v419 = vmax.f32 %v371, 0.0
      %v420 = vmax.f32 %v373, 0.0
      %v421 = vmax.f32 %v413, 0.0
      %v422 = vld [vmem:[%s5] sm:$0x7]
      %v424 = vlaneseq
      %v425 = vshrl.u32 %v424, 7
      %v426 = vsub.s32 0, %v425
      %v427 = vrot.slane %v422, %v426
      %v428 = vlaneseq
      %v429 = vshrl.u32 %v428, 7
      %v430 = vsub.s32 1, %v429
      %v431 = vrot.slane %v422, %v430
      %v432 = vlaneseq
      %v433 = vshrl.u32 %v432, 7
      %v434 = vsub.s32 2, %v433
      %v435 = vrot.slane %v422, %v434
      %v439 = vmul.f32 %v416, %v427
      %v440 = vmul.f32 %v417, %v431
      %v441 = vmul.f32 %v418, %v435
      %v442 = vmul.f32 %v419, %v427
      %v443 = vmul.f32 %v420, %v431
      %v444 = vmul.f32 %v421, %v435
      %v445 = vpack.c.bf16 %v442, %v439
      %v446 = vpack.c.bf16 %v443, %v440
      %v447 = vpack.c.bf16 %v444, %v441
      %451 = vrot.lane.b32.xlu0 %v445, 19
      %v452 = vpop.permute.xlu0 %451
      %453 = vrot.lane.b32.xlu0 %v446, 19
      %v454 = vpop.permute.xlu0 %453
      %455 = vrot.lane.b32.xlu0 %v447, 19
      %v456 = vpop.permute.xlu0 %455
      %vm457 = vcmask 154624
      %v458 = vsel %vm457, %v452, %v454
      %v459 = vsel %vm457, %v454, %v456
      %vm461 = vcmask 154624
      %v464 = vsel %vm461, 0, %v452
      %vm466 = vcmask 711680
      %v468 = vsel %vm466, %v459, 0
      %472 = vrot.lane.b32.xlu0 %v464, 127
      %v473 = vpop.permute.xlu0 %472
      %474 = vrot.lane.b32.xlu0 %v458, 127
      %v475 = vpop.permute.xlu0 %474
      %476 = vrot.lane.b32.xlu0 %v468, 127
      %v477 = vpop.permute.xlu0 %476
      %v478 = vsel %vm279, %v473, %v475
      %v479 = vsel %vm279, %v475, %v477
      %483 = vrot.lane.b32.xlu0 %v464, 126
      %v484 = vpop.permute.xlu0 %483
      %485 = vrot.lane.b32.xlu0 %v458, 126
      %v486 = vpop.permute.xlu0 %485
      %487 = vrot.lane.b32.xlu0 %v468, 126
      %v488 = vpop.permute.xlu0 %487
      %vm489 = vcmask 1031168
      %v490 = vsel %vm489, %v484, %v486
      %v491 = vsel %vm489, %v486, %v488
      %495 = vrot.lane.b32.xlu0 %v464, 110
      %v496 = vpop.permute.xlu0 %495
      %497 = vrot.lane.b32.xlu0 %v458, 110
      %v498 = vpop.permute.xlu0 %497
      %499 = vrot.lane.b32.xlu0 %v468, 110
      %v500 = vpop.permute.xlu0 %499
      %v501 = vsel %vm291, %v496, %v498
      %v502 = vsel %vm291, %v498, %v500
      %506 = vrot.lane.b32.xlu0 %v464, 109
      %v507 = vpop.permute.xlu0 %506
      %508 = vrot.lane.b32.xlu0 %v458, 109
      %v509 = vpop.permute.xlu0 %508
      %510 = vrot.lane.b32.xlu0 %v468, 109
      %v511 = vpop.permute.xlu0 %510
      %v512 = vsel %vm303, %v507, %v509
      %v513 = vsel %vm303, %v509, %v511
      %517 = vrot.lane.b32.xlu0 %v464, 108
      %v518 = vpop.permute.xlu0 %517
      %519 = vrot.lane.b32.xlu0 %v458, 108
      %v520 = vpop.permute.xlu0 %519
      %521 = vrot.lane.b32.xlu0 %v468, 108
      %v522 = vpop.permute.xlu0 %521
      %vm523 = vcmask 883712
      %v524 = vsel %vm523, %v518, %v520
      %v525 = vsel %vm523, %v520, %v522
      %529 = vrot.lane.b32.xlu0 %v464, 92
      %v530 = vpop.permute.xlu0 %529
      %531 = vrot.lane.b32.xlu0 %v458, 92
      %v532 = vpop.permute.xlu0 %531
      %533 = vrot.lane.b32.xlu0 %v468, 92
      %v534 = vpop.permute.xlu0 %533
      %vm535 = vcmask 752640
      %v536 = vsel %vm535, %v530, %v532
      %v537 = vsel %vm535, %v532, %v534
      %541 = vrot.lane.b32.xlu0 %v464, 91
      %v542 = vpop.permute.xlu0 %541
      %543 = vrot.lane.b32.xlu0 %v458, 91
      %v544 = vpop.permute.xlu0 %543
      %545 = vrot.lane.b32.xlu0 %v468, 91
      %v546 = vpop.permute.xlu0 %545
      %vm547 = vcmask 744448
      %v548 = vsel %vm547, %v542, %v544
      %v549 = vsel %vm547, %v544, %v546
      %553 = vrot.lane.b32.xlu0 %v464, 90
      %v554 = vpop.permute.xlu0 %553
      %555 = vrot.lane.b32.xlu0 %v458, 90
      %v556 = vpop.permute.xlu0 %555
      %557 = vrot.lane.b32.xlu0 %v468, 90
      %v558 = vpop.permute.xlu0 %557
      %vm559 = vcmask 736256
      %v560 = vsel %vm559, %v554, %v556
      %v561 = vsel %vm559, %v556, %v558
      %v565 = vld [vmem:[%s3] sm:$0xff]
      %v566 = vld [vmem:[%s3 + $0x8] sm:$0xff]
      %v567 = vld [vmem:[%s4] sm:$0xff]
      %v568 = vld [vmem:[%s4 + $0x8] sm:$0xff]
      %570 = vset.pattern.permute.xlu0 0
      %571 = vperm.xlu0 %570, %v567
      %v572 = vpop.permute.xlu0 %571
      %575 = vset.pattern.permute.xlu0 0
      %576 = vperm.xlu0 %575, %v568
      %v577 = vpop.permute.xlu0 %576
      %v581 = vunpack.c.l.b16 %v565
      %v582 = vunpack.c.h.b16 %v565
      %v583 = vunpack.c.l.b16 %v566
      %v584 = vunpack.c.h.b16 %v566
      %v585 = vpack.c.b16 %v583, %v581
      %v586 = vpack.c.b16 %v584, %v582
      %vm588 = vcmask 130048
      %v590 = vsel %vm588, %v586, 0
      %592 = vmatprep.subr.bf16.mxu0 %v458
      %593 = vmatpush1.bf16.msra.mxu0 %v464
      %594 = vmatprep.subr.bf16.mxu0 %v479
      %595 = vmatpush1.bf16.msra.mxu0 %v478
      %596 = vmatprep.subr.bf16.mxu0 %v491
      %597 = vmatpush1.bf16.msra.mxu0 %v490
      %598 = vmatprep.subr.bf16.mxu0 %v502
      %599 = vmatpush1.bf16.msra.mxu0 %v501
      %600 = vmatprep.subr.bf16.mxu0 %v513
      %601 = vmatpush1.bf16.msra.mxu0 %v512
      %602 = vmatprep.subr.bf16.mxu0 %v525
      %603 = vmatpush1.bf16.msra.mxu0 %v524
      %604 = vmatprep.subr.bf16.mxu0 %v537
      %605 = vmatpush1.bf16.msra.mxu0 %v536
      %606 = vmatprep.subr.bf16.mxu0 %v549
      %607 = vmatpush1.bf16.msra.mxu0 %v548
      %608 = vmatprep.subr.bf16.mxu0 %v561
      %609 = vmatpush1.bf16.msra.mxu0 %v560
      %610 = vmatprep.subr.bf16.mxu0 0
      %611 = vmatpush1.bf16.msra.mxu0 0
      %612 = vmatprep.subr.bf16.mxu0 0
      %613 = vmatpush1.bf16.msra.mxu0 0
      %614 = vmatprep.subr.bf16.mxu0 0
      %615 = vmatpush1.bf16.msra.mxu0 0
      %616 = vmatprep.subr.bf16.mxu0 0
      %617 = vmatpush1.bf16.msra.mxu0 0
      %618 = vmatprep.subr.bf16.mxu0 0
      %619 = vmatpush1.bf16.msra.mxu0 0
      %620 = vmatprep.subr.bf16.mxu0 0
      %621 = vmatpush1.bf16.msra.mxu0 0
      %622 = vmatprep.subr.bf16.mxu0 0
      %623 = vmatpush1.bf16.msra.mxu0 0
      %624 = vmatprep.mubr.bf16.mxu0 %v590
      %625 = vmatmul.mubr.bf16.gmra.mrb[0].mxu0 %v585
      %v626 = vpop.f32.mrb[0].mxu0
      %v627 = vadd.f32 %v572, %v626
      %v628 = vpop.f32.mrb[0].mxu0
      %v629 = vadd.f32 %v572, %v628
      %v630 = vpop.f32.mrb[0].mxu0
      %v631 = vadd.f32 %v577, %v630
      %v632 = vpop.f32.mrb[0].mxu0
      %v633 = vadd.f32 %v577, %v632
      %634 = vdwg.mxu0
      %635 = vmatprep.subr.bf16.mxu0 0
      %636 = vmatpush1.bf16.msra.mxu0 %v468
      %637 = vmatprep.subr.bf16.mxu0 0
      %638 = vmatpush1.bf16.msra.mxu0 %v477
      %639 = vmatprep.subr.bf16.mxu0 0
      %640 = vmatpush1.bf16.msra.mxu0 %v488
      %641 = vmatprep.subr.bf16.mxu0 0
      %642 = vmatpush1.bf16.msra.mxu0 %v500
      %643 = vmatprep.subr.bf16.mxu0 0
      %644 = vmatpush1.bf16.msra.mxu0 %v511
      %645 = vmatprep.subr.bf16.mxu0 0
      %646 = vmatpush1.bf16.msra.mxu0 %v522
      %647 = vmatprep.subr.bf16.mxu0 0
      %648 = vmatpush1.bf16.msra.mxu0 %v534
      %649 = vmatprep.subr.bf16.mxu0 0
      %650 = vmatpush1.bf16.msra.mxu0 %v546
      %651 = vmatprep.subr.bf16.mxu0 0
      %652 = vmatpush1.bf16.msra.mxu0 %v558
      %653 = vmatprep.subr.bf16.mxu0 0
      %654 = vmatpush1.bf16.msra.mxu0 0
      %655 = vmatprep.subr.bf16.mxu0 0
      %656 = vmatpush1.bf16.msra.mxu0 0
      %657 = vmatprep.subr.bf16.mxu0 0
      %658 = vmatpush1.bf16.msra.mxu0 0
      %659 = vmatprep.subr.bf16.mxu0 0
      %660 = vmatpush1.bf16.msra.mxu0 0
      %661 = vmatprep.subr.bf16.mxu0 0
      %662 = vmatpush1.bf16.msra.mxu0 0
      %663 = vmatprep.subr.bf16.mxu0 0
      %664 = vmatpush1.bf16.msra.mxu0 0
      %665 = vmatprep.subr.bf16.mxu0 0
      %666 = vmatpush1.bf16.msra.mxu0 0
      %667 = vmatprep.mubr.bf16.mxu0 %v590
      %668 = vmatmul.mubr.bf16.gmra.mrb[0].mxu0 %v585
      %v669 = vpop.f32.mrb[0].mxu0
      %v670 = vadd.f32 %v572, %v669
      %v671 = vpop.f32.mrb[0].mxu0
      %v672 = vpop.f32.mrb[0].mxu0
      %v673 = vadd.f32 %v577, %v672
      %v674 = vpop.f32.mrb[0].mxu0
      %675 = vdwg.mxu0
      %v676 = vmax.f32 %v627, 0.0
      %v677 = vmax.f32 %v629, 0.0
      %v678 = vmax.f32 %v670, 0.0
      %v679 = vmax.f32 %v631, 0.0
      %v680 = vmax.f32 %v633, 0.0
      %v681 = vmax.f32 %v673, 0.0
      %v682 = vpack.c.bf16 %v679, %v676
      %v683 = vpack.c.bf16 %v680, %v677
      %v684 = vpack.c.bf16 %v681, %v678
      %vm685 = vcmask 556032
      %v687 = vsel %vm685, %v684, 0
      %v691 = vunpack.c.l.b16 %v682
      %v692 = vunpack.c.l.b16 %v683
      %v693 = vunpack.c.l.b16 %v687
      %v694 = vunpack.c.h.b16 %v682
      %v695 = vunpack.c.h.b16 %v683
      %v696 = vunpack.c.h.b16 %v687
      %v697 = vpack.c.b16 %v692, %v691
      %v698 = vpack.c.b16 %v693, %v693
      %v699 = vpack.c.b16 %v695, %v694
      %v700 = vpack.c.b16 %v696, %v696
      %705 = vst [vmem:[%s251] sm:$0xff] %v697
      %706 = vst [vmem:[%s251 + $0x8] sm:$0xf] %v698
      %707 = vst [vmem:[%s251 + $0xc] sm:$0xff] %v699
      %708 = vst [vmem:[%s251 + $0x14] sm:$0xf] %v700
      %p709 = scmp.lt.s32.totalorder %s17, 1
      %s710 = scalar_select %p709, %s17, 1
      %s711 = smul.addr %s710, 6
      %s712 = smul.addr %s711, 4
      %s713 = scalar_lea.vmem %s6, %s712
      // Predicated region
      $region45: #{forward.13} parent=43 // pred_check
        %p714 = pneg %p166
      $region46: #{forward.13} parent=43 // pred_check_branch
        %716 = sbr.rel (%p714) target = $region48
      $region47: #{forward.13} parent=43 // pred_region
        _
      $region48: #{forward.13} parent=43 // pred_fallthru
        _
    $region44: #{forward.13} parent=5 // pred_fallthru
      _
    %p717 = scmp.le.s32.totalorder 2, %s12
    // Predicated region
    $region49: #{forward.13} parent=5 // pred_check
      %p718 = pneg %p717
    $region50: #{forward.13} parent=5 // pred_check_branch
      %720 = sbr.rel (%p718) target = $region52
    $region51: #{forward.13} parent=5 // pred_region
      %s721 = ssub.s32 %s12, 2
      // Predicated region
      $region53: #{forward.13} parent=51 // pred_check
        %p722 = pneg %p172
      $region54: #{forward.13} parent=51 // pred_check_branch
        %724 = sbr.rel (%p722) target = $region56
      $region55: #{forward.13} parent=51 // pred_region
        %p725 = scmp.lt.s32.totalorder %s18, 1
        %s726 = scalar_select %p725, %s18, 1
        %s727 = smul.addr %s726, 6
        %s728 = smul.addr %s727, 4
        %s729 = scalar_lea.vmem %s6, %s728
      $region56: #{forward.13} parent=51 // pred_fallthru
        _
    $region52: #{forward.13} parent=5 // pred_fallthru
      _
  $region6: #{forward.13} parent=0 // loop_footer
    %s16 = sadd.s32 1, %s12
  $region7: #{forward.13} parent=0 // loop_footer_branch
    %11 = sbr.rel target = $region3
  $region8: #{forward.13} parent=0 // loop_exit
    _

// kernel: forward.14
$region0: #{forward.14}
  #allocation0 [shape = 'u32[]', space=smem, size = 0x4, offset = 0x4, fixed_abs, tag = 'smem constant byte address 0x4 - core index']
  #allocation1 [shape = 'u32[144,128]{1,0:T(1,128)}', space=vmem, size = 0x12000, scoped, tag = 'internal scratch']
  %s0 = inlined_call_operand.vmem [shape: bf16[2,32,128], index: 0, kind: input, shape index: {}]
  %s1 = inlined_call_operand.vmem [shape: bf16[16,128], index: 1, kind: input, shape index: {}]
  %s2 = inlined_call_operand.vmem [shape: f32[16,128], index: 2, kind: input, shape index: {}]
  %s3 = inlined_call_operand.vmem [shape: bf16[16,144], index: 3, kind: input, shape index: {}]
  %s4 = inlined_call_operand.vmem [shape: f32[16,128], index: 4, kind: input, shape index: {}]
  %s5 = inlined_call_operand.vmem [shape: f32[1,100], index: 5, kind: input, shape index: {}]
  %s6 = inlined_call_operand.vmem [shape: bf16[2,16,128], index: 6, kind: output, shape index: {}]
  %s7 = sld [smem:[#allocation0]]
  $region57: #{forward.14} parent=0
    _
  %s9 = ssub.s32 1, %s7
  %s10 = scalar_select 0, %s9, %s7
  loop: start=0, step=1, limit=4
  $region2: #{forward.14} parent=0 // loop_pre_header
    _
  $region3: #{forward.14} parent=0 // loop_header
    %s12 = sphi 0, %s16
    %p13 = scmp.ge.s32.totalorder %s12, 4
    %s22 = sphi 0, %s24
    %s25 = sphi 0, %s22
    %s26 = sphi 0, %s25
    %s42 = sphi 0, %s26
    %s46 = sphi 0, %s46
    %s48 = sphi 0, %s46
    %s49 = sphi 0, %s48
    %s63 = sphi 0, %s49
    %s67 = sphi 0, %s67
    %s69 = sphi 0, %s67
    %s70 = sphi 0, %s69
    %s84 = sphi 0, %s70
    %s88 = sphi 0, %s88
    %s90 = sphi 0, %s88
    %s91 = sphi 0, %s90
    %s105 = sphi 0, %s91
    %s109 = sphi 0, %s109
    %s111 = sphi 0, %s109
    %s112 = sphi 0, %s111
    %s126 = sphi 0, %s112
    %s130 = sphi 0, %s130
    %s132 = sphi 0, %s130
    %s133 = sphi 0, %s132
    %s147 = sphi 0, %s133
    %s153 = sphi 0, %s155
    %s156 = sphi 0, %s153
    %s157 = sphi 0, %s156
    %s173 = sphi 0, %s157
  $region4: #{forward.14} parent=0 // loop_header_branch
    %15 = sbr.rel (%p13) target = $region8
  $region5: #{forward.14} parent=0 // loop_body
    %s17 = ssub.s32 %s12, 1
    %s18 = ssub.s32 %s12, 2
    %s19 = sadd.s32 %s12, 1
    %s20 = ssub.s32 %s12, %s19
    %p21 = scmp.eq.s32.totalorder %s20, 0
    %s23 = sadd.s32 %s22, 1
    %s24 = scalar_select %p21, %s22, %s23
    %p27 = pneg %p21
    %p28 = scmp.eq.s32.totalorder %s12, 1
    %p29 = por %p27, %p28
    %p30 = scmp.ne.s32.totalorder %s22, %s25
    %p31 = scmp.eq.s32.totalorder %s12, 0
    %p32 = por %p30, %p31
    %p33 = scmp.ne.s32.totalorder %s22, %s25
    %p34 = scmp.eq.s32.totalorder %s17, 1
    %p35 = por %p33, %p34
    %p36 = scmp.ne.s32.totalorder %s25, %s26
    %p37 = scmp.eq.s32.totalorder %s17, 0
    %p38 = por %p36, %p37
    %p39 = scmp.ne.s32.totalorder %s25, %s26
    %p40 = scmp.eq.s32.totalorder %s18, 1
    %p41 = por %p39, %p40
    %p43 = scmp.ne.s32.totalorder %s26, %s42
    %p44 = scmp.eq.s32.totalorder %s18, 0
    %p45 = por %p43, %p44
    %s47 = sadd.s32 %s46, 1
    %p50 = scmp.eq.s32.totalorder %s12, 1
    %p51 = scmp.ne.s32.totalorder %s46, %s48
    %p52 = scmp.eq.s32.totalorder %s12, 0
    %p53 = por %p51, %p52
    %p54 = scmp.ne.s32.totalorder %s46, %s48
    %p55 = scmp.eq.s32.totalorder %s17, 1
    %p56 = por %p54, %p55
    %p57 = scmp.ne.s32.totalorder %s48, %s49
    %p58 = scmp.eq.s32.totalorder %s17, 0
    %p59 = por %p57, %p58
    %p60 = scmp.ne.s32.totalorder %s48, %s49
    %p61 = scmp.eq.s32.totalorder %s18, 1
    %p62 = por %p60, %p61
    %p64 = scmp.ne.s32.totalorder %s49, %s63
    %p65 = scmp.eq.s32.totalorder %s18, 0
    %p66 = por %p64, %p65
    %s68 = sadd.s32 %s67, 1
    %p71 = scmp.eq.s32.totalorder %s12, 1
    %p72 = scmp.ne.s32.totalorder %s67, %s69
    %p73 = scmp.eq.s32.totalorder %s12, 0
    %p74 = por %p72, %p73
    %p75 = scmp.ne.s32.totalorder %s67, %s69
    %p76 = scmp.eq.s32.totalorder %s17, 1
    %p77 = por %p75, %p76
    %p78 = scmp.ne.s32.totalorder %s69, %s70
    %p79 = scmp.eq.s32.totalorder %s17, 0
    %p80 = por %p78, %p79
    %p81 = scmp.ne.s32.totalorder %s69, %s70
    %p82 = scmp.eq.s32.totalorder %s18, 1
    %p83 = por %p81, %p82
    %p85 = scmp.ne.s32.totalorder %s70, %s84
    %p86 = scmp.eq.s32.totalorder %s18, 0
    %p87 = por %p85, %p86
    %s89 = sadd.s32 %s88, 1
    %p92 = scmp.eq.s32.totalorder %s12, 1
    %p93 = scmp.ne.s32.totalorder %s88, %s90
    %p94 = scmp.eq.s32.totalorder %s12, 0
    %p95 = por %p93, %p94
    %p96 = scmp.ne.s32.totalorder %s88, %s90
    %p97 = scmp.eq.s32.totalorder %s17, 1
    %p98 = por %p96, %p97
    %p99 = scmp.ne.s32.totalorder %s90, %s91
    %p100 = scmp.eq.s32.totalorder %s17, 0
    %p101 = por %p99, %p100
    %p102 = scmp.ne.s32.totalorder %s90, %s91
    %p103 = scmp.eq.s32.totalorder %s18, 1
    %p104 = por %p102, %p103
    %p106 = scmp.ne.s32.totalorder %s91, %s105
    %p107 = scmp.eq.s32.totalorder %s18, 0
    %p108 = por %p106, %p107
    %s110 = sadd.s32 %s109, 1
    %p113 = scmp.eq.s32.totalorder %s12, 1
    %p114 = scmp.ne.s32.totalorder %s109, %s111
    %p115 = scmp.eq.s32.totalorder %s12, 0
    %p116 = por %p114, %p115
    %p117 = scmp.ne.s32.totalorder %s109, %s111
    %p118 = scmp.eq.s32.totalorder %s17, 1
    %p119 = por %p117, %p118
    %p120 = scmp.ne.s32.totalorder %s111, %s112
    %p121 = scmp.eq.s32.totalorder %s17, 0
    %p122 = por %p120, %p121
    %p123 = scmp.ne.s32.totalorder %s111, %s112
    %p124 = scmp.eq.s32.totalorder %s18, 1
    %p125 = por %p123, %p124
    %p127 = scmp.ne.s32.totalorder %s112, %s126
    %p128 = scmp.eq.s32.totalorder %s18, 0
    %p129 = por %p127, %p128
    %s131 = sadd.s32 %s130, 1
    %p134 = scmp.eq.s32.totalorder %s12, 1
    %p135 = scmp.ne.s32.totalorder %s130, %s132
    %p136 = scmp.eq.s32.totalorder %s12, 0
    %p137 = por %p135, %p136
    %p138 = scmp.ne.s32.totalorder %s130, %s132
    %p139 = scmp.eq.s32.totalorder %s17, 1
    %p140 = por %p138, %p139
    %p141 = scmp.ne.s32.totalorder %s132, %s133
    %p142 = scmp.eq.s32.totalorder %s17, 0
    %p143 = por %p141, %p142
    %p144 = scmp.ne.s32.totalorder %s132, %s133
    %p145 = scmp.eq.s32.totalorder %s18, 1
    %p146 = por %p144, %p145
    %p148 = scmp.ne.s32.totalorder %s133, %s147
    %p149 = scmp.eq.s32.totalorder %s18, 0
    %p150 = por %p148, %p149
    %s151 = ssub.s32 %s12, %s19
    %p152 = scmp.eq.s32.totalorder %s151, 0
    %s154 = sadd.s32 %s153, 1
    %s155 = scalar_select %p152, %s153, %s154
    %p158 = pneg %p152
    %p159 = scmp.eq.s32.totalorder %s12, 1
    %p160 = por %p158, %p159
    %p161 = scmp.ne.s32.totalorder %s153, %s156
    %p162 = scmp.eq.s32.totalorder %s12, 0
    %p163 = por %p161, %p162
    %p164 = scmp.ne.s32.totalorder %s153, %s156
    %p165 = scmp.eq.s32.totalorder %s17, 1
    %p166 = por %p164, %p165
    %p167 = scmp.ne.s32.totalorder %s156, %s157
    %p168 = scmp.eq.s32.totalorder %s17, 0
    %p169 = por %p167, %p168
    %p170 = scmp.ne.s32.totalorder %s156, %s157
    %p171 = scmp.eq.s32.totalorder %s18, 1
    %p172 = por %p170, %p171
    %p174 = scmp.ne.s32.totalorder %s157, %s173
    %p175 = scmp.eq.s32.totalorder %s18, 0
    %p176 = por %p174, %p175
    %p177 = scmp.le.s32.totalorder 1, %s12
    %p178 = scmp.lt.s32.totalorder %s12, 3
    %p179 = pnand %p177, %p178
    %p180 = pneg %p179
    // Predicated region
    $region9: #{forward.14} parent=5 // pred_check
      _
    $region10: #{forward.14} parent=5 // pred_check_branch
      %182 = sbr.rel (%p179) target = $region12
    $region11: #{forward.14} parent=5 // pred_region
      %s183 = ssub.s32 %s12, 1
      // Predicated region
      $region13: #{forward.14} parent=11 // pred_check
        %p184 = pneg %p59
      $region14: #{forward.14} parent=11 // pred_check_branch
        %186 = sbr.rel (%p184) target = $region16
      $region15: #{forward.14} parent=11 // pred_region
        _
      $region16: #{forward.14} parent=11 // pred_fallthru
        _
      // Predicated region
      $region17: #{forward.14} parent=11 // pred_check
        %p187 = pneg %p80
      $region18: #{forward.14} parent=11 // pred_check_branch
        %189 = sbr.rel (%p187) target = $region20
      $region19: #{forward.14} parent=11 // pred_region
        _
      $region20: #{forward.14} parent=11 // pred_fallthru
        _
      // Predicated region
      $region21: #{forward.14} parent=11 // pred_check
        %p190 = pneg %p101
      $region22: #{forward.14} parent=11 // pred_check_branch
        %192 = sbr.rel (%p190) target = $region24
      $region23: #{forward.14} parent=11 // pred_region
        _
      $region24: #{forward.14} parent=11 // pred_fallthru
        _
      // Predicated region
      $region25: #{forward.14} parent=11 // pred_check
        %p193 = pneg %p122
      $region26: #{forward.14} parent=11 // pred_check_branch
        %195 = sbr.rel (%p193) target = $region28
      $region27: #{forward.14} parent=11 // pred_region
        _
      $region28: #{forward.14} parent=11 // pred_fallthru
        _
      // Predicated region
      $region29: #{forward.14} parent=11 // pred_check
        %p196 = pneg %p143
      $region30: #{forward.14} parent=11 // pred_check_branch
        %198 = sbr.rel (%p196) target = $region32
      $region31: #{forward.14} parent=11 // pred_region
        _
      $region32: #{forward.14} parent=11 // pred_fallthru
        _
    $region12: #{forward.14} parent=5 // pred_fallthru
      _
    %p199 = scmp.lt.s32.totalorder %s12, 2
    // Predicated region
    $region33: #{forward.14} parent=5 // pred_check
      %p200 = pneg %p199
    $region34: #{forward.14} parent=5 // pred_check_branch
      %202 = sbr.rel (%p200) target = $region36
    $region35: #{forward.14} parent=5 // pred_region
      // Predicated region
      $region37: #{forward.14} parent=35 // pred_check
        %p203 = pneg %p32
      $region38: #{forward.14} parent=35 // pred_check_branch
        %205 = sbr.rel (%p203) target = $region40
      $region39: #{forward.14} parent=35 // pred_region
        %p206 = scmp.lt.s32.totalorder %s12, 1
        %s207 = scalar_select %p206, %s12, 1
        %s208 = smul.addr %s207, 4
        %s209 = smul.addr %s208, 4
        %s210 = scalar_lea.vmem %s0, %s209
      $region40: #{forward.14} parent=35 // pred_fallthru
        _
    $region36: #{forward.14} parent=5 // pred_fallthru
      _
    %p211 = scmp.le.s32.totalorder 1, %s12
    %p212 = scmp.lt.s32.totalorder %s12, 3
    %p213 = pnand %p211, %p212
    %p214 = pneg %p213
    // Predicated region
    $region41: #{forward.14} parent=5 // pred_check
      _
    $region42: #{forward.14} parent=5 // pred_check_branch
      %216 = sbr.rel (%p213) target = $region44
    $region43: #{forward.14} parent=5 // pred_region
      %s217 = ssub.s32 %s12, 1
      %p218 = scmp.lt.s32.totalorder %s17, 1
      %s219 = scalar_select %p218, %s17, 1
      %s220 = smul.addr %s219, 4
      %s221 = smul.addr %s220, 4
      %s222 = scalar_lea.vmem %s0, %s221
      %p223 = pneg %p38
      %p224 = pneg %p35
      %p225 = pneg %p59
      %p226 = pneg %p56
      %p227 = pneg %p80
      %p228 = pneg %p77
      %p229 = pneg %p101
      %p230 = pneg %p98
      %p231 = pneg %p122
      %p232 = pneg %p119
      %p233 = pneg %p143
      %p234 = pneg %p140
      %p235 = pneg %p169
      %p236 = pneg %p166
      %p237 = scmp.lt.s32.totalorder %s17, 1
      %s238 = scalar_select %p237, %s17, 1
      %s239 = smul.addr %s238, 2
      %s240 = smul.addr %s239, 4
      %s241 = scalar_lea.vmem %s6, %s240
      %p242 = scmp.lt.s32.totalorder %s17, 1
      %s243 = scalar_select %p242, %s17, 1
      %s244 = smul.addr %s243, 4
      %s245 = smul.addr %s244, 4
      %s246 = scalar_lea.vmem %s0, %s245
      %p247 = scmp.lt.s32.totalorder %s17, 1
      %s248 = scalar_select %p247, %s17, 1
      %s249 = smul.addr %s248, 2
      %s250 = smul.addr %s249, 4
      %s251 = scalar_lea.vmem %s6, %s250
      %v253 = vld [vmem:[%s246] sm:$0xf]
      %v254 = vld [vmem:[%s246 + $0x4] sm:$0xf]
      %v255 = vld [vmem:[%s246 + $0x8] sm:$0xf]
      %v256 = vld [vmem:[%s246 + $0xc] sm:$0xf]
      %v261 = vunpack.c.l.b16 %v253
      %v262 = vunpack.c.l.b16 %v254
      %v263 = vunpack.c.l.b16 %v255
      %v264 = vunpack.c.l.b16 %v256
      %v265 = vpack.c.b16 %v262, %v261
      %v266 = vpack.c.b16 %v264, %v263
      %269 = vrot.lane.b32.xlu0 %v265, 127
      %v270 = vpop.permute.xlu0 %269
      %271 = vrot.lane.b32.xlu0 %v266, 127
      %v272 = vpop.permute.xlu0 %271
      %275 = vrot.lane.b32.xlu0 %v265, 118
      %v276 = vpop.permute.xlu0 %275
      %277 = vrot.lane.b32.xlu0 %v266, 118
      %v278 = vpop.permute.xlu0 %277
      %281 = vrot.lane.b32.xlu0 %v265, 117
      %v282 = vpop.permute.xlu0 %281
      %283 = vrot.lane.b32.xlu0 %v266, 117
      %v284 = vpop.permute.xlu0 %283
      %v287 = vld [vmem:[%s1] sm:$0xf]
      %v288 = vld [vmem:[%s1 + $0x4] sm:$0xf]
      %v289 = vld [vmem:[%s2] sm:$0xff]
      %v290 = vld [vmem:[%s2 + $0x8] sm:$0xff]
      %292 = vset.pattern.permute.xlu0 0
      %293 = vperm.xlu0 %292, %v289
      %v294 = vpop.permute.xlu0 %293
      %297 = vset.pattern.permute.xlu0 0
      %298 = vperm.xlu0 %297, %v290
      %v299 = vpop.permute.xlu0 %298
      %v303 = vunpack.c.l.b16 %v287
      %v304 = vunpack.c.l.b16 %v288
      %v305 = vpack.c.b16 %v304, %v303
      %307 = vmatprep.subr.bf16.mxu0 0
      %308 = vmatpush1.bf16.msra.mxu0 %v265
      %309 = vmatprep.subr.bf16.mxu0 0
      %310 = vmatpush1.bf16.msra.mxu0 %v266
      %311 = vmatprep.subr.bf16.mxu0 0
      %312 = vmatpush1.bf16.msra.mxu0 %v270
      %313 = vmatprep.subr.bf16.mxu0 0
      %314 = vmatpush1.bf16.msra.mxu0 %v272
      %315 = vmatprep.subr.bf16.mxu0 0
      %316 = vmatpush1.bf16.msra.mxu0 %v276
      %317 = vmatprep.subr.bf16.mxu0 0
      %318 = vmatpush1.bf16.msra.mxu0 %v278
      %319 = vmatprep.subr.bf16.mxu0 0
      %320 = vmatpush1.bf16.msra.mxu0 %v282
      %321 = vmatprep.subr.bf16.mxu0 0
      %322 = vmatpush1.bf16.msra.mxu0 %v284
      %323 = vmatprep.subr.bf16.mxu0 0
      %324 = vmatpush1.bf16.msra.mxu0 0
      %325 = vmatprep.subr.bf16.mxu0 0
      %326 = vmatpush1.bf16.msra.mxu0 0
      %327 = vmatprep.subr.bf16.mxu0 0
      %328 = vmatpush1.bf16.msra.mxu0 0
      %329 = vmatprep.subr.bf16.mxu0 0
      %330 = vmatpush1.bf16.msra.mxu0 0
      %331 = vmatprep.subr.bf16.mxu0 0
      %332 = vmatpush1.bf16.msra.mxu0 0
      %333 = vmatprep.subr.bf16.mxu0 0
      %334 = vmatpush1.bf16.msra.mxu0 0
      %335 = vmatprep.subr.bf16.mxu0 0
      %336 = vmatpush1.bf16.msra.mxu0 0
      %337 = vmatprep.subr.bf16.mxu0 0
      %338 = vmatpush1.bf16.msra.mxu0 0
      %339 = vmatprep.mubr.bf16.mxu0 0
      %340 = vmatmul.mubr.bf16.gmra.mrb[0].mxu0 %v305
      %v341 = vpop.f32.mrb[0].mxu0
      %v342 = vadd.f32 %v294, %v341
      %v343 = vpop.f32.mrb[0].mxu0
      %v344 = vpop.f32.mrb[0].mxu0
      %v345 = vadd.f32 %v299, %v344
      %v346 = vpop.f32.mrb[0].mxu0
      %347 = vdwg.mxu0
      %v348 = vmax.f32 %v342, 0.0
      %v349 = vmax.f32 %v345, 0.0
      %v350 = vld [vmem:[%s5] sm:$0x1]
      %v352 = vlaneseq
      %v353 = vshrl.u32 %v352, 7
      %v354 = vsub.s32 0, %v353
      %v355 = vrot.slane %v350, %v354
      %v357 = vmul.f32 %v348, %v355
      %v358 = vmul.f32 %v349, %v355
      %v359 = vpack.c.bf16 %v358, %v357
      %361 = vrot.lane.b32.xlu0 %v359, 11
      %v362 = vpop.permute.xlu0 %361
      %vm363 = vcmask 89088
      %v366 = vsel %vm363, 0, %v362
      %vm367 = vcmask 908288
      %v368 = vsel %vm367, %v366, 0
      %371 = vrot.lane.b32.xlu0 %v368, 127
      %v372 = vpop.permute.xlu0 %371
      %374 = vrot.lane.b32.xlu0 %v368, 126
      %v375 = vpop.permute.xlu0 %374
      %377 = vrot.lane.b32.xlu0 %v368, 118
      %v378 = vpop.permute.xlu0 %377
      %380 = vrot.lane.b32.xlu0 %v368, 117
      %v381 = vpop.permute.xlu0 %380
      %383 = vrot.lane.b32.xlu0 %v368, 116
      %v384 = vpop.permute.xlu0 %383
      %386 = vrot.lane.b32.xlu0 %v368, 108
      %v387 = vpop.permute.xlu0 %386
      %389 = vrot.lane.b32.xlu0 %v368, 107
      %v390 = vpop.permute.xlu0 %389
      %392 = vrot.lane.b32.xlu0 %v368, 106
      %v393 = vpop.permute.xlu0 %392
      %v395 = vld [vmem:[%s3] sm:$0xff]
      %v396 = vld [vmem:[%s3 + $0x8] sm:$0xff]
      %v397 = vld [vmem:[%s4] sm:$0xff]
      %v398 = vld [vmem:[%s4 + $0x8] sm:$0xff]
      %400 = vset.pattern.permute.xlu0 0
      %401 = vperm.xlu0 %400, %v397
      %v402 = vpop.permute.xlu0 %401
      %405 = vset.pattern.permute.xlu0 0
      %406 = vperm.xlu0 %405, %v398
      %v407 = vpop.permute.xlu0 %406
      %v411 = vunpack.c.l.b16 %v395
      %v412 = vunpack.c.h.b16 %v395
      %v413 = vunpack.c.l.b16 %v396
      %v414 = vunpack.c.h.b16 %v396
      %v415 = vpack.c.b16 %v413, %v411
      %v416 = vpack.c.b16 %v414, %v412
      %vm418 = vcmask 130048
      %v420 = vsel %vm418, %v416, 0
      %422 = vmatprep.subr.bf16.mxu0 0
      %423 = vmatpush1.bf16.msra.mxu0 %v368
      %424 = vmatprep.subr.bf16.mxu0 0
      %425 = vmatpush1.bf16.msra.mxu0 %v372
      %426 = vmatprep.subr.bf16.mxu0 0
      %427 = vmatpush1.bf16.msra.mxu0 %v375
      %428 = vmatprep.subr.bf16.mxu0 0
      %429 = vmatpush1.bf16.msra.mxu0 %v378
      %430 = vmatprep.subr.bf16.mxu0 0
      %431 = vmatpush1.bf16.msra.mxu0 %v381
      %432 = vmatprep.subr.bf16.mxu0 0
      %433 = vmatpush1.bf16.msra.mxu0 %v384
      %434 = vmatprep.subr.bf16.mxu0 0
      %435 = vmatpush1.bf16.msra.mxu0 %v387
      %436 = vmatprep.subr.bf16.mxu0 0
      %437 = vmatpush1.bf16.msra.mxu0 %v390
      %438 = vmatprep.subr.bf16.mxu0 0
      %439 = vmatpush1.bf16.msra.mxu0 %v393
      %440 = vmatprep.subr.bf16.mxu0 0
      %441 = vmatpush1.bf16.msra.mxu0 0
      %442 = vmatprep.subr.bf16.mxu0 0
      %443 = vmatpush1.bf16.msra.mxu0 0
      %444 = vmatprep.subr.bf16.mxu0 0
      %445 = vmatpush1.bf16.msra.mxu0 0
      %446 = vmatprep.subr.bf16.mxu0 0
      %447 = vmatpush1.bf16.msra.mxu0 0
      %448 = vmatprep.subr.bf16.mxu0 0
      %449 = vmatpush1.bf16.msra.mxu0 0
      %450 = vmatprep.subr.bf16.mxu0 0
      %451 = vmatpush1.bf16.msra.mxu0 0
      %452 = vmatprep.subr.bf16.mxu0 0
      %453 = vmatpush1.bf16.msra.mxu0 0
      %454 = vmatprep.mubr.bf16.mxu0 %v420
      %455 = vmatmul.mubr.bf16.gmra.mrb[0].mxu0 %v415
      %v456 = vpop.f32.mrb[0].mxu0
      %v457 = vadd.f32 %v402, %v456
      %v458 = vpop.f32.mrb[0].mxu0
      %v459 = vpop.f32.mrb[0].mxu0
      %v460 = vadd.f32 %v407, %v459
      %v461 = vpop.f32.mrb[0].mxu0
      %462 = vdwg.mxu0
      %v463 = vmax.f32 %v457, 0.0
      %v464 = vmax.f32 %v460, 0.0
      %v465 = vpack.c.bf16 %v464, %v463
      %vm466 = vcmask 818176
      %v468 = vsel %vm466, %v465, 0
      %v470 = vunpack.c.l.b16 %v468
      %v471 = vunpack.c.h.b16 %v468
      %v472 = vpack.c.b16 %v470, %v470
      %v473 = vpack.c.b16 %v471, %v471
      %476 = vst [vmem:[%s251] sm:$0xf] %v472
      %477 = vst [vmem:[%s251 + $0x4] sm:$0xf] %v473
      %p478 = scmp.lt.s32.totalorder %s17, 1
      %s479 = scalar_select %p478, %s17, 1
      %s480 = smul.addr %s479, 2
      %s481 = smul.addr %s480, 4
      %s482 = scalar_lea.vmem %s6, %s481
      // Predicated region
      $region45: #{forward.14} parent=43 // pred_check
        %p483 = pneg %p166
      $region46: #{forward.14} parent=43 // pred_check_branch
        %485 = sbr.rel (%p483) target = $region48
      $region47: #{forward.14} parent=43 // pred_region
        _
      $region48: #{forward.14} parent=43 // pred_fallthru
        _
    $region44: #{forward.14} parent=5 // pred_fallthru
      _
    %p486 = scmp.le.s32.totalorder 2, %s12
    // Predicated region
    $region49: #{forward.14} parent=5 // pred_check
      %p487 = pneg %p486
    $region50: #{forward.14} parent=5 // pred_check_branch
      %489 = sbr.rel (%p487) target = $region52
    $region51: #{forward.14} parent=5 // pred_region
      %s490 = ssub.s32 %s12, 2
      // Predicated region
      $region53: #{forward.14} parent=51 // pred_check
        %p491 = pneg %p172
      $region54: #{forward.14} parent=51 // pred_check_branch
        %493 = sbr.rel (%p491) target = $region56
      $region55: #{forward.14} parent=51 // pred_region
        %p494 = scmp.lt.s32.totalorder %s18, 1
        %s495 = scalar_select %p494, %s18, 1
        %s496 = smul.addr %s495, 2
        %s497 = smul.addr %s496, 4
        %s498 = scalar_lea.vmem %s6, %s497
      $region56: #{forward.14} parent=51 // pred_fallthru
        _
    $region52: #{forward.14} parent=5 // pred_fallthru
      _
  $region6: #{forward.14} parent=0 // loop_footer
    %s16 = sadd.s32 1, %s12
  $region7: #{forward.14} parent=0 // loop_footer_branch
    %11 = sbr.rel target = $region3
  $region8: #{forward.14} parent=0 // loop_exit
    _

// kernel: forward.15
$region0: #{forward.15}
  #allocation0 [shape = 'u32[]', space=smem, size = 0x4, offset = 0x4, fixed_abs, tag = 'smem constant byte address 0x4 - core index']
  #allocation1 [shape = 'u32[144,128]{1,0:T(1,128)}', space=vmem, size = 0x12000, scoped, tag = 'internal scratch']
  %s0 = inlined_call_operand.vmem [shape: bf16[2,32,128], index: 0, kind: input, shape index: {}]
  %s1 = inlined_call_operand.vmem [shape: bf16[16,128], index: 1, kind: input, shape index: {}]
  %s2 = inlined_call_operand.vmem [shape: f32[16,128], index: 2, kind: input, shape index: {}]
  %s3 = inlined_call_operand.vmem [shape: bf16[16,144], index: 3, kind: input, shape index: {}]
  %s4 = inlined_call_operand.vmem [shape: f32[16,128], index: 4, kind: input, shape index: {}]
  %s5 = inlined_call_operand.vmem [shape: f32[1,36], index: 5, kind: input, shape index: {}]
  %s6 = inlined_call_operand.vmem [shape: bf16[2,16,128], index: 6, kind: output, shape index: {}]
  %s7 = sld [smem:[#allocation0]]
  $region57: #{forward.15} parent=0
    _
  %s9 = ssub.s32 1, %s7
  %s10 = scalar_select 0, %s9, %s7
  loop: start=0, step=1, limit=4
  $region2: #{forward.15} parent=0 // loop_pre_header
    _
  $region3: #{forward.15} parent=0 // loop_header
    %s12 = sphi 0, %s16
    %p13 = scmp.ge.s32.totalorder %s12, 4
    %s22 = sphi 0, %s24
    %s25 = sphi 0, %s22
    %s26 = sphi 0, %s25
    %s42 = sphi 0, %s26
    %s46 = sphi 0, %s46
    %s48 = sphi 0, %s46
    %s49 = sphi 0, %s48
    %s63 = sphi 0, %s49
    %s67 = sphi 0, %s67
    %s69 = sphi 0, %s67
    %s70 = sphi 0, %s69
    %s84 = sphi 0, %s70
    %s88 = sphi 0, %s88
    %s90 = sphi 0, %s88
    %s91 = sphi 0, %s90
    %s105 = sphi 0, %s91
    %s109 = sphi 0, %s109
    %s111 = sphi 0, %s109
    %s112 = sphi 0, %s111
    %s126 = sphi 0, %s112
    %s130 = sphi 0, %s130
    %s132 = sphi 0, %s130
    %s133 = sphi 0, %s132
    %s147 = sphi 0, %s133
    %s153 = sphi 0, %s155
    %s156 = sphi 0, %s153
    %s157 = sphi 0, %s156
    %s173 = sphi 0, %s157
  $region4: #{forward.15} parent=0 // loop_header_branch
    %15 = sbr.rel (%p13) target = $region8
  $region5: #{forward.15} parent=0 // loop_body
    %s17 = ssub.s32 %s12, 1
    %s18 = ssub.s32 %s12, 2
    %s19 = sadd.s32 %s12, 1
    %s20 = ssub.s32 %s12, %s19
    %p21 = scmp.eq.s32.totalorder %s20, 0
    %s23 = sadd.s32 %s22, 1
    %s24 = scalar_select %p21, %s22, %s23
    %p27 = pneg %p21
    %p28 = scmp.eq.s32.totalorder %s12, 1
    %p29 = por %p27, %p28
    %p30 = scmp.ne.s32.totalorder %s22, %s25
    %p31 = scmp.eq.s32.totalorder %s12, 0
    %p32 = por %p30, %p31
    %p33 = scmp.ne.s32.totalorder %s22, %s25
    %p34 = scmp.eq.s32.totalorder %s17, 1
    %p35 = por %p33, %p34
    %p36 = scmp.ne.s32.totalorder %s25, %s26
    %p37 = scmp.eq.s32.totalorder %s17, 0
    %p38 = por %p36, %p37
    %p39 = scmp.ne.s32.totalorder %s25, %s26
    %p40 = scmp.eq.s32.totalorder %s18, 1
    %p41 = por %p39, %p40
    %p43 = scmp.ne.s32.totalorder %s26, %s42
    %p44 = scmp.eq.s32.totalorder %s18, 0
    %p45 = por %p43, %p44
    %s47 = sadd.s32 %s46, 1
    %p50 = scmp.eq.s32.totalorder %s12, 1
    %p51 = scmp.ne.s32.totalorder %s46, %s48
    %p52 = scmp.eq.s32.totalorder %s12, 0
    %p53 = por %p51, %p52
    %p54 = scmp.ne.s32.totalorder %s46, %s48
    %p55 = scmp.eq.s32.totalorder %s17, 1
    %p56 = por %p54, %p55
    %p57 = scmp.ne.s32.totalorder %s48, %s49
    %p58 = scmp.eq.s32.totalorder %s17, 0
    %p59 = por %p57, %p58
    %p60 = scmp.ne.s32.totalorder %s48, %s49
    %p61 = scmp.eq.s32.totalorder %s18, 1
    %p62 = por %p60, %p61
    %p64 = scmp.ne.s32.totalorder %s49, %s63
    %p65 = scmp.eq.s32.totalorder %s18, 0
    %p66 = por %p64, %p65
    %s68 = sadd.s32 %s67, 1
    %p71 = scmp.eq.s32.totalorder %s12, 1
    %p72 = scmp.ne.s32.totalorder %s67, %s69
    %p73 = scmp.eq.s32.totalorder %s12, 0
    %p74 = por %p72, %p73
    %p75 = scmp.ne.s32.totalorder %s67, %s69
    %p76 = scmp.eq.s32.totalorder %s17, 1
    %p77 = por %p75, %p76
    %p78 = scmp.ne.s32.totalorder %s69, %s70
    %p79 = scmp.eq.s32.totalorder %s17, 0
    %p80 = por %p78, %p79
    %p81 = scmp.ne.s32.totalorder %s69, %s70
    %p82 = scmp.eq.s32.totalorder %s18, 1
    %p83 = por %p81, %p82
    %p85 = scmp.ne.s32.totalorder %s70, %s84
    %p86 = scmp.eq.s32.totalorder %s18, 0
    %p87 = por %p85, %p86
    %s89 = sadd.s32 %s88, 1
    %p92 = scmp.eq.s32.totalorder %s12, 1
    %p93 = scmp.ne.s32.totalorder %s88, %s90
    %p94 = scmp.eq.s32.totalorder %s12, 0
    %p95 = por %p93, %p94
    %p96 = scmp.ne.s32.totalorder %s88, %s90
    %p97 = scmp.eq.s32.totalorder %s17, 1
    %p98 = por %p96, %p97
    %p99 = scmp.ne.s32.totalorder %s90, %s91
    %p100 = scmp.eq.s32.totalorder %s17, 0
    %p101 = por %p99, %p100
    %p102 = scmp.ne.s32.totalorder %s90, %s91
    %p103 = scmp.eq.s32.totalorder %s18, 1
    %p104 = por %p102, %p103
    %p106 = scmp.ne.s32.totalorder %s91, %s105
    %p107 = scmp.eq.s32.totalorder %s18, 0
    %p108 = por %p106, %p107
    %s110 = sadd.s32 %s109, 1
    %p113 = scmp.eq.s32.totalorder %s12, 1
    %p114 = scmp.ne.s32.totalorder %s109, %s111
    %p115 = scmp.eq.s32.totalorder %s12, 0
    %p116 = por %p114, %p115
    %p117 = scmp.ne.s32.totalorder %s109, %s111
    %p118 = scmp.eq.s32.totalorder %s17, 1
    %p119 = por %p117, %p118
    %p120 = scmp.ne.s32.totalorder %s111, %s112
    %p121 = scmp.eq.s32.totalorder %s17, 0
    %p122 = por %p120, %p121
    %p123 = scmp.ne.s32.totalorder %s111, %s112
    %p124 = scmp.eq.s32.totalorder %s18, 1
    %p125 = por %p123, %p124
    %p127 = scmp.ne.s32.totalorder %s112, %s126
    %p128 = scmp.eq.s32.totalorder %s18, 0
    %p129 = por %p127, %p128
    %s131 = sadd.s32 %s130, 1
    %p134 = scmp.eq.s32.totalorder %s12, 1
    %p135 = scmp.ne.s32.totalorder %s130, %s132
    %p136 = scmp.eq.s32.totalorder %s12, 0
    %p137 = por %p135, %p136
    %p138 = scmp.ne.s32.totalorder %s130, %s132
    %p139 = scmp.eq.s32.totalorder %s17, 1
    %p140 = por %p138, %p139
    %p141 = scmp.ne.s32.totalorder %s132, %s133
    %p142 = scmp.eq.s32.totalorder %s17, 0
    %p143 = por %p141, %p142
    %p144 = scmp.ne.s32.totalorder %s132, %s133
    %p145 = scmp.eq.s32.totalorder %s18, 1
    %p146 = por %p144, %p145
    %p148 = scmp.ne.s32.totalorder %s133, %s147
    %p149 = scmp.eq.s32.totalorder %s18, 0
    %p150 = por %p148, %p149
    %s151 = ssub.s32 %s12, %s19
    %p152 = scmp.eq.s32.totalorder %s151, 0
    %s154 = sadd.s32 %s153, 1
    %s155 = scalar_select %p152, %s153, %s154
    %p158 = pneg %p152
    %p159 = scmp.eq.s32.totalorder %s12, 1
    %p160 = por %p158, %p159
    %p161 = scmp.ne.s32.totalorder %s153, %s156
    %p162 = scmp.eq.s32.totalorder %s12, 0
    %p163 = por %p161, %p162
    %p164 = scmp.ne.s32.totalorder %s153, %s156
    %p165 = scmp.eq.s32.totalorder %s17, 1
    %p166 = por %p164, %p165
    %p167 = scmp.ne.s32.totalorder %s156, %s157
    %p168 = scmp.eq.s32.totalorder %s17, 0
    %p169 = por %p167, %p168
    %p170 = scmp.ne.s32.totalorder %s156, %s157
    %p171 = scmp.eq.s32.totalorder %s18, 1
    %p172 = por %p170, %p171
    %p174 = scmp.ne.s32.totalorder %s157, %s173
    %p175 = scmp.eq.s32.totalorder %s18, 0
    %p176 = por %p174, %p175
    %p177 = scmp.le.s32.totalorder 1, %s12
    %p178 = scmp.lt.s32.totalorder %s12, 3
    %p179 = pnand %p177, %p178
    %p180 = pneg %p179
    // Predicated region
    $region9: #{forward.15} parent=5 // pred_check
      _
    $region10: #{forward.15} parent=5 // pred_check_branch
      %182 = sbr.rel (%p179) target = $region12
    $region11: #{forward.15} parent=5 // pred_region
      %s183 = ssub.s32 %s12, 1
      // Predicated region
      $region13: #{forward.15} parent=11 // pred_check
        %p184 = pneg %p59
      $region14: #{forward.15} parent=11 // pred_check_branch
        %186 = sbr.rel (%p184) target = $region16
      $region15: #{forward.15} parent=11 // pred_region
        _
      $region16: #{forward.15} parent=11 // pred_fallthru
        _
      // Predicated region
      $region17: #{forward.15} parent=11 // pred_check
        %p187 = pneg %p80
      $region18: #{forward.15} parent=11 // pred_check_branch
        %189 = sbr.rel (%p187) target = $region20
      $region19: #{forward.15} parent=11 // pred_region
        _
      $region20: #{forward.15} parent=11 // pred_fallthru
        _
      // Predicated region
      $region21: #{forward.15} parent=11 // pred_check
        %p190 = pneg %p101
      $region22: #{forward.15} parent=11 // pred_check_branch
        %192 = sbr.rel (%p190) target = $region24
      $region23: #{forward.15} parent=11 // pred_region
        _
      $region24: #{forward.15} parent=11 // pred_fallthru
        _
      // Predicated region
      $region25: #{forward.15} parent=11 // pred_check
        %p193 = pneg %p122
      $region26: #{forward.15} parent=11 // pred_check_branch
        %195 = sbr.rel (%p193) target = $region28
      $region27: #{forward.15} parent=11 // pred_region
        _
      $region28: #{forward.15} parent=11 // pred_fallthru
        _
      // Predicated region
      $region29: #{forward.15} parent=11 // pred_check
        %p196 = pneg %p143
      $region30: #{forward.15} parent=11 // pred_check_branch
        %198 = sbr.rel (%p196) target = $region32
      $region31: #{forward.15} parent=11 // pred_region
        _
      $region32: #{forward.15} parent=11 // pred_fallthru
        _
    $region12: #{forward.15} parent=5 // pred_fallthru
      _
    %p199 = scmp.lt.s32.totalorder %s12, 2
    // Predicated region
    $region33: #{forward.15} parent=5 // pred_check
      %p200 = pneg %p199
    $region34: #{forward.15} parent=5 // pred_check_branch
      %202 = sbr.rel (%p200) target = $region36
    $region35: #{forward.15} parent=5 // pred_region
      // Predicated region
      $region37: #{forward.15} parent=35 // pred_check
        %p203 = pneg %p32
      $region38: #{forward.15} parent=35 // pred_check_branch
        %205 = sbr.rel (%p203) target = $region40
      $region39: #{forward.15} parent=35 // pred_region
        %p206 = scmp.lt.s32.totalorder %s12, 1
        %s207 = scalar_select %p206, %s12, 1
        %s208 = smul.addr %s207, 4
        %s209 = smul.addr %s208, 4
        %s210 = scalar_lea.vmem %s0, %s209
      $region40: #{forward.15} parent=35 // pred_fallthru
        _
    $region36: #{forward.15} parent=5 // pred_fallthru
      _
    %p211 = scmp.le.s32.totalorder 1, %s12
    %p212 = scmp.lt.s32.totalorder %s12, 3
    %p213 = pnand %p211, %p212
    %p214 = pneg %p213
    // Predicated region
    $region41: #{forward.15} parent=5 // pred_check
      _
    $region42: #{forward.15} parent=5 // pred_check_branch
      %216 = sbr.rel (%p213) target = $region44
    $region43: #{forward.15} parent=5 // pred_region
      %s217 = ssub.s32 %s12, 1
      %p218 = scmp.lt.s32.totalorder %s17, 1
      %s219 = scalar_select %p218, %s17, 1
      %s220 = smul.addr %s219, 4
      %s221 = smul.addr %s220, 4
      %s222 = scalar_lea.vmem %s0, %s221
      %p223 = pneg %p38
      %p224 = pneg %p35
      %p225 = pneg %p59
      %p226 = pneg %p56
      %p227 = pneg %p80
      %p228 = pneg %p77
      %p229 = pneg %p101
      %p230 = pneg %p98
      %p231 = pneg %p122
      %p232 = pneg %p119
      %p233 = pneg %p143
      %p234 = pneg %p140
      %p235 = pneg %p169
      %p236 = pneg %p166
      %p237 = scmp.lt.s32.totalorder %s17, 1
      %s238 = scalar_select %p237, %s17, 1
      %s239 = smul.addr %s238, 2
      %s240 = smul.addr %s239, 4
      %s241 = scalar_lea.vmem %s6, %s240
      %p242 = scmp.lt.s32.totalorder %s17, 1
      %s243 = scalar_select %p242, %s17, 1
      %s244 = smul.addr %s243, 4
      %s245 = smul.addr %s244, 4
      %s246 = scalar_lea.vmem %s0, %s245
      %p247 = scmp.lt.s32.totalorder %s17, 1
      %s248 = scalar_select %p247, %s17, 1
      %s249 = smul.addr %s248, 2
      %s250 = smul.addr %s249, 4
      %s251 = scalar_lea.vmem %s6, %s250
      %v253 = vld [vmem:[%s246] sm:$0xf]
      %v254 = vld [vmem:[%s246 + $0x4] sm:$0xf]
      %v255 = vld [vmem:[%s246 + $0x8] sm:$0xf]
      %v256 = vld [vmem:[%s246 + $0xc] sm:$0xf]
      %v261 = vunpack.c.l.b16 %v253
      %v262 = vunpack.c.l.b16 %v254
      %v263 = vunpack.c.l.b16 %v255
      %v264 = vunpack.c.l.b16 %v256
      %v265 = vpack.c.b16 %v262, %v261
      %v266 = vpack.c.b16 %v264, %v263
      %269 = vrot.lane.b32.xlu0 %v265, 127
      %v270 = vpop.permute.xlu0 %269
      %271 = vrot.lane.b32.xlu0 %v266, 127
      %v272 = vpop.permute.xlu0 %271
      %275 = vrot.lane.b32.xlu0 %v265, 122
      %v276 = vpop.permute.xlu0 %275
      %277 = vrot.lane.b32.xlu0 %v266, 122
      %v278 = vpop.permute.xlu0 %277
      %281 = vrot.lane.b32.xlu0 %v265, 121
      %v282 = vpop.permute.xlu0 %281
      %283 = vrot.lane.b32.xlu0 %v266, 121
      %v284 = vpop.permute.xlu0 %283
      %v287 = vld [vmem:[%s1] sm:$0xf]
      %v288 = vld [vmem:[%s1 + $0x4] sm:$0xf]
      %v289 = vld [vmem:[%s2] sm:$0xff]
      %v290 = vld [vmem:[%s2 + $0x8] sm:$0xff]
      %292 = vset.pattern.permute.xlu0 0
      %293 = vperm.xlu0 %292, %v289
      %v294 = vpop.permute.xlu0 %293
      %297 = vset.pattern.permute.xlu0 0
      %298 = vperm.xlu0 %297, %v290
      %v299 = vpop.permute.xlu0 %298
      %v303 = vunpack.c.l.b16 %v287
      %v304 = vunpack.c.l.b16 %v288
      %v305 = vpack.c.b16 %v304, %v303
      %307 = vmatprep.subr.bf16.mxu0 0
      %308 = vmatpush1.bf16.msra.mxu0 %v265
      %309 = vmatprep.subr.bf16.mxu0 0
      %310 = vmatpush1.bf16.msra.mxu0 %v266
      %311 = vmatprep.subr.bf16.mxu0 0
      %312 = vmatpush1.bf16.msra.mxu0 %v270
      %313 = vmatprep.subr.bf16.mxu0 0
      %314 = vmatpush1.bf16.msra.mxu0 %v272
      %315 = vmatprep.subr.bf16.mxu0 0
      %316 = vmatpush1.bf16.msra.mxu0 %v276
      %317 = vmatprep.subr.bf16.mxu0 0
      %318 = vmatpush1.bf16.msra.mxu0 %v278
      %319 = vmatprep.subr.bf16.mxu0 0
      %320 = vmatpush1.bf16.msra.mxu0 %v282
      %321 = vmatprep.subr.bf16.mxu0 0
      %322 = vmatpush1.bf16.msra.mxu0 %v284
      %323 = vmatprep.subr.bf16.mxu0 0
      %324 = vmatpush1.bf16.msra.mxu0 0
      %325 = vmatprep.subr.bf16.mxu0 0
      %326 = vmatpush1.bf16.msra.mxu0 0
      %327 = vmatprep.subr.bf16.mxu0 0
      %328 = vmatpush1.bf16.msra.mxu0 0
      %329 = vmatprep.subr.bf16.mxu0 0
      %330 = vmatpush1.bf16.msra.mxu0 0
      %331 = vmatprep.subr.bf16.mxu0 0
      %332 = vmatpush1.bf16.msra.mxu0 0
      %333 = vmatprep.subr.bf16.mxu0 0
      %334 = vmatpush1.bf16.msra.mxu0 0
      %335 = vmatprep.subr.bf16.mxu0 0
      %336 = vmatpush1.bf16.msra.mxu0 0
      %337 = vmatprep.subr.bf16.mxu0 0
      %338 = vmatpush1.bf16.msra.mxu0 0
      %339 = vmatprep.mubr.bf16.mxu0 0
      %340 = vmatmul.mubr.bf16.gmra.mrb[0].mxu0 %v305
      %v341 = vpop.f32.mrb[0].mxu0
      %v342 = vadd.f32 %v294, %v341
      %v343 = vpop.f32.mrb[0].mxu0
      %v344 = vpop.f32.mrb[0].mxu0
      %v345 = vadd.f32 %v299, %v344
      %v346 = vpop.f32.mrb[0].mxu0
      %347 = vdwg.mxu0
      %v348 = vmax.f32 %v342, 0.0
      %v349 = vmax.f32 %v345, 0.0
      %v350 = vld [vmem:[%s5] sm:$0x1]
      %v352 = vlaneseq
      %v353 = vshrl.u32 %v352, 7
      %v354 = vsub.s32 0, %v353
      %v355 = vrot.slane %v350, %v354
      %v357 = vmul.f32 %v348, %v355
      %v358 = vmul.f32 %v349, %v355
      %v359 = vpack.c.bf16 %v358, %v357
      %361 = vrot.lane.b32.xlu0 %v359, 7
      %v362 = vpop.permute.xlu0 %361
      %vm363 = vcmask 56320
      %v366 = vsel %vm363, 0, %v362
      %vm367 = vcmask 351232
      %v368 = vsel %vm367, %v366, 0
      %371 = vrot.lane.b32.xlu0 %v368, 127
      %v372 = vpop.permute.xlu0 %371
      %374 = vrot.lane.b32.xlu0 %v368, 126
      %v375 = vpop.permute.xlu0 %374
      %377 = vrot.lane.b32.xlu0 %v368, 122
      %v378 = vpop.permute.xlu0 %377
      %380 = vrot.lane.b32.xlu0 %v368, 121
      %v381 = vpop.permute.xlu0 %380
      %383 = vrot.lane.b32.xlu0 %v368, 120
      %v384 = vpop.permute.xlu0 %383
      %386 = vrot.lane.b32.xlu0 %v368, 116
      %v387 = vpop.permute.xlu0 %386
      %389 = vrot.lane.b32.xlu0 %v368, 115
      %v390 = vpop.permute.xlu0 %389
      %392 = vrot.lane.b32.xlu0 %v368, 114
      %v393 = vpop.permute.xlu0 %392
      %v395 = vld [vmem:[%s3] sm:$0xff]
      %v396 = vld [vmem:[%s3 + $0x8] sm:$0xff]
      %v397 = vld [vmem:[%s4] sm:$0xff]
      %v398 = vld [vmem:[%s4 + $0x8] sm:$0xff]
      %400 = vset.pattern.permute.xlu0 0
      %401 = vperm.xlu0 %400, %v397
      %v402 = vpop.permute.xlu0 %401
      %405 = vset.pattern.permute.xlu0 0
      %406 = vperm.xlu0 %405, %v398
      %v407 = vpop.permute.xlu0 %406
      %v411 = vunpack.c.l.b16 %v395
      %v412 = vunpack.c.h.b16 %v395
      %v413 = vunpack.c.l.b16 %v396
      %v414 = vunpack.c.h.b16 %v396
      %v415 = vpack.c.b16 %v413, %v411
      %v416 = vpack.c.b16 %v414, %v412
      %vm418 = vcmask 130048
      %v420 = vsel %vm418, %v416, 0
      %422 = vmatprep.subr.bf16.mxu0 0
      %423 = vmatpush1.bf16.msra.mxu0 %v368
      %424 = vmatprep.subr.bf16.mxu0 0
      %425 = vmatpush1.bf16.msra.mxu0 %v372
      %426 = vmatprep.subr.bf16.mxu0 0
      %427 = vmatpush1.bf16.msra.mxu0 %v375
      %428 = vmatprep.subr.bf16.mxu0 0
      %429 = vmatpush1.bf16.msra.mxu0 %v378
      %430 = vmatprep.subr.bf16.mxu0 0
      %431 = vmatpush1.bf16.msra.mxu0 %v381
      %432 = vmatprep.subr.bf16.mxu0 0
      %433 = vmatpush1.bf16.msra.mxu0 %v384
      %434 = vmatprep.subr.bf16.mxu0 0
      %435 = vmatpush1.bf16.msra.mxu0 %v387
      %436 = vmatprep.subr.bf16.mxu0 0
      %437 = vmatpush1.bf16.msra.mxu0 %v390
      %438 = vmatprep.subr.bf16.mxu0 0
      %439 = vmatpush1.bf16.msra.mxu0 %v393
      %440 = vmatprep.subr.bf16.mxu0 0
      %441 = vmatpush1.bf16.msra.mxu0 0
      %442 = vmatprep.subr.bf16.mxu0 0
      %443 = vmatpush1.bf16.msra.mxu0 0
      %444 = vmatprep.subr.bf16.mxu0 0
      %445 = vmatpush1.bf16.msra.mxu0 0
      %446 = vmatprep.subr.bf16.mxu0 0
      %447 = vmatpush1.bf16.msra.mxu0 0
      %448 = vmatprep.subr.bf16.mxu0 0
      %449 = vmatpush1.bf16.msra.mxu0 0
      %450 = vmatprep.subr.bf16.mxu0 0
      %451 = vmatpush1.bf16.msra.mxu0 0
      %452 = vmatprep.subr.bf16.mxu0 0
      %453 = vmatpush1.bf16.msra.mxu0 0
      %454 = vmatprep.mubr.bf16.mxu0 %v420
      %455 = vmatmul.mubr.bf16.gmra.mrb[0].mxu0 %v415
      %v456 = vpop.f32.mrb[0].mxu0
      %v457 = vadd.f32 %v402, %v456
      %v458 = vpop.f32.mrb[0].mxu0
      %v459 = vpop.f32.mrb[0].mxu0
      %v460 = vadd.f32 %v407, %v459
      %v461 = vpop.f32.mrb[0].mxu0
      %462 = vdwg.mxu0
      %v463 = vmax.f32 %v457, 0.0
      %v464 = vmax.f32 %v460, 0.0
      %v465 = vpack.c.bf16 %v464, %v463
      %vm466 = vcmask 293888
      %v468 = vsel %vm466, %v465, 0
      %v470 = vunpack.c.l.b16 %v468
      %v471 = vunpack.c.h.b16 %v468
      %v472 = vpack.c.b16 %v470, %v470
      %v473 = vpack.c.b16 %v471, %v471
      %476 = vst [vmem:[%s251] sm:$0xf] %v472
      %477 = vst [vmem:[%s251 + $0x4] sm:$0xf] %v473
      %p478 = scmp.lt.s32.totalorder %s17, 1
      %s479 = scalar_select %p478, %s17, 1
      %s480 = smul.addr %s479, 2
      %s481 = smul.addr %s480, 4
      %s482 = scalar_lea.vmem %s6, %s481
      // Predicated region
      $region45: #{forward.15} parent=43 // pred_check
        %p483 = pneg %p166
      $region46: #{forward.15} parent=43 // pred_check_branch
        %485 = sbr.rel (%p483) target = $region48
      $region47: #{forward.15} parent=43 // pred_region
        _
      $region48: #{forward.15} parent=43 // pred_fallthru
        _
    $region44: #{forward.15} parent=5 // pred_fallthru
      _
    %p486 = scmp.le.s32.totalorder 2, %s12
    // Predicated region
    $region49: #{forward.15} parent=5 // pred_check
      %p487 = pneg %p486
    $region50: #{forward.15} parent=5 // pred_check_branch
      %489 = sbr.rel (%p487) target = $region52
    $region51: #{forward.15} parent=5 // pred_region
      %s490 = ssub.s32 %s12, 2
      // Predicated region
      $region53: #{forward.15} parent=51 // pred_check
        %p491 = pneg %p172
      $region54: #{forward.15} parent=51 // pred_check_branch
        %493 = sbr.rel (%p491) target = $region56
      $region55: #{forward.15} parent=51 // pred_region
        %p494 = scmp.lt.s32.totalorder %s18, 1
        %s495 = scalar_select %p494, %s18, 1
        %s496 = smul.addr %s495, 2
        %s497 = smul.addr %s496, 4
        %s498 = scalar_lea.vmem %s6, %s497
      $region56: #{forward.15} parent=51 // pred_fallthru
        _
    $region52: #{forward.15} parent=5 // pred_fallthru
      _
  $region6: #{forward.15} parent=0 // loop_footer
    %s16 = sadd.s32 1, %s12
  $region7: #{forward.15} parent=0 // loop_footer_branch
    %11 = sbr.rel target = $region3
  $region8: #{forward.15} parent=0 // loop_exit
    _

// kernel: forward.16
$region0: #{forward.16}
  #allocation0 [shape = 'u32[]', space=smem, size = 0x4, offset = 0x4, fixed_abs, tag = 'smem constant byte address 0x4 - core index']
  #allocation1 [shape = 'u32[144,128]{1,0:T(1,128)}', space=vmem, size = 0x12000, scoped, tag = 'internal scratch']
  %s0 = inlined_call_operand.vmem [shape: bf16[2,64,128], index: 0, kind: input, shape index: {}]
  %s1 = inlined_call_operand.vmem [shape: bf16[16,256], index: 1, kind: input, shape index: {}]
  %s2 = inlined_call_operand.vmem [shape: f32[16,128], index: 2, kind: input, shape index: {}]
  %s3 = inlined_call_operand.vmem [shape: bf16[16,144], index: 3, kind: input, shape index: {}]
  %s4 = inlined_call_operand.vmem [shape: f32[16,128], index: 4, kind: input, shape index: {}]
  %s5 = inlined_call_operand.vmem [shape: f32[1,16], index: 5, kind: input, shape index: {}]
  %s6 = inlined_call_operand.vmem [shape: bf16[2,16,128], index: 6, kind: output, shape index: {}]
  %s7 = sld [smem:[#allocation0]]
  $region57: #{forward.16} parent=0
    _
  %s9 = ssub.s32 1, %s7
  %s10 = scalar_select 0, %s9, %s7
  loop: start=0, step=1, limit=4
  $region2: #{forward.16} parent=0 // loop_pre_header
    _
  $region3: #{forward.16} parent=0 // loop_header
    %s12 = sphi 0, %s16
    %p13 = scmp.ge.s32.totalorder %s12, 4
    %s22 = sphi 0, %s24
    %s25 = sphi 0, %s22
    %s26 = sphi 0, %s25
    %s42 = sphi 0, %s26
    %s46 = sphi 0, %s46
    %s48 = sphi 0, %s46
    %s49 = sphi 0, %s48
    %s63 = sphi 0, %s49
    %s67 = sphi 0, %s67
    %s69 = sphi 0, %s67
    %s70 = sphi 0, %s69
    %s84 = sphi 0, %s70
    %s88 = sphi 0, %s88
    %s90 = sphi 0, %s88
    %s91 = sphi 0, %s90
    %s105 = sphi 0, %s91
    %s109 = sphi 0, %s109
    %s111 = sphi 0, %s109
    %s112 = sphi 0, %s111
    %s126 = sphi 0, %s112
    %s130 = sphi 0, %s130
    %s132 = sphi 0, %s130
    %s133 = sphi 0, %s132
    %s147 = sphi 0, %s133
    %s153 = sphi 0, %s155
    %s156 = sphi 0, %s153
    %s157 = sphi 0, %s156
    %s173 = sphi 0, %s157
  $region4: #{forward.16} parent=0 // loop_header_branch
    %15 = sbr.rel (%p13) target = $region8
  $region5: #{forward.16} parent=0 // loop_body
    %s17 = ssub.s32 %s12, 1
    %s18 = ssub.s32 %s12, 2
    %s19 = sadd.s32 %s12, 1
    %s20 = ssub.s32 %s12, %s19
    %p21 = scmp.eq.s32.totalorder %s20, 0
    %s23 = sadd.s32 %s22, 1
    %s24 = scalar_select %p21, %s22, %s23
    %p27 = pneg %p21
    %p28 = scmp.eq.s32.totalorder %s12, 1
    %p29 = por %p27, %p28
    %p30 = scmp.ne.s32.totalorder %s22, %s25
    %p31 = scmp.eq.s32.totalorder %s12, 0
    %p32 = por %p30, %p31
    %p33 = scmp.ne.s32.totalorder %s22, %s25
    %p34 = scmp.eq.s32.totalorder %s17, 1
    %p35 = por %p33, %p34
    %p36 = scmp.ne.s32.totalorder %s25, %s26
    %p37 = scmp.eq.s32.totalorder %s17, 0
    %p38 = por %p36, %p37
    %p39 = scmp.ne.s32.totalorder %s25, %s26
    %p40 = scmp.eq.s32.totalorder %s18, 1
    %p41 = por %p39, %p40
    %p43 = scmp.ne.s32.totalorder %s26, %s42
    %p44 = scmp.eq.s32.totalorder %s18, 0
    %p45 = por %p43, %p44
    %s47 = sadd.s32 %s46, 1
    %p50 = scmp.eq.s32.totalorder %s12, 1
    %p51 = scmp.ne.s32.totalorder %s46, %s48
    %p52 = scmp.eq.s32.totalorder %s12, 0
    %p53 = por %p51, %p52
    %p54 = scmp.ne.s32.totalorder %s46, %s48
    %p55 = scmp.eq.s32.totalorder %s17, 1
    %p56 = por %p54, %p55
    %p57 = scmp.ne.s32.totalorder %s48, %s49
    %p58 = scmp.eq.s32.totalorder %s17, 0
    %p59 = por %p57, %p58
    %p60 = scmp.ne.s32.totalorder %s48, %s49
    %p61 = scmp.eq.s32.totalorder %s18, 1
    %p62 = por %p60, %p61
    %p64 = scmp.ne.s32.totalorder %s49, %s63
    %p65 = scmp.eq.s32.totalorder %s18, 0
    %p66 = por %p64, %p65
    %s68 = sadd.s32 %s67, 1
    %p71 = scmp.eq.s32.totalorder %s12, 1
    %p72 = scmp.ne.s32.totalorder %s67, %s69
    %p73 = scmp.eq.s32.totalorder %s12, 0
    %p74 = por %p72, %p73
    %p75 = scmp.ne.s32.totalorder %s67, %s69
    %p76 = scmp.eq.s32.totalorder %s17, 1
    %p77 = por %p75, %p76
    %p78 = scmp.ne.s32.totalorder %s69, %s70
    %p79 = scmp.eq.s32.totalorder %s17, 0
    %p80 = por %p78, %p79
    %p81 = scmp.ne.s32.totalorder %s69, %s70
    %p82 = scmp.eq.s32.totalorder %s18, 1
    %p83 = por %p81, %p82
    %p85 = scmp.ne.s32.totalorder %s70, %s84
    %p86 = scmp.eq.s32.totalorder %s18, 0
    %p87 = por %p85, %p86
    %s89 = sadd.s32 %s88, 1
    %p92 = scmp.eq.s32.totalorder %s12, 1
    %p93 = scmp.ne.s32.totalorder %s88, %s90
    %p94 = scmp.eq.s32.totalorder %s12, 0
    %p95 = por %p93, %p94
    %p96 = scmp.ne.s32.totalorder %s88, %s90
    %p97 = scmp.eq.s32.totalorder %s17, 1
    %p98 = por %p96, %p97
    %p99 = scmp.ne.s32.totalorder %s90, %s91
    %p100 = scmp.eq.s32.totalorder %s17, 0
    %p101 = por %p99, %p100
    %p102 = scmp.ne.s32.totalorder %s90, %s91
    %p103 = scmp.eq.s32.totalorder %s18, 1
    %p104 = por %p102, %p103
    %p106 = scmp.ne.s32.totalorder %s91, %s105
    %p107 = scmp.eq.s32.totalorder %s18, 0
    %p108 = por %p106, %p107
    %s110 = sadd.s32 %s109, 1
    %p113 = scmp.eq.s32.totalorder %s12, 1
    %p114 = scmp.ne.s32.totalorder %s109, %s111
    %p115 = scmp.eq.s32.totalorder %s12, 0
    %p116 = por %p114, %p115
    %p117 = scmp.ne.s32.totalorder %s109, %s111
    %p118 = scmp.eq.s32.totalorder %s17, 1
    %p119 = por %p117, %p118
    %p120 = scmp.ne.s32.totalorder %s111, %s112
    %p121 = scmp.eq.s32.totalorder %s17, 0
    %p122 = por %p120, %p121
    %p123 = scmp.ne.s32.totalorder %s111, %s112
    %p124 = scmp.eq.s32.totalorder %s18, 1
    %p125 = por %p123, %p124
    %p127 = scmp.ne.s32.totalorder %s112, %s126
    %p128 = scmp.eq.s32.totalorder %s18, 0
    %p129 = por %p127, %p128
    %s131 = sadd.s32 %s130, 1
    %p134 = scmp.eq.s32.totalorder %s12, 1
    %p135 = scmp.ne.s32.totalorder %s130, %s132
    %p136 = scmp.eq.s32.totalorder %s12, 0
    %p137 = por %p135, %p136
    %p138 = scmp.ne.s32.totalorder %s130, %s132
    %p139 = scmp.eq.s32.totalorder %s17, 1
    %p140 = por %p138, %p139
    %p141 = scmp.ne.s32.totalorder %s132, %s133
    %p142 = scmp.eq.s32.totalorder %s17, 0
    %p143 = por %p141, %p142
    %p144 = scmp.ne.s32.totalorder %s132, %s133
    %p145 = scmp.eq.s32.totalorder %s18, 1
    %p146 = por %p144, %p145
    %p148 = scmp.ne.s32.totalorder %s133, %s147
    %p149 = scmp.eq.s32.totalorder %s18, 0
    %p150 = por %p148, %p149
    %s151 = ssub.s32 %s12, %s19
    %p152 = scmp.eq.s32.totalorder %s151, 0
    %s154 = sadd.s32 %s153, 1
    %s155 = scalar_select %p152, %s153, %s154
    %p158 = pneg %p152
    %p159 = scmp.eq.s32.totalorder %s12, 1
    %p160 = por %p158, %p159
    %p161 = scmp.ne.s32.totalorder %s153, %s156
    %p162 = scmp.eq.s32.totalorder %s12, 0
    %p163 = por %p161, %p162
    %p164 = scmp.ne.s32.totalorder %s153, %s156
    %p165 = scmp.eq.s32.totalorder %s17, 1
    %p166 = por %p164, %p165
    %p167 = scmp.ne.s32.totalorder %s156, %s157
    %p168 = scmp.eq.s32.totalorder %s17, 0
    %p169 = por %p167, %p168
    %p170 = scmp.ne.s32.totalorder %s156, %s157
    %p171 = scmp.eq.s32.totalorder %s18, 1
    %p172 = por %p170, %p171
    %p174 = scmp.ne.s32.totalorder %s157, %s173
    %p175 = scmp.eq.s32.totalorder %s18, 0
    %p176 = por %p174, %p175
    %p177 = scmp.le.s32.totalorder 1, %s12
    %p178 = scmp.lt.s32.totalorder %s12, 3
    %p179 = pnand %p177, %p178
    %p180 = pneg %p179
    // Predicated region
    $region9: #{forward.16} parent=5 // pred_check
      _
    $region10: #{forward.16} parent=5 // pred_check_branch
      %182 = sbr.rel (%p179) target = $region12
    $region11: #{forward.16} parent=5 // pred_region
      %s183 = ssub.s32 %s12, 1
      // Predicated region
      $region13: #{forward.16} parent=11 // pred_check
        %p184 = pneg %p59
      $region14: #{forward.16} parent=11 // pred_check_branch
        %186 = sbr.rel (%p184) target = $region16
      $region15: #{forward.16} parent=11 // pred_region
        _
      $region16: #{forward.16} parent=11 // pred_fallthru
        _
      // Predicated region
      $region17: #{forward.16} parent=11 // pred_check
        %p187 = pneg %p80
      $region18: #{forward.16} parent=11 // pred_check_branch
        %189 = sbr.rel (%p187) target = $region20
      $region19: #{forward.16} parent=11 // pred_region
        _
      $region20: #{forward.16} parent=11 // pred_fallthru
        _
      // Predicated region
      $region21: #{forward.16} parent=11 // pred_check
        %p190 = pneg %p101
      $region22: #{forward.16} parent=11 // pred_check_branch
        %192 = sbr.rel (%p190) target = $region24
      $region23: #{forward.16} parent=11 // pred_region
        _
      $region24: #{forward.16} parent=11 // pred_fallthru
        _
      // Predicated region
      $region25: #{forward.16} parent=11 // pred_check
        %p193 = pneg %p122
      $region26: #{forward.16} parent=11 // pred_check_branch
        %195 = sbr.rel (%p193) target = $region28
      $region27: #{forward.16} parent=11 // pred_region
        _
      $region28: #{forward.16} parent=11 // pred_fallthru
        _
      // Predicated region
      $region29: #{forward.16} parent=11 // pred_check
        %p196 = pneg %p143
      $region30: #{forward.16} parent=11 // pred_check_branch
        %198 = sbr.rel (%p196) target = $region32
      $region31: #{forward.16} parent=11 // pred_region
        _
      $region32: #{forward.16} parent=11 // pred_fallthru
        _
    $region12: #{forward.16} parent=5 // pred_fallthru
      _
    %p199 = scmp.lt.s32.totalorder %s12, 2
    // Predicated region
    $region33: #{forward.16} parent=5 // pred_check
      %p200 = pneg %p199
    $region34: #{forward.16} parent=5 // pred_check_branch
      %202 = sbr.rel (%p200) target = $region36
    $region35: #{forward.16} parent=5 // pred_region
      // Predicated region
      $region37: #{forward.16} parent=35 // pred_check
        %p203 = pneg %p32
      $region38: #{forward.16} parent=35 // pred_check_branch
        %205 = sbr.rel (%p203) target = $region40
      $region39: #{forward.16} parent=35 // pred_region
        %p206 = scmp.lt.s32.totalorder %s12, 1
        %s207 = scalar_select %p206, %s12, 1
        %s208 = smul.addr %s207, 8
        %s209 = smul.addr %s208, 4
        %s210 = scalar_lea.vmem %s0, %s209
      $region40: #{forward.16} parent=35 // pred_fallthru
        _
    $region36: #{forward.16} parent=5 // pred_fallthru
      _
    %p211 = scmp.le.s32.totalorder 1, %s12
    %p212 = scmp.lt.s32.totalorder %s12, 3
    %p213 = pnand %p211, %p212
    %p214 = pneg %p213
    // Predicated region
    $region41: #{forward.16} parent=5 // pred_check
      _
    $region42: #{forward.16} parent=5 // pred_check_branch
      %216 = sbr.rel (%p213) target = $region44
    $region43: #{forward.16} parent=5 // pred_region
      %s217 = ssub.s32 %s12, 1
      %p218 = scmp.lt.s32.totalorder %s17, 1
      %s219 = scalar_select %p218, %s17, 1
      %s220 = smul.addr %s219, 8
      %s221 = smul.addr %s220, 4
      %s222 = scalar_lea.vmem %s0, %s221
      %p223 = pneg %p38
      %p224 = pneg %p35
      %p225 = pneg %p59
      %p226 = pneg %p56
      %p227 = pneg %p80
      %p228 = pneg %p77
      %p229 = pneg %p101
      %p230 = pneg %p98
      %p231 = pneg %p122
      %p232 = pneg %p119
      %p233 = pneg %p143
      %p234 = pneg %p140
      %p235 = pneg %p169
      %p236 = pneg %p166
      %p237 = scmp.lt.s32.totalorder %s17, 1
      %s238 = scalar_select %p237, %s17, 1
      %s239 = smul.addr %s238, 2
      %s240 = smul.addr %s239, 4
      %s241 = scalar_lea.vmem %s6, %s240
      %p242 = scmp.lt.s32.totalorder %s17, 1
      %s243 = scalar_select %p242, %s17, 1
      %s244 = smul.addr %s243, 8
      %s245 = smul.addr %s244, 4
      %s246 = scalar_lea.vmem %s0, %s245
      %p247 = scmp.lt.s32.totalorder %s17, 1
      %s248 = scalar_select %p247, %s17, 1
      %s249 = smul.addr %s248, 2
      %s250 = smul.addr %s249, 4
      %s251 = scalar_lea.vmem %s6, %s250
      %v253 = vld [vmem:[%s246] sm:$0xf]
      %v254 = vld [vmem:[%s246 + $0x4] sm:$0xf]
      %v255 = vld [vmem:[%s246 + $0x8] sm:$0xf]
      %v256 = vld [vmem:[%s246 + $0xc] sm:$0xf]
      %v257 = vld [vmem:[%s246 + $0x10] sm:$0xf]
      %v258 = vld [vmem:[%s246 + $0x14] sm:$0xf]
      %v259 = vld [vmem:[%s246 + $0x18] sm:$0xf]
      %v260 = vld [vmem:[%s246 + $0x1c] sm:$0xf]
      %v269 = vunpack.c.l.b16 %v253
      %v270 = vunpack.c.l.b16 %v254
      %v271 = vunpack.c.l.b16 %v255
      %v272 = vunpack.c.l.b16 %v256
      %v273 = vunpack.c.l.b16 %v257
      %v274 = vunpack.c.l.b16 %v258
      %v275 = vunpack.c.l.b16 %v259
      %v276 = vunpack.c.l.b16 %v260
      %v277 = vpack.c.b16 %v270, %v269
      %v278 = vpack.c.b16 %v272, %v271
      %v279 = vpack.c.b16 %v274, %v273
      %v280 = vpack.c.b16 %v276, %v275
      %285 = vrot.lane.b32.xlu0 %v277, 127
      %v286 = vpop.permute.xlu0 %285
      %287 = vrot.lane.b32.xlu0 %v278, 127
      %v288 = vpop.permute.xlu0 %287
      %289 = vrot.lane.b32.xlu0 %v279, 127
      %v290 = vpop.permute.xlu0 %289
      %291 = vrot.lane.b32.xlu0 %v280, 127
      %v292 = vpop.permute.xlu0 %291
      %297 = vrot.lane.b32.xlu0 %v277, 124
      %v298 = vpop.permute.xlu0 %297
      %299 = vrot.lane.b32.xlu0 %v278, 124
      %v300 = vpop.permute.xlu0 %299
      %301 = vrot.lane.b32.xlu0 %v279, 124
      %v302 = vpop.permute.xlu0 %301
      %303 = vrot.lane.b32.xlu0 %v280, 124
      %v304 = vpop.permute.xlu0 %303
      %309 = vrot.lane.b32.xlu0 %v277, 123
      %v310 = vpop.permute.xlu0 %309
      %311 = vrot.lane.b32.xlu0 %v278, 123
      %v312 = vpop.permute.xlu0 %311
      %313 = vrot.lane.b32.xlu0 %v279, 123
      %v314 = vpop.permute.xlu0 %313
      %315 = vrot.lane.b32.xlu0 %v280, 123
      %v316 = vpop.permute.xlu0 %315
      %v321 = vld [vmem:[%s1] sm:$0xff]
      %v322 = vld [vmem:[%s1 + $0x8] sm:$0xff]
      %v323 = vld [vmem:[%s2] sm:$0xff]
      %v324 = vld [vmem:[%s2 + $0x8] sm:$0xff]
      %326 = vset.pattern.permute.xlu0 0
      %327 = vperm.xlu0 %326, %v323
      %v328 = vpop.permute.xlu0 %327
      %331 = vset.pattern.permute.xlu0 0
      %332 = vperm.xlu0 %331, %v324
      %v333 = vpop.permute.xlu0 %332
      %v337 = vunpack.c.l.b16 %v321
      %v338 = vunpack.c.h.b16 %v321
      %v339 = vunpack.c.l.b16 %v322
      %v340 = vunpack.c.h.b16 %v322
      %v341 = vpack.c.b16 %v339, %v337
      %v342 = vpack.c.b16 %v340, %v338
      %345 = vmatprep.subr.bf16.mxu0 0
      %346 = vmatpush1.bf16.msra.mxu0 %v277
      %347 = vmatprep.subr.bf16.mxu0 0
      %348 = vmatpush1.bf16.msra.mxu0 %v278
      %349 = vmatprep.subr.bf16.mxu0 0
      %350 = vmatpush1.bf16.msra.mxu0 %v279
      %351 = vmatprep.subr.bf16.mxu0 0
      %352 = vmatpush1.bf16.msra.mxu0 %v280
      %353 = vmatprep.subr.bf16.mxu0 0
      %354 = vmatpush1.bf16.msra.mxu0 %v286
      %355 = vmatprep.subr.bf16.mxu0 0
      %356 = vmatpush1.bf16.msra.mxu0 %v288
      %357 = vmatprep.subr.bf16.mxu0 0
      %358 = vmatpush1.bf16.msra.mxu0 %v290
      %359 = vmatprep.subr.bf16.mxu0 0
      %360 = vmatpush1.bf16.msra.mxu0 %v292
      %361 = vmatprep.subr.bf16.mxu0 0
      %362 = vmatpush1.bf16.msra.mxu0 %v298
      %363 = vmatprep.subr.bf16.mxu0 0
      %364 = vmatpush1.bf16.msra.mxu0 %v300
      %365 = vmatprep.subr.bf16.mxu0 0
      %366 = vmatpush1.bf16.msra.mxu0 %v302
      %367 = vmatprep.subr.bf16.mxu0 0
      %368 = vmatpush1.bf16.msra.mxu0 %v304
      %369 = vmatprep.subr.bf16.mxu0 0
      %370 = vmatpush1.bf16.msra.mxu0 %v310
      %371 = vmatprep.subr.bf16.mxu0 0
      %372 = vmatpush1.bf16.msra.mxu0 %v312
      %373 = vmatprep.subr.bf16.mxu0 0
      %374 = vmatpush1.bf16.msra.mxu0 %v314
      %375 = vmatprep.subr.bf16.mxu0 0
      %376 = vmatpush1.bf16.msra.mxu0 %v316
      %377 = vmatprep.mubr.bf16.mxu0 %v342
      %378 = vmatmul.mubr.bf16.gmra.mrb[0].mxu0 %v341
      %v379 = vpop.f32.mrb[0].mxu0
      %v380 = vadd.f32 %v328, %v379
      %v381 = vpop.f32.mrb[0].mxu0
      %v382 = vpop.f32.mrb[0].mxu0
      %v383 = vadd.f32 %v333, %v382
      %v384 = vpop.f32.mrb[0].mxu0
      %385 = vdwg.mxu0
      %v386 = vmax.f32 %v380, 0.0
      %v387 = vmax.f32 %v383, 0.0
      %v388 = vld [vmem:[%s5] sm:$0x1]
      %v390 = vlaneseq
      %v391 = vshrl.u32 %v390, 7
      %v392 = vsub.s32 0, %v391
      %v393 = vrot.slane %v388, %v392
      %v395 = vmul.f32 %v386, %v393
      %v396 = vmul.f32 %v387, %v393
      %v397 = vpack.c.bf16 %v396, %v395
      %399 = vrot.lane.b32.xlu0 %v397, 5
      %v400 = vpop.permute.xlu0 %399
      %vm401 = vcmask 39936
      %v404 = vsel %vm401, 0, %v400
      %vm405 = vcmask 171008
      %v406 = vsel %vm405, %v404, 0
      %409 = vrot.lane.b32.xlu0 %v406, 127
      %v410 = vpop.permute.xlu0 %409
      %412 = vrot.lane.b32.xlu0 %v406, 126
      %v413 = vpop.permute.xlu0 %412
      %415 = vrot.lane.b32.xlu0 %v406, 124
      %v416 = vpop.permute.xlu0 %415
      %418 = vrot.lane.b32.xlu0 %v406, 123
      %v419 = vpop.permute.xlu0 %418
      %421 = vrot.lane.b32.xlu0 %v406, 122
      %v422 = vpop.permute.xlu0 %421
      %424 = vrot.lane.b32.xlu0 %v406, 120
      %v425 = vpop.permute.xlu0 %424
      %427 = vrot.lane.b32.xlu0 %v406, 119
      %v428 = vpop.permute.xlu0 %427
      %430 = vrot.lane.b32.xlu0 %v406, 118
      %v431 = vpop.permute.xlu0 %430
      %v433 = vld [vmem:[%s3] sm:$0xff]
      %v434 = vld [vmem:[%s3 + $0x8] sm:$0xff]
      %v435 = vld [vmem:[%s4] sm:$0xff]
      %v436 = vld [vmem:[%s4 + $0x8] sm:$0xff]
      %438 = vset.pattern.permute.xlu0 0
      %439 = vperm.xlu0 %438, %v435
      %v440 = vpop.permute.xlu0 %439
      %443 = vset.pattern.permute.xlu0 0
      %444 = vperm.xlu0 %443, %v436
      %v445 = vpop.permute.xlu0 %444
      %v449 = vunpack.c.l.b16 %v433
      %v450 = vunpack.c.h.b16 %v433
      %v451 = vunpack.c.l.b16 %v434
      %v452 = vunpack.c.h.b16 %v434
      %v453 = vpack.c.b16 %v451, %v449
      %v454 = vpack.c.b16 %v452, %v450
      %vm456 = vcmask 130048
      %v458 = vsel %vm456, %v454, 0
      %460 = vmatprep.subr.bf16.mxu0 0
      %461 = vmatpush1.bf16.msra.mxu0 %v406
      %462 = vmatprep.subr.bf16.mxu0 0
      %463 = vmatpush1.bf16.msra.mxu0 %v410
      %464 = vmatprep.subr.bf16.mxu0 0
      %465 = vmatpush1.bf16.msra.mxu0 %v413
      %466 = vmatprep.subr.bf16.mxu0 0
      %467 = vmatpush1.bf16.msra.mxu0 %v416
      %468 = vmatprep.subr.bf16.mxu0 0
      %469 = vmatpush1.bf16.msra.mxu0 %v419
      %470 = vmatprep.subr.bf16.mxu0 0
      %471 = vmatpush1.bf16.msra.mxu0 %v422
      %472 = vmatprep.subr.bf16.mxu0 0
      %473 = vmatpush1.bf16.msra.mxu0 %v425
      %474 = vmatprep.subr.bf16.mxu0 0
      %475 = vmatpush1.bf16.msra.mxu0 %v428
      %476 = vmatprep.subr.bf16.mxu0 0
      %477 = vmatpush1.bf16.msra.mxu0 %v431
      %478 = vmatprep.subr.bf16.mxu0 0
      %479 = vmatpush1.bf16.msra.mxu0 0
      %480 = vmatprep.subr.bf16.mxu0 0
      %481 = vmatpush1.bf16.msra.mxu0 0
      %482 = vmatprep.subr.bf16.mxu0 0
      %483 = vmatpush1.bf16.msra.mxu0 0
      %484 = vmatprep.subr.bf16.mxu0 0
      %485 = vmatpush1.bf16.msra.mxu0 0
      %486 = vmatprep.subr.bf16.mxu0 0
      %487 = vmatpush1.bf16.msra.mxu0 0
      %488 = vmatprep.subr.bf16.mxu0 0
      %489 = vmatpush1.bf16.msra.mxu0 0
      %490 = vmatprep.subr.bf16.mxu0 0
      %491 = vmatpush1.bf16.msra.mxu0 0
      %492 = vmatprep.mubr.bf16.mxu0 %v458
      %493 = vmatmul.mubr.bf16.gmra.mrb[0].mxu0 %v453
      %v494 = vpop.f32.mrb[0].mxu0
      %v495 = vadd.f32 %v440, %v494
      %v496 = vpop.f32.mrb[0].mxu0
      %v497 = vpop.f32.mrb[0].mxu0
      %v498 = vadd.f32 %v445, %v497
      %v499 = vpop.f32.mrb[0].mxu0
      %500 = vdwg.mxu0
      %v501 = vmax.f32 %v495, 0.0
      %v502 = vmax.f32 %v498, 0.0
      %v503 = vpack.c.bf16 %v502, %v501
      %v505 = vsel %vm456, %v503, 0
      %v507 = vunpack.c.l.b16 %v505
      %v508 = vunpack.c.h.b16 %v505
      %v509 = vpack.c.b16 %v507, %v507
      %v510 = vpack.c.b16 %v508, %v508
      %513 = vst [vmem:[%s251] sm:$0xf] %v509
      %514 = vst [vmem:[%s251 + $0x4] sm:$0xf] %v510
      %p515 = scmp.lt.s32.totalorder %s17, 1
      %s516 = scalar_select %p515, %s17, 1
      %s517 = smul.addr %s516, 2
      %s518 = smul.addr %s517, 4
      %s519 = scalar_lea.vmem %s6, %s518
      // Predicated region
      $region45: #{forward.16} parent=43 // pred_check
        %p520 = pneg %p166
      $region46: #{forward.16} parent=43 // pred_check_branch
        %522 = sbr.rel (%p520) target = $region48
      $region47: #{forward.16} parent=43 // pred_region
        _
      $region48: #{forward.16} parent=43 // pred_fallthru
        _
    $region44: #{forward.16} parent=5 // pred_fallthru
      _
    %p523 = scmp.le.s32.totalorder 2, %s12
    // Predicated region
    $region49: #{forward.16} parent=5 // pred_check
      %p524 = pneg %p523
    $region50: #{forward.16} parent=5 // pred_check_branch
      %526 = sbr.rel (%p524) target = $region52
    $region51: #{forward.16} parent=5 // pred_region
      %s527 = ssub.s32 %s12, 2
      // Predicated region
      $region53: #{forward.16} parent=51 // pred_check
        %p528 = pneg %p172
      $region54: #{forward.16} parent=51 // pred_check_branch
        %530 = sbr.rel (%p528) target = $region56
      $region55: #{forward.16} parent=51 // pred_region
        %p531 = scmp.lt.s32.totalorder %s18, 1
        %s532 = scalar_select %p531, %s18, 1
        %s533 = smul.addr %s532, 2
        %s534 = smul.addr %s533, 4
        %s535 = scalar_lea.vmem %s6, %s534
      $region56: #{forward.16} parent=51 // pred_fallthru
        _
    $region52: #{forward.16} parent=5 // pred_fallthru
      _
  $region6: #{forward.16} parent=0 // loop_footer
    %s16 = sadd.s32 1, %s12
  $region7: #{forward.16} parent=0 // loop_footer_branch
    %11 = sbr.rel target = $region3
  $region8: #{forward.16} parent=0 // loop_exit
    _

// kernel: tile.28
$region0: #{tile.28}
  #allocation0 [shape = 's32[1]{0}', space=sflag, size = 0x4, scoped, tag = 'scoped memory for tile.28']
  %s0 = inlined_call_operand.vmem [shape: f32[16], index: 0, kind: input, shape index: {}]
  %s1 = inlined_call_operand.vmem [shape: f32[4,16], index: 1, kind: output, shape index: {}]
  // Predicated region
  $region2: #{tile.28} parent=0 // pred_check
    _
  $region3: #{tile.28} parent=0 // pred_check_branch
    %3 = sbr.rel (0) target = $region5
  $region4: #{tile.28} parent=0 // pred_region
    _
  $region5: #{tile.28} parent=0 // pred_fallthru
    _
  %v4 = vld [vmem:[%s0] ss:$0 sm:$0xff]
  %5 = vst [vmem:[%s1] sm:$0xf] %v4

// kernel: forward.17
$region0: #{forward.17}
  #allocation0 [shape = 'u32[]', space=smem, size = 0x4, offset = 0x4, fixed_abs, tag = 'smem constant byte address 0x4 - core index']
  #allocation1 [shape = 'u32[144,128]{1,0:T(1,128)}', space=vmem, size = 0x12000, scoped, tag = 'internal scratch']
  %s0 = inlined_call_operand.vmem [shape: bf16[2,64,128], index: 0, kind: input, shape index: {}]
  %s1 = inlined_call_operand.vmem [shape: bf16[16,256], index: 1, kind: input, shape index: {}]
  %s2 = inlined_call_operand.vmem [shape: f32[16,128], index: 2, kind: input, shape index: {}]
  %s3 = inlined_call_operand.vmem [shape: bf16[16,144], index: 3, kind: input, shape index: {}]
  %s4 = inlined_call_operand.vmem [shape: f32[16,128], index: 4, kind: input, shape index: {}]
  %s5 = inlined_call_operand.vmem [shape: f32[1,9], index: 5, kind: input, shape index: {}]
  %s6 = inlined_call_operand.vmem [shape: bf16[2,16,128], index: 6, kind: output, shape index: {}]
  %s7 = sld [smem:[#allocation0]]
  $region57: #{forward.17} parent=0
    _
  %s9 = ssub.s32 1, %s7
  %s10 = scalar_select 0, %s9, %s7
  loop: start=0, step=1, limit=4
  $region2: #{forward.17} parent=0 // loop_pre_header
    _
  $region3: #{forward.17} parent=0 // loop_header
    %s12 = sphi 0, %s16
    %p13 = scmp.ge.s32.totalorder %s12, 4
    %s22 = sphi 0, %s24
    %s25 = sphi 0, %s22
    %s26 = sphi 0, %s25
    %s42 = sphi 0, %s26
    %s46 = sphi 0, %s46
    %s48 = sphi 0, %s46
    %s49 = sphi 0, %s48
    %s63 = sphi 0, %s49
    %s67 = sphi 0, %s67
    %s69 = sphi 0, %s67
    %s70 = sphi 0, %s69
    %s84 = sphi 0, %s70
    %s88 = sphi 0, %s88
    %s90 = sphi 0, %s88
    %s91 = sphi 0, %s90
    %s105 = sphi 0, %s91
    %s109 = sphi 0, %s109
    %s111 = sphi 0, %s109
    %s112 = sphi 0, %s111
    %s126 = sphi 0, %s112
    %s130 = sphi 0, %s130
    %s132 = sphi 0, %s130
    %s133 = sphi 0, %s132
    %s147 = sphi 0, %s133
    %s153 = sphi 0, %s155
    %s156 = sphi 0, %s153
    %s157 = sphi 0, %s156
    %s173 = sphi 0, %s157
  $region4: #{forward.17} parent=0 // loop_header_branch
    %15 = sbr.rel (%p13) target = $region8
  $region5: #{forward.17} parent=0 // loop_body
    %s17 = ssub.s32 %s12, 1
    %s18 = ssub.s32 %s12, 2
    %s19 = sadd.s32 %s12, 1
    %s20 = ssub.s32 %s12, %s19
    %p21 = scmp.eq.s32.totalorder %s20, 0
    %s23 = sadd.s32 %s22, 1
    %s24 = scalar_select %p21, %s22, %s23
    %p27 = pneg %p21
    %p28 = scmp.eq.s32.totalorder %s12, 1
    %p29 = por %p27, %p28
    %p30 = scmp.ne.s32.totalorder %s22, %s25
    %p31 = scmp.eq.s32.totalorder %s12, 0
    %p32 = por %p30, %p31
    %p33 = scmp.ne.s32.totalorder %s22, %s25
    %p34 = scmp.eq.s32.totalorder %s17, 1
    %p35 = por %p33, %p34
    %p36 = scmp.ne.s32.totalorder %s25, %s26
    %p37 = scmp.eq.s32.totalorder %s17, 0
    %p38 = por %p36, %p37
    %p39 = scmp.ne.s32.totalorder %s25, %s26
    %p40 = scmp.eq.s32.totalorder %s18, 1
    %p41 = por %p39, %p40
    %p43 = scmp.ne.s32.totalorder %s26, %s42
    %p44 = scmp.eq.s32.totalorder %s18, 0
    %p45 = por %p43, %p44
    %s47 = sadd.s32 %s46, 1
    %p50 = scmp.eq.s32.totalorder %s12, 1
    %p51 = scmp.ne.s32.totalorder %s46, %s48
    %p52 = scmp.eq.s32.totalorder %s12, 0
    %p53 = por %p51, %p52
    %p54 = scmp.ne.s32.totalorder %s46, %s48
    %p55 = scmp.eq.s32.totalorder %s17, 1
    %p56 = por %p54, %p55
    %p57 = scmp.ne.s32.totalorder %s48, %s49
    %p58 = scmp.eq.s32.totalorder %s17, 0
    %p59 = por %p57, %p58
    %p60 = scmp.ne.s32.totalorder %s48, %s49
    %p61 = scmp.eq.s32.totalorder %s18, 1
    %p62 = por %p60, %p61
    %p64 = scmp.ne.s32.totalorder %s49, %s63
    %p65 = scmp.eq.s32.totalorder %s18, 0
    %p66 = por %p64, %p65
    %s68 = sadd.s32 %s67, 1
    %p71 = scmp.eq.s32.totalorder %s12, 1
    %p72 = scmp.ne.s32.totalorder %s67, %s69
    %p73 = scmp.eq.s32.totalorder %s12, 0
    %p74 = por %p72, %p73
    %p75 = scmp.ne.s32.totalorder %s67, %s69
    %p76 = scmp.eq.s32.totalorder %s17, 1
    %p77 = por %p75, %p76
    %p78 = scmp.ne.s32.totalorder %s69, %s70
    %p79 = scmp.eq.s32.totalorder %s17, 0
    %p80 = por %p78, %p79
    %p81 = scmp.ne.s32.totalorder %s69, %s70
    %p82 = scmp.eq.s32.totalorder %s18, 1
    %p83 = por %p81, %p82
    %p85 = scmp.ne.s32.totalorder %s70, %s84
    %p86 = scmp.eq.s32.totalorder %s18, 0
    %p87 = por %p85, %p86
    %s89 = sadd.s32 %s88, 1
    %p92 = scmp.eq.s32.totalorder %s12, 1
    %p93 = scmp.ne.s32.totalorder %s88, %s90
    %p94 = scmp.eq.s32.totalorder %s12, 0
    %p95 = por %p93, %p94
    %p96 = scmp.ne.s32.totalorder %s88, %s90
    %p97 = scmp.eq.s32.totalorder %s17, 1
    %p98 = por %p96, %p97
    %p99 = scmp.ne.s32.totalorder %s90, %s91
    %p100 = scmp.eq.s32.totalorder %s17, 0
    %p101 = por %p99, %p100
    %p102 = scmp.ne.s32.totalorder %s90, %s91
    %p103 = scmp.eq.s32.totalorder %s18, 1
    %p104 = por %p102, %p103
    %p106 = scmp.ne.s32.totalorder %s91, %s105
    %p107 = scmp.eq.s32.totalorder %s18, 0
    %p108 = por %p106, %p107
    %s110 = sadd.s32 %s109, 1
    %p113 = scmp.eq.s32.totalorder %s12, 1
    %p114 = scmp.ne.s32.totalorder %s109, %s111
    %p115 = scmp.eq.s32.totalorder %s12, 0
    %p116 = por %p114, %p115
    %p117 = scmp.ne.s32.totalorder %s109, %s111
    %p118 = scmp.eq.s32.totalorder %s17, 1
    %p119 = por %p117, %p118
    %p120 = scmp.ne.s32.totalorder %s111, %s112
    %p121 = scmp.eq.s32.totalorder %s17, 0
    %p122 = por %p120, %p121
    %p123 = scmp.ne.s32.totalorder %s111, %s112
    %p124 = scmp.eq.s32.totalorder %s18, 1
    %p125 = por %p123, %p124
    %p127 = scmp.ne.s32.totalorder %s112, %s126
    %p128 = scmp.eq.s32.totalorder %s18, 0
    %p129 = por %p127, %p128
    %s131 = sadd.s32 %s130, 1
    %p134 = scmp.eq.s32.totalorder %s12, 1
    %p135 = scmp.ne.s32.totalorder %s130, %s132
    %p136 = scmp.eq.s32.totalorder %s12, 0
    %p137 = por %p135, %p136
    %p138 = scmp.ne.s32.totalorder %s130, %s132
    %p139 = scmp.eq.s32.totalorder %s17, 1
    %p140 = por %p138, %p139
    %p141 = scmp.ne.s32.totalorder %s132, %s133
    %p142 = scmp.eq.s32.totalorder %s17, 0
    %p143 = por %p141, %p142
    %p144 = scmp.ne.s32.totalorder %s132, %s133
    %p145 = scmp.eq.s32.totalorder %s18, 1
    %p146 = por %p144, %p145
    %p148 = scmp.ne.s32.totalorder %s133, %s147
    %p149 = scmp.eq.s32.totalorder %s18, 0
    %p150 = por %p148, %p149
    %s151 = ssub.s32 %s12, %s19
    %p152 = scmp.eq.s32.totalorder %s151, 0
    %s154 = sadd.s32 %s153, 1
    %s155 = scalar_select %p152, %s153, %s154
    %p158 = pneg %p152
    %p159 = scmp.eq.s32.totalorder %s12, 1
    %p160 = por %p158, %p159
    %p161 = scmp.ne.s32.totalorder %s153, %s156
    %p162 = scmp.eq.s32.totalorder %s12, 0
    %p163 = por %p161, %p162
    %p164 = scmp.ne.s32.totalorder %s153, %s156
    %p165 = scmp.eq.s32.totalorder %s17, 1
    %p166 = por %p164, %p165
    %p167 = scmp.ne.s32.totalorder %s156, %s157
    %p168 = scmp.eq.s32.totalorder %s17, 0
    %p169 = por %p167, %p168
    %p170 = scmp.ne.s32.totalorder %s156, %s157
    %p171 = scmp.eq.s32.totalorder %s18, 1
    %p172 = por %p170, %p171
    %p174 = scmp.ne.s32.totalorder %s157, %s173
    %p175 = scmp.eq.s32.totalorder %s18, 0
    %p176 = por %p174, %p175
    %p177 = scmp.le.s32.totalorder 1, %s12
    %p178 = scmp.lt.s32.totalorder %s12, 3
    %p179 = pnand %p177, %p178
    %p180 = pneg %p179
    // Predicated region
    $region9: #{forward.17} parent=5 // pred_check
      _
    $region10: #{forward.17} parent=5 // pred_check_branch
      %182 = sbr.rel (%p179) target = $region12
    $region11: #{forward.17} parent=5 // pred_region
      %s183 = ssub.s32 %s12, 1
      // Predicated region
      $region13: #{forward.17} parent=11 // pred_check
        %p184 = pneg %p59
      $region14: #{forward.17} parent=11 // pred_check_branch
        %186 = sbr.rel (%p184) target = $region16
      $region15: #{forward.17} parent=11 // pred_region
        _
      $region16: #{forward.17} parent=11 // pred_fallthru
        _
      // Predicated region
      $region17: #{forward.17} parent=11 // pred_check
        %p187 = pneg %p80
      $region18: #{forward.17} parent=11 // pred_check_branch
        %189 = sbr.rel (%p187) target = $region20
      $region19: #{forward.17} parent=11 // pred_region
        _
      $region20: #{forward.17} parent=11 // pred_fallthru
        _
      // Predicated region
      $region21: #{forward.17} parent=11 // pred_check
        %p190 = pneg %p101
      $region22: #{forward.17} parent=11 // pred_check_branch
        %192 = sbr.rel (%p190) target = $region24
      $region23: #{forward.17} parent=11 // pred_region
        _
      $region24: #{forward.17} parent=11 // pred_fallthru
        _
      // Predicated region
      $region25: #{forward.17} parent=11 // pred_check
        %p193 = pneg %p122
      $region26: #{forward.17} parent=11 // pred_check_branch
        %195 = sbr.rel (%p193) target = $region28
      $region27: #{forward.17} parent=11 // pred_region
        _
      $region28: #{forward.17} parent=11 // pred_fallthru
        _
      // Predicated region
      $region29: #{forward.17} parent=11 // pred_check
        %p196 = pneg %p143
      $region30: #{forward.17} parent=11 // pred_check_branch
        %198 = sbr.rel (%p196) target = $region32
      $region31: #{forward.17} parent=11 // pred_region
        _
      $region32: #{forward.17} parent=11 // pred_fallthru
        _
    $region12: #{forward.17} parent=5 // pred_fallthru
      _
    %p199 = scmp.lt.s32.totalorder %s12, 2
    // Predicated region
    $region33: #{forward.17} parent=5 // pred_check
      %p200 = pneg %p199
    $region34: #{forward.17} parent=5 // pred_check_branch
      %202 = sbr.rel (%p200) target = $region36
    $region35: #{forward.17} parent=5 // pred_region
      // Predicated region
      $region37: #{forward.17} parent=35 // pred_check
        %p203 = pneg %p32
      $region38: #{forward.17} parent=35 // pred_check_branch
        %205 = sbr.rel (%p203) target = $region40
      $region39: #{forward.17} parent=35 // pred_region
        %p206 = scmp.lt.s32.totalorder %s12, 1
        %s207 = scalar_select %p206, %s12, 1
        %s208 = smul.addr %s207, 8
        %s209 = smul.addr %s208, 4
        %s210 = scalar_lea.vmem %s0, %s209
      $region40: #{forward.17} parent=35 // pred_fallthru
        _
    $region36: #{forward.17} parent=5 // pred_fallthru
      _
    %p211 = scmp.le.s32.totalorder 1, %s12
    %p212 = scmp.lt.s32.totalorder %s12, 3
    %p213 = pnand %p211, %p212
    %p214 = pneg %p213
    // Predicated region
    $region41: #{forward.17} parent=5 // pred_check
      _
    $region42: #{forward.17} parent=5 // pred_check_branch
      %216 = sbr.rel (%p213) target = $region44
    $region43: #{forward.17} parent=5 // pred_region
      %s217 = ssub.s32 %s12, 1
      %p218 = scmp.lt.s32.totalorder %s17, 1
      %s219 = scalar_select %p218, %s17, 1
      %s220 = smul.addr %s219, 8
      %s221 = smul.addr %s220, 4
      %s222 = scalar_lea.vmem %s0, %s221
      %p223 = pneg %p38
      %p224 = pneg %p35
      %p225 = pneg %p59
      %p226 = pneg %p56
      %p227 = pneg %p80
      %p228 = pneg %p77
      %p229 = pneg %p101
      %p230 = pneg %p98
      %p231 = pneg %p122
      %p232 = pneg %p119
      %p233 = pneg %p143
      %p234 = pneg %p140
      %p235 = pneg %p169
      %p236 = pneg %p166
      %p237 = scmp.lt.s32.totalorder %s17, 1
      %s238 = scalar_select %p237, %s17, 1
      %s239 = smul.addr %s238, 2
      %s240 = smul.addr %s239, 4
      %s241 = scalar_lea.vmem %s6, %s240
      %p242 = scmp.lt.s32.totalorder %s17, 1
      %s243 = scalar_select %p242, %s17, 1
      %s244 = smul.addr %s243, 8
      %s245 = smul.addr %s244, 4
      %s246 = scalar_lea.vmem %s0, %s245
      %p247 = scmp.lt.s32.totalorder %s17, 1
      %s248 = scalar_select %p247, %s17, 1
      %s249 = smul.addr %s248, 2
      %s250 = smul.addr %s249, 4
      %s251 = scalar_lea.vmem %s6, %s250
      %v253 = vld [vmem:[%s246] sm:$0xf]
      %v254 = vld [vmem:[%s246 + $0x4] sm:$0xf]
      %v255 = vld [vmem:[%s246 + $0x8] sm:$0xf]
      %v256 = vld [vmem:[%s246 + $0xc] sm:$0xf]
      %v257 = vld [vmem:[%s246 + $0x10] sm:$0xf]
      %v258 = vld [vmem:[%s246 + $0x14] sm:$0xf]
      %v259 = vld [vmem:[%s246 + $0x18] sm:$0xf]
      %v260 = vld [vmem:[%s246 + $0x1c] sm:$0xf]
      %v269 = vunpack.c.l.b16 %v253
      %v270 = vunpack.c.l.b16 %v254
      %v271 = vunpack.c.l.b16 %v255
      %v272 = vunpack.c.l.b16 %v256
      %v273 = vunpack.c.l.b16 %v257
      %v274 = vunpack.c.l.b16 %v258
      %v275 = vunpack.c.l.b16 %v259
      %v276 = vunpack.c.l.b16 %v260
      %v277 = vpack.c.b16 %v270, %v269
      %v278 = vpack.c.b16 %v272, %v271
      %v279 = vpack.c.b16 %v274, %v273
      %v280 = vpack.c.b16 %v276, %v275
      %285 = vrot.lane.b32.xlu0 %v277, 127
      %v286 = vpop.permute.xlu0 %285
      %287 = vrot.lane.b32.xlu0 %v278, 127
      %v288 = vpop.permute.xlu0 %287
      %289 = vrot.lane.b32.xlu0 %v279, 127
      %v290 = vpop.permute.xlu0 %289
      %291 = vrot.lane.b32.xlu0 %v280, 127
      %v292 = vpop.permute.xlu0 %291
      %297 = vrot.lane.b32.xlu0 %v277, 125
      %v298 = vpop.permute.xlu0 %297
      %299 = vrot.lane.b32.xlu0 %v278, 125
      %v300 = vpop.permute.xlu0 %299
      %301 = vrot.lane.b32.xlu0 %v279, 125
      %v302 = vpop.permute.xlu0 %301
      %303 = vrot.lane.b32.xlu0 %v280, 125
      %v304 = vpop.permute.xlu0 %303
      %309 = vrot.lane.b32.xlu0 %v277, 124
      %v310 = vpop.permute.xlu0 %309
      %311 = vrot.lane.b32.xlu0 %v278, 124
      %v312 = vpop.permute.xlu0 %311
      %313 = vrot.lane.b32.xlu0 %v279, 124
      %v314 = vpop.permute.xlu0 %313
      %315 = vrot.lane.b32.xlu0 %v280, 124
      %v316 = vpop.permute.xlu0 %315
      %v321 = vld [vmem:[%s1] sm:$0xff]
      %v322 = vld [vmem:[%s1 + $0x8] sm:$0xff]
      %v323 = vld [vmem:[%s2] sm:$0xff]
      %v324 = vld [vmem:[%s2 + $0x8] sm:$0xff]
      %326 = vset.pattern.permute.xlu0 0
      %327 = vperm.xlu0 %326, %v323
      %v328 = vpop.permute.xlu0 %327
      %331 = vset.pattern.permute.xlu0 0
      %332 = vperm.xlu0 %331, %v324
      %v333 = vpop.permute.xlu0 %332
      %v337 = vunpack.c.l.b16 %v321
      %v338 = vunpack.c.h.b16 %v321
      %v339 = vunpack.c.l.b16 %v322
      %v340 = vunpack.c.h.b16 %v322
      %v341 = vpack.c.b16 %v339, %v337
      %v342 = vpack.c.b16 %v340, %v338
      %345 = vmatprep.subr.bf16.mxu0 0
      %346 = vmatpush1.bf16.msra.mxu0 %v277
      %347 = vmatprep.subr.bf16.mxu0 0
      %348 = vmatpush1.bf16.msra.mxu0 %v278
      %349 = vmatprep.subr.bf16.mxu0 0
      %350 = vmatpush1.bf16.msra.mxu0 %v279
      %351 = vmatprep.subr.bf16.mxu0 0
      %352 = vmatpush1.bf16.msra.mxu0 %v280
      %353 = vmatprep.subr.bf16.mxu0 0
      %354 = vmatpush1.bf16.msra.mxu0 %v286
      %355 = vmatprep.subr.bf16.mxu0 0
      %356 = vmatpush1.bf16.msra.mxu0 %v288
      %357 = vmatprep.subr.bf16.mxu0 0
      %358 = vmatpush1.bf16.msra.mxu0 %v290
      %359 = vmatprep.subr.bf16.mxu0 0
      %360 = vmatpush1.bf16.msra.mxu0 %v292
      %361 = vmatprep.subr.bf16.mxu0 0
      %362 = vmatpush1.bf16.msra.mxu0 %v298
      %363 = vmatprep.subr.bf16.mxu0 0
      %364 = vmatpush1.bf16.msra.mxu0 %v300
      %365 = vmatprep.subr.bf16.mxu0 0
      %366 = vmatpush1.bf16.msra.mxu0 %v302
      %367 = vmatprep.subr.bf16.mxu0 0
      %368 = vmatpush1.bf16.msra.mxu0 %v304
      %369 = vmatprep.subr.bf16.mxu0 0
      %370 = vmatpush1.bf16.msra.mxu0 %v310
      %371 = vmatprep.subr.bf16.mxu0 0
      %372 = vmatpush1.bf16.msra.mxu0 %v312
      %373 = vmatprep.subr.bf16.mxu0 0
      %374 = vmatpush1.bf16.msra.mxu0 %v314
      %375 = vmatprep.subr.bf16.mxu0 0
      %376 = vmatpush1.bf16.msra.mxu0 %v316
      %377 = vmatprep.mubr.bf16.mxu0 %v342
      %378 = vmatmul.mubr.bf16.gmra.mrb[0].mxu0 %v341
      %v379 = vpop.f32.mrb[0].mxu0
      %v380 = vadd.f32 %v328, %v379
      %v381 = vpop.f32.mrb[0].mxu0
      %v382 = vpop.f32.mrb[0].mxu0
      %v383 = vadd.f32 %v333, %v382
      %v384 = vpop.f32.mrb[0].mxu0
      %385 = vdwg.mxu0
      %v386 = vmax.f32 %v380, 0.0
      %v387 = vmax.f32 %v383, 0.0
      %v388 = vld [vmem:[%s5] sm:$0x1]
      %v390 = vlaneseq
      %v391 = vshrl.u32 %v390, 7
      %v392 = vsub.s32 0, %v391
      %v393 = vrot.slane %v388, %v392
      %v395 = vmul.f32 %v386, %v393
      %v396 = vmul.f32 %v387, %v393
      %v397 = vpack.c.bf16 %v396, %v395
      %399 = vrot.lane.b32.xlu0 %v397, 4
      %v400 = vpop.permute.xlu0 %399
      %vm401 = vcmask 31744
      %v404 = vsel %vm401, 0, %v400
      %vm405 = vcmask 105472
      %v406 = vsel %vm405, %v404, 0
      %409 = vrot.lane.b32.xlu0 %v406, 127
      %v410 = vpop.permute.xlu0 %409
      %412 = vrot.lane.b32.xlu0 %v406, 126
      %v413 = vpop.permute.xlu0 %412
      %415 = vrot.lane.b32.xlu0 %v406, 125
      %v416 = vpop.permute.xlu0 %415
      %418 = vrot.lane.b32.xlu0 %v406, 124
      %v419 = vpop.permute.xlu0 %418
      %421 = vrot.lane.b32.xlu0 %v406, 123
      %v422 = vpop.permute.xlu0 %421
      %424 = vrot.lane.b32.xlu0 %v406, 122
      %v425 = vpop.permute.xlu0 %424
      %427 = vrot.lane.b32.xlu0 %v406, 121
      %v428 = vpop.permute.xlu0 %427
      %430 = vrot.lane.b32.xlu0 %v406, 120
      %v431 = vpop.permute.xlu0 %430
      %v433 = vld [vmem:[%s3] sm:$0xff]
      %v434 = vld [vmem:[%s3 + $0x8] sm:$0xff]
      %v435 = vld [vmem:[%s4] sm:$0xff]
      %v436 = vld [vmem:[%s4 + $0x8] sm:$0xff]
      %438 = vset.pattern.permute.xlu0 0
      %439 = vperm.xlu0 %438, %v435
      %v440 = vpop.permute.xlu0 %439
      %443 = vset.pattern.permute.xlu0 0
      %444 = vperm.xlu0 %443, %v436
      %v445 = vpop.permute.xlu0 %444
      %v449 = vunpack.c.l.b16 %v433
      %v450 = vunpack.c.h.b16 %v433
      %v451 = vunpack.c.l.b16 %v434
      %v452 = vunpack.c.h.b16 %v434
      %v453 = vpack.c.b16 %v451, %v449
      %v454 = vpack.c.b16 %v452, %v450
      %vm456 = vcmask 130048
      %v458 = vsel %vm456, %v454, 0
      %460 = vmatprep.subr.bf16.mxu0 0
      %461 = vmatpush1.bf16.msra.mxu0 %v406
      %462 = vmatprep.subr.bf16.mxu0 0
      %463 = vmatpush1.bf16.msra.mxu0 %v410
      %464 = vmatprep.subr.bf16.mxu0 0
      %465 = vmatpush1.bf16.msra.mxu0 %v413
      %466 = vmatprep.subr.bf16.mxu0 0
      %467 = vmatpush1.bf16.msra.mxu0 %v416
      %468 = vmatprep.subr.bf16.mxu0 0
      %469 = vmatpush1.bf16.msra.mxu0 %v419
      %470 = vmatprep.subr.bf16.mxu0 0
      %471 = vmatpush1.bf16.msra.mxu0 %v422
      %472 = vmatprep.subr.bf16.mxu0 0
      %473 = vmatpush1.bf16.msra.mxu0 %v425
      %474 = vmatprep.subr.bf16.mxu0 0
      %475 = vmatpush1.bf16.msra.mxu0 %v428
      %476 = vmatprep.subr.bf16.mxu0 0
      %477 = vmatpush1.bf16.msra.mxu0 %v431
      %478 = vmatprep.subr.bf16.mxu0 0
      %479 = vmatpush1.bf16.msra.mxu0 0
      %480 = vmatprep.subr.bf16.mxu0 0
      %481 = vmatpush1.bf16.msra.mxu0 0
      %482 = vmatprep.subr.bf16.mxu0 0
      %483 = vmatpush1.bf16.msra.mxu0 0
      %484 = vmatprep.subr.bf16.mxu0 0
      %485 = vmatpush1.bf16.msra.mxu0 0
      %486 = vmatprep.subr.bf16.mxu0 0
      %487 = vmatpush1.bf16.msra.mxu0 0
      %488 = vmatprep.subr.bf16.mxu0 0
      %489 = vmatpush1.bf16.msra.mxu0 0
      %490 = vmatprep.subr.bf16.mxu0 0
      %491 = vmatpush1.bf16.msra.mxu0 0
      %492 = vmatprep.mubr.bf16.mxu0 %v458
      %493 = vmatmul.mubr.bf16.gmra.mrb[0].mxu0 %v453
      %v494 = vpop.f32.mrb[0].mxu0
      %v495 = vadd.f32 %v440, %v494
      %v496 = vpop.f32.mrb[0].mxu0
      %v497 = vpop.f32.mrb[0].mxu0
      %v498 = vadd.f32 %v445, %v497
      %v499 = vpop.f32.mrb[0].mxu0
      %500 = vdwg.mxu0
      %v501 = vmax.f32 %v495, 0.0
      %v502 = vmax.f32 %v498, 0.0
      %v503 = vpack.c.bf16 %v502, %v501
      %vm504 = vcmask 72704
      %v506 = vsel %vm504, %v503, 0
      %v508 = vunpack.c.l.b16 %v506
      %v509 = vunpack.c.h.b16 %v506
      %v510 = vpack.c.b16 %v508, %v508
      %v511 = vpack.c.b16 %v509, %v509
      %514 = vst [vmem:[%s251] sm:$0xf] %v510
      %515 = vst [vmem:[%s251 + $0x4] sm:$0xf] %v511
      %p516 = scmp.lt.s32.totalorder %s17, 1
      %s517 = scalar_select %p516, %s17, 1
      %s518 = smul.addr %s517, 2
      %s519 = smul.addr %s518, 4
      %s520 = scalar_lea.vmem %s6, %s519
      // Predicated region
      $region45: #{forward.17} parent=43 // pred_check
        %p521 = pneg %p166
      $region46: #{forward.17} parent=43 // pred_check_branch
        %523 = sbr.rel (%p521) target = $region48
      $region47: #{forward.17} parent=43 // pred_region
        _
      $region48: #{forward.17} parent=43 // pred_fallthru
        _
    $region44: #{forward.17} parent=5 // pred_fallthru
      _
    %p524 = scmp.le.s32.totalorder 2, %s12
    // Predicated region
    $region49: #{forward.17} parent=5 // pred_check
      %p525 = pneg %p524
    $region50: #{forward.17} parent=5 // pred_check_branch
      %527 = sbr.rel (%p525) target = $region52
    $region51: #{forward.17} parent=5 // pred_region
      %s528 = ssub.s32 %s12, 2
      // Predicated region
      $region53: #{forward.17} parent=51 // pred_check
        %p529 = pneg %p172
      $region54: #{forward.17} parent=51 // pred_check_branch
        %531 = sbr.rel (%p529) target = $region56
      $region55: #{forward.17} parent=51 // pred_region
        %p532 = scmp.lt.s32.totalorder %s18, 1
        %s533 = scalar_select %p532, %s18, 1
        %s534 = smul.addr %s533, 2
        %s535 = smul.addr %s534, 4
        %s536 = scalar_lea.vmem %s6, %s535
      $region56: #{forward.17} parent=51 // pred_fallthru
        _
    $region52: #{forward.17} parent=5 // pred_fallthru
      _
  $region6: #{forward.17} parent=0 // loop_footer
    %s16 = sadd.s32 1, %s12
  $region7: #{forward.17} parent=0 // loop_footer_branch
    %11 = sbr.rel target = $region3
  $region8: #{forward.17} parent=0 // loop_exit
    _

// kernel: forward.18
$region0: #{forward.18}
  #allocation0 [shape = 'u32[]', space=smem, size = 0x4, offset = 0x4, fixed_abs, tag = 'smem constant byte address 0x4 - core index']
  #allocation1 [shape = 'u32[144,128]{1,0:T(1,128)}', space=vmem, size = 0x12000, scoped, tag = 'internal scratch']
  %s0 = inlined_call_operand.vmem [shape: bf16[2,16,128], index: 0, kind: input, shape index: {}]
  %s1 = inlined_call_operand.vmem [shape: bf16[16,144], index: 1, kind: input, shape index: {}]
  %s2 = inlined_call_operand.vmem [shape: f32[16,128], index: 2, kind: input, shape index: {}]
  %s3 = inlined_call_operand.vmem [shape: bf16[64,64], index: 3, kind: input, shape index: {}]
  %s4 = inlined_call_operand.vmem [shape: f32[64,128], index: 4, kind: input, shape index: {}]
  %s5 = inlined_call_operand.vmem [shape: f32[1,9], index: 5, kind: input, shape index: {}]
  %s6 = inlined_call_operand.vmem [shape: bf16[2,64,128], index: 6, kind: output, shape index: {}]
  %s7 = sld [smem:[#allocation0]]
  $region57: #{forward.18} parent=0
    _
  %s9 = ssub.s32 1, %s7
  %s10 = scalar_select 0, %s9, %s7
  loop: start=0, step=1, limit=4
  $region2: #{forward.18} parent=0 // loop_pre_header
    _
  $region3: #{forward.18} parent=0 // loop_header
    %s12 = sphi 0, %s16
    %p13 = scmp.ge.s32.totalorder %s12, 4
    %s22 = sphi 0, %s24
    %s25 = sphi 0, %s22
    %s26 = sphi 0, %s25
    %s42 = sphi 0, %s26
    %s46 = sphi 0, %s46
    %s48 = sphi 0, %s46
    %s49 = sphi 0, %s48
    %s63 = sphi 0, %s49
    %s67 = sphi 0, %s67
    %s69 = sphi 0, %s67
    %s70 = sphi 0, %s69
    %s84 = sphi 0, %s70
    %s88 = sphi 0, %s88
    %s90 = sphi 0, %s88
    %s91 = sphi 0, %s90
    %s105 = sphi 0, %s91
    %s109 = sphi 0, %s109
    %s111 = sphi 0, %s109
    %s112 = sphi 0, %s111
    %s126 = sphi 0, %s112
    %s130 = sphi 0, %s130
    %s132 = sphi 0, %s130
    %s133 = sphi 0, %s132
    %s147 = sphi 0, %s133
    %s153 = sphi 0, %s155
    %s156 = sphi 0, %s153
    %s157 = sphi 0, %s156
    %s173 = sphi 0, %s157
  $region4: #{forward.18} parent=0 // loop_header_branch
    %15 = sbr.rel (%p13) target = $region8
  $region5: #{forward.18} parent=0 // loop_body
    %s17 = ssub.s32 %s12, 1
    %s18 = ssub.s32 %s12, 2
    %s19 = sadd.s32 %s12, 1
    %s20 = ssub.s32 %s12, %s19
    %p21 = scmp.eq.s32.totalorder %s20, 0
    %s23 = sadd.s32 %s22, 1
    %s24 = scalar_select %p21, %s22, %s23
    %p27 = pneg %p21
    %p28 = scmp.eq.s32.totalorder %s12, 1
    %p29 = por %p27, %p28
    %p30 = scmp.ne.s32.totalorder %s22, %s25
    %p31 = scmp.eq.s32.totalorder %s12, 0
    %p32 = por %p30, %p31
    %p33 = scmp.ne.s32.totalorder %s22, %s25
    %p34 = scmp.eq.s32.totalorder %s17, 1
    %p35 = por %p33, %p34
    %p36 = scmp.ne.s32.totalorder %s25, %s26
    %p37 = scmp.eq.s32.totalorder %s17, 0
    %p38 = por %p36, %p37
    %p39 = scmp.ne.s32.totalorder %s25, %s26
    %p40 = scmp.eq.s32.totalorder %s18, 1
    %p41 = por %p39, %p40
    %p43 = scmp.ne.s32.totalorder %s26, %s42
    %p44 = scmp.eq.s32.totalorder %s18, 0
    %p45 = por %p43, %p44
    %s47 = sadd.s32 %s46, 1
    %p50 = scmp.eq.s32.totalorder %s12, 1
    %p51 = scmp.ne.s32.totalorder %s46, %s48
    %p52 = scmp.eq.s32.totalorder %s12, 0
    %p53 = por %p51, %p52
    %p54 = scmp.ne.s32.totalorder %s46, %s48
    %p55 = scmp.eq.s32.totalorder %s17, 1
    %p56 = por %p54, %p55
    %p57 = scmp.ne.s32.totalorder %s48, %s49
    %p58 = scmp.eq.s32.totalorder %s17, 0
    %p59 = por %p57, %p58
    %p60 = scmp.ne.s32.totalorder %s48, %s49
    %p61 = scmp.eq.s32.totalorder %s18, 1
    %p62 = por %p60, %p61
    %p64 = scmp.ne.s32.totalorder %s49, %s63
    %p65 = scmp.eq.s32.totalorder %s18, 0
    %p66 = por %p64, %p65
    %s68 = sadd.s32 %s67, 1
    %p71 = scmp.eq.s32.totalorder %s12, 1
    %p72 = scmp.ne.s32.totalorder %s67, %s69
    %p73 = scmp.eq.s32.totalorder %s12, 0
    %p74 = por %p72, %p73
    %p75 = scmp.ne.s32.totalorder %s67, %s69
    %p76 = scmp.eq.s32.totalorder %s17, 1
    %p77 = por %p75, %p76
    %p78 = scmp.ne.s32.totalorder %s69, %s70
    %p79 = scmp.eq.s32.totalorder %s17, 0
    %p80 = por %p78, %p79
    %p81 = scmp.ne.s32.totalorder %s69, %s70
    %p82 = scmp.eq.s32.totalorder %s18, 1
    %p83 = por %p81, %p82
    %p85 = scmp.ne.s32.totalorder %s70, %s84
    %p86 = scmp.eq.s32.totalorder %s18, 0
    %p87 = por %p85, %p86
    %s89 = sadd.s32 %s88, 1
    %p92 = scmp.eq.s32.totalorder %s12, 1
    %p93 = scmp.ne.s32.totalorder %s88, %s90
    %p94 = scmp.eq.s32.totalorder %s12, 0
    %p95 = por %p93, %p94
    %p96 = scmp.ne.s32.totalorder %s88, %s90
    %p97 = scmp.eq.s32.totalorder %s17, 1
    %p98 = por %p96, %p97
    %p99 = scmp.ne.s32.totalorder %s90, %s91
    %p100 = scmp.eq.s32.totalorder %s17, 0
    %p101 = por %p99, %p100
    %p102 = scmp.ne.s32.totalorder %s90, %s91
    %p103 = scmp.eq.s32.totalorder %s18, 1
    %p104 = por %p102, %p103
    %p106 = scmp.ne.s32.totalorder %s91, %s105
    %p107 = scmp.eq.s32.totalorder %s18, 0
    %p108 = por %p106, %p107
    %s110 = sadd.s32 %s109, 1
    %p113 = scmp.eq.s32.totalorder %s12, 1
    %p114 = scmp.ne.s32.totalorder %s109, %s111
    %p115 = scmp.eq.s32.totalorder %s12, 0
    %p116 = por %p114, %p115
    %p117 = scmp.ne.s32.totalorder %s109, %s111
    %p118 = scmp.eq.s32.totalorder %s17, 1
    %p119 = por %p117, %p118
    %p120 = scmp.ne.s32.totalorder %s111, %s112
    %p121 = scmp.eq.s32.totalorder %s17, 0
    %p122 = por %p120, %p121
    %p123 = scmp.ne.s32.totalorder %s111, %s112
    %p124 = scmp.eq.s32.totalorder %s18, 1
    %p125 = por %p123, %p124
    %p127 = scmp.ne.s32.totalorder %s112, %s126
    %p128 = scmp.eq.s32.totalorder %s18, 0
    %p129 = por %p127, %p128
    %s131 = sadd.s32 %s130, 1
    %p134 = scmp.eq.s32.totalorder %s12, 1
    %p135 = scmp.ne.s32.totalorder %s130, %s132
    %p136 = scmp.eq.s32.totalorder %s12, 0
    %p137 = por %p135, %p136
    %p138 = scmp.ne.s32.totalorder %s130, %s132
    %p139 = scmp.eq.s32.totalorder %s17, 1
    %p140 = por %p138, %p139
    %p141 = scmp.ne.s32.totalorder %s132, %s133
    %p142 = scmp.eq.s32.totalorder %s17, 0
    %p143 = por %p141, %p142
    %p144 = scmp.ne.s32.totalorder %s132, %s133
    %p145 = scmp.eq.s32.totalorder %s18, 1
    %p146 = por %p144, %p145
    %p148 = scmp.ne.s32.totalorder %s133, %s147
    %p149 = scmp.eq.s32.totalorder %s18, 0
    %p150 = por %p148, %p149
    %s151 = ssub.s32 %s12, %s19
    %p152 = scmp.eq.s32.totalorder %s151, 0
    %s154 = sadd.s32 %s153, 1
    %s155 = scalar_select %p152, %s153, %s154
    %p158 = pneg %p152
    %p159 = scmp.eq.s32.totalorder %s12, 1
    %p160 = por %p158, %p159
    %p161 = scmp.ne.s32.totalorder %s153, %s156
    %p162 = scmp.eq.s32.totalorder %s12, 0
    %p163 = por %p161, %p162
    %p164 = scmp.ne.s32.totalorder %s153, %s156
    %p165 = scmp.eq.s32.totalorder %s17, 1
    %p166 = por %p164, %p165
    %p167 = scmp.ne.s32.totalorder %s156, %s157
    %p168 = scmp.eq.s32.totalorder %s17, 0
    %p169 = por %p167, %p168
    %p170 = scmp.ne.s32.totalorder %s156, %s157
    %p171 = scmp.eq.s32.totalorder %s18, 1
    %p172 = por %p170, %p171
    %p174 = scmp.ne.s32.totalorder %s157, %s173
    %p175 = scmp.eq.s32.totalorder %s18, 0
    %p176 = por %p174, %p175
    %p177 = scmp.le.s32.totalorder 1, %s12
    %p178 = scmp.lt.s32.totalorder %s12, 3
    %p179 = pnand %p177, %p178
    %p180 = pneg %p179
    // Predicated region
    $region9: #{forward.18} parent=5 // pred_check
      _
    $region10: #{forward.18} parent=5 // pred_check_branch
      %182 = sbr.rel (%p179) target = $region12
    $region11: #{forward.18} parent=5 // pred_region
      %s183 = ssub.s32 %s12, 1
      // Predicated region
      $region13: #{forward.18} parent=11 // pred_check
        %p184 = pneg %p59
      $region14: #{forward.18} parent=11 // pred_check_branch
        %186 = sbr.rel (%p184) target = $region16
      $region15: #{forward.18} parent=11 // pred_region
        _
      $region16: #{forward.18} parent=11 // pred_fallthru
        _
      // Predicated region
      $region17: #{forward.18} parent=11 // pred_check
        %p187 = pneg %p80
      $region18: #{forward.18} parent=11 // pred_check_branch
        %189 = sbr.rel (%p187) target = $region20
      $region19: #{forward.18} parent=11 // pred_region
        _
      $region20: #{forward.18} parent=11 // pred_fallthru
        _
      // Predicated region
      $region21: #{forward.18} parent=11 // pred_check
        %p190 = pneg %p101
      $region22: #{forward.18} parent=11 // pred_check_branch
        %192 = sbr.rel (%p190) target = $region24
      $region23: #{forward.18} parent=11 // pred_region
        _
      $region24: #{forward.18} parent=11 // pred_fallthru
        _
      // Predicated region
      $region25: #{forward.18} parent=11 // pred_check
        %p193 = pneg %p122
      $region26: #{forward.18} parent=11 // pred_check_branch
        %195 = sbr.rel (%p193) target = $region28
      $region27: #{forward.18} parent=11 // pred_region
        _
      $region28: #{forward.18} parent=11 // pred_fallthru
        _
      // Predicated region
      $region29: #{forward.18} parent=11 // pred_check
        %p196 = pneg %p143
      $region30: #{forward.18} parent=11 // pred_check_branch
        %198 = sbr.rel (%p196) target = $region32
      $region31: #{forward.18} parent=11 // pred_region
        _
      $region32: #{forward.18} parent=11 // pred_fallthru
        _
    $region12: #{forward.18} parent=5 // pred_fallthru
      _
    %p199 = scmp.lt.s32.totalorder %s12, 2
    // Predicated region
    $region33: #{forward.18} parent=5 // pred_check
      %p200 = pneg %p199
    $region34: #{forward.18} parent=5 // pred_check_branch
      %202 = sbr.rel (%p200) target = $region36
    $region35: #{forward.18} parent=5 // pred_region
      // Predicated region
      $region37: #{forward.18} parent=35 // pred_check
        %p203 = pneg %p32
      $region38: #{forward.18} parent=35 // pred_check_branch
        %205 = sbr.rel (%p203) target = $region40
      $region39: #{forward.18} parent=35 // pred_region
        %p206 = scmp.lt.s32.totalorder %s12, 1
        %s207 = scalar_select %p206, %s12, 1
        %s208 = smul.addr %s207, 2
        %s209 = smul.addr %s208, 4
        %s210 = scalar_lea.vmem %s0, %s209
      $region40: #{forward.18} parent=35 // pred_fallthru
        _
    $region36: #{forward.18} parent=5 // pred_fallthru
      _
    %p211 = scmp.le.s32.totalorder 1, %s12
    %p212 = scmp.lt.s32.totalorder %s12, 3
    %p213 = pnand %p211, %p212
    %p214 = pneg %p213
    // Predicated region
    $region41: #{forward.18} parent=5 // pred_check
      _
    $region42: #{forward.18} parent=5 // pred_check_branch
      %216 = sbr.rel (%p213) target = $region44
    $region43: #{forward.18} parent=5 // pred_region
      %s217 = ssub.s32 %s12, 1
      %p218 = scmp.lt.s32.totalorder %s17, 1
      %s219 = scalar_select %p218, %s17, 1
      %s220 = smul.addr %s219, 2
      %s221 = smul.addr %s220, 4
      %s222 = scalar_lea.vmem %s0, %s221
      %p223 = pneg %p38
      %p224 = pneg %p35
      %p225 = pneg %p59
      %p226 = pneg %p56
      %p227 = pneg %p80
      %p228 = pneg %p77
      %p229 = pneg %p101
      %p230 = pneg %p98
      %p231 = pneg %p122
      %p232 = pneg %p119
      %p233 = pneg %p143
      %p234 = pneg %p140
      %p235 = pneg %p169
      %p236 = pneg %p166
      %p237 = scmp.lt.s32.totalorder %s17, 1
      %s238 = scalar_select %p237, %s17, 1
      %s239 = smul.addr %s238, 8
      %s240 = smul.addr %s239, 4
      %s241 = scalar_lea.vmem %s6, %s240
      %p242 = scmp.lt.s32.totalorder %s17, 1
      %s243 = scalar_select %p242, %s17, 1
      %s244 = smul.addr %s243, 2
      %s245 = smul.addr %s244, 4
      %s246 = scalar_lea.vmem %s0, %s245
      %p247 = scmp.lt.s32.totalorder %s17, 1
      %s248 = scalar_select %p247, %s17, 1
      %s249 = smul.addr %s248, 8
      %s250 = smul.addr %s249, 4
      %s251 = scalar_lea.vmem %s6, %s250
      %v253 = vld [vmem:[%s246] sm:$0xf]
      %v254 = vld [vmem:[%s246 + $0x4] sm:$0xf]
      %v257 = vunpack.c.l.b16 %v253
      %v258 = vunpack.c.l.b16 %v254
      %v259 = vpack.c.b16 %v258, %v257
      %261 = vrot.lane.b32.xlu0 %v259, 127
      %v262 = vpop.permute.xlu0 %261
      %264 = vrot.lane.b32.xlu0 %v259, 126
      %v265 = vpop.permute.xlu0 %264
      %267 = vrot.lane.b32.xlu0 %v259, 125
      %v268 = vpop.permute.xlu0 %267
      %270 = vrot.lane.b32.xlu0 %v259, 124
      %v271 = vpop.permute.xlu0 %270
      %273 = vrot.lane.b32.xlu0 %v259, 123
      %v274 = vpop.permute.xlu0 %273
      %276 = vrot.lane.b32.xlu0 %v259, 122
      %v277 = vpop.permute.xlu0 %276
      %279 = vrot.lane.b32.xlu0 %v259, 121
      %v280 = vpop.permute.xlu0 %279
      %282 = vrot.lane.b32.xlu0 %v259, 120
      %v283 = vpop.permute.xlu0 %282
      %v285 = vld [vmem:[%s1] sm:$0xff]
      %v286 = vld [vmem:[%s1 + $0x8] sm:$0xff]
      %v287 = vld [vmem:[%s2] sm:$0xff]
      %v288 = vld [vmem:[%s2 + $0x8] sm:$0xff]
      %290 = vset.pattern.permute.xlu0 0
      %291 = vperm.xlu0 %290, %v287
      %v292 = vpop.permute.xlu0 %291
      %295 = vset.pattern.permute.xlu0 0
      %296 = vperm.xlu0 %295, %v288
      %v297 = vpop.permute.xlu0 %296
      %v301 = vunpack.c.l.b16 %v285
      %v302 = vunpack.c.h.b16 %v285
      %v303 = vunpack.c.l.b16 %v286
      %v304 = vunpack.c.h.b16 %v286
      %v305 = vpack.c.b16 %v303, %v301
      %v306 = vpack.c.b16 %v304, %v302
      %vm308 = vcmask 130048
      %v310 = vsel %vm308, %v306, 0
      %312 = vmatprep.subr.bf16.mxu0 0
      %313 = vmatpush1.bf16.msra.mxu0 %v259
      %314 = vmatprep.subr.bf16.mxu0 0
      %315 = vmatpush1.bf16.msra.mxu0 %v262
      %316 = vmatprep.subr.bf16.mxu0 0
      %317 = vmatpush1.bf16.msra.mxu0 %v265
      %318 = vmatprep.subr.bf16.mxu0 0
      %319 = vmatpush1.bf16.msra.mxu0 %v268
      %320 = vmatprep.subr.bf16.mxu0 0
      %321 = vmatpush1.bf16.msra.mxu0 %v271
      %322 = vmatprep.subr.bf16.mxu0 0
      %323 = vmatpush1.bf16.msra.mxu0 %v274
      %324 = vmatprep.subr.bf16.mxu0 0
      %325 = vmatpush1.bf16.msra.mxu0 %v277
      %326 = vmatprep.subr.bf16.mxu0 0
      %327 = vmatpush1.bf16.msra.mxu0 %v280
      %328 = vmatprep.subr.bf16.mxu0 0
      %329 = vmatpush1.bf16.msra.mxu0 %v283
      %330 = vmatprep.subr.bf16.mxu0 0
      %331 = vmatpush1.bf16.msra.mxu0 0
      %332 = vmatprep.subr.bf16.mxu0 0
      %333 = vmatpush1.bf16.msra.mxu0 0
      %334 = vmatprep.subr.bf16.mxu0 0
      %335 = vmatpush1.bf16.msra.mxu0 0
      %336 = vmatprep.subr.bf16.mxu0 0
      %337 = vmatpush1.bf16.msra.mxu0 0
      %338 = vmatprep.subr.bf16.mxu0 0
      %339 = vmatpush1.bf16.msra.mxu0 0
      %340 = vmatprep.subr.bf16.mxu0 0
      %341 = vmatpush1.bf16.msra.mxu0 0
      %342 = vmatprep.subr.bf16.mxu0 0
      %343 = vmatpush1.bf16.msra.mxu0 0
      %344 = vmatprep.mubr.bf16.mxu0 %v310
      %345 = vmatmul.mubr.bf16.gmra.mrb[0].mxu0 %v305
      %v346 = vpop.f32.mrb[0].mxu0
      %v347 = vadd.f32 %v292, %v346
      %v348 = vpop.f32.mrb[0].mxu0
      %v349 = vpop.f32.mrb[0].mxu0
      %v350 = vadd.f32 %v297, %v349
      %v351 = vpop.f32.mrb[0].mxu0
      %352 = vdwg.mxu0
      %v353 = vmax.f32 %v347, 0.0
      %v354 = vmax.f32 %v350, 0.0
      %v355 = vld [vmem:[%s5] sm:$0x1]
      %v357 = vlaneseq
      %v358 = vshrl.u32 %v357, 7
      %v359 = vsub.s32 0, %v358
      %v360 = vrot.slane %v355, %v359
      %v362 = vmul.f32 %v353, %v360
      %v363 = vmul.f32 %v354, %v360
      %v364 = vpack.c.bf16 %v363, %v362
      %366 = vrot.lane.b32.xlu0 %v364, 4
      %v367 = vpop.permute.xlu0 %366
      %vm368 = vcmask 31744
      %v371 = vsel %vm368, 0, %v367
      %vm372 = vcmask 105472
      %v373 = vsel %vm372, %v371, 0
      %375 = vrot.lane.b32.xlu0 %v373, 127
      %v376 = vpop.permute.xlu0 %375
      %377 = vrot.lane.b32.xlu0 %v373, 125
      %v378 = vpop.permute.xlu0 %377
      %379 = vrot.lane.b32.xlu0 %v373, 124
      %v380 = vpop.permute.xlu0 %379
      %v381 = vld [vmem:[%s3] sm:$0xf]
      %v382 = vld [vmem:[%s3 + $0x4] sm:$0xf]
      %v383 = vld [vmem:[%s3 + $0x8] sm:$0xf]
      %v384 = vld [vmem:[%s3 + $0xc] sm:$0xf]
      %v385 = vld [vmem:[%s3 + $0x10] sm:$0xf]
      %v386 = vld [vmem:[%s3 + $0x14] sm:$0xf]
      %v387 = vld [vmem:[%s3 + $0x18] sm:$0xf]
      %v388 = vld [vmem:[%s3 + $0x1c] sm:$0xf]
      %v389 = vld [vmem:[%s4] sm:$0xff]
      %v390 = vld [vmem:[%s4 + $0x8] sm:$0xff]
      %v391 = vld [vmem:[%s4 + $0x10] sm:$0xff]
      %v392 = vld [vmem:[%s4 + $0x18] sm:$0xff]
      %v393 = vld [vmem:[%s4 + $0x20] sm:$0xff]
      %v394 = vld [vmem:[%s4 + $0x28] sm:$0xff]
      %v395 = vld [vmem:[%s4 + $0x30] sm:$0xff]
      %v396 = vld [vmem:[%s4 + $0x38] sm:$0xff]
      %398 = vset.pattern.permute.xlu0 0
      %399 = vperm.xlu0 %398, %v389
      %v400 = vpop.permute.xlu0 %399
      %403 = vset.pattern.permute.xlu0 0
      %404 = vperm.xlu0 %403, %v390
      %v405 = vpop.permute.xlu0 %404
      %408 = vset.pattern.permute.xlu0 0
      %409 = vperm.xlu0 %408, %v391
      %v410 = vpop.permute.xlu0 %409
      %413 = vset.pattern.permute.xlu0 0
      %414 = vperm.xlu0 %413, %v392
      %v415 = vpop.permute.xlu0 %414
      %418 = vset.pattern.permute.xlu0 0
      %419 = vperm.xlu0 %418, %v393
      %v420 = vpop.permute.xlu0 %419
      %423 = vset.pattern.permute.xlu0 0
      %424 = vperm.xlu0 %423, %v394
      %v425 = vpop.permute.xlu0 %424
      %428 = vset.pattern.permute.xlu0 0
      %429 = vperm.xlu0 %428, %v395
      %v430 = vpop.permute.xlu0 %429
      %433 = vset.pattern.permute.xlu0 0
      %434 = vperm.xlu0 %433, %v396
      %v435 = vpop.permute.xlu0 %434
      %v445 = vunpack.c.l.b16 %v381
      %v446 = vunpack.c.l.b16 %v382
      %v447 = vunpack.c.l.b16 %v383
      %v448 = vunpack.c.l.b16 %v384
      %v449 = vunpack.c.l.b16 %v385
      %v450 = vunpack.c.l.b16 %v386
      %v451 = vunpack.c.l.b16 %v387
      %v452 = vunpack.c.l.b16 %v388
      %v453 = vpack.c.b16 %v446, %v445
      %v454 = vpack.c.b16 %v448, %v447
      %v455 = vpack.c.b16 %v450, %v449
      %v456 = vpack.c.b16 %v452, %v451
      %457 = vrot.lane.b32.xlu0 %v376, 124
      %v458 = vpop.permute.xlu0 %457
      %459 = vrot.lane.b32.xlu0 %v378, 124
      %v460 = vpop.permute.xlu0 %459
      %461 = vrot.lane.b32.xlu0 %v380, 124
      %v462 = vpop.permute.xlu0 %461
      %vm467 = vcmask 523264
      %v469 = vsel %vm467, %v453, 0
      %v472 = vsel %vm467, %v454, 0
      %v475 = vsel %vm467, %v455, 0
      %v478 = vsel %vm467, %v456, 0
      %480 = vmatprep.subr.bf16.mxu0 0
      %481 = vmatpush1.bf16.msra.mxu0 %v380
      %482 = vmatprep.subr.bf16.mxu0 0
      %483 = vmatpush1.bf16.msra.mxu0 %v458
      %484 = vmatprep.subr.bf16.mxu0 0
      %485 = vmatpush1.bf16.msra.mxu0 %v460
      %486 = vmatprep.subr.bf16.mxu0 0
      %487 = vmatpush1.bf16.msra.mxu0 %v462
      %488 = vmatprep.subr.bf16.mxu0 0
      %489 = vmatpush1.bf16.msra.mxu0 0
      %490 = vmatprep.subr.bf16.mxu0 0
      %491 = vmatpush1.bf16.msra.mxu0 0
      %492 = vmatprep.subr.bf16.mxu0 0
      %493 = vmatpush1.bf16.msra.mxu0 0
      %494 = vmatprep.subr.bf16.mxu0 0
      %495 = vmatpush1.bf16.msra.mxu0 0
      %496 = vmatprep.subr.bf16.mxu0 0
      %497 = vmatpush1.bf16.msra.mxu0 0
      %498 = vmatprep.subr.bf16.mxu0 0
      %499 = vmatpush1.bf16.msra.mxu0 0
      %500 = vmatprep.subr.bf16.mxu0 0
      %501 = vmatpush1.bf16.msra.mxu0 0
      %502 = vmatprep.subr.bf16.mxu0 0
      %503 = vmatpush1.bf16.msra.mxu0 0
      %504 = vmatprep.subr.bf16.mxu0 0
      %505 = vmatpush1.bf16.msra.mxu0 0
      %506 = vmatprep.subr.bf16.mxu0 0
      %507 = vmatpush1.bf16.msra.mxu0 0
      %508 = vmatprep.subr.bf16.mxu0 0
      %509 = vmatpush1.bf16.msra.mxu0 0
      %510 = vmatprep.subr.bf16.mxu0 0
      %511 = vmatpush1.bf16.msra.mxu0 0
      %512 = vmatprep.mubr.bf16.mxu0 0
      %513 = vmatmul.mubr.bf16.gmra.mrb[0].mxu0 %v469
      %v514 = vpop.f32.mrb[0].mxu0
      %v515 = vadd.f32 %v400, %v514
      %v516 = vpop.f32.mrb[0].mxu0
      %v517 = vpop.f32.mrb[0].mxu0
      %v518 = vadd.f32 %v405, %v517
      %v519 = vpop.f32.mrb[0].mxu0
      %520 = vmatprep.mubr.bf16.mxu0 0
      %521 = vmatmul.mubr.bf16.gmra.mrb[0].mxu0 %v472
      %v522 = vpop.f32.mrb[0].mxu0
      %v523 = vadd.f32 %v410, %v522
      %v524 = vpop.f32.mrb[0].mxu0
      %v525 = vpop.f32.mrb[0].mxu0
      %v526 = vadd.f32 %v415, %v525
      %v527 = vpop.f32.mrb[0].mxu0
      %528 = vmatprep.mubr.bf16.mxu0 0
      %529 = vmatmul.mubr.bf16.gmra.mrb[0].mxu0 %v475
      %v530 = vpop.f32.mrb[0].mxu0
      %v531 = vadd.f32 %v420, %v530
      %v532 = vpop.f32.mrb[0].mxu0
      %v533 = vpop.f32.mrb[0].mxu0
      %v534 = vadd.f32 %v425, %v533
      %v535 = vpop.f32.mrb[0].mxu0
      %536 = vmatprep.mubr.bf16.mxu0 0
      %537 = vmatmul.mubr.bf16.gmra.mrb[0].mxu0 %v478
      %v538 = vpop.f32.mrb[0].mxu0
      %v539 = vadd.f32 %v430, %v538
      %v540 = vpop.f32.mrb[0].mxu0
      %v541 = vpop.f32.mrb[0].mxu0
      %v542 = vadd.f32 %v435, %v541
      %v543 = vpop.f32.mrb[0].mxu0
      %544 = vdwg.mxu0
      %v545 = vmax.f32 %v515, 0.0
      %v546 = vmax.f32 %v518, 0.0
      %v547 = vmax.f32 %v523, 0.0
      %v548 = vmax.f32 %v526, 0.0
      %v549 = vmax.f32 %v531, 0.0
      %v550 = vmax.f32 %v534, 0.0
      %v551 = vmax.f32 %v539, 0.0
      %v552 = vmax.f32 %v542, 0.0
      %v553 = vpack.c.bf16 %v546, %v545
      %v554 = vpack.c.bf16 %v548, %v547
      %v555 = vpack.c.bf16 %v550, %v549
      %v556 = vpack.c.bf16 %v552, %v551
      %vm557 = vcmask 72704
      %v559 = vsel %vm557, %v553, 0
      %v561 = vsel %vm557, %v554, 0
      %v563 = vsel %vm557, %v555, 0
      %v565 = vsel %vm557, %v556, 0
      %v570 = vunpack.c.l.b16 %v559
      %v571 = vunpack.c.h.b16 %v559
      %v572 = vunpack.c.l.b16 %v561
      %v573 = vunpack.c.h.b16 %v561
      %v574 = vunpack.c.l.b16 %v563
      %v575 = vunpack.c.h.b16 %v563
      %v576 = vunpack.c.l.b16 %v565
      %v577 = vunpack.c.h.b16 %v565
      %v578 = vpack.c.b16 %v570, %v570
      %v579 = vpack.c.b16 %v571, %v571
      %v580 = vpack.c.b16 %v572, %v572
      %v581 = vpack.c.b16 %v573, %v573
      %v582 = vpack.c.b16 %v574, %v574
      %v583 = vpack.c.b16 %v575, %v575
      %v584 = vpack.c.b16 %v576, %v576
      %v585 = vpack.c.b16 %v577, %v577
      %594 = vst [vmem:[%s251] sm:$0xf] %v578
      %595 = vst [vmem:[%s251 + $0x4] sm:$0xf] %v579
      %596 = vst [vmem:[%s251 + $0x8] sm:$0xf] %v580
      %597 = vst [vmem:[%s251 + $0xc] sm:$0xf] %v581
      %598 = vst [vmem:[%s251 + $0x10] sm:$0xf] %v582
      %599 = vst [vmem:[%s251 + $0x14] sm:$0xf] %v583
      %600 = vst [vmem:[%s251 + $0x18] sm:$0xf] %v584
      %601 = vst [vmem:[%s251 + $0x1c] sm:$0xf] %v585
      %p602 = scmp.lt.s32.totalorder %s17, 1
      %s603 = scalar_select %p602, %s17, 1
      %s604 = smul.addr %s603, 8
      %s605 = smul.addr %s604, 4
      %s606 = scalar_lea.vmem %s6, %s605
      // Predicated region
      $region45: #{forward.18} parent=43 // pred_check
        %p607 = pneg %p166
      $region46: #{forward.18} parent=43 // pred_check_branch
        %609 = sbr.rel (%p607) target = $region48
      $region47: #{forward.18} parent=43 // pred_region
        _
      $region48: #{forward.18} parent=43 // pred_fallthru
        _
    $region44: #{forward.18} parent=5 // pred_fallthru
      _
    %p610 = scmp.le.s32.totalorder 2, %s12
    // Predicated region
    $region49: #{forward.18} parent=5 // pred_check
      %p611 = pneg %p610
    $region50: #{forward.18} parent=5 // pred_check_branch
      %613 = sbr.rel (%p611) target = $region52
    $region51: #{forward.18} parent=5 // pred_region
      %s614 = ssub.s32 %s12, 2
      // Predicated region
      $region53: #{forward.18} parent=51 // pred_check
        %p615 = pneg %p172
      $region54: #{forward.18} parent=51 // pred_check_branch
        %617 = sbr.rel (%p615) target = $region56
      $region55: #{forward.18} parent=51 // pred_region
        %p618 = scmp.lt.s32.totalorder %s18, 1
        %s619 = scalar_select %p618, %s18, 1
        %s620 = smul.addr %s619, 8
        %s621 = smul.addr %s620, 4
        %s622 = scalar_lea.vmem %s6, %s621
      $region56: #{forward.18} parent=51 // pred_fallthru
        _
    $region52: #{forward.18} parent=5 // pred_fallthru
      _
  $region6: #{forward.18} parent=0 // loop_footer
    %s16 = sadd.s32 1, %s12
  $region7: #{forward.18} parent=0 // loop_footer_branch
    %11 = sbr.rel target = $region3
  $region8: #{forward.18} parent=0 // loop_exit
    _

// kernel: tile.38
$region0: #{tile.38}
  #allocation0 [shape = 's32[1]{0}', space=sflag, size = 0x4, scoped, tag = 'scoped memory for tile.38']
  %s0 = inlined_call_operand.vmem [shape: f32[8], index: 0, kind: input, shape index: {}]
  %s1 = inlined_call_operand.vmem [shape: f32[4,8], index: 1, kind: output, shape index: {}]
  // Predicated region
  $region2: #{tile.38} parent=0 // pred_check
    _
  $region3: #{tile.38} parent=0 // pred_check_branch
    %3 = sbr.rel (0) target = $region5
  $region4: #{tile.38} parent=0 // pred_region
    _
  $region5: #{tile.38} parent=0 // pred_fallthru
    _
  %v4 = vld [vmem:[%s0] ss:$0 sm:$0xff]
  %5 = vst [vmem:[%s1] sm:$0xf] %v4

// kernel: forward.19
$region0: #{forward.19}
  #allocation0 [shape = 'u32[]', space=smem, size = 0x4, offset = 0x4, fixed_abs, tag = 'smem constant byte address 0x4 - core index']
  #allocation1 [shape = 'u32[144,128]{1,0:T(1,128)}', space=vmem, size = 0x12000, scoped, tag = 'internal scratch']
  %s0 = inlined_call_operand.vmem [shape: bf16[2,16,128], index: 0, kind: input, shape index: {}]
  %s1 = inlined_call_operand.vmem [shape: bf16[16,144], index: 1, kind: input, shape index: {}]
  %s2 = inlined_call_operand.vmem [shape: f32[16,128], index: 2, kind: input, shape index: {}]
  %s3 = inlined_call_operand.vmem [shape: bf16[64,64], index: 3, kind: input, shape index: {}]
  %s4 = inlined_call_operand.vmem [shape: f32[64,128], index: 4, kind: input, shape index: {}]
  %s5 = inlined_call_operand.vmem [shape: f32[1,16], index: 5, kind: input, shape index: {}]
  %s6 = inlined_call_operand.vmem [shape: bf16[2,64,128], index: 6, kind: output, shape index: {}]
  %s7 = sld [smem:[#allocation0]]
  $region57: #{forward.19} parent=0
    _
  %s9 = ssub.s32 1, %s7
  %s10 = scalar_select 0, %s9, %s7
  loop: start=0, step=1, limit=4
  $region2: #{forward.19} parent=0 // loop_pre_header
    _
  $region3: #{forward.19} parent=0 // loop_header
    %s12 = sphi 0, %s16
    %p13 = scmp.ge.s32.totalorder %s12, 4
    %s22 = sphi 0, %s24
    %s25 = sphi 0, %s22
    %s26 = sphi 0, %s25
    %s42 = sphi 0, %s26
    %s46 = sphi 0, %s46
    %s48 = sphi 0, %s46
    %s49 = sphi 0, %s48
    %s63 = sphi 0, %s49
    %s67 = sphi 0, %s67
    %s69 = sphi 0, %s67
    %s70 = sphi 0, %s69
    %s84 = sphi 0, %s70
    %s88 = sphi 0, %s88
    %s90 = sphi 0, %s88
    %s91 = sphi 0, %s90
    %s105 = sphi 0, %s91
    %s109 = sphi 0, %s109
    %s111 = sphi 0, %s109
    %s112 = sphi 0, %s111
    %s126 = sphi 0, %s112
    %s130 = sphi 0, %s130
    %s132 = sphi 0, %s130
    %s133 = sphi 0, %s132
    %s147 = sphi 0, %s133
    %s153 = sphi 0, %s155
    %s156 = sphi 0, %s153
    %s157 = sphi 0, %s156
    %s173 = sphi 0, %s157
  $region4: #{forward.19} parent=0 // loop_header_branch
    %15 = sbr.rel (%p13) target = $region8
  $region5: #{forward.19} parent=0 // loop_body
    %s17 = ssub.s32 %s12, 1
    %s18 = ssub.s32 %s12, 2
    %s19 = sadd.s32 %s12, 1
    %s20 = ssub.s32 %s12, %s19
    %p21 = scmp.eq.s32.totalorder %s20, 0
    %s23 = sadd.s32 %s22, 1
    %s24 = scalar_select %p21, %s22, %s23
    %p27 = pneg %p21
    %p28 = scmp.eq.s32.totalorder %s12, 1
    %p29 = por %p27, %p28
    %p30 = scmp.ne.s32.totalorder %s22, %s25
    %p31 = scmp.eq.s32.totalorder %s12, 0
    %p32 = por %p30, %p31
    %p33 = scmp.ne.s32.totalorder %s22, %s25
    %p34 = scmp.eq.s32.totalorder %s17, 1
    %p35 = por %p33, %p34
    %p36 = scmp.ne.s32.totalorder %s25, %s26
    %p37 = scmp.eq.s32.totalorder %s17, 0
    %p38 = por %p36, %p37
    %p39 = scmp.ne.s32.totalorder %s25, %s26
    %p40 = scmp.eq.s32.totalorder %s18, 1
    %p41 = por %p39, %p40
    %p43 = scmp.ne.s32.totalorder %s26, %s42
    %p44 = scmp.eq.s32.totalorder %s18, 0
    %p45 = por %p43, %p44
    %s47 = sadd.s32 %s46, 1
    %p50 = scmp.eq.s32.totalorder %s12, 1
    %p51 = scmp.ne.s32.totalorder %s46, %s48
    %p52 = scmp.eq.s32.totalorder %s12, 0
    %p53 = por %p51, %p52
    %p54 = scmp.ne.s32.totalorder %s46, %s48
    %p55 = scmp.eq.s32.totalorder %s17, 1
    %p56 = por %p54, %p55
    %p57 = scmp.ne.s32.totalorder %s48, %s49
    %p58 = scmp.eq.s32.totalorder %s17, 0
    %p59 = por %p57, %p58
    %p60 = scmp.ne.s32.totalorder %s48, %s49
    %p61 = scmp.eq.s32.totalorder %s18, 1
    %p62 = por %p60, %p61
    %p64 = scmp.ne.s32.totalorder %s49, %s63
    %p65 = scmp.eq.s32.totalorder %s18, 0
    %p66 = por %p64, %p65
    %s68 = sadd.s32 %s67, 1
    %p71 = scmp.eq.s32.totalorder %s12, 1
    %p72 = scmp.ne.s32.totalorder %s67, %s69
    %p73 = scmp.eq.s32.totalorder %s12, 0
    %p74 = por %p72, %p73
    %p75 = scmp.ne.s32.totalorder %s67, %s69
    %p76 = scmp.eq.s32.totalorder %s17, 1
    %p77 = por %p75, %p76
    %p78 = scmp.ne.s32.totalorder %s69, %s70
    %p79 = scmp.eq.s32.totalorder %s17, 0
    %p80 = por %p78, %p79
    %p81 = scmp.ne.s32.totalorder %s69, %s70
    %p82 = scmp.eq.s32.totalorder %s18, 1
    %p83 = por %p81, %p82
    %p85 = scmp.ne.s32.totalorder %s70, %s84
    %p86 = scmp.eq.s32.totalorder %s18, 0
    %p87 = por %p85, %p86
    %s89 = sadd.s32 %s88, 1
    %p92 = scmp.eq.s32.totalorder %s12, 1
    %p93 = scmp.ne.s32.totalorder %s88, %s90
    %p94 = scmp.eq.s32.totalorder %s12, 0
    %p95 = por %p93, %p94
    %p96 = scmp.ne.s32.totalorder %s88, %s90
    %p97 = scmp.eq.s32.totalorder %s17, 1
    %p98 = por %p96, %p97
    %p99 = scmp.ne.s32.totalorder %s90, %s91
    %p100 = scmp.eq.s32.totalorder %s17, 0
    %p101 = por %p99, %p100
    %p102 = scmp.ne.s32.totalorder %s90, %s91
    %p103 = scmp.eq.s32.totalorder %s18, 1
    %p104 = por %p102, %p103
    %p106 = scmp.ne.s32.totalorder %s91, %s105
    %p107 = scmp.eq.s32.totalorder %s18, 0
    %p108 = por %p106, %p107
    %s110 = sadd.s32 %s109, 1
    %p113 = scmp.eq.s32.totalorder %s12, 1
    %p114 = scmp.ne.s32.totalorder %s109, %s111
    %p115 = scmp.eq.s32.totalorder %s12, 0
    %p116 = por %p114, %p115
    %p117 = scmp.ne.s32.totalorder %s109, %s111
    %p118 = scmp.eq.s32.totalorder %s17, 1
    %p119 = por %p117, %p118
    %p120 = scmp.ne.s32.totalorder %s111, %s112
    %p121 = scmp.eq.s32.totalorder %s17, 0
    %p122 = por %p120, %p121
    %p123 = scmp.ne.s32.totalorder %s111, %s112
    %p124 = scmp.eq.s32.totalorder %s18, 1
    %p125 = por %p123, %p124
    %p127 = scmp.ne.s32.totalorder %s112, %s126
    %p128 = scmp.eq.s32.totalorder %s18, 0
    %p129 = por %p127, %p128
    %s131 = sadd.s32 %s130, 1
    %p134 = scmp.eq.s32.totalorder %s12, 1
    %p135 = scmp.ne.s32.totalorder %s130, %s132
    %p136 = scmp.eq.s32.totalorder %s12, 0
    %p137 = por %p135, %p136
    %p138 = scmp.ne.s32.totalorder %s130, %s132
    %p139 = scmp.eq.s32.totalorder %s17, 1
    %p140 = por %p138, %p139
    %p141 = scmp.ne.s32.totalorder %s132, %s133
    %p142 = scmp.eq.s32.totalorder %s17, 0
    %p143 = por %p141, %p142
    %p144 = scmp.ne.s32.totalorder %s132, %s133
    %p145 = scmp.eq.s32.totalorder %s18, 1
    %p146 = por %p144, %p145
    %p148 = scmp.ne.s32.totalorder %s133, %s147
    %p149 = scmp.eq.s32.totalorder %s18, 0
    %p150 = por %p148, %p149
    %s151 = ssub.s32 %s12, %s19
    %p152 = scmp.eq.s32.totalorder %s151, 0
    %s154 = sadd.s32 %s153, 1
    %s155 = scalar_select %p152, %s153, %s154
    %p158 = pneg %p152
    %p159 = scmp.eq.s32.totalorder %s12, 1
    %p160 = por %p158, %p159
    %p161 = scmp.ne.s32.totalorder %s153, %s156
    %p162 = scmp.eq.s32.totalorder %s12, 0
    %p163 = por %p161, %p162
    %p164 = scmp.ne.s32.totalorder %s153, %s156
    %p165 = scmp.eq.s32.totalorder %s17, 1
    %p166 = por %p164, %p165
    %p167 = scmp.ne.s32.totalorder %s156, %s157
    %p168 = scmp.eq.s32.totalorder %s17, 0
    %p169 = por %p167, %p168
    %p170 = scmp.ne.s32.totalorder %s156, %s157
    %p171 = scmp.eq.s32.totalorder %s18, 1
    %p172 = por %p170, %p171
    %p174 = scmp.ne.s32.totalorder %s157, %s173
    %p175 = scmp.eq.s32.totalorder %s18, 0
    %p176 = por %p174, %p175
    %p177 = scmp.le.s32.totalorder 1, %s12
    %p178 = scmp.lt.s32.totalorder %s12, 3
    %p179 = pnand %p177, %p178
    %p180 = pneg %p179
    // Predicated region
    $region9: #{forward.19} parent=5 // pred_check
      _
    $region10: #{forward.19} parent=5 // pred_check_branch
      %182 = sbr.rel (%p179) target = $region12
    $region11: #{forward.19} parent=5 // pred_region
      %s183 = ssub.s32 %s12, 1
      // Predicated region
      $region13: #{forward.19} parent=11 // pred_check
        %p184 = pneg %p59
      $region14: #{forward.19} parent=11 // pred_check_branch
        %186 = sbr.rel (%p184) target = $region16
      $region15: #{forward.19} parent=11 // pred_region
        _
      $region16: #{forward.19} parent=11 // pred_fallthru
        _
      // Predicated region
      $region17: #{forward.19} parent=11 // pred_check
        %p187 = pneg %p80
      $region18: #{forward.19} parent=11 // pred_check_branch
        %189 = sbr.rel (%p187) target = $region20
      $region19: #{forward.19} parent=11 // pred_region
        _
      $region20: #{forward.19} parent=11 // pred_fallthru
        _
      // Predicated region
      $region21: #{forward.19} parent=11 // pred_check
        %p190 = pneg %p101
      $region22: #{forward.19} parent=11 // pred_check_branch
        %192 = sbr.rel (%p190) target = $region24
      $region23: #{forward.19} parent=11 // pred_region
        _
      $region24: #{forward.19} parent=11 // pred_fallthru
        _
      // Predicated region
      $region25: #{forward.19} parent=11 // pred_check
        %p193 = pneg %p122
      $region26: #{forward.19} parent=11 // pred_check_branch
        %195 = sbr.rel (%p193) target = $region28
      $region27: #{forward.19} parent=11 // pred_region
        _
      $region28: #{forward.19} parent=11 // pred_fallthru
        _
      // Predicated region
      $region29: #{forward.19} parent=11 // pred_check
        %p196 = pneg %p143
      $region30: #{forward.19} parent=11 // pred_check_branch
        %198 = sbr.rel (%p196) target = $region32
      $region31: #{forward.19} parent=11 // pred_region
        _
      $region32: #{forward.19} parent=11 // pred_fallthru
        _
    $region12: #{forward.19} parent=5 // pred_fallthru
      _
    %p199 = scmp.lt.s32.totalorder %s12, 2
    // Predicated region
    $region33: #{forward.19} parent=5 // pred_check
      %p200 = pneg %p199
    $region34: #{forward.19} parent=5 // pred_check_branch
      %202 = sbr.rel (%p200) target = $region36
    $region35: #{forward.19} parent=5 // pred_region
      // Predicated region
      $region37: #{forward.19} parent=35 // pred_check
        %p203 = pneg %p32
      $region38: #{forward.19} parent=35 // pred_check_branch
        %205 = sbr.rel (%p203) target = $region40
      $region39: #{forward.19} parent=35 // pred_region
        %p206 = scmp.lt.s32.totalorder %s12, 1
        %s207 = scalar_select %p206, %s12, 1
        %s208 = smul.addr %s207, 2
        %s209 = smul.addr %s208, 4
        %s210 = scalar_lea.vmem %s0, %s209
      $region40: #{forward.19} parent=35 // pred_fallthru
        _
    $region36: #{forward.19} parent=5 // pred_fallthru
      _
    %p211 = scmp.le.s32.totalorder 1, %s12
    %p212 = scmp.lt.s32.totalorder %s12, 3
    %p213 = pnand %p211, %p212
    %p214 = pneg %p213
    // Predicated region
    $region41: #{forward.19} parent=5 // pred_check
      _
    $region42: #{forward.19} parent=5 // pred_check_branch
      %216 = sbr.rel (%p213) target = $region44
    $region43: #{forward.19} parent=5 // pred_region
      %s217 = ssub.s32 %s12, 1
      %p218 = scmp.lt.s32.totalorder %s17, 1
      %s219 = scalar_select %p218, %s17, 1
      %s220 = smul.addr %s219, 2
      %s221 = smul.addr %s220, 4
      %s222 = scalar_lea.vmem %s0, %s221
      %p223 = pneg %p38
      %p224 = pneg %p35
      %p225 = pneg %p59
      %p226 = pneg %p56
      %p227 = pneg %p80
      %p228 = pneg %p77
      %p229 = pneg %p101
      %p230 = pneg %p98
      %p231 = pneg %p122
      %p232 = pneg %p119
      %p233 = pneg %p143
      %p234 = pneg %p140
      %p235 = pneg %p169
      %p236 = pneg %p166
      %p237 = scmp.lt.s32.totalorder %s17, 1
      %s238 = scalar_select %p237, %s17, 1
      %s239 = smul.addr %s238, 8
      %s240 = smul.addr %s239, 4
      %s241 = scalar_lea.vmem %s6, %s240
      %p242 = scmp.lt.s32.totalorder %s17, 1
      %s243 = scalar_select %p242, %s17, 1
      %s244 = smul.addr %s243, 2
      %s245 = smul.addr %s244, 4
      %s246 = scalar_lea.vmem %s0, %s245
      %p247 = scmp.lt.s32.totalorder %s17, 1
      %s248 = scalar_select %p247, %s17, 1
      %s249 = smul.addr %s248, 8
      %s250 = smul.addr %s249, 4
      %s251 = scalar_lea.vmem %s6, %s250
      %v253 = vld [vmem:[%s246] sm:$0xf]
      %v254 = vld [vmem:[%s246 + $0x4] sm:$0xf]
      %v257 = vunpack.c.l.b16 %v253
      %v258 = vunpack.c.l.b16 %v254
      %v259 = vpack.c.b16 %v258, %v257
      %261 = vrot.lane.b32.xlu0 %v259, 127
      %v262 = vpop.permute.xlu0 %261
      %264 = vrot.lane.b32.xlu0 %v259, 126
      %v265 = vpop.permute.xlu0 %264
      %267 = vrot.lane.b32.xlu0 %v259, 124
      %v268 = vpop.permute.xlu0 %267
      %270 = vrot.lane.b32.xlu0 %v259, 123
      %v271 = vpop.permute.xlu0 %270
      %273 = vrot.lane.b32.xlu0 %v259, 122
      %v274 = vpop.permute.xlu0 %273
      %276 = vrot.lane.b32.xlu0 %v259, 120
      %v277 = vpop.permute.xlu0 %276
      %279 = vrot.lane.b32.xlu0 %v259, 119
      %v280 = vpop.permute.xlu0 %279
      %282 = vrot.lane.b32.xlu0 %v259, 118
      %v283 = vpop.permute.xlu0 %282
      %v285 = vld [vmem:[%s1] sm:$0xff]
      %v286 = vld [vmem:[%s1 + $0x8] sm:$0xff]
      %v287 = vld [vmem:[%s2] sm:$0xff]
      %v288 = vld [vmem:[%s2 + $0x8] sm:$0xff]
      %290 = vset.pattern.permute.xlu0 0
      %291 = vperm.xlu0 %290, %v287
      %v292 = vpop.permute.xlu0 %291
      %295 = vset.pattern.permute.xlu0 0
      %296 = vperm.xlu0 %295, %v288
      %v297 = vpop.permute.xlu0 %296
      %v301 = vunpack.c.l.b16 %v285
      %v302 = vunpack.c.h.b16 %v285
      %v303 = vunpack.c.l.b16 %v286
      %v304 = vunpack.c.h.b16 %v286
      %v305 = vpack.c.b16 %v303, %v301
      %v306 = vpack.c.b16 %v304, %v302
      %vm308 = vcmask 130048
      %v310 = vsel %vm308, %v306, 0
      %312 = vmatprep.subr.bf16.mxu0 0
      %313 = vmatpush1.bf16.msra.mxu0 %v259
      %314 = vmatprep.subr.bf16.mxu0 0
      %315 = vmatpush1.bf16.msra.mxu0 %v262
      %316 = vmatprep.subr.bf16.mxu0 0
      %317 = vmatpush1.bf16.msra.mxu0 %v265
      %318 = vmatprep.subr.bf16.mxu0 0
      %319 = vmatpush1.bf16.msra.mxu0 %v268
      %320 = vmatprep.subr.bf16.mxu0 0
      %321 = vmatpush1.bf16.msra.mxu0 %v271
      %322 = vmatprep.subr.bf16.mxu0 0
      %323 = vmatpush1.bf16.msra.mxu0 %v274
      %324 = vmatprep.subr.bf16.mxu0 0
      %325 = vmatpush1.bf16.msra.mxu0 %v277
      %326 = vmatprep.subr.bf16.mxu0 0
      %327 = vmatpush1.bf16.msra.mxu0 %v280
      %328 = vmatprep.subr.bf16.mxu0 0
      %329 = vmatpush1.bf16.msra.mxu0 %v283
      %330 = vmatprep.subr.bf16.mxu0 0
      %331 = vmatpush1.bf16.msra.mxu0 0
      %332 = vmatprep.subr.bf16.mxu0 0
      %333 = vmatpush1.bf16.msra.mxu0 0
      %334 = vmatprep.subr.bf16.mxu0 0
      %335 = vmatpush1.bf16.msra.mxu0 0
      %336 = vmatprep.subr.bf16.mxu0 0
      %337 = vmatpush1.bf16.msra.mxu0 0
      %338 = vmatprep.subr.bf16.mxu0 0
      %339 = vmatpush1.bf16.msra.mxu0 0
      %340 = vmatprep.subr.bf16.mxu0 0
      %341 = vmatpush1.bf16.msra.mxu0 0
      %342 = vmatprep.subr.bf16.mxu0 0
      %343 = vmatpush1.bf16.msra.mxu0 0
      %344 = vmatprep.mubr.bf16.mxu0 %v310
      %345 = vmatmul.mubr.bf16.gmra.mrb[0].mxu0 %v305
      %v346 = vpop.f32.mrb[0].mxu0
      %v347 = vadd.f32 %v292, %v346
      %v348 = vpop.f32.mrb[0].mxu0
      %v349 = vpop.f32.mrb[0].mxu0
      %v350 = vadd.f32 %v297, %v349
      %v351 = vpop.f32.mrb[0].mxu0
      %352 = vdwg.mxu0
      %v353 = vmax.f32 %v347, 0.0
      %v354 = vmax.f32 %v350, 0.0
      %v355 = vld [vmem:[%s5] sm:$0x1]
      %v357 = vlaneseq
      %v358 = vshrl.u32 %v357, 7
      %v359 = vsub.s32 0, %v358
      %v360 = vrot.slane %v355, %v359
      %v362 = vmul.f32 %v353, %v360
      %v363 = vmul.f32 %v354, %v360
      %v364 = vpack.c.bf16 %v363, %v362
      %366 = vrot.lane.b32.xlu0 %v364, 5
      %v367 = vpop.permute.xlu0 %366
      %vm368 = vcmask 39936
      %v371 = vsel %vm368, 0, %v367
      %vm372 = vcmask 171008
      %v373 = vsel %vm372, %v371, 0
      %375 = vrot.lane.b32.xlu0 %v373, 127
      %v376 = vpop.permute.xlu0 %375
      %377 = vrot.lane.b32.xlu0 %v373, 124
      %v378 = vpop.permute.xlu0 %377
      %379 = vrot.lane.b32.xlu0 %v373, 123
      %v380 = vpop.permute.xlu0 %379
      %v381 = vld [vmem:[%s3] sm:$0xf]
      %v382 = vld [vmem:[%s3 + $0x4] sm:$0xf]
      %v383 = vld [vmem:[%s3 + $0x8] sm:$0xf]
      %v384 = vld [vmem:[%s3 + $0xc] sm:$0xf]
      %v385 = vld [vmem:[%s3 + $0x10] sm:$0xf]
      %v386 = vld [vmem:[%s3 + $0x14] sm:$0xf]
      %v387 = vld [vmem:[%s3 + $0x18] sm:$0xf]
      %v388 = vld [vmem:[%s3 + $0x1c] sm:$0xf]
      %v389 = vld [vmem:[%s4] sm:$0xff]
      %v390 = vld [vmem:[%s4 + $0x8] sm:$0xff]
      %v391 = vld [vmem:[%s4 + $0x10] sm:$0xff]
      %v392 = vld [vmem:[%s4 + $0x18] sm:$0xff]
      %v393 = vld [vmem:[%s4 + $0x20] sm:$0xff]
      %v394 = vld [vmem:[%s4 + $0x28] sm:$0xff]
      %v395 = vld [vmem:[%s4 + $0x30] sm:$0xff]
      %v396 = vld [vmem:[%s4 + $0x38] sm:$0xff]
      %398 = vset.pattern.permute.xlu0 0
      %399 = vperm.xlu0 %398, %v389
      %v400 = vpop.permute.xlu0 %399
      %403 = vset.pattern.permute.xlu0 0
      %404 = vperm.xlu0 %403, %v390
      %v405 = vpop.permute.xlu0 %404
      %408 = vset.pattern.permute.xlu0 0
      %409 = vperm.xlu0 %408, %v391
      %v410 = vpop.permute.xlu0 %409
      %413 = vset.pattern.permute.xlu0 0
      %414 = vperm.xlu0 %413, %v392
      %v415 = vpop.permute.xlu0 %414
      %418 = vset.pattern.permute.xlu0 0
      %419 = vperm.xlu0 %418, %v393
      %v420 = vpop.permute.xlu0 %419
      %423 = vset.pattern.permute.xlu0 0
      %424 = vperm.xlu0 %423, %v394
      %v425 = vpop.permute.xlu0 %424
      %428 = vset.pattern.permute.xlu0 0
      %429 = vperm.xlu0 %428, %v395
      %v430 = vpop.permute.xlu0 %429
      %433 = vset.pattern.permute.xlu0 0
      %434 = vperm.xlu0 %433, %v396
      %v435 = vpop.permute.xlu0 %434
      %v445 = vunpack.c.l.b16 %v381
      %v446 = vunpack.c.l.b16 %v382
      %v447 = vunpack.c.l.b16 %v383
      %v448 = vunpack.c.l.b16 %v384
      %v449 = vunpack.c.l.b16 %v385
      %v450 = vunpack.c.l.b16 %v386
      %v451 = vunpack.c.l.b16 %v387
      %v452 = vunpack.c.l.b16 %v388
      %v453 = vpack.c.b16 %v446, %v445
      %v454 = vpack.c.b16 %v448, %v447
      %v455 = vpack.c.b16 %v450, %v449
      %v456 = vpack.c.b16 %v452, %v451
      %457 = vrot.lane.b32.xlu0 %v376, 123
      %v458 = vpop.permute.xlu0 %457
      %459 = vrot.lane.b32.xlu0 %v378, 123
      %v460 = vpop.permute.xlu0 %459
      %461 = vrot.lane.b32.xlu0 %v380, 123
      %v462 = vpop.permute.xlu0 %461
      %vm467 = vcmask 523264
      %v469 = vsel %vm467, %v453, 0
      %v472 = vsel %vm467, %v454, 0
      %v475 = vsel %vm467, %v455, 0
      %v478 = vsel %vm467, %v456, 0
      %480 = vmatprep.subr.bf16.mxu0 0
      %481 = vmatpush1.bf16.msra.mxu0 %v380
      %482 = vmatprep.subr.bf16.mxu0 0
      %483 = vmatpush1.bf16.msra.mxu0 %v458
      %484 = vmatprep.subr.bf16.mxu0 0
      %485 = vmatpush1.bf16.msra.mxu0 %v460
      %486 = vmatprep.subr.bf16.mxu0 0
      %487 = vmatpush1.bf16.msra.mxu0 %v462
      %488 = vmatprep.subr.bf16.mxu0 0
      %489 = vmatpush1.bf16.msra.mxu0 0
      %490 = vmatprep.subr.bf16.mxu0 0
      %491 = vmatpush1.bf16.msra.mxu0 0
      %492 = vmatprep.subr.bf16.mxu0 0
      %493 = vmatpush1.bf16.msra.mxu0 0
      %494 = vmatprep.subr.bf16.mxu0 0
      %495 = vmatpush1.bf16.msra.mxu0 0
      %496 = vmatprep.subr.bf16.mxu0 0
      %497 = vmatpush1.bf16.msra.mxu0 0
      %498 = vmatprep.subr.bf16.mxu0 0
      %499 = vmatpush1.bf16.msra.mxu0 0
      %500 = vmatprep.subr.bf16.mxu0 0
      %501 = vmatpush1.bf16.msra.mxu0 0
      %502 = vmatprep.subr.bf16.mxu0 0
      %503 = vmatpush1.bf16.msra.mxu0 0
      %504 = vmatprep.subr.bf16.mxu0 0
      %505 = vmatpush1.bf16.msra.mxu0 0
      %506 = vmatprep.subr.bf16.mxu0 0
      %507 = vmatpush1.bf16.msra.mxu0 0
      %508 = vmatprep.subr.bf16.mxu0 0
      %509 = vmatpush1.bf16.msra.mxu0 0
      %510 = vmatprep.subr.bf16.mxu0 0
      %511 = vmatpush1.bf16.msra.mxu0 0
      %512 = vmatprep.mubr.bf16.mxu0 0
      %513 = vmatmul.mubr.bf16.gmra.mrb[0].mxu0 %v469
      %v514 = vpop.f32.mrb[0].mxu0
      %v515 = vadd.f32 %v400, %v514
      %v516 = vpop.f32.mrb[0].mxu0
      %v517 = vpop.f32.mrb[0].mxu0
      %v518 = vadd.f32 %v405, %v517
      %v519 = vpop.f32.mrb[0].mxu0
      %520 = vmatprep.mubr.bf16.mxu0 0
      %521 = vmatmul.mubr.bf16.gmra.mrb[0].mxu0 %v472
      %v522 = vpop.f32.mrb[0].mxu0
      %v523 = vadd.f32 %v410, %v522
      %v524 = vpop.f32.mrb[0].mxu0
      %v525 = vpop.f32.mrb[0].mxu0
      %v526 = vadd.f32 %v415, %v525
      %v527 = vpop.f32.mrb[0].mxu0
      %528 = vmatprep.mubr.bf16.mxu0 0
      %529 = vmatmul.mubr.bf16.gmra.mrb[0].mxu0 %v475
      %v530 = vpop.f32.mrb[0].mxu0
      %v531 = vadd.f32 %v420, %v530
      %v532 = vpop.f32.mrb[0].mxu0
      %v533 = vpop.f32.mrb[0].mxu0
      %v534 = vadd.f32 %v425, %v533
      %v535 = vpop.f32.mrb[0].mxu0
      %536 = vmatprep.mubr.bf16.mxu0 0
      %537 = vmatmul.mubr.bf16.gmra.mrb[0].mxu0 %v478
      %v538 = vpop.f32.mrb[0].mxu0
      %v539 = vadd.f32 %v430, %v538
      %v540 = vpop.f32.mrb[0].mxu0
      %v541 = vpop.f32.mrb[0].mxu0
      %v542 = vadd.f32 %v435, %v541
      %v543 = vpop.f32.mrb[0].mxu0
      %544 = vdwg.mxu0
      %v545 = vmax.f32 %v515, 0.0
      %v546 = vmax.f32 %v518, 0.0
      %v547 = vmax.f32 %v523, 0.0
      %v548 = vmax.f32 %v526, 0.0
      %v549 = vmax.f32 %v531, 0.0
      %v550 = vmax.f32 %v534, 0.0
      %v551 = vmax.f32 %v539, 0.0
      %v552 = vmax.f32 %v542, 0.0
      %v553 = vpack.c.bf16 %v546, %v545
      %v554 = vpack.c.bf16 %v548, %v547
      %v555 = vpack.c.bf16 %v550, %v549
      %v556 = vpack.c.bf16 %v552, %v551
      %v558 = vsel %vm308, %v553, 0
      %v560 = vsel %vm308, %v554, 0
      %v562 = vsel %vm308, %v555, 0
      %v564 = vsel %vm308, %v556, 0
      %v569 = vunpack.c.l.b16 %v558
      %v570 = vunpack.c.h.b16 %v558
      %v571 = vunpack.c.l.b16 %v560
      %v572 = vunpack.c.h.b16 %v560
      %v573 = vunpack.c.l.b16 %v562
      %v574 = vunpack.c.h.b16 %v562
      %v575 = vunpack.c.l.b16 %v564
      %v576 = vunpack.c.h.b16 %v564
      %v577 = vpack.c.b16 %v569, %v569
      %v578 = vpack.c.b16 %v570, %v570
      %v579 = vpack.c.b16 %v571, %v571
      %v580 = vpack.c.b16 %v572, %v572
      %v581 = vpack.c.b16 %v573, %v573
      %v582 = vpack.c.b16 %v574, %v574
      %v583 = vpack.c.b16 %v575, %v575
      %v584 = vpack.c.b16 %v576, %v576
      %593 = vst [vmem:[%s251] sm:$0xf] %v577
      %594 = vst [vmem:[%s251 + $0x4] sm:$0xf] %v578
      %595 = vst [vmem:[%s251 + $0x8] sm:$0xf] %v579
      %596 = vst [vmem:[%s251 + $0xc] sm:$0xf] %v580
      %597 = vst [vmem:[%s251 + $0x10] sm:$0xf] %v581
      %598 = vst [vmem:[%s251 + $0x14] sm:$0xf] %v582
      %599 = vst [vmem:[%s251 + $0x18] sm:$0xf] %v583
      %600 = vst [vmem:[%s251 + $0x1c] sm:$0xf] %v584
      %p601 = scmp.lt.s32.totalorder %s17, 1
      %s602 = scalar_select %p601, %s17, 1
      %s603 = smul.addr %s602, 8
      %s604 = smul.addr %s603, 4
      %s605 = scalar_lea.vmem %s6, %s604
      // Predicated region
      $region45: #{forward.19} parent=43 // pred_check
        %p606 = pneg %p166
      $region46: #{forward.19} parent=43 // pred_check_branch
        %608 = sbr.rel (%p606) target = $region48
      $region47: #{forward.19} parent=43 // pred_region
        _
      $region48: #{forward.19} parent=43 // pred_fallthru
        _
    $region44: #{forward.19} parent=5 // pred_fallthru
      _
    %p609 = scmp.le.s32.totalorder 2, %s12
    // Predicated region
    $region49: #{forward.19} parent=5 // pred_check
      %p610 = pneg %p609
    $region50: #{forward.19} parent=5 // pred_check_branch
      %612 = sbr.rel (%p610) target = $region52
    $region51: #{forward.19} parent=5 // pred_region
      %s613 = ssub.s32 %s12, 2
      // Predicated region
      $region53: #{forward.19} parent=51 // pred_check
        %p614 = pneg %p172
      $region54: #{forward.19} parent=51 // pred_check_branch
        %616 = sbr.rel (%p614) target = $region56
      $region55: #{forward.19} parent=51 // pred_region
        %p617 = scmp.lt.s32.totalorder %s18, 1
        %s618 = scalar_select %p617, %s18, 1
        %s619 = smul.addr %s618, 8
        %s620 = smul.addr %s619, 4
        %s621 = scalar_lea.vmem %s6, %s620
      $region56: #{forward.19} parent=51 // pred_fallthru
        _
    $region52: #{forward.19} parent=5 // pred_fallthru
      _
  $region6: #{forward.19} parent=0 // loop_footer
    %s16 = sadd.s32 1, %s12
  $region7: #{forward.19} parent=0 // loop_footer_branch
    %11 = sbr.rel target = $region3
  $region8: #{forward.19} parent=0 // loop_exit
    _

// kernel: forward.20
$region0: #{forward.20}
  #allocation0 [shape = 'u32[]', space=smem, size = 0x4, offset = 0x4, fixed_abs, tag = 'smem constant byte address 0x4 - core index']
  #allocation1 [shape = 'u32[144,128]{1,0:T(1,128)}', space=vmem, size = 0x12000, scoped, tag = 'internal scratch']
  %s0 = inlined_call_operand.vmem [shape: bf16[2,16,128], index: 0, kind: input, shape index: {}]
  %s1 = inlined_call_operand.vmem [shape: bf16[16,144], index: 1, kind: input, shape index: {}]
  %s2 = inlined_call_operand.vmem [shape: f32[16,128], index: 2, kind: input, shape index: {}]
  %s3 = inlined_call_operand.vmem [shape: bf16[32,64], index: 3, kind: input, shape index: {}]
  %s4 = inlined_call_operand.vmem [shape: f32[32,128], index: 4, kind: input, shape index: {}]
  %s5 = inlined_call_operand.vmem [shape: f32[1,36], index: 5, kind: input, shape index: {}]
  %s6 = inlined_call_operand.vmem [shape: bf16[2,32,128], index: 6, kind: output, shape index: {}]
  %s7 = sld [smem:[#allocation0]]
  $region57: #{forward.20} parent=0
    _
  %s9 = ssub.s32 1, %s7
  %s10 = scalar_select 0, %s9, %s7
  loop: start=0, step=1, limit=4
  $region2: #{forward.20} parent=0 // loop_pre_header
    _
  $region3: #{forward.20} parent=0 // loop_header
    %s12 = sphi 0, %s16
    %p13 = scmp.ge.s32.totalorder %s12, 4
    %s22 = sphi 0, %s24
    %s25 = sphi 0, %s22
    %s26 = sphi 0, %s25
    %s42 = sphi 0, %s26
    %s46 = sphi 0, %s46
    %s48 = sphi 0, %s46
    %s49 = sphi 0, %s48
    %s63 = sphi 0, %s49
    %s67 = sphi 0, %s67
    %s69 = sphi 0, %s67
    %s70 = sphi 0, %s69
    %s84 = sphi 0, %s70
    %s88 = sphi 0, %s88
    %s90 = sphi 0, %s88
    %s91 = sphi 0, %s90
    %s105 = sphi 0, %s91
    %s109 = sphi 0, %s109
    %s111 = sphi 0, %s109
    %s112 = sphi 0, %s111
    %s126 = sphi 0, %s112
    %s130 = sphi 0, %s130
    %s132 = sphi 0, %s130
    %s133 = sphi 0, %s132
    %s147 = sphi 0, %s133
    %s153 = sphi 0, %s155
    %s156 = sphi 0, %s153
    %s157 = sphi 0, %s156
    %s173 = sphi 0, %s157
  $region4: #{forward.20} parent=0 // loop_header_branch
    %15 = sbr.rel (%p13) target = $region8
  $region5: #{forward.20} parent=0 // loop_body
    %s17 = ssub.s32 %s12, 1
    %s18 = ssub.s32 %s12, 2
    %s19 = sadd.s32 %s12, 1
    %s20 = ssub.s32 %s12, %s19
    %p21 = scmp.eq.s32.totalorder %s20, 0
    %s23 = sadd.s32 %s22, 1
    %s24 = scalar_select %p21, %s22, %s23
    %p27 = pneg %p21
    %p28 = scmp.eq.s32.totalorder %s12, 1
    %p29 = por %p27, %p28
    %p30 = scmp.ne.s32.totalorder %s22, %s25
    %p31 = scmp.eq.s32.totalorder %s12, 0
    %p32 = por %p30, %p31
    %p33 = scmp.ne.s32.totalorder %s22, %s25
    %p34 = scmp.eq.s32.totalorder %s17, 1
    %p35 = por %p33, %p34
    %p36 = scmp.ne.s32.totalorder %s25, %s26
    %p37 = scmp.eq.s32.totalorder %s17, 0
    %p38 = por %p36, %p37
    %p39 = scmp.ne.s32.totalorder %s25, %s26
    %p40 = scmp.eq.s32.totalorder %s18, 1
    %p41 = por %p39, %p40
    %p43 = scmp.ne.s32.totalorder %s26, %s42
    %p44 = scmp.eq.s32.totalorder %s18, 0
    %p45 = por %p43, %p44
    %s47 = sadd.s32 %s46, 1
    %p50 = scmp.eq.s32.totalorder %s12, 1
    %p51 = scmp.ne.s32.totalorder %s46, %s48
    %p52 = scmp.eq.s32.totalorder %s12, 0
    %p53 = por %p51, %p52
    %p54 = scmp.ne.s32.totalorder %s46, %s48
    %p55 = scmp.eq.s32.totalorder %s17, 1
    %p56 = por %p54, %p55
    %p57 = scmp.ne.s32.totalorder %s48, %s49
    %p58 = scmp.eq.s32.totalorder %s17, 0
    %p59 = por %p57, %p58
    %p60 = scmp.ne.s32.totalorder %s48, %s49
    %p61 = scmp.eq.s32.totalorder %s18, 1
    %p62 = por %p60, %p61
    %p64 = scmp.ne.s32.totalorder %s49, %s63
    %p65 = scmp.eq.s32.totalorder %s18, 0
    %p66 = por %p64, %p65
    %s68 = sadd.s32 %s67, 1
    %p71 = scmp.eq.s32.totalorder %s12, 1
    %p72 = scmp.ne.s32.totalorder %s67, %s69
    %p73 = scmp.eq.s32.totalorder %s12, 0
    %p74 = por %p72, %p73
    %p75 = scmp.ne.s32.totalorder %s67, %s69
    %p76 = scmp.eq.s32.totalorder %s17, 1
    %p77 = por %p75, %p76
    %p78 = scmp.ne.s32.totalorder %s69, %s70
    %p79 = scmp.eq.s32.totalorder %s17, 0
    %p80 = por %p78, %p79
    %p81 = scmp.ne.s32.totalorder %s69, %s70
    %p82 = scmp.eq.s32.totalorder %s18, 1
    %p83 = por %p81, %p82
    %p85 = scmp.ne.s32.totalorder %s70, %s84
    %p86 = scmp.eq.s32.totalorder %s18, 0
    %p87 = por %p85, %p86
    %s89 = sadd.s32 %s88, 1
    %p92 = scmp.eq.s32.totalorder %s12, 1
    %p93 = scmp.ne.s32.totalorder %s88, %s90
    %p94 = scmp.eq.s32.totalorder %s12, 0
    %p95 = por %p93, %p94
    %p96 = scmp.ne.s32.totalorder %s88, %s90
    %p97 = scmp.eq.s32.totalorder %s17, 1
    %p98 = por %p96, %p97
    %p99 = scmp.ne.s32.totalorder %s90, %s91
    %p100 = scmp.eq.s32.totalorder %s17, 0
    %p101 = por %p99, %p100
    %p102 = scmp.ne.s32.totalorder %s90, %s91
    %p103 = scmp.eq.s32.totalorder %s18, 1
    %p104 = por %p102, %p103
    %p106 = scmp.ne.s32.totalorder %s91, %s105
    %p107 = scmp.eq.s32.totalorder %s18, 0
    %p108 = por %p106, %p107
    %s110 = sadd.s32 %s109, 1
    %p113 = scmp.eq.s32.totalorder %s12, 1
    %p114 = scmp.ne.s32.totalorder %s109, %s111
    %p115 = scmp.eq.s32.totalorder %s12, 0
    %p116 = por %p114, %p115
    %p117 = scmp.ne.s32.totalorder %s109, %s111
    %p118 = scmp.eq.s32.totalorder %s17, 1
    %p119 = por %p117, %p118
    %p120 = scmp.ne.s32.totalorder %s111, %s112
    %p121 = scmp.eq.s32.totalorder %s17, 0
    %p122 = por %p120, %p121
    %p123 = scmp.ne.s32.totalorder %s111, %s112
    %p124 = scmp.eq.s32.totalorder %s18, 1
    %p125 = por %p123, %p124
    %p127 = scmp.ne.s32.totalorder %s112, %s126
    %p128 = scmp.eq.s32.totalorder %s18, 0
    %p129 = por %p127, %p128
    %s131 = sadd.s32 %s130, 1
    %p134 = scmp.eq.s32.totalorder %s12, 1
    %p135 = scmp.ne.s32.totalorder %s130, %s132
    %p136 = scmp.eq.s32.totalorder %s12, 0
    %p137 = por %p135, %p136
    %p138 = scmp.ne.s32.totalorder %s130, %s132
    %p139 = scmp.eq.s32.totalorder %s17, 1
    %p140 = por %p138, %p139
    %p141 = scmp.ne.s32.totalorder %s132, %s133
    %p142 = scmp.eq.s32.totalorder %s17, 0
    %p143 = por %p141, %p142
    %p144 = scmp.ne.s32.totalorder %s132, %s133
    %p145 = scmp.eq.s32.totalorder %s18, 1
    %p146 = por %p144, %p145
    %p148 = scmp.ne.s32.totalorder %s133, %s147
    %p149 = scmp.eq.s32.totalorder %s18, 0
    %p150 = por %p148, %p149
    %s151 = ssub.s32 %s12, %s19
    %p152 = scmp.eq.s32.totalorder %s151, 0
    %s154 = sadd.s32 %s153, 1
    %s155 = scalar_select %p152, %s153, %s154
    %p158 = pneg %p152
    %p159 = scmp.eq.s32.totalorder %s12, 1
    %p160 = por %p158, %p159
    %p161 = scmp.ne.s32.totalorder %s153, %s156
    %p162 = scmp.eq.s32.totalorder %s12, 0
    %p163 = por %p161, %p162
    %p164 = scmp.ne.s32.totalorder %s153, %s156
    %p165 = scmp.eq.s32.totalorder %s17, 1
    %p166 = por %p164, %p165
    %p167 = scmp.ne.s32.totalorder %s156, %s157
    %p168 = scmp.eq.s32.totalorder %s17, 0
    %p169 = por %p167, %p168
    %p170 = scmp.ne.s32.totalorder %s156, %s157
    %p171 = scmp.eq.s32.totalorder %s18, 1
    %p172 = por %p170, %p171
    %p174 = scmp.ne.s32.totalorder %s157, %s173
    %p175 = scmp.eq.s32.totalorder %s18, 0
    %p176 = por %p174, %p175
    %p177 = scmp.le.s32.totalorder 1, %s12
    %p178 = scmp.lt.s32.totalorder %s12, 3
    %p179 = pnand %p177, %p178
    %p180 = pneg %p179
    // Predicated region
    $region9: #{forward.20} parent=5 // pred_check
      _
    $region10: #{forward.20} parent=5 // pred_check_branch
      %182 = sbr.rel (%p179) target = $region12
    $region11: #{forward.20} parent=5 // pred_region
      %s183 = ssub.s32 %s12, 1
      // Predicated region
      $region13: #{forward.20} parent=11 // pred_check
        %p184 = pneg %p59
      $region14: #{forward.20} parent=11 // pred_check_branch
        %186 = sbr.rel (%p184) target = $region16
      $region15: #{forward.20} parent=11 // pred_region
        _
      $region16: #{forward.20} parent=11 // pred_fallthru
        _
      // Predicated region
      $region17: #{forward.20} parent=11 // pred_check
        %p187 = pneg %p80
      $region18: #{forward.20} parent=11 // pred_check_branch
        %189 = sbr.rel (%p187) target = $region20
      $region19: #{forward.20} parent=11 // pred_region
        _
      $region20: #{forward.20} parent=11 // pred_fallthru
        _
      // Predicated region
      $region21: #{forward.20} parent=11 // pred_check
        %p190 = pneg %p101
      $region22: #{forward.20} parent=11 // pred_check_branch
        %192 = sbr.rel (%p190) target = $region24
      $region23: #{forward.20} parent=11 // pred_region
        _
      $region24: #{forward.20} parent=11 // pred_fallthru
        _
      // Predicated region
      $region25: #{forward.20} parent=11 // pred_check
        %p193 = pneg %p122
      $region26: #{forward.20} parent=11 // pred_check_branch
        %195 = sbr.rel (%p193) target = $region28
      $region27: #{forward.20} parent=11 // pred_region
        _
      $region28: #{forward.20} parent=11 // pred_fallthru
        _
      // Predicated region
      $region29: #{forward.20} parent=11 // pred_check
        %p196 = pneg %p143
      $region30: #{forward.20} parent=11 // pred_check_branch
        %198 = sbr.rel (%p196) target = $region32
      $region31: #{forward.20} parent=11 // pred_region
        _
      $region32: #{forward.20} parent=11 // pred_fallthru
        _
    $region12: #{forward.20} parent=5 // pred_fallthru
      _
    %p199 = scmp.lt.s32.totalorder %s12, 2
    // Predicated region
    $region33: #{forward.20} parent=5 // pred_check
      %p200 = pneg %p199
    $region34: #{forward.20} parent=5 // pred_check_branch
      %202 = sbr.rel (%p200) target = $region36
    $region35: #{forward.20} parent=5 // pred_region
      // Predicated region
      $region37: #{forward.20} parent=35 // pred_check
        %p203 = pneg %p32
      $region38: #{forward.20} parent=35 // pred_check_branch
        %205 = sbr.rel (%p203) target = $region40
      $region39: #{forward.20} parent=35 // pred_region
        %p206 = scmp.lt.s32.totalorder %s12, 1
        %s207 = scalar_select %p206, %s12, 1
        %s208 = smul.addr %s207, 2
        %s209 = smul.addr %s208, 4
        %s210 = scalar_lea.vmem %s0, %s209
      $region40: #{forward.20} parent=35 // pred_fallthru
        _
    $region36: #{forward.20} parent=5 // pred_fallthru
      _
    %p211 = scmp.le.s32.totalorder 1, %s12
    %p212 = scmp.lt.s32.totalorder %s12, 3
    %p213 = pnand %p211, %p212
    %p214 = pneg %p213
    // Predicated region
    $region41: #{forward.20} parent=5 // pred_check
      _
    $region42: #{forward.20} parent=5 // pred_check_branch
      %216 = sbr.rel (%p213) target = $region44
    $region43: #{forward.20} parent=5 // pred_region
      %s217 = ssub.s32 %s12, 1
      %p218 = scmp.lt.s32.totalorder %s17, 1
      %s219 = scalar_select %p218, %s17, 1
      %s220 = smul.addr %s219, 2
      %s221 = smul.addr %s220, 4
      %s222 = scalar_lea.vmem %s0, %s221
      %p223 = pneg %p38
      %p224 = pneg %p35
      %p225 = pneg %p59
      %p226 = pneg %p56
      %p227 = pneg %p80
      %p228 = pneg %p77
      %p229 = pneg %p101
      %p230 = pneg %p98
      %p231 = pneg %p122
      %p232 = pneg %p119
      %p233 = pneg %p143
      %p234 = pneg %p140
      %p235 = pneg %p169
      %p236 = pneg %p166
      %p237 = scmp.lt.s32.totalorder %s17, 1
      %s238 = scalar_select %p237, %s17, 1
      %s239 = smul.addr %s238, 4
      %s240 = smul.addr %s239, 4
      %s241 = scalar_lea.vmem %s6, %s240
      %p242 = scmp.lt.s32.totalorder %s17, 1
      %s243 = scalar_select %p242, %s17, 1
      %s244 = smul.addr %s243, 2
      %s245 = smul.addr %s244, 4
      %s246 = scalar_lea.vmem %s0, %s245
      %p247 = scmp.lt.s32.totalorder %s17, 1
      %s248 = scalar_select %p247, %s17, 1
      %s249 = smul.addr %s248, 4
      %s250 = smul.addr %s249, 4
      %s251 = scalar_lea.vmem %s6, %s250
      %v253 = vld [vmem:[%s246] sm:$0xf]
      %v254 = vld [vmem:[%s246 + $0x4] sm:$0xf]
      %v257 = vunpack.c.l.b16 %v253
      %v258 = vunpack.c.l.b16 %v254
      %v259 = vpack.c.b16 %v258, %v257
      %261 = vrot.lane.b32.xlu0 %v259, 127
      %v262 = vpop.permute.xlu0 %261
      %264 = vrot.lane.b32.xlu0 %v259, 126
      %v265 = vpop.permute.xlu0 %264
      %267 = vrot.lane.b32.xlu0 %v259, 122
      %v268 = vpop.permute.xlu0 %267
      %270 = vrot.lane.b32.xlu0 %v259, 121
      %v271 = vpop.permute.xlu0 %270
      %273 = vrot.lane.b32.xlu0 %v259, 120
      %v274 = vpop.permute.xlu0 %273
      %276 = vrot.lane.b32.xlu0 %v259, 116
      %v277 = vpop.permute.xlu0 %276
      %279 = vrot.lane.b32.xlu0 %v259, 115
      %v280 = vpop.permute.xlu0 %279
      %282 = vrot.lane.b32.xlu0 %v259, 114
      %v283 = vpop.permute.xlu0 %282
      %v285 = vld [vmem:[%s1] sm:$0xff]
      %v286 = vld [vmem:[%s1 + $0x8] sm:$0xff]
      %v287 = vld [vmem:[%s2] sm:$0xff]
      %v288 = vld [vmem:[%s2 + $0x8] sm:$0xff]
      %290 = vset.pattern.permute.xlu0 0
      %291 = vperm.xlu0 %290, %v287
      %v292 = vpop.permute.xlu0 %291
      %295 = vset.pattern.permute.xlu0 0
      %296 = vperm.xlu0 %295, %v288
      %v297 = vpop.permute.xlu0 %296
      %v301 = vunpack.c.l.b16 %v285
      %v302 = vunpack.c.h.b16 %v285
      %v303 = vunpack.c.l.b16 %v286
      %v304 = vunpack.c.h.b16 %v286
      %v305 = vpack.c.b16 %v303, %v301
      %v306 = vpack.c.b16 %v304, %v302
      %vm308 = vcmask 130048
      %v310 = vsel %vm308, %v306, 0
      %312 = vmatprep.subr.bf16.mxu0 0
      %313 = vmatpush1.bf16.msra.mxu0 %v259
      %314 = vmatprep.subr.bf16.mxu0 0
      %315 = vmatpush1.bf16.msra.mxu0 %v262
      %316 = vmatprep.subr.bf16.mxu0 0
      %317 = vmatpush1.bf16.msra.mxu0 %v265
      %318 = vmatprep.subr.bf16.mxu0 0
      %319 = vmatpush1.bf16.msra.mxu0 %v268
      %320 = vmatprep.subr.bf16.mxu0 0
      %321 = vmatpush1.bf16.msra.mxu0 %v271
      %322 = vmatprep.subr.bf16.mxu0 0
      %323 = vmatpush1.bf16.msra.mxu0 %v274
      %324 = vmatprep.subr.bf16.mxu0 0
      %325 = vmatpush1.bf16.msra.mxu0 %v277
      %326 = vmatprep.subr.bf16.mxu0 0
      %327 = vmatpush1.bf16.msra.mxu0 %v280
      %328 = vmatprep.subr.bf16.mxu0 0
      %329 = vmatpush1.bf16.msra.mxu0 %v283
      %330 = vmatprep.subr.bf16.mxu0 0
      %331 = vmatpush1.bf16.msra.mxu0 0
      %332 = vmatprep.subr.bf16.mxu0 0
      %333 = vmatpush1.bf16.msra.mxu0 0
      %334 = vmatprep.subr.bf16.mxu0 0
      %335 = vmatpush1.bf16.msra.mxu0 0
      %336 = vmatprep.subr.bf16.mxu0 0
      %337 = vmatpush1.bf16.msra.mxu0 0
      %338 = vmatprep.subr.bf16.mxu0 0
      %339 = vmatpush1.bf16.msra.mxu0 0
      %340 = vmatprep.subr.bf16.mxu0 0
      %341 = vmatpush1.bf16.msra.mxu0 0
      %342 = vmatprep.subr.bf16.mxu0 0
      %343 = vmatpush1.bf16.msra.mxu0 0
      %344 = vmatprep.mubr.bf16.mxu0 %v310
      %345 = vmatmul.mubr.bf16.gmra.mrb[0].mxu0 %v305
      %v346 = vpop.f32.mrb[0].mxu0
      %v347 = vadd.f32 %v292, %v346
      %v348 = vpop.f32.mrb[0].mxu0
      %v349 = vpop.f32.mrb[0].mxu0
      %v350 = vadd.f32 %v297, %v349
      %v351 = vpop.f32.mrb[0].mxu0
      %352 = vdwg.mxu0
      %v353 = vmax.f32 %v347, 0.0
      %v354 = vmax.f32 %v350, 0.0
      %v355 = vld [vmem:[%s5] sm:$0x1]
      %v357 = vlaneseq
      %v358 = vshrl.u32 %v357, 7
      %v359 = vsub.s32 0, %v358
      %v360 = vrot.slane %v355, %v359
      %v362 = vmul.f32 %v353, %v360
      %v363 = vmul.f32 %v354, %v360
      %v364 = vpack.c.bf16 %v363, %v362
      %366 = vrot.lane.b32.xlu0 %v364, 7
      %v367 = vpop.permute.xlu0 %366
      %vm368 = vcmask 56320
      %v371 = vsel %vm368, 0, %v367
      %vm372 = vcmask 351232
      %v373 = vsel %vm372, %v371, 0
      %375 = vrot.lane.b32.xlu0 %v373, 127
      %v376 = vpop.permute.xlu0 %375
      %377 = vrot.lane.b32.xlu0 %v373, 122
      %v378 = vpop.permute.xlu0 %377
      %379 = vrot.lane.b32.xlu0 %v373, 121
      %v380 = vpop.permute.xlu0 %379
      %v381 = vld [vmem:[%s3] sm:$0xf]
      %v382 = vld [vmem:[%s3 + $0x4] sm:$0xf]
      %v383 = vld [vmem:[%s3 + $0x8] sm:$0xf]
      %v384 = vld [vmem:[%s3 + $0xc] sm:$0xf]
      %v385 = vld [vmem:[%s4] sm:$0xff]
      %v386 = vld [vmem:[%s4 + $0x8] sm:$0xff]
      %v387 = vld [vmem:[%s4 + $0x10] sm:$0xff]
      %v388 = vld [vmem:[%s4 + $0x18] sm:$0xff]
      %390 = vset.pattern.permute.xlu0 0
      %391 = vperm.xlu0 %390, %v385
      %v392 = vpop.permute.xlu0 %391
      %395 = vset.pattern.permute.xlu0 0
      %396 = vperm.xlu0 %395, %v386
      %v397 = vpop.permute.xlu0 %396
      %400 = vset.pattern.permute.xlu0 0
      %401 = vperm.xlu0 %400, %v387
      %v402 = vpop.permute.xlu0 %401
      %405 = vset.pattern.permute.xlu0 0
      %406 = vperm.xlu0 %405, %v388
      %v407 = vpop.permute.xlu0 %406
      %v413 = vunpack.c.l.b16 %v381
      %v414 = vunpack.c.l.b16 %v382
      %v415 = vunpack.c.l.b16 %v383
      %v416 = vunpack.c.l.b16 %v384
      %v417 = vpack.c.b16 %v414, %v413
      %v418 = vpack.c.b16 %v416, %v415
      %419 = vrot.lane.b32.xlu0 %v376, 121
      %v420 = vpop.permute.xlu0 %419
      %421 = vrot.lane.b32.xlu0 %v378, 121
      %v422 = vpop.permute.xlu0 %421
      %423 = vrot.lane.b32.xlu0 %v380, 121
      %v424 = vpop.permute.xlu0 %423
      %vm429 = vcmask 523264
      %v431 = vsel %vm429, %v417, 0
      %v434 = vsel %vm429, %v418, 0
      %436 = vmatprep.subr.bf16.mxu0 0
      %437 = vmatpush1.bf16.msra.mxu0 %v380
      %438 = vmatprep.subr.bf16.mxu0 0
      %439 = vmatpush1.bf16.msra.mxu0 %v420
      %440 = vmatprep.subr.bf16.mxu0 0
      %441 = vmatpush1.bf16.msra.mxu0 %v422
      %442 = vmatprep.subr.bf16.mxu0 0
      %443 = vmatpush1.bf16.msra.mxu0 %v424
      %444 = vmatprep.subr.bf16.mxu0 0
      %445 = vmatpush1.bf16.msra.mxu0 0
      %446 = vmatprep.subr.bf16.mxu0 0
      %447 = vmatpush1.bf16.msra.mxu0 0
      %448 = vmatprep.subr.bf16.mxu0 0
      %449 = vmatpush1.bf16.msra.mxu0 0
      %450 = vmatprep.subr.bf16.mxu0 0
      %451 = vmatpush1.bf16.msra.mxu0 0
      %452 = vmatprep.subr.bf16.mxu0 0
      %453 = vmatpush1.bf16.msra.mxu0 0
      %454 = vmatprep.subr.bf16.mxu0 0
      %455 = vmatpush1.bf16.msra.mxu0 0
      %456 = vmatprep.subr.bf16.mxu0 0
      %457 = vmatpush1.bf16.msra.mxu0 0
      %458 = vmatprep.subr.bf16.mxu0 0
      %459 = vmatpush1.bf16.msra.mxu0 0
      %460 = vmatprep.subr.bf16.mxu0 0
      %461 = vmatpush1.bf16.msra.mxu0 0
      %462 = vmatprep.subr.bf16.mxu0 0
      %463 = vmatpush1.bf16.msra.mxu0 0
      %464 = vmatprep.subr.bf16.mxu0 0
      %465 = vmatpush1.bf16.msra.mxu0 0
      %466 = vmatprep.subr.bf16.mxu0 0
      %467 = vmatpush1.bf16.msra.mxu0 0
      %468 = vmatprep.mubr.bf16.mxu0 0
      %469 = vmatmul.mubr.bf16.gmra.mrb[0].mxu0 %v431
      %v470 = vpop.f32.mrb[0].mxu0
      %v471 = vadd.f32 %v392, %v470
      %v472 = vpop.f32.mrb[0].mxu0
      %v473 = vpop.f32.mrb[0].mxu0
      %v474 = vadd.f32 %v397, %v473
      %v475 = vpop.f32.mrb[0].mxu0
      %476 = vmatprep.mubr.bf16.mxu0 0
      %477 = vmatmul.mubr.bf16.gmra.mrb[0].mxu0 %v434
      %v478 = vpop.f32.mrb[0].mxu0
      %v479 = vadd.f32 %v402, %v478
      %v480 = vpop.f32.mrb[0].mxu0
      %v481 = vpop.f32.mrb[0].mxu0
      %v482 = vadd.f32 %v407, %v481
      %v483 = vpop.f32.mrb[0].mxu0
      %484 = vdwg.mxu0
      %v485 = vmax.f32 %v471, 0.0
      %v486 = vmax.f32 %v474, 0.0
      %v487 = vmax.f32 %v479, 0.0
      %v488 = vmax.f32 %v482, 0.0
      %v489 = vpack.c.bf16 %v486, %v485
      %v490 = vpack.c.bf16 %v488, %v487
      %vm491 = vcmask 293888
      %v493 = vsel %vm491, %v489, 0
      %v495 = vsel %vm491, %v490, 0
      %v498 = vunpack.c.l.b16 %v493
      %v499 = vunpack.c.h.b16 %v493
      %v500 = vunpack.c.l.b16 %v495
      %v501 = vunpack.c.h.b16 %v495
      %v502 = vpack.c.b16 %v498, %v498
      %v503 = vpack.c.b16 %v499, %v499
      %v504 = vpack.c.b16 %v500, %v500
      %v505 = vpack.c.b16 %v501, %v501
      %510 = vst [vmem:[%s251] sm:$0xf] %v502
      %511 = vst [vmem:[%s251 + $0x4] sm:$0xf] %v503
      %512 = vst [vmem:[%s251 + $0x8] sm:$0xf] %v504
      %513 = vst [vmem:[%s251 + $0xc] sm:$0xf] %v505
      %p514 = scmp.lt.s32.totalorder %s17, 1
      %s515 = scalar_select %p514, %s17, 1
      %s516 = smul.addr %s515, 4
      %s517 = smul.addr %s516, 4
      %s518 = scalar_lea.vmem %s6, %s517
      // Predicated region
      $region45: #{forward.20} parent=43 // pred_check
        %p519 = pneg %p166
      $region46: #{forward.20} parent=43 // pred_check_branch
        %521 = sbr.rel (%p519) target = $region48
      $region47: #{forward.20} parent=43 // pred_region
        _
      $region48: #{forward.20} parent=43 // pred_fallthru
        _
    $region44: #{forward.20} parent=5 // pred_fallthru
      _
    %p522 = scmp.le.s32.totalorder 2, %s12
    // Predicated region
    $region49: #{forward.20} parent=5 // pred_check
      %p523 = pneg %p522
    $region50: #{forward.20} parent=5 // pred_check_branch
      %525 = sbr.rel (%p523) target = $region52
    $region51: #{forward.20} parent=5 // pred_region
      %s526 = ssub.s32 %s12, 2
      // Predicated region
      $region53: #{forward.20} parent=51 // pred_check
        %p527 = pneg %p172
      $region54: #{forward.20} parent=51 // pred_check_branch
        %529 = sbr.rel (%p527) target = $region56
      $region55: #{forward.20} parent=51 // pred_region
        %p530 = scmp.lt.s32.totalorder %s18, 1
        %s531 = scalar_select %p530, %s18, 1
        %s532 = smul.addr %s531, 4
        %s533 = smul.addr %s532, 4
        %s534 = scalar_lea.vmem %s6, %s533
      $region56: #{forward.20} parent=51 // pred_fallthru
        _
    $region52: #{forward.20} parent=5 // pred_fallthru
      _
  $region6: #{forward.20} parent=0 // loop_footer
    %s16 = sadd.s32 1, %s12
  $region7: #{forward.20} parent=0 // loop_footer_branch
    %11 = sbr.rel target = $region3
  $region8: #{forward.20} parent=0 // loop_exit
    _

// kernel: forward.21
$region0: #{forward.21}
  #allocation0 [shape = 'u32[]', space=smem, size = 0x4, offset = 0x4, fixed_abs, tag = 'smem constant byte address 0x4 - core index']
  #allocation1 [shape = 'u32[144,128]{1,0:T(1,128)}', space=vmem, size = 0x12000, scoped, tag = 'internal scratch']
  %s0 = inlined_call_operand.vmem [shape: bf16[2,16,128], index: 0, kind: input, shape index: {}]
  %s1 = inlined_call_operand.vmem [shape: bf16[16,144], index: 1, kind: input, shape index: {}]
  %s2 = inlined_call_operand.vmem [shape: f32[16,128], index: 2, kind: input, shape index: {}]
  %s3 = inlined_call_operand.vmem [shape: bf16[32,64], index: 3, kind: input, shape index: {}]
  %s4 = inlined_call_operand.vmem [shape: f32[32,128], index: 4, kind: input, shape index: {}]
  %s5 = inlined_call_operand.vmem [shape: f32[1,100], index: 5, kind: input, shape index: {}]
  %s6 = inlined_call_operand.vmem [shape: bf16[2,32,128], index: 6, kind: output, shape index: {}]
  %s7 = sld [smem:[#allocation0]]
  $region57: #{forward.21} parent=0
    _
  %s9 = ssub.s32 1, %s7
  %s10 = scalar_select 0, %s9, %s7
  loop: start=0, step=1, limit=4
  $region2: #{forward.21} parent=0 // loop_pre_header
    _
  $region3: #{forward.21} parent=0 // loop_header
    %s12 = sphi 0, %s16
    %p13 = scmp.ge.s32.totalorder %s12, 4
    %s22 = sphi 0, %s24
    %s25 = sphi 0, %s22
    %s26 = sphi 0, %s25
    %s42 = sphi 0, %s26
    %s46 = sphi 0, %s46
    %s48 = sphi 0, %s46
    %s49 = sphi 0, %s48
    %s63 = sphi 0, %s49
    %s67 = sphi 0, %s67
    %s69 = sphi 0, %s67
    %s70 = sphi 0, %s69
    %s84 = sphi 0, %s70
    %s88 = sphi 0, %s88
    %s90 = sphi 0, %s88
    %s91 = sphi 0, %s90
    %s105 = sphi 0, %s91
    %s109 = sphi 0, %s109
    %s111 = sphi 0, %s109
    %s112 = sphi 0, %s111
    %s126 = sphi 0, %s112
    %s130 = sphi 0, %s130
    %s132 = sphi 0, %s130
    %s133 = sphi 0, %s132
    %s147 = sphi 0, %s133
    %s153 = sphi 0, %s155
    %s156 = sphi 0, %s153
    %s157 = sphi 0, %s156
    %s173 = sphi 0, %s157
  $region4: #{forward.21} parent=0 // loop_header_branch
    %15 = sbr.rel (%p13) target = $region8
  $region5: #{forward.21} parent=0 // loop_body
    %s17 = ssub.s32 %s12, 1
    %s18 = ssub.s32 %s12, 2
    %s19 = sadd.s32 %s12, 1
    %s20 = ssub.s32 %s12, %s19
    %p21 = scmp.eq.s32.totalorder %s20, 0
    %s23 = sadd.s32 %s22, 1
    %s24 = scalar_select %p21, %s22, %s23
    %p27 = pneg %p21
    %p28 = scmp.eq.s32.totalorder %s12, 1
    %p29 = por %p27, %p28
    %p30 = scmp.ne.s32.totalorder %s22, %s25
    %p31 = scmp.eq.s32.totalorder %s12, 0
    %p32 = por %p30, %p31
    %p33 = scmp.ne.s32.totalorder %s22, %s25
    %p34 = scmp.eq.s32.totalorder %s17, 1
    %p35 = por %p33, %p34
    %p36 = scmp.ne.s32.totalorder %s25, %s26
    %p37 = scmp.eq.s32.totalorder %s17, 0
    %p38 = por %p36, %p37
    %p39 = scmp.ne.s32.totalorder %s25, %s26
    %p40 = scmp.eq.s32.totalorder %s18, 1
    %p41 = por %p39, %p40
    %p43 = scmp.ne.s32.totalorder %s26, %s42
    %p44 = scmp.eq.s32.totalorder %s18, 0
    %p45 = por %p43, %p44
    %s47 = sadd.s32 %s46, 1
    %p50 = scmp.eq.s32.totalorder %s12, 1
    %p51 = scmp.ne.s32.totalorder %s46, %s48
    %p52 = scmp.eq.s32.totalorder %s12, 0
    %p53 = por %p51, %p52
    %p54 = scmp.ne.s32.totalorder %s46, %s48
    %p55 = scmp.eq.s32.totalorder %s17, 1
    %p56 = por %p54, %p55
    %p57 = scmp.ne.s32.totalorder %s48, %s49
    %p58 = scmp.eq.s32.totalorder %s17, 0
    %p59 = por %p57, %p58
    %p60 = scmp.ne.s32.totalorder %s48, %s49
    %p61 = scmp.eq.s32.totalorder %s18, 1
    %p62 = por %p60, %p61
    %p64 = scmp.ne.s32.totalorder %s49, %s63
    %p65 = scmp.eq.s32.totalorder %s18, 0
    %p66 = por %p64, %p65
    %s68 = sadd.s32 %s67, 1
    %p71 = scmp.eq.s32.totalorder %s12, 1
    %p72 = scmp.ne.s32.totalorder %s67, %s69
    %p73 = scmp.eq.s32.totalorder %s12, 0
    %p74 = por %p72, %p73
    %p75 = scmp.ne.s32.totalorder %s67, %s69
    %p76 = scmp.eq.s32.totalorder %s17, 1
    %p77 = por %p75, %p76
    %p78 = scmp.ne.s32.totalorder %s69, %s70
    %p79 = scmp.eq.s32.totalorder %s17, 0
    %p80 = por %p78, %p79
    %p81 = scmp.ne.s32.totalorder %s69, %s70
    %p82 = scmp.eq.s32.totalorder %s18, 1
    %p83 = por %p81, %p82
    %p85 = scmp.ne.s32.totalorder %s70, %s84
    %p86 = scmp.eq.s32.totalorder %s18, 0
    %p87 = por %p85, %p86
    %s89 = sadd.s32 %s88, 1
    %p92 = scmp.eq.s32.totalorder %s12, 1
    %p93 = scmp.ne.s32.totalorder %s88, %s90
    %p94 = scmp.eq.s32.totalorder %s12, 0
    %p95 = por %p93, %p94
    %p96 = scmp.ne.s32.totalorder %s88, %s90
    %p97 = scmp.eq.s32.totalorder %s17, 1
    %p98 = por %p96, %p97
    %p99 = scmp.ne.s32.totalorder %s90, %s91
    %p100 = scmp.eq.s32.totalorder %s17, 0
    %p101 = por %p99, %p100
    %p102 = scmp.ne.s32.totalorder %s90, %s91
    %p103 = scmp.eq.s32.totalorder %s18, 1
    %p104 = por %p102, %p103
    %p106 = scmp.ne.s32.totalorder %s91, %s105
    %p107 = scmp.eq.s32.totalorder %s18, 0
    %p108 = por %p106, %p107
    %s110 = sadd.s32 %s109, 1
    %p113 = scmp.eq.s32.totalorder %s12, 1
    %p114 = scmp.ne.s32.totalorder %s109, %s111
    %p115 = scmp.eq.s32.totalorder %s12, 0
    %p116 = por %p114, %p115
    %p117 = scmp.ne.s32.totalorder %s109, %s111
    %p118 = scmp.eq.s32.totalorder %s17, 1
    %p119 = por %p117, %p118
    %p120 = scmp.ne.s32.totalorder %s111, %s112
    %p121 = scmp.eq.s32.totalorder %s17, 0
    %p122 = por %p120, %p121
    %p123 = scmp.ne.s32.totalorder %s111, %s112
    %p124 = scmp.eq.s32.totalorder %s18, 1
    %p125 = por %p123, %p124
    %p127 = scmp.ne.s32.totalorder %s112, %s126
    %p128 = scmp.eq.s32.totalorder %s18, 0
    %p129 = por %p127, %p128
    %s131 = sadd.s32 %s130, 1
    %p134 = scmp.eq.s32.totalorder %s12, 1
    %p135 = scmp.ne.s32.totalorder %s130, %s132
    %p136 = scmp.eq.s32.totalorder %s12, 0
    %p137 = por %p135, %p136
    %p138 = scmp.ne.s32.totalorder %s130, %s132
    %p139 = scmp.eq.s32.totalorder %s17, 1
    %p140 = por %p138, %p139
    %p141 = scmp.ne.s32.totalorder %s132, %s133
    %p142 = scmp.eq.s32.totalorder %s17, 0
    %p143 = por %p141, %p142
    %p144 = scmp.ne.s32.totalorder %s132, %s133
    %p145 = scmp.eq.s32.totalorder %s18, 1
    %p146 = por %p144, %p145
    %p148 = scmp.ne.s32.totalorder %s133, %s147
    %p149 = scmp.eq.s32.totalorder %s18, 0
    %p150 = por %p148, %p149
    %s151 = ssub.s32 %s12, %s19
    %p152 = scmp.eq.s32.totalorder %s151, 0
    %s154 = sadd.s32 %s153, 1
    %s155 = scalar_select %p152, %s153, %s154
    %p158 = pneg %p152
    %p159 = scmp.eq.s32.totalorder %s12, 1
    %p160 = por %p158, %p159
    %p161 = scmp.ne.s32.totalorder %s153, %s156
    %p162 = scmp.eq.s32.totalorder %s12, 0
    %p163 = por %p161, %p162
    %p164 = scmp.ne.s32.totalorder %s153, %s156
    %p165 = scmp.eq.s32.totalorder %s17, 1
    %p166 = por %p164, %p165
    %p167 = scmp.ne.s32.totalorder %s156, %s157
    %p168 = scmp.eq.s32.totalorder %s17, 0
    %p169 = por %p167, %p168
    %p170 = scmp.ne.s32.totalorder %s156, %s157
    %p171 = scmp.eq.s32.totalorder %s18, 1
    %p172 = por %p170, %p171
    %p174 = scmp.ne.s32.totalorder %s157, %s173
    %p175 = scmp.eq.s32.totalorder %s18, 0
    %p176 = por %p174, %p175
    %p177 = scmp.le.s32.totalorder 1, %s12
    %p178 = scmp.lt.s32.totalorder %s12, 3
    %p179 = pnand %p177, %p178
    %p180 = pneg %p179
    // Predicated region
    $region9: #{forward.21} parent=5 // pred_check
      _
    $region10: #{forward.21} parent=5 // pred_check_branch
      %182 = sbr.rel (%p179) target = $region12
    $region11: #{forward.21} parent=5 // pred_region
      %s183 = ssub.s32 %s12, 1
      // Predicated region
      $region13: #{forward.21} parent=11 // pred_check
        %p184 = pneg %p59
      $region14: #{forward.21} parent=11 // pred_check_branch
        %186 = sbr.rel (%p184) target = $region16
      $region15: #{forward.21} parent=11 // pred_region
        _
      $region16: #{forward.21} parent=11 // pred_fallthru
        _
      // Predicated region
      $region17: #{forward.21} parent=11 // pred_check
        %p187 = pneg %p80
      $region18: #{forward.21} parent=11 // pred_check_branch
        %189 = sbr.rel (%p187) target = $region20
      $region19: #{forward.21} parent=11 // pred_region
        _
      $region20: #{forward.21} parent=11 // pred_fallthru
        _
      // Predicated region
      $region21: #{forward.21} parent=11 // pred_check
        %p190 = pneg %p101
      $region22: #{forward.21} parent=11 // pred_check_branch
        %192 = sbr.rel (%p190) target = $region24
      $region23: #{forward.21} parent=11 // pred_region
        _
      $region24: #{forward.21} parent=11 // pred_fallthru
        _
      // Predicated region
      $region25: #{forward.21} parent=11 // pred_check
        %p193 = pneg %p122
      $region26: #{forward.21} parent=11 // pred_check_branch
        %195 = sbr.rel (%p193) target = $region28
      $region27: #{forward.21} parent=11 // pred_region
        _
      $region28: #{forward.21} parent=11 // pred_fallthru
        _
      // Predicated region
      $region29: #{forward.21} parent=11 // pred_check
        %p196 = pneg %p143
      $region30: #{forward.21} parent=11 // pred_check_branch
        %198 = sbr.rel (%p196) target = $region32
      $region31: #{forward.21} parent=11 // pred_region
        _
      $region32: #{forward.21} parent=11 // pred_fallthru
        _
    $region12: #{forward.21} parent=5 // pred_fallthru
      _
    %p199 = scmp.lt.s32.totalorder %s12, 2
    // Predicated region
    $region33: #{forward.21} parent=5 // pred_check
      %p200 = pneg %p199
    $region34: #{forward.21} parent=5 // pred_check_branch
      %202 = sbr.rel (%p200) target = $region36
    $region35: #{forward.21} parent=5 // pred_region
      // Predicated region
      $region37: #{forward.21} parent=35 // pred_check
        %p203 = pneg %p32
      $region38: #{forward.21} parent=35 // pred_check_branch
        %205 = sbr.rel (%p203) target = $region40
      $region39: #{forward.21} parent=35 // pred_region
        %p206 = scmp.lt.s32.totalorder %s12, 1
        %s207 = scalar_select %p206, %s12, 1
        %s208 = smul.addr %s207, 2
        %s209 = smul.addr %s208, 4
        %s210 = scalar_lea.vmem %s0, %s209
      $region40: #{forward.21} parent=35 // pred_fallthru
        _
    $region36: #{forward.21} parent=5 // pred_fallthru
      _
    %p211 = scmp.le.s32.totalorder 1, %s12
    %p212 = scmp.lt.s32.totalorder %s12, 3
    %p213 = pnand %p211, %p212
    %p214 = pneg %p213
    // Predicated region
    $region41: #{forward.21} parent=5 // pred_check
      _
    $region42: #{forward.21} parent=5 // pred_check_branch
      %216 = sbr.rel (%p213) target = $region44
    $region43: #{forward.21} parent=5 // pred_region
      %s217 = ssub.s32 %s12, 1
      %p218 = scmp.lt.s32.totalorder %s17, 1
      %s219 = scalar_select %p218, %s17, 1
      %s220 = smul.addr %s219, 2
      %s221 = smul.addr %s220, 4
      %s222 = scalar_lea.vmem %s0, %s221
      %p223 = pneg %p38
      %p224 = pneg %p35
      %p225 = pneg %p59
      %p226 = pneg %p56
      %p227 = pneg %p80
      %p228 = pneg %p77
      %p229 = pneg %p101
      %p230 = pneg %p98
      %p231 = pneg %p122
      %p232 = pneg %p119
      %p233 = pneg %p143
      %p234 = pneg %p140
      %p235 = pneg %p169
      %p236 = pneg %p166
      %p237 = scmp.lt.s32.totalorder %s17, 1
      %s238 = scalar_select %p237, %s17, 1
      %s239 = smul.addr %s238, 4
      %s240 = smul.addr %s239, 4
      %s241 = scalar_lea.vmem %s6, %s240
      %p242 = scmp.lt.s32.totalorder %s17, 1
      %s243 = scalar_select %p242, %s17, 1
      %s244 = smul.addr %s243, 2
      %s245 = smul.addr %s244, 4
      %s246 = scalar_lea.vmem %s0, %s245
      %p247 = scmp.lt.s32.totalorder %s17, 1
      %s248 = scalar_select %p247, %s17, 1
      %s249 = smul.addr %s248, 4
      %s250 = smul.addr %s249, 4
      %s251 = scalar_lea.vmem %s6, %s250
      %v253 = vld [vmem:[%s246] sm:$0xf]
      %v254 = vld [vmem:[%s246 + $0x4] sm:$0xf]
      %v257 = vunpack.c.l.b16 %v253
      %v258 = vunpack.c.l.b16 %v254
      %v259 = vpack.c.b16 %v258, %v257
      %261 = vrot.lane.b32.xlu0 %v259, 127
      %v262 = vpop.permute.xlu0 %261
      %264 = vrot.lane.b32.xlu0 %v259, 126
      %v265 = vpop.permute.xlu0 %264
      %267 = vrot.lane.b32.xlu0 %v259, 118
      %v268 = vpop.permute.xlu0 %267
      %270 = vrot.lane.b32.xlu0 %v259, 117
      %v271 = vpop.permute.xlu0 %270
      %273 = vrot.lane.b32.xlu0 %v259, 116
      %v274 = vpop.permute.xlu0 %273
      %276 = vrot.lane.b32.xlu0 %v259, 108
      %v277 = vpop.permute.xlu0 %276
      %279 = vrot.lane.b32.xlu0 %v259, 107
      %v280 = vpop.permute.xlu0 %279
      %282 = vrot.lane.b32.xlu0 %v259, 106
      %v283 = vpop.permute.xlu0 %282
      %v285 = vld [vmem:[%s1] sm:$0xff]
      %v286 = vld [vmem:[%s1 + $0x8] sm:$0xff]
      %v287 = vld [vmem:[%s2] sm:$0xff]
      %v288 = vld [vmem:[%s2 + $0x8] sm:$0xff]
      %290 = vset.pattern.permute.xlu0 0
      %291 = vperm.xlu0 %290, %v287
      %v292 = vpop.permute.xlu0 %291
      %295 = vset.pattern.permute.xlu0 0
      %296 = vperm.xlu0 %295, %v288
      %v297 = vpop.permute.xlu0 %296
      %v301 = vunpack.c.l.b16 %v285
      %v302 = vunpack.c.h.b16 %v285
      %v303 = vunpack.c.l.b16 %v286
      %v304 = vunpack.c.h.b16 %v286
      %v305 = vpack.c.b16 %v303, %v301
      %v306 = vpack.c.b16 %v304, %v302
      %vm308 = vcmask 130048
      %v310 = vsel %vm308, %v306, 0
      %312 = vmatprep.subr.bf16.mxu0 0
      %313 = vmatpush1.bf16.msra.mxu0 %v259
      %314 = vmatprep.subr.bf16.mxu0 0
      %315 = vmatpush1.bf16.msra.mxu0 %v262
      %316 = vmatprep.subr.bf16.mxu0 0
      %317 = vmatpush1.bf16.msra.mxu0 %v265
      %318 = vmatprep.subr.bf16.mxu0 0
      %319 = vmatpush1.bf16.msra.mxu0 %v268
      %320 = vmatprep.subr.bf16.mxu0 0
      %321 = vmatpush1.bf16.msra.mxu0 %v271
      %322 = vmatprep.subr.bf16.mxu0 0
      %323 = vmatpush1.bf16.msra.mxu0 %v274
      %324 = vmatprep.subr.bf16.mxu0 0
      %325 = vmatpush1.bf16.msra.mxu0 %v277
      %326 = vmatprep.subr.bf16.mxu0 0
      %327 = vmatpush1.bf16.msra.mxu0 %v280
      %328 = vmatprep.subr.bf16.mxu0 0
      %329 = vmatpush1.bf16.msra.mxu0 %v283
      %330 = vmatprep.subr.bf16.mxu0 0
      %331 = vmatpush1.bf16.msra.mxu0 0
      %332 = vmatprep.subr.bf16.mxu0 0
      %333 = vmatpush1.bf16.msra.mxu0 0
      %334 = vmatprep.subr.bf16.mxu0 0
      %335 = vmatpush1.bf16.msra.mxu0 0
      %336 = vmatprep.subr.bf16.mxu0 0
      %337 = vmatpush1.bf16.msra.mxu0 0
      %338 = vmatprep.subr.bf16.mxu0 0
      %339 = vmatpush1.bf16.msra.mxu0 0
      %340 = vmatprep.subr.bf16.mxu0 0
      %341 = vmatpush1.bf16.msra.mxu0 0
      %342 = vmatprep.subr.bf16.mxu0 0
      %343 = vmatpush1.bf16.msra.mxu0 0
      %344 = vmatprep.mubr.bf16.mxu0 %v310
      %345 = vmatmul.mubr.bf16.gmra.mrb[0].mxu0 %v305
      %v346 = vpop.f32.mrb[0].mxu0
      %v347 = vadd.f32 %v292, %v346
      %v348 = vpop.f32.mrb[0].mxu0
      %v349 = vpop.f32.mrb[0].mxu0
      %v350 = vadd.f32 %v297, %v349
      %v351 = vpop.f32.mrb[0].mxu0
      %352 = vdwg.mxu0
      %v353 = vmax.f32 %v347, 0.0
      %v354 = vmax.f32 %v350, 0.0
      %v355 = vld [vmem:[%s5] sm:$0x1]
      %v357 = vlaneseq
      %v358 = vshrl.u32 %v357, 7
      %v359 = vsub.s32 0, %v358
      %v360 = vrot.slane %v355, %v359
      %v362 = vmul.f32 %v353, %v360
      %v363 = vmul.f32 %v354, %v360
      %v364 = vpack.c.bf16 %v363, %v362
      %366 = vrot.lane.b32.xlu0 %v364, 11
      %v367 = vpop.permute.xlu0 %366
      %vm368 = vcmask 89088
      %v371 = vsel %vm368, 0, %v367
      %vm372 = vcmask 908288
      %v373 = vsel %vm372, %v371, 0
      %375 = vrot.lane.b32.xlu0 %v373, 127
      %v376 = vpop.permute.xlu0 %375
      %377 = vrot.lane.b32.xlu0 %v373, 118
      %v378 = vpop.permute.xlu0 %377
      %379 = vrot.lane.b32.xlu0 %v373, 117
      %v380 = vpop.permute.xlu0 %379
      %v381 = vld [vmem:[%s3] sm:$0xf]
      %v382 = vld [vmem:[%s3 + $0x4] sm:$0xf]
      %v383 = vld [vmem:[%s3 + $0x8] sm:$0xf]
      %v384 = vld [vmem:[%s3 + $0xc] sm:$0xf]
      %v385 = vld [vmem:[%s4] sm:$0xff]
      %v386 = vld [vmem:[%s4 + $0x8] sm:$0xff]
      %v387 = vld [vmem:[%s4 + $0x10] sm:$0xff]
      %v388 = vld [vmem:[%s4 + $0x18] sm:$0xff]
      %390 = vset.pattern.permute.xlu0 0
      %391 = vperm.xlu0 %390, %v385
      %v392 = vpop.permute.xlu0 %391
      %395 = vset.pattern.permute.xlu0 0
      %396 = vperm.xlu0 %395, %v386
      %v397 = vpop.permute.xlu0 %396
      %400 = vset.pattern.permute.xlu0 0
      %401 = vperm.xlu0 %400, %v387
      %v402 = vpop.permute.xlu0 %401
      %405 = vset.pattern.permute.xlu0 0
      %406 = vperm.xlu0 %405, %v388
      %v407 = vpop.permute.xlu0 %406
      %v413 = vunpack.c.l.b16 %v381
      %v414 = vunpack.c.l.b16 %v382
      %v415 = vunpack.c.l.b16 %v383
      %v416 = vunpack.c.l.b16 %v384
      %v417 = vpack.c.b16 %v414, %v413
      %v418 = vpack.c.b16 %v416, %v415
      %419 = vrot.lane.b32.xlu0 %v376, 117
      %v420 = vpop.permute.xlu0 %419
      %421 = vrot.lane.b32.xlu0 %v378, 117
      %v422 = vpop.permute.xlu0 %421
      %423 = vrot.lane.b32.xlu0 %v380, 117
      %v424 = vpop.permute.xlu0 %423
      %vm429 = vcmask 523264
      %v431 = vsel %vm429, %v417, 0
      %v434 = vsel %vm429, %v418, 0
      %436 = vmatprep.subr.bf16.mxu0 0
      %437 = vmatpush1.bf16.msra.mxu0 %v380
      %438 = vmatprep.subr.bf16.mxu0 0
      %439 = vmatpush1.bf16.msra.mxu0 %v420
      %440 = vmatprep.subr.bf16.mxu0 0
      %441 = vmatpush1.bf16.msra.mxu0 %v422
      %442 = vmatprep.subr.bf16.mxu0 0
      %443 = vmatpush1.bf16.msra.mxu0 %v424
      %444 = vmatprep.subr.bf16.mxu0 0
      %445 = vmatpush1.bf16.msra.mxu0 0
      %446 = vmatprep.subr.bf16.mxu0 0
      %447 = vmatpush1.bf16.msra.mxu0 0
      %448 = vmatprep.subr.bf16.mxu0 0
      %449 = vmatpush1.bf16.msra.mxu0 0
      %450 = vmatprep.subr.bf16.mxu0 0
      %451 = vmatpush1.bf16.msra.mxu0 0
      %452 = vmatprep.subr.bf16.mxu0 0
      %453 = vmatpush1.bf16.msra.mxu0 0
      %454 = vmatprep.subr.bf16.mxu0 0
      %455 = vmatpush1.bf16.msra.mxu0 0
      %456 = vmatprep.subr.bf16.mxu0 0
      %457 = vmatpush1.bf16.msra.mxu0 0
      %458 = vmatprep.subr.bf16.mxu0 0
      %459 = vmatpush1.bf16.msra.mxu0 0
      %460 = vmatprep.subr.bf16.mxu0 0
      %461 = vmatpush1.bf16.msra.mxu0 0
      %462 = vmatprep.subr.bf16.mxu0 0
      %463 = vmatpush1.bf16.msra.mxu0 0
      %464 = vmatprep.subr.bf16.mxu0 0
      %465 = vmatpush1.bf16.msra.mxu0 0
      %466 = vmatprep.subr.bf16.mxu0 0
      %467 = vmatpush1.bf16.msra.mxu0 0
      %468 = vmatprep.mubr.bf16.mxu0 0
      %469 = vmatmul.mubr.bf16.gmra.mrb[0].mxu0 %v431
      %v470 = vpop.f32.mrb[0].mxu0
      %v471 = vadd.f32 %v392, %v470
      %v472 = vpop.f32.mrb[0].mxu0
      %v473 = vpop.f32.mrb[0].mxu0
      %v474 = vadd.f32 %v397, %v473
      %v475 = vpop.f32.mrb[0].mxu0
      %476 = vmatprep.mubr.bf16.mxu0 0
      %477 = vmatmul.mubr.bf16.gmra.mrb[0].mxu0 %v434
      %v478 = vpop.f32.mrb[0].mxu0
      %v479 = vadd.f32 %v402, %v478
      %v480 = vpop.f32.mrb[0].mxu0
      %v481 = vpop.f32.mrb[0].mxu0
      %v482 = vadd.f32 %v407, %v481
      %v483 = vpop.f32.mrb[0].mxu0
      %484 = vdwg.mxu0
      %v485 = vmax.f32 %v471, 0.0
      %v486 = vmax.f32 %v474, 0.0
      %v487 = vmax.f32 %v479, 0.0
      %v488 = vmax.f32 %v482, 0.0
      %v489 = vpack.c.bf16 %v486, %v485
      %v490 = vpack.c.bf16 %v488, %v487
      %vm491 = vcmask 818176
      %v493 = vsel %vm491, %v489, 0
      %v495 = vsel %vm491, %v490, 0
      %v498 = vunpack.c.l.b16 %v493
      %v499 = vunpack.c.h.b16 %v493
      %v500 = vunpack.c.l.b16 %v495
      %v501 = vunpack.c.h.b16 %v495
      %v502 = vpack.c.b16 %v498, %v498
      %v503 = vpack.c.b16 %v499, %v499
      %v504 = vpack.c.b16 %v500, %v500
      %v505 = vpack.c.b16 %v501, %v501
      %510 = vst [vmem:[%s251] sm:$0xf] %v502
      %511 = vst [vmem:[%s251 + $0x4] sm:$0xf] %v503
      %512 = vst [vmem:[%s251 + $0x8] sm:$0xf] %v504
      %513 = vst [vmem:[%s251 + $0xc] sm:$0xf] %v505
      %p514 = scmp.lt.s32.totalorder %s17, 1
      %s515 = scalar_select %p514, %s17, 1
      %s516 = smul.addr %s515, 4
      %s517 = smul.addr %s516, 4
      %s518 = scalar_lea.vmem %s6, %s517
      // Predicated region
      $region45: #{forward.21} parent=43 // pred_check
        %p519 = pneg %p166
      $region46: #{forward.21} parent=43 // pred_check_branch
        %521 = sbr.rel (%p519) target = $region48
      $region47: #{forward.21} parent=43 // pred_region
        _
      $region48: #{forward.21} parent=43 // pred_fallthru
        _
    $region44: #{forward.21} parent=5 // pred_fallthru
      _
    %p522 = scmp.le.s32.totalorder 2, %s12
    // Predicated region
    $region49: #{forward.21} parent=5 // pred_check
      %p523 = pneg %p522
    $region50: #{forward.21} parent=5 // pred_check_branch
      %525 = sbr.rel (%p523) target = $region52
    $region51: #{forward.21} parent=5 // pred_region
      %s526 = ssub.s32 %s12, 2
      // Predicated region
      $region53: #{forward.21} parent=51 // pred_check
        %p527 = pneg %p172
      $region54: #{forward.21} parent=51 // pred_check_branch
        %529 = sbr.rel (%p527) target = $region56
      $region55: #{forward.21} parent=51 // pred_region
        %p530 = scmp.lt.s32.totalorder %s18, 1
        %s531 = scalar_select %p530, %s18, 1
        %s532 = smul.addr %s531, 4
        %s533 = smul.addr %s532, 4
        %s534 = scalar_lea.vmem %s6, %s533
      $region56: #{forward.21} parent=51 // pred_fallthru
        _
    $region52: #{forward.21} parent=5 // pred_fallthru
      _
  $region6: #{forward.21} parent=0 // loop_footer
    %s16 = sadd.s32 1, %s12
  $region7: #{forward.21} parent=0 // loop_footer_branch
    %11 = sbr.rel target = $region3
  $region8: #{forward.21} parent=0 // loop_exit
    _

// kernel: tile.48
$region0: #{tile.48}
  #allocation0 [shape = 's32[1]{0}', space=sflag, size = 0x4, scoped, tag = 'scoped memory for tile.48']
  %s0 = inlined_call_operand.vmem [shape: f32[4], index: 0, kind: input, shape index: {}]
  %s1 = inlined_call_operand.vmem [shape: f32[4,4], index: 1, kind: output, shape index: {}]
  // Predicated region
  $region2: #{tile.48} parent=0 // pred_check
    _
  $region3: #{tile.48} parent=0 // pred_check_branch
    %3 = sbr.rel (0) target = $region5
  $region4: #{tile.48} parent=0 // pred_region
    _
  $region5: #{tile.48} parent=0 // pred_fallthru
    _
  %v4 = vld [vmem:[%s0] ss:$0 sm:$0xff]
  %5 = vst [vmem:[%s1] sm:$0xf] %v4

// kernel: forward.22
$region0: #{forward.22}
  #allocation0 [shape = 'u32[]', space=smem, size = 0x4, offset = 0x4, fixed_abs, tag = 'smem constant byte address 0x4 - core index']
  #allocation1 [shape = 'u32[144,128]{1,0:T(1,128)}', space=vmem, size = 0x12000, scoped, tag = 'internal scratch']
  %s0 = inlined_call_operand.vmem [shape: bf16[2,16,384], index: 0, kind: input, shape index: {}]
  %s1 = inlined_call_operand.vmem [shape: bf16[16,144], index: 1, kind: input, shape index: {}]
  %s2 = inlined_call_operand.vmem [shape: f32[16,128], index: 2, kind: input, shape index: {}]
  %s3 = inlined_call_operand.vmem [shape: bf16[16,64], index: 3, kind: input, shape index: {}]
  %s4 = inlined_call_operand.vmem [shape: f32[16,128], index: 4, kind: input, shape index: {}]
  %s5 = inlined_call_operand.vmem [shape: f32[1,324], index: 5, kind: input, shape index: {}]
  %s6 = inlined_call_operand.vmem [shape: bf16[2,16,384], index: 6, kind: output, shape index: {}]
  %s7 = sld [smem:[#allocation0]]
  $region57: #{forward.22} parent=0
    _
  %s9 = ssub.s32 1, %s7
  %s10 = scalar_select 0, %s9, %s7
  loop: start=0, step=1, limit=4
  $region2: #{forward.22} parent=0 // loop_pre_header
    _
  $region3: #{forward.22} parent=0 // loop_header
    %s12 = sphi 0, %s16
    %p13 = scmp.ge.s32.totalorder %s12, 4
    %s22 = sphi 0, %s24
    %s25 = sphi 0, %s22
    %s26 = sphi 0, %s25
    %s42 = sphi 0, %s26
    %s46 = sphi 0, %s46
    %s48 = sphi 0, %s46
    %s49 = sphi 0, %s48
    %s63 = sphi 0, %s49
    %s67 = sphi 0, %s67
    %s69 = sphi 0, %s67
    %s70 = sphi 0, %s69
    %s84 = sphi 0, %s70
    %s88 = sphi 0, %s88
    %s90 = sphi 0, %s88
    %s91 = sphi 0, %s90
    %s105 = sphi 0, %s91
    %s109 = sphi 0, %s109
    %s111 = sphi 0, %s109
    %s112 = sphi 0, %s111
    %s126 = sphi 0, %s112
    %s130 = sphi 0, %s130
    %s132 = sphi 0, %s130
    %s133 = sphi 0, %s132
    %s147 = sphi 0, %s133
    %s153 = sphi 0, %s155
    %s156 = sphi 0, %s153
    %s157 = sphi 0, %s156
    %s173 = sphi 0, %s157
  $region4: #{forward.22} parent=0 // loop_header_branch
    %15 = sbr.rel (%p13) target = $region8
  $region5: #{forward.22} parent=0 // loop_body
    %s17 = ssub.s32 %s12, 1
    %s18 = ssub.s32 %s12, 2
    %s19 = sadd.s32 %s12, 1
    %s20 = ssub.s32 %s12, %s19
    %p21 = scmp.eq.s32.totalorder %s20, 0
    %s23 = sadd.s32 %s22, 1
    %s24 = scalar_select %p21, %s22, %s23
    %p27 = pneg %p21
    %p28 = scmp.eq.s32.totalorder %s12, 1
    %p29 = por %p27, %p28
    %p30 = scmp.ne.s32.totalorder %s22, %s25
    %p31 = scmp.eq.s32.totalorder %s12, 0
    %p32 = por %p30, %p31
    %p33 = scmp.ne.s32.totalorder %s22, %s25
    %p34 = scmp.eq.s32.totalorder %s17, 1
    %p35 = por %p33, %p34
    %p36 = scmp.ne.s32.totalorder %s25, %s26
    %p37 = scmp.eq.s32.totalorder %s17, 0
    %p38 = por %p36, %p37
    %p39 = scmp.ne.s32.totalorder %s25, %s26
    %p40 = scmp.eq.s32.totalorder %s18, 1
    %p41 = por %p39, %p40
    %p43 = scmp.ne.s32.totalorder %s26, %s42
    %p44 = scmp.eq.s32.totalorder %s18, 0
    %p45 = por %p43, %p44
    %s47 = sadd.s32 %s46, 1
    %p50 = scmp.eq.s32.totalorder %s12, 1
    %p51 = scmp.ne.s32.totalorder %s46, %s48
    %p52 = scmp.eq.s32.totalorder %s12, 0
    %p53 = por %p51, %p52
    %p54 = scmp.ne.s32.totalorder %s46, %s48
    %p55 = scmp.eq.s32.totalorder %s17, 1
    %p56 = por %p54, %p55
    %p57 = scmp.ne.s32.totalorder %s48, %s49
    %p58 = scmp.eq.s32.totalorder %s17, 0
    %p59 = por %p57, %p58
    %p60 = scmp.ne.s32.totalorder %s48, %s49
    %p61 = scmp.eq.s32.totalorder %s18, 1
    %p62 = por %p60, %p61
    %p64 = scmp.ne.s32.totalorder %s49, %s63
    %p65 = scmp.eq.s32.totalorder %s18, 0
    %p66 = por %p64, %p65
    %s68 = sadd.s32 %s67, 1
    %p71 = scmp.eq.s32.totalorder %s12, 1
    %p72 = scmp.ne.s32.totalorder %s67, %s69
    %p73 = scmp.eq.s32.totalorder %s12, 0
    %p74 = por %p72, %p73
    %p75 = scmp.ne.s32.totalorder %s67, %s69
    %p76 = scmp.eq.s32.totalorder %s17, 1
    %p77 = por %p75, %p76
    %p78 = scmp.ne.s32.totalorder %s69, %s70
    %p79 = scmp.eq.s32.totalorder %s17, 0
    %p80 = por %p78, %p79
    %p81 = scmp.ne.s32.totalorder %s69, %s70
    %p82 = scmp.eq.s32.totalorder %s18, 1
    %p83 = por %p81, %p82
    %p85 = scmp.ne.s32.totalorder %s70, %s84
    %p86 = scmp.eq.s32.totalorder %s18, 0
    %p87 = por %p85, %p86
    %s89 = sadd.s32 %s88, 1
    %p92 = scmp.eq.s32.totalorder %s12, 1
    %p93 = scmp.ne.s32.totalorder %s88, %s90
    %p94 = scmp.eq.s32.totalorder %s12, 0
    %p95 = por %p93, %p94
    %p96 = scmp.ne.s32.totalorder %s88, %s90
    %p97 = scmp.eq.s32.totalorder %s17, 1
    %p98 = por %p96, %p97
    %p99 = scmp.ne.s32.totalorder %s90, %s91
    %p100 = scmp.eq.s32.totalorder %s17, 0
    %p101 = por %p99, %p100
    %p102 = scmp.ne.s32.totalorder %s90, %s91
    %p103 = scmp.eq.s32.totalorder %s18, 1
    %p104 = por %p102, %p103
    %p106 = scmp.ne.s32.totalorder %s91, %s105
    %p107 = scmp.eq.s32.totalorder %s18, 0
    %p108 = por %p106, %p107
    %s110 = sadd.s32 %s109, 1
    %p113 = scmp.eq.s32.totalorder %s12, 1
    %p114 = scmp.ne.s32.totalorder %s109, %s111
    %p115 = scmp.eq.s32.totalorder %s12, 0
    %p116 = por %p114, %p115
    %p117 = scmp.ne.s32.totalorder %s109, %s111
    %p118 = scmp.eq.s32.totalorder %s17, 1
    %p119 = por %p117, %p118
    %p120 = scmp.ne.s32.totalorder %s111, %s112
    %p121 = scmp.eq.s32.totalorder %s17, 0
    %p122 = por %p120, %p121
    %p123 = scmp.ne.s32.totalorder %s111, %s112
    %p124 = scmp.eq.s32.totalorder %s18, 1
    %p125 = por %p123, %p124
    %p127 = scmp.ne.s32.totalorder %s112, %s126
    %p128 = scmp.eq.s32.totalorder %s18, 0
    %p129 = por %p127, %p128
    %s131 = sadd.s32 %s130, 1
    %p134 = scmp.eq.s32.totalorder %s12, 1
    %p135 = scmp.ne.s32.totalorder %s130, %s132
    %p136 = scmp.eq.s32.totalorder %s12, 0
    %p137 = por %p135, %p136
    %p138 = scmp.ne.s32.totalorder %s130, %s132
    %p139 = scmp.eq.s32.totalorder %s17, 1
    %p140 = por %p138, %p139
    %p141 = scmp.ne.s32.totalorder %s132, %s133
    %p142 = scmp.eq.s32.totalorder %s17, 0
    %p143 = por %p141, %p142
    %p144 = scmp.ne.s32.totalorder %s132, %s133
    %p145 = scmp.eq.s32.totalorder %s18, 1
    %p146 = por %p144, %p145
    %p148 = scmp.ne.s32.totalorder %s133, %s147
    %p149 = scmp.eq.s32.totalorder %s18, 0
    %p150 = por %p148, %p149
    %s151 = ssub.s32 %s12, %s19
    %p152 = scmp.eq.s32.totalorder %s151, 0
    %s154 = sadd.s32 %s153, 1
    %s155 = scalar_select %p152, %s153, %s154
    %p158 = pneg %p152
    %p159 = scmp.eq.s32.totalorder %s12, 1
    %p160 = por %p158, %p159
    %p161 = scmp.ne.s32.totalorder %s153, %s156
    %p162 = scmp.eq.s32.totalorder %s12, 0
    %p163 = por %p161, %p162
    %p164 = scmp.ne.s32.totalorder %s153, %s156
    %p165 = scmp.eq.s32.totalorder %s17, 1
    %p166 = por %p164, %p165
    %p167 = scmp.ne.s32.totalorder %s156, %s157
    %p168 = scmp.eq.s32.totalorder %s17, 0
    %p169 = por %p167, %p168
    %p170 = scmp.ne.s32.totalorder %s156, %s157
    %p171 = scmp.eq.s32.totalorder %s18, 1
    %p172 = por %p170, %p171
    %p174 = scmp.ne.s32.totalorder %s157, %s173
    %p175 = scmp.eq.s32.totalorder %s18, 0
    %p176 = por %p174, %p175
    %p177 = scmp.le.s32.totalorder 1, %s12
    %p178 = scmp.lt.s32.totalorder %s12, 3
    %p179 = pnand %p177, %p178
    %p180 = pneg %p179
    // Predicated region
    $region9: #{forward.22} parent=5 // pred_check
      _
    $region10: #{forward.22} parent=5 // pred_check_branch
      %182 = sbr.rel (%p179) target = $region12
    $region11: #{forward.22} parent=5 // pred_region
      %s183 = ssub.s32 %s12, 1
      // Predicated region
      $region13: #{forward.22} parent=11 // pred_check
        %p184 = pneg %p59
      $region14: #{forward.22} parent=11 // pred_check_branch
        %186 = sbr.rel (%p184) target = $region16
      $region15: #{forward.22} parent=11 // pred_region
        _
      $region16: #{forward.22} parent=11 // pred_fallthru
        _
      // Predicated region
      $region17: #{forward.22} parent=11 // pred_check
        %p187 = pneg %p80
      $region18: #{forward.22} parent=11 // pred_check_branch
        %189 = sbr.rel (%p187) target = $region20
      $region19: #{forward.22} parent=11 // pred_region
        _
      $region20: #{forward.22} parent=11 // pred_fallthru
        _
      // Predicated region
      $region21: #{forward.22} parent=11 // pred_check
        %p190 = pneg %p101
      $region22: #{forward.22} parent=11 // pred_check_branch
        %192 = sbr.rel (%p190) target = $region24
      $region23: #{forward.22} parent=11 // pred_region
        _
      $region24: #{forward.22} parent=11 // pred_fallthru
        _
      // Predicated region
      $region25: #{forward.22} parent=11 // pred_check
        %p193 = pneg %p122
      $region26: #{forward.22} parent=11 // pred_check_branch
        %195 = sbr.rel (%p193) target = $region28
      $region27: #{forward.22} parent=11 // pred_region
        _
      $region28: #{forward.22} parent=11 // pred_fallthru
        _
      // Predicated region
      $region29: #{forward.22} parent=11 // pred_check
        %p196 = pneg %p143
      $region30: #{forward.22} parent=11 // pred_check_branch
        %198 = sbr.rel (%p196) target = $region32
      $region31: #{forward.22} parent=11 // pred_region
        _
      $region32: #{forward.22} parent=11 // pred_fallthru
        _
    $region12: #{forward.22} parent=5 // pred_fallthru
      _
    %p199 = scmp.lt.s32.totalorder %s12, 2
    // Predicated region
    $region33: #{forward.22} parent=5 // pred_check
      %p200 = pneg %p199
    $region34: #{forward.22} parent=5 // pred_check_branch
      %202 = sbr.rel (%p200) target = $region36
    $region35: #{forward.22} parent=5 // pred_region
      // Predicated region
      $region37: #{forward.22} parent=35 // pred_check
        %p203 = pneg %p32
      $region38: #{forward.22} parent=35 // pred_check_branch
        %205 = sbr.rel (%p203) target = $region40
      $region39: #{forward.22} parent=35 // pred_region
        %p206 = scmp.lt.s32.totalorder %s12, 1
        %s207 = scalar_select %p206, %s12, 1
        %s208 = smul.addr %s207, 6
        %s209 = smul.addr %s208, 4
        %s210 = scalar_lea.vmem %s0, %s209
      $region40: #{forward.22} parent=35 // pred_fallthru
        _
    $region36: #{forward.22} parent=5 // pred_fallthru
      _
    %p211 = scmp.le.s32.totalorder 1, %s12
    %p212 = scmp.lt.s32.totalorder %s12, 3
    %p213 = pnand %p211, %p212
    %p214 = pneg %p213
    // Predicated region
    $region41: #{forward.22} parent=5 // pred_check
      _
    $region42: #{forward.22} parent=5 // pred_check_branch
      %216 = sbr.rel (%p213) target = $region44
    $region43: #{forward.22} parent=5 // pred_region
      %s217 = ssub.s32 %s12, 1
      %p218 = scmp.lt.s32.totalorder %s17, 1
      %s219 = scalar_select %p218, %s17, 1
      %s220 = smul.addr %s219, 6
      %s221 = smul.addr %s220, 4
      %s222 = scalar_lea.vmem %s0, %s221
      %p223 = pneg %p38
      %p224 = pneg %p35
      %p225 = pneg %p59
      %p226 = pneg %p56
      %p227 = pneg %p80
      %p228 = pneg %p77
      %p229 = pneg %p101
      %p230 = pneg %p98
      %p231 = pneg %p122
      %p232 = pneg %p119
      %p233 = pneg %p143
      %p234 = pneg %p140
      %p235 = pneg %p169
      %p236 = pneg %p166
      %p237 = scmp.lt.s32.totalorder %s17, 1
      %s238 = scalar_select %p237, %s17, 1
      %s239 = smul.addr %s238, 6
      %s240 = smul.addr %s239, 4
      %s241 = scalar_lea.vmem %s6, %s240
      %p242 = scmp.lt.s32.totalorder %s17, 1
      %s243 = scalar_select %p242, %s17, 1
      %s244 = smul.addr %s243, 6
      %s245 = smul.addr %s244, 4
      %s246 = scalar_lea.vmem %s0, %s245
      %p247 = scmp.lt.s32.totalorder %s17, 1
      %s248 = scalar_select %p247, %s17, 1
      %s249 = smul.addr %s248, 6
      %s250 = smul.addr %s249, 4
      %s251 = scalar_lea.vmem %s6, %s250
      %v253 = vld [vmem:[%s246] sm:$0xff]
      %v254 = vld [vmem:[%s246 + $0x8] sm:$0xf]
      %v255 = vld [vmem:[%s246 + $0xc] sm:$0xff]
      %v256 = vld [vmem:[%s246 + $0x14] sm:$0xf]
      %v261 = vunpack.c.l.b16 %v253
      %v262 = vunpack.c.h.b16 %v253
      %v263 = vunpack.c.l.b16 %v254
      %v264 = vunpack.c.l.b16 %v255
      %v265 = vunpack.c.h.b16 %v255
      %v266 = vunpack.c.l.b16 %v256
      %v267 = vpack.c.b16 %v264, %v261
      %v268 = vpack.c.b16 %v265, %v262
      %v269 = vpack.c.b16 %v266, %v263
      %273 = vrot.lane.b32.xlu0 %v267, 127
      %v274 = vpop.permute.xlu0 %273
      %275 = vrot.lane.b32.xlu0 %v268, 127
      %v276 = vpop.permute.xlu0 %275
      %277 = vrot.lane.b32.xlu0 %v269, 127
      %v278 = vpop.permute.xlu0 %277
      %vm279 = vcmask 1039360
      %v280 = vsel %vm279, %v274, %v276
      %v281 = vsel %vm279, %v276, %v278
      %285 = vrot.lane.b32.xlu0 %v267, 126
      %v286 = vpop.permute.xlu0 %285
      %287 = vrot.lane.b32.xlu0 %v268, 126
      %v288 = vpop.permute.xlu0 %287
      %289 = vrot.lane.b32.xlu0 %v269, 126
      %v290 = vpop.permute.xlu0 %289
      %vm291 = vcmask 1031168
      %v292 = vsel %vm291, %v286, %v288
      %v293 = vsel %vm291, %v288, %v290
      %297 = vrot.lane.b32.xlu0 %v267, 110
      %v298 = vpop.permute.xlu0 %297
      %299 = vrot.lane.b32.xlu0 %v268, 110
      %v300 = vpop.permute.xlu0 %299
      %301 = vrot.lane.b32.xlu0 %v269, 110
      %v302 = vpop.permute.xlu0 %301
      %vm303 = vcmask 900096
      %v304 = vsel %vm303, %v298, %v300
      %v305 = vsel %vm303, %v300, %v302
      %309 = vrot.lane.b32.xlu0 %v267, 109
      %v310 = vpop.permute.xlu0 %309
      %311 = vrot.lane.b32.xlu0 %v268, 109
      %v312 = vpop.permute.xlu0 %311
      %313 = vrot.lane.b32.xlu0 %v269, 109
      %v314 = vpop.permute.xlu0 %313
      %vm315 = vcmask 891904
      %v316 = vsel %vm315, %v310, %v312
      %v317 = vsel %vm315, %v312, %v314
      %321 = vrot.lane.b32.xlu0 %v267, 108
      %v322 = vpop.permute.xlu0 %321
      %323 = vrot.lane.b32.xlu0 %v268, 108
      %v324 = vpop.permute.xlu0 %323
      %325 = vrot.lane.b32.xlu0 %v269, 108
      %v326 = vpop.permute.xlu0 %325
      %vm327 = vcmask 883712
      %v328 = vsel %vm327, %v322, %v324
      %v329 = vsel %vm327, %v324, %v326
      %333 = vrot.lane.b32.xlu0 %v267, 92
      %v334 = vpop.permute.xlu0 %333
      %335 = vrot.lane.b32.xlu0 %v268, 92
      %v336 = vpop.permute.xlu0 %335
      %337 = vrot.lane.b32.xlu0 %v269, 92
      %v338 = vpop.permute.xlu0 %337
      %vm339 = vcmask 752640
      %v340 = vsel %vm339, %v334, %v336
      %v341 = vsel %vm339, %v336, %v338
      %345 = vrot.lane.b32.xlu0 %v267, 91
      %v346 = vpop.permute.xlu0 %345
      %347 = vrot.lane.b32.xlu0 %v268, 91
      %v348 = vpop.permute.xlu0 %347
      %349 = vrot.lane.b32.xlu0 %v269, 91
      %v350 = vpop.permute.xlu0 %349
      %vm351 = vcmask 744448
      %v352 = vsel %vm351, %v346, %v348
      %v353 = vsel %vm351, %v348, %v350
      %357 = vrot.lane.b32.xlu0 %v267, 90
      %v358 = vpop.permute.xlu0 %357
      %359 = vrot.lane.b32.xlu0 %v268, 90
      %v360 = vpop.permute.xlu0 %359
      %361 = vrot.lane.b32.xlu0 %v269, 90
      %v362 = vpop.permute.xlu0 %361
      %vm363 = vcmask 736256
      %v364 = vsel %vm363, %v358, %v360
      %v365 = vsel %vm363, %v360, %v362
      %v369 = vld [vmem:[%s1] sm:$0xff]
      %v370 = vld [vmem:[%s1 + $0x8] sm:$0xff]
      %v371 = vld [vmem:[%s2] sm:$0xff]
      %v372 = vld [vmem:[%s2 + $0x8] sm:$0xff]
      %374 = vset.pattern.permute.xlu0 0
      %375 = vperm.xlu0 %374, %v371
      %v376 = vpop.permute.xlu0 %375
      %379 = vset.pattern.permute.xlu0 0
      %380 = vperm.xlu0 %379, %v372
      %v381 = vpop.permute.xlu0 %380
      %v385 = vunpack.c.l.b16 %v369
      %v386 = vunpack.c.h.b16 %v369
      %v387 = vunpack.c.l.b16 %v370
      %v388 = vunpack.c.h.b16 %v370
      %v389 = vpack.c.b16 %v387, %v385
      %v390 = vpack.c.b16 %v388, %v386
      %vm392 = vcmask 130048
      %v394 = vsel %vm392, %v390, 0
      %396 = vmatprep.subr.bf16.mxu0 %v268
      %397 = vmatpush1.bf16.msra.mxu0 %v267
      %398 = vmatprep.subr.bf16.mxu0 %v281
      %399 = vmatpush1.bf16.msra.mxu0 %v280
      %400 = vmatprep.subr.bf16.mxu0 %v293
      %401 = vmatpush1.bf16.msra.mxu0 %v292
      %402 = vmatprep.subr.bf16.mxu0 %v305
      %403 = vmatpush1.bf16.msra.mxu0 %v304
      %404 = vmatprep.subr.bf16.mxu0 %v317
      %405 = vmatpush1.bf16.msra.mxu0 %v316
      %406 = vmatprep.subr.bf16.mxu0 %v329
      %407 = vmatpush1.bf16.msra.mxu0 %v328
      %408 = vmatprep.subr.bf16.mxu0 %v341
      %409 = vmatpush1.bf16.msra.mxu0 %v340
      %410 = vmatprep.subr.bf16.mxu0 %v353
      %411 = vmatpush1.bf16.msra.mxu0 %v352
      %412 = vmatprep.subr.bf16.mxu0 %v365
      %413 = vmatpush1.bf16.msra.mxu0 %v364
      %414 = vmatprep.subr.bf16.mxu0 0
      %415 = vmatpush1.bf16.msra.mxu0 0
      %416 = vmatprep.subr.bf16.mxu0 0
      %417 = vmatpush1.bf16.msra.mxu0 0
      %418 = vmatprep.subr.bf16.mxu0 0
      %419 = vmatpush1.bf16.msra.mxu0 0
      %420 = vmatprep.subr.bf16.mxu0 0
      %421 = vmatpush1.bf16.msra.mxu0 0
      %422 = vmatprep.subr.bf16.mxu0 0
      %423 = vmatpush1.bf16.msra.mxu0 0
      %424 = vmatprep.subr.bf16.mxu0 0
      %425 = vmatpush1.bf16.msra.mxu0 0
      %426 = vmatprep.subr.bf16.mxu0 0
      %427 = vmatpush1.bf16.msra.mxu0 0
      %428 = vmatprep.mubr.bf16.mxu0 %v394
      %429 = vmatmul.mubr.bf16.gmra.mrb[0].mxu0 %v389
      %v430 = vpop.f32.mrb[0].mxu0
      %v431 = vadd.f32 %v376, %v430
      %v432 = vpop.f32.mrb[0].mxu0
      %v433 = vadd.f32 %v376, %v432
      %v434 = vpop.f32.mrb[0].mxu0
      %v435 = vadd.f32 %v381, %v434
      %v436 = vpop.f32.mrb[0].mxu0
      %v437 = vadd.f32 %v381, %v436
      %438 = vdwg.mxu0
      %439 = vmatprep.subr.bf16.mxu0 0
      %440 = vmatpush1.bf16.msra.mxu0 %v269
      %441 = vmatprep.subr.bf16.mxu0 0
      %442 = vmatpush1.bf16.msra.mxu0 %v278
      %443 = vmatprep.subr.bf16.mxu0 0
      %444 = vmatpush1.bf16.msra.mxu0 %v290
      %445 = vmatprep.subr.bf16.mxu0 0
      %446 = vmatpush1.bf16.msra.mxu0 %v302
      %447 = vmatprep.subr.bf16.mxu0 0
      %448 = vmatpush1.bf16.msra.mxu0 %v314
      %449 = vmatprep.subr.bf16.mxu0 0
      %450 = vmatpush1.bf16.msra.mxu0 %v326
      %451 = vmatprep.subr.bf16.mxu0 0
      %452 = vmatpush1.bf16.msra.mxu0 %v338
      %453 = vmatprep.subr.bf16.mxu0 0
      %454 = vmatpush1.bf16.msra.mxu0 %v350
      %455 = vmatprep.subr.bf16.mxu0 0
      %456 = vmatpush1.bf16.msra.mxu0 %v362
      %457 = vmatprep.subr.bf16.mxu0 0
      %458 = vmatpush1.bf16.msra.mxu0 0
      %459 = vmatprep.subr.bf16.mxu0 0
      %460 = vmatpush1.bf16.msra.mxu0 0
      %461 = vmatprep.subr.bf16.mxu0 0
      %462 = vmatpush1.bf16.msra.mxu0 0
      %463 = vmatprep.subr.bf16.mxu0 0
      %464 = vmatpush1.bf16.msra.mxu0 0
      %465 = vmatprep.subr.bf16.mxu0 0
      %466 = vmatpush1.bf16.msra.mxu0 0
      %467 = vmatprep.subr.bf16.mxu0 0
      %468 = vmatpush1.bf16.msra.mxu0 0
      %469 = vmatprep.subr.bf16.mxu0 0
      %470 = vmatpush1.bf16.msra.mxu0 0
      %471 = vmatprep.mubr.bf16.mxu0 %v394
      %472 = vmatmul.mubr.bf16.gmra.mrb[0].mxu0 %v389
      %v473 = vpop.f32.mrb[0].mxu0
      %v474 = vadd.f32 %v376, %v473
      %v475 = vpop.f32.mrb[0].mxu0
      %v476 = vpop.f32.mrb[0].mxu0
      %v477 = vadd.f32 %v381, %v476
      %v478 = vpop.f32.mrb[0].mxu0
      %479 = vdwg.mxu0
      %v480 = vmax.f32 %v431, 0.0
      %v481 = vmax.f32 %v433, 0.0
      %v482 = vmax.f32 %v474, 0.0
      %v483 = vmax.f32 %v435, 0.0
      %v484 = vmax.f32 %v437, 0.0
      %v485 = vmax.f32 %v477, 0.0
      %v486 = vld [vmem:[%s5] sm:$0x7]
      %v488 = vlaneseq
      %v489 = vshrl.u32 %v488, 7
      %v490 = vsub.s32 0, %v489
      %v491 = vrot.slane %v486, %v490
      %v492 = vlaneseq
      %v493 = vshrl.u32 %v492, 7
      %v494 = vsub.s32 1, %v493
      %v495 = vrot.slane %v486, %v494
      %v496 = vlaneseq
      %v497 = vshrl.u32 %v496, 7
      %v498 = vsub.s32 2, %v497
      %v499 = vrot.slane %v486, %v498
      %v503 = vmul.f32 %v480, %v491
      %v504 = vmul.f32 %v481, %v495
      %v505 = vmul.f32 %v482, %v499
      %v506 = vmul.f32 %v483, %v491
      %v507 = vmul.f32 %v484, %v495
      %v508 = vmul.f32 %v485, %v499
      %v509 = vpack.c.bf16 %v506, %v503
      %v510 = vpack.c.bf16 %v507, %v504
      %v511 = vpack.c.bf16 %v508, %v505
      %515 = vrot.lane.b32.xlu0 %v509, 19
      %v516 = vpop.permute.xlu0 %515
      %517 = vrot.lane.b32.xlu0 %v510, 19
      %v518 = vpop.permute.xlu0 %517
      %519 = vrot.lane.b32.xlu0 %v511, 19
      %v520 = vpop.permute.xlu0 %519
      %vm521 = vcmask 154624
      %v522 = vsel %vm521, %v516, %v518
      %v523 = vsel %vm521, %v518, %v520
      %vm524 = vcmask 154624
      %v527 = vsel %vm524, 0, %v516
      %vm528 = vcmask 711680
      %v530 = vsel %vm528, %v523, 0
      %533 = vrot.lane.b32.xlu0 %v527, 127
      %v534 = vpop.permute.xlu0 %533
      %535 = vrot.lane.b32.xlu0 %v522, 127
      %v536 = vpop.permute.xlu0 %535
      %537 = vrot.lane.b32.xlu0 %v530, 127
      %v538 = vpop.permute.xlu0 %537
      %v539 = vsel %vm279, %v534, %v536
      %v540 = vsel %vm279, %v536, %v538
      %541 = vrot.lane.b32.xlu0 %v527, 110
      %v542 = vpop.permute.xlu0 %541
      %543 = vrot.lane.b32.xlu0 %v522, 110
      %v544 = vpop.permute.xlu0 %543
      %545 = vrot.lane.b32.xlu0 %v530, 110
      %v546 = vpop.permute.xlu0 %545
      %v547 = vsel %vm303, %v542, %v544
      %v548 = vsel %vm303, %v544, %v546
      %549 = vrot.lane.b32.xlu0 %v527, 109
      %v550 = vpop.permute.xlu0 %549
      %551 = vrot.lane.b32.xlu0 %v522, 109
      %v552 = vpop.permute.xlu0 %551
      %553 = vrot.lane.b32.xlu0 %v530, 109
      %v554 = vpop.permute.xlu0 %553
      %v555 = vsel %vm315, %v550, %v552
      %v556 = vsel %vm315, %v552, %v554
      %v557 = vld [vmem:[%s3] sm:$0xf]
      %v558 = vld [vmem:[%s3 + $0x4] sm:$0xf]
      %v559 = vld [vmem:[%s4] sm:$0xff]
      %v560 = vld [vmem:[%s4 + $0x8] sm:$0xff]
      %562 = vset.pattern.permute.xlu0 0
      %563 = vperm.xlu0 %562, %v559
      %v564 = vpop.permute.xlu0 %563
      %567 = vset.pattern.permute.xlu0 0
      %568 = vperm.xlu0 %567, %v560
      %v569 = vpop.permute.xlu0 %568
      %v573 = vunpack.c.l.b16 %v557
      %v574 = vunpack.c.l.b16 %v558
      %v575 = vpack.c.b16 %v574, %v573
      %576 = vrot.lane.b32.xlu0 %v539, 109
      %v577 = vpop.permute.xlu0 %576
      %578 = vrot.lane.b32.xlu0 %v540, 109
      %v579 = vpop.permute.xlu0 %578
      %580 = vrot.lane.b32.xlu0 %v538, 109
      %v581 = vpop.permute.xlu0 %580
      %582 = vrot.lane.b32.xlu0 %v547, 109
      %v583 = vpop.permute.xlu0 %582
      %584 = vrot.lane.b32.xlu0 %v548, 109
      %v585 = vpop.permute.xlu0 %584
      %586 = vrot.lane.b32.xlu0 %v546, 109
      %v587 = vpop.permute.xlu0 %586
      %588 = vrot.lane.b32.xlu0 %v555, 109
      %v589 = vpop.permute.xlu0 %588
      %590 = vrot.lane.b32.xlu0 %v556, 109
      %v591 = vpop.permute.xlu0 %590
      %592 = vrot.lane.b32.xlu0 %v554, 109
      %v593 = vpop.permute.xlu0 %592
      %v594 = vsel %vm315, %v577, %v579
      %v595 = vsel %vm315, %v579, %v581
      %v596 = vsel %vm315, %v583, %v585
      %v597 = vsel %vm315, %v585, %v587
      %v598 = vsel %vm315, %v589, %v591
      %v599 = vsel %vm315, %v591, %v593
      %vm612 = vcmask 523264
      %v614 = vsel %vm612, %v575, 0
      %616 = vmatprep.subr.bf16.mxu0 %v556
      %617 = vmatpush1.bf16.msra.mxu0 %v555
      %618 = vmatprep.subr.bf16.mxu0 %v595
      %619 = vmatpush1.bf16.msra.mxu0 %v594
      %620 = vmatprep.subr.bf16.mxu0 %v597
      %621 = vmatpush1.bf16.msra.mxu0 %v596
      %622 = vmatprep.subr.bf16.mxu0 %v599
      %623 = vmatpush1.bf16.msra.mxu0 %v598
      %624 = vmatprep.subr.bf16.mxu0 0
      %625 = vmatpush1.bf16.msra.mxu0 0
      %626 = vmatprep.subr.bf16.mxu0 0
      %627 = vmatpush1.bf16.msra.mxu0 0
      %628 = vmatprep.subr.bf16.mxu0 0
      %629 = vmatpush1.bf16.msra.mxu0 0
      %630 = vmatprep.subr.bf16.mxu0 0
      %631 = vmatpush1.bf16.msra.mxu0 0
      %632 = vmatprep.subr.bf16.mxu0 0
      %633 = vmatpush1.bf16.msra.mxu0 0
      %634 = vmatprep.subr.bf16.mxu0 0
      %635 = vmatpush1.bf16.msra.mxu0 0
      %636 = vmatprep.subr.bf16.mxu0 0
      %637 = vmatpush1.bf16.msra.mxu0 0
      %638 = vmatprep.subr.bf16.mxu0 0
      %639 = vmatpush1.bf16.msra.mxu0 0
      %640 = vmatprep.subr.bf16.mxu0 0
      %641 = vmatpush1.bf16.msra.mxu0 0
      %642 = vmatprep.subr.bf16.mxu0 0
      %643 = vmatpush1.bf16.msra.mxu0 0
      %644 = vmatprep.subr.bf16.mxu0 0
      %645 = vmatpush1.bf16.msra.mxu0 0
      %646 = vmatprep.subr.bf16.mxu0 0
      %647 = vmatpush1.bf16.msra.mxu0 0
      %648 = vmatprep.mubr.bf16.mxu0 0
      %649 = vmatmul.mubr.bf16.gmra.mrb[0].mxu0 %v614
      %v650 = vpop.f32.mrb[0].mxu0
      %v651 = vadd.f32 %v564, %v650
      %v652 = vpop.f32.mrb[0].mxu0
      %v653 = vadd.f32 %v564, %v652
      %v654 = vpop.f32.mrb[0].mxu0
      %v655 = vadd.f32 %v569, %v654
      %v656 = vpop.f32.mrb[0].mxu0
      %v657 = vadd.f32 %v569, %v656
      %658 = vdwg.mxu0
      %659 = vmatprep.subr.bf16.mxu0 0
      %660 = vmatpush1.bf16.msra.mxu0 %v554
      %661 = vmatprep.subr.bf16.mxu0 0
      %662 = vmatpush1.bf16.msra.mxu0 %v581
      %663 = vmatprep.subr.bf16.mxu0 0
      %664 = vmatpush1.bf16.msra.mxu0 %v587
      %665 = vmatprep.subr.bf16.mxu0 0
      %666 = vmatpush1.bf16.msra.mxu0 %v593
      %667 = vmatprep.subr.bf16.mxu0 0
      %668 = vmatpush1.bf16.msra.mxu0 0
      %669 = vmatprep.subr.bf16.mxu0 0
      %670 = vmatpush1.bf16.msra.mxu0 0
      %671 = vmatprep.subr.bf16.mxu0 0
      %672 = vmatpush1.bf16.msra.mxu0 0
      %673 = vmatprep.subr.bf16.mxu0 0
      %674 = vmatpush1.bf16.msra.mxu0 0
      %675 = vmatprep.subr.bf16.mxu0 0
      %676 = vmatpush1.bf16.msra.mxu0 0
      %677 = vmatprep.subr.bf16.mxu0 0
      %678 = vmatpush1.bf16.msra.mxu0 0
      %679 = vmatprep.subr.bf16.mxu0 0
      %680 = vmatpush1.bf16.msra.mxu0 0
      %681 = vmatprep.subr.bf16.mxu0 0
      %682 = vmatpush1.bf16.msra.mxu0 0
      %683 = vmatprep.subr.bf16.mxu0 0
      %684 = vmatpush1.bf16.msra.mxu0 0
      %685 = vmatprep.subr.bf16.mxu0 0
      %686 = vmatpush1.bf16.msra.mxu0 0
      %687 = vmatprep.subr.bf16.mxu0 0
      %688 = vmatpush1.bf16.msra.mxu0 0
      %689 = vmatprep.subr.bf16.mxu0 0
      %690 = vmatpush1.bf16.msra.mxu0 0
      %691 = vmatprep.mubr.bf16.mxu0 0
      %692 = vmatmul.mubr.bf16.gmra.mrb[0].mxu0 %v614
      %v693 = vpop.f32.mrb[0].mxu0
      %v694 = vadd.f32 %v564, %v693
      %v695 = vpop.f32.mrb[0].mxu0
      %v696 = vpop.f32.mrb[0].mxu0
      %v697 = vadd.f32 %v569, %v696
      %v698 = vpop.f32.mrb[0].mxu0
      %699 = vdwg.mxu0
      %v700 = vmax.f32 %v651, 0.0
      %v701 = vmax.f32 %v653, 0.0
      %v702 = vmax.f32 %v694, 0.0
      %v703 = vmax.f32 %v655, 0.0
      %v704 = vmax.f32 %v657, 0.0
      %v705 = vmax.f32 %v697, 0.0
      %v706 = vpack.c.bf16 %v703, %v700
      %v707 = vpack.c.bf16 %v704, %v701
      %v708 = vpack.c.bf16 %v705, %v702
      %vm709 = vcmask 556032
      %v711 = vsel %vm709, %v708, 0
      %v715 = vunpack.c.l.b16 %v706
      %v716 = vunpack.c.l.b16 %v707
      %v717 = vunpack.c.l.b16 %v711
      %v718 = vunpack.c.h.b16 %v706
      %v719 = vunpack.c.h.b16 %v707
      %v720 = vunpack.c.h.b16 %v711
      %v721 = vpack.c.b16 %v716, %v715
      %v722 = vpack.c.b16 %v717, %v717
      %v723 = vpack.c.b16 %v719, %v718
      %v724 = vpack.c.b16 %v720, %v720
      %729 = vst [vmem:[%s251] sm:$0xff] %v721
      %730 = vst [vmem:[%s251 + $0x8] sm:$0xf] %v722
      %731 = vst [vmem:[%s251 + $0xc] sm:$0xff] %v723
      %732 = vst [vmem:[%s251 + $0x14] sm:$0xf] %v724
      %p733 = scmp.lt.s32.totalorder %s17, 1
      %s734 = scalar_select %p733, %s17, 1
      %s735 = smul.addr %s734, 6
      %s736 = smul.addr %s735, 4
      %s737 = scalar_lea.vmem %s6, %s736
      // Predicated region
      $region45: #{forward.22} parent=43 // pred_check
        %p738 = pneg %p166
      $region46: #{forward.22} parent=43 // pred_check_branch
        %740 = sbr.rel (%p738) target = $region48
      $region47: #{forward.22} parent=43 // pred_region
        _
      $region48: #{forward.22} parent=43 // pred_fallthru
        _
    $region44: #{forward.22} parent=5 // pred_fallthru
      _
    %p741 = scmp.le.s32.totalorder 2, %s12
    // Predicated region
    $region49: #{forward.22} parent=5 // pred_check
      %p742 = pneg %p741
    $region50: #{forward.22} parent=5 // pred_check_branch
      %744 = sbr.rel (%p742) target = $region52
    $region51: #{forward.22} parent=5 // pred_region
      %s745 = ssub.s32 %s12, 2
      // Predicated region
      $region53: #{forward.22} parent=51 // pred_check
        %p746 = pneg %p172
      $region54: #{forward.22} parent=51 // pred_check_branch
        %748 = sbr.rel (%p746) target = $region56
      $region55: #{forward.22} parent=51 // pred_region
        %p749 = scmp.lt.s32.totalorder %s18, 1
        %s750 = scalar_select %p749, %s18, 1
        %s751 = smul.addr %s750, 6
        %s752 = smul.addr %s751, 4
        %s753 = scalar_lea.vmem %s6, %s752
      $region56: #{forward.22} parent=51 // pred_fallthru
        _
    $region52: #{forward.22} parent=5 // pred_fallthru
      _
  $region6: #{forward.22} parent=0 // loop_footer
    %s16 = sadd.s32 1, %s12
  $region7: #{forward.22} parent=0 // loop_footer_branch
    %11 = sbr.rel target = $region3
  $region8: #{forward.22} parent=0 // loop_exit
    _

// kernel: forward.23
$region0: #{forward.23}
  #allocation0 [shape = 'u32[]', space=smem, size = 0x4, offset = 0x4, fixed_abs, tag = 'smem constant byte address 0x4 - core index']
  #allocation1 [shape = 'u32[144,128]{1,0:T(1,128)}', space=vmem, size = 0x12000, scoped, tag = 'internal scratch']
  %s0 = inlined_call_operand.vmem [shape: bf16[2,16,1280], index: 0, kind: input, shape index: {}]
  %s1 = inlined_call_operand.vmem [shape: bf16[16,144], index: 1, kind: input, shape index: {}]
  %s2 = inlined_call_operand.vmem [shape: f32[16,128], index: 2, kind: input, shape index: {}]
  %s3 = inlined_call_operand.vmem [shape: bf16[16,144], index: 3, kind: input, shape index: {}]
  %s4 = inlined_call_operand.vmem [shape: f32[16,128], index: 4, kind: input, shape index: {}]
  %s5 = inlined_call_operand.vmem [shape: f32[1,1156], index: 5, kind: input, shape index: {}]
  %s6 = inlined_call_operand.vmem [shape: bf16[2,16,1280], index: 6, kind: output, shape index: {}]
  %s7 = sld [smem:[#allocation0]]
  $region57: #{forward.23} parent=0
    _
  %s9 = ssub.s32 1, %s7
  %s10 = scalar_select 0, %s9, %s7
  loop: start=0, step=1, limit=4
  $region2: #{forward.23} parent=0 // loop_pre_header
    _
  $region3: #{forward.23} parent=0 // loop_header
    %s12 = sphi 0, %s16
    %p13 = scmp.ge.s32.totalorder %s12, 4
    %s22 = sphi 0, %s24
    %s25 = sphi 0, %s22
    %s26 = sphi 0, %s25
    %s42 = sphi 0, %s26
    %s46 = sphi 0, %s46
    %s48 = sphi 0, %s46
    %s49 = sphi 0, %s48
    %s63 = sphi 0, %s49
    %s67 = sphi 0, %s67
    %s69 = sphi 0, %s67
    %s70 = sphi 0, %s69
    %s84 = sphi 0, %s70
    %s88 = sphi 0, %s88
    %s90 = sphi 0, %s88
    %s91 = sphi 0, %s90
    %s105 = sphi 0, %s91
    %s109 = sphi 0, %s109
    %s111 = sphi 0, %s109
    %s112 = sphi 0, %s111
    %s126 = sphi 0, %s112
    %s130 = sphi 0, %s130
    %s132 = sphi 0, %s130
    %s133 = sphi 0, %s132
    %s147 = sphi 0, %s133
    %s153 = sphi 0, %s155
    %s156 = sphi 0, %s153
    %s157 = sphi 0, %s156
    %s173 = sphi 0, %s157
  $region4: #{forward.23} parent=0 // loop_header_branch
    %15 = sbr.rel (%p13) target = $region8
  $region5: #{forward.23} parent=0 // loop_body
    %s17 = ssub.s32 %s12, 1
    %s18 = ssub.s32 %s12, 2
    %s19 = sadd.s32 %s12, 1
    %s20 = ssub.s32 %s12, %s19
    %p21 = scmp.eq.s32.totalorder %s20, 0
    %s23 = sadd.s32 %s22, 1
    %s24 = scalar_select %p21, %s22, %s23
    %p27 = pneg %p21
    %p28 = scmp.eq.s32.totalorder %s12, 1
    %p29 = por %p27, %p28
    %p30 = scmp.ne.s32.totalorder %s22, %s25
    %p31 = scmp.eq.s32.totalorder %s12, 0
    %p32 = por %p30, %p31
    %p33 = scmp.ne.s32.totalorder %s22, %s25
    %p34 = scmp.eq.s32.totalorder %s17, 1
    %p35 = por %p33, %p34
    %p36 = scmp.ne.s32.totalorder %s25, %s26
    %p37 = scmp.eq.s32.totalorder %s17, 0
    %p38 = por %p36, %p37
    %p39 = scmp.ne.s32.totalorder %s25, %s26
    %p40 = scmp.eq.s32.totalorder %s18, 1
    %p41 = por %p39, %p40
    %p43 = scmp.ne.s32.totalorder %s26, %s42
    %p44 = scmp.eq.s32.totalorder %s18, 0
    %p45 = por %p43, %p44
    %s47 = sadd.s32 %s46, 1
    %p50 = scmp.eq.s32.totalorder %s12, 1
    %p51 = scmp.ne.s32.totalorder %s46, %s48
    %p52 = scmp.eq.s32.totalorder %s12, 0
    %p53 = por %p51, %p52
    %p54 = scmp.ne.s32.totalorder %s46, %s48
    %p55 = scmp.eq.s32.totalorder %s17, 1
    %p56 = por %p54, %p55
    %p57 = scmp.ne.s32.totalorder %s48, %s49
    %p58 = scmp.eq.s32.totalorder %s17, 0
    %p59 = por %p57, %p58
    %p60 = scmp.ne.s32.totalorder %s48, %s49
    %p61 = scmp.eq.s32.totalorder %s18, 1
    %p62 = por %p60, %p61
    %p64 = scmp.ne.s32.totalorder %s49, %s63
    %p65 = scmp.eq.s32.totalorder %s18, 0
    %p66 = por %p64, %p65
    %s68 = sadd.s32 %s67, 1
    %p71 = scmp.eq.s32.totalorder %s12, 1
    %p72 = scmp.ne.s32.totalorder %s67, %s69
    %p73 = scmp.eq.s32.totalorder %s12, 0
    %p74 = por %p72, %p73
    %p75 = scmp.ne.s32.totalorder %s67, %s69
    %p76 = scmp.eq.s32.totalorder %s17, 1
    %p77 = por %p75, %p76
    %p78 = scmp.ne.s32.totalorder %s69, %s70
    %p79 = scmp.eq.s32.totalorder %s17, 0
    %p80 = por %p78, %p79
    %p81 = scmp.ne.s32.totalorder %s69, %s70
    %p82 = scmp.eq.s32.totalorder %s18, 1
    %p83 = por %p81, %p82
    %p85 = scmp.ne.s32.totalorder %s70, %s84
    %p86 = scmp.eq.s32.totalorder %s18, 0
    %p87 = por %p85, %p86
    %s89 = sadd.s32 %s88, 1
    %p92 = scmp.eq.s32.totalorder %s12, 1
    %p93 = scmp.ne.s32.totalorder %s88, %s90
    %p94 = scmp.eq.s32.totalorder %s12, 0
    %p95 = por %p93, %p94
    %p96 = scmp.ne.s32.totalorder %s88, %s90
    %p97 = scmp.eq.s32.totalorder %s17, 1
    %p98 = por %p96, %p97
    %p99 = scmp.ne.s32.totalorder %s90, %s91
    %p100 = scmp.eq.s32.totalorder %s17, 0
    %p101 = por %p99, %p100
    %p102 = scmp.ne.s32.totalorder %s90, %s91
    %p103 = scmp.eq.s32.totalorder %s18, 1
    %p104 = por %p102, %p103
    %p106 = scmp.ne.s32.totalorder %s91, %s105
    %p107 = scmp.eq.s32.totalorder %s18, 0
    %p108 = por %p106, %p107
    %s110 = sadd.s32 %s109, 1
    %p113 = scmp.eq.s32.totalorder %s12, 1
    %p114 = scmp.ne.s32.totalorder %s109, %s111
    %p115 = scmp.eq.s32.totalorder %s12, 0
    %p116 = por %p114, %p115
    %p117 = scmp.ne.s32.totalorder %s109, %s111
    %p118 = scmp.eq.s32.totalorder %s17, 1
    %p119 = por %p117, %p118
    %p120 = scmp.ne.s32.totalorder %s111, %s112
    %p121 = scmp.eq.s32.totalorder %s17, 0
    %p122 = por %p120, %p121
    %p123 = scmp.ne.s32.totalorder %s111, %s112
    %p124 = scmp.eq.s32.totalorder %s18, 1
    %p125 = por %p123, %p124
    %p127 = scmp.ne.s32.totalorder %s112, %s126
    %p128 = scmp.eq.s32.totalorder %s18, 0
    %p129 = por %p127, %p128
    %s131 = sadd.s32 %s130, 1
    %p134 = scmp.eq.s32.totalorder %s12, 1
    %p135 = scmp.ne.s32.totalorder %s130, %s132
    %p136 = scmp.eq.s32.totalorder %s12, 0
    %p137 = por %p135, %p136
    %p138 = scmp.ne.s32.totalorder %s130, %s132
    %p139 = scmp.eq.s32.totalorder %s17, 1
    %p140 = por %p138, %p139
    %p141 = scmp.ne.s32.totalorder %s132, %s133
    %p142 = scmp.eq.s32.totalorder %s17, 0
    %p143 = por %p141, %p142
    %p144 = scmp.ne.s32.totalorder %s132, %s133
    %p145 = scmp.eq.s32.totalorder %s18, 1
    %p146 = por %p144, %p145
    %p148 = scmp.ne.s32.totalorder %s133, %s147
    %p149 = scmp.eq.s32.totalorder %s18, 0
    %p150 = por %p148, %p149
    %s151 = ssub.s32 %s12, %s19
    %p152 = scmp.eq.s32.totalorder %s151, 0
    %s154 = sadd.s32 %s153, 1
    %s155 = scalar_select %p152, %s153, %s154
    %p158 = pneg %p152
    %p159 = scmp.eq.s32.totalorder %s12, 1
    %p160 = por %p158, %p159
    %p161 = scmp.ne.s32.totalorder %s153, %s156
    %p162 = scmp.eq.s32.totalorder %s12, 0
    %p163 = por %p161, %p162
    %p164 = scmp.ne.s32.totalorder %s153, %s156
    %p165 = scmp.eq.s32.totalorder %s17, 1
    %p166 = por %p164, %p165
    %p167 = scmp.ne.s32.totalorder %s156, %s157
    %p168 = scmp.eq.s32.totalorder %s17, 0
    %p169 = por %p167, %p168
    %p170 = scmp.ne.s32.totalorder %s156, %s157
    %p171 = scmp.eq.s32.totalorder %s18, 1
    %p172 = por %p170, %p171
    %p174 = scmp.ne.s32.totalorder %s157, %s173
    %p175 = scmp.eq.s32.totalorder %s18, 0
    %p176 = por %p174, %p175
    %p177 = scmp.le.s32.totalorder 1, %s12
    %p178 = scmp.lt.s32.totalorder %s12, 3
    %p179 = pnand %p177, %p178
    %p180 = pneg %p179
    // Predicated region
    $region9: #{forward.23} parent=5 // pred_check
      _
    $region10: #{forward.23} parent=5 // pred_check_branch
      %182 = sbr.rel (%p179) target = $region12
    $region11: #{forward.23} parent=5 // pred_region
      %s183 = ssub.s32 %s12, 1
      // Predicated region
      $region13: #{forward.23} parent=11 // pred_check
        %p184 = pneg %p59
      $region14: #{forward.23} parent=11 // pred_check_branch
        %186 = sbr.rel (%p184) target = $region16
      $region15: #{forward.23} parent=11 // pred_region
        _
      $region16: #{forward.23} parent=11 // pred_fallthru
        _
      // Predicated region
      $region17: #{forward.23} parent=11 // pred_check
        %p187 = pneg %p80
      $region18: #{forward.23} parent=11 // pred_check_branch
        %189 = sbr.rel (%p187) target = $region20
      $region19: #{forward.23} parent=11 // pred_region
        _
      $region20: #{forward.23} parent=11 // pred_fallthru
        _
      // Predicated region
      $region21: #{forward.23} parent=11 // pred_check
        %p190 = pneg %p101
      $region22: #{forward.23} parent=11 // pred_check_branch
        %192 = sbr.rel (%p190) target = $region24
      $region23: #{forward.23} parent=11 // pred_region
        _
      $region24: #{forward.23} parent=11 // pred_fallthru
        _
      // Predicated region
      $region25: #{forward.23} parent=11 // pred_check
        %p193 = pneg %p122
      $region26: #{forward.23} parent=11 // pred_check_branch
        %195 = sbr.rel (%p193) target = $region28
      $region27: #{forward.23} parent=11 // pred_region
        _
      $region28: #{forward.23} parent=11 // pred_fallthru
        _
      // Predicated region
      $region29: #{forward.23} parent=11 // pred_check
        %p196 = pneg %p143
      $region30: #{forward.23} parent=11 // pred_check_branch
        %198 = sbr.rel (%p196) target = $region32
      $region31: #{forward.23} parent=11 // pred_region
        _
      $region32: #{forward.23} parent=11 // pred_fallthru
        _
    $region12: #{forward.23} parent=5 // pred_fallthru
      _
    %p199 = scmp.lt.s32.totalorder %s12, 2
    // Predicated region
    $region33: #{forward.23} parent=5 // pred_check
      %p200 = pneg %p199
    $region34: #{forward.23} parent=5 // pred_check_branch
      %202 = sbr.rel (%p200) target = $region36
    $region35: #{forward.23} parent=5 // pred_region
      // Predicated region
      $region37: #{forward.23} parent=35 // pred_check
        %p203 = pneg %p32
      $region38: #{forward.23} parent=35 // pred_check_branch
        %205 = sbr.rel (%p203) target = $region40
      $region39: #{forward.23} parent=35 // pred_region
        %p206 = scmp.lt.s32.totalorder %s12, 1
        %s207 = scalar_select %p206, %s12, 1
        %s208 = smul.addr %s207, 20
        %s209 = smul.addr %s208, 4
        %s210 = scalar_lea.vmem %s0, %s209
      $region40: #{forward.23} parent=35 // pred_fallthru
        _
    $region36: #{forward.23} parent=5 // pred_fallthru
      _
    %p211 = scmp.le.s32.totalorder 1, %s12
    %p212 = scmp.lt.s32.totalorder %s12, 3
    %p213 = pnand %p211, %p212
    %p214 = pneg %p213
    // Predicated region
    $region41: #{forward.23} parent=5 // pred_check
      _
    $region42: #{forward.23} parent=5 // pred_check_branch
      %216 = sbr.rel (%p213) target = $region44
    $region43: #{forward.23} parent=5 // pred_region
      %s217 = ssub.s32 %s12, 1
      %p218 = scmp.lt.s32.totalorder %s17, 1
      %s219 = scalar_select %p218, %s17, 1
      %s220 = smul.addr %s219, 20
      %s221 = smul.addr %s220, 4
      %s222 = scalar_lea.vmem %s0, %s221
      %p223 = pneg %p38
      %p224 = pneg %p35
      %p225 = pneg %p59
      %p226 = pneg %p56
      %p227 = pneg %p80
      %p228 = pneg %p77
      %p229 = pneg %p101
      %p230 = pneg %p98
      %p231 = pneg %p122
      %p232 = pneg %p119
      %p233 = pneg %p143
      %p234 = pneg %p140
      %p235 = pneg %p169
      %p236 = pneg %p166
      %p237 = scmp.lt.s32.totalorder %s17, 1
      %s238 = scalar_select %p237, %s17, 1
      %s239 = smul.addr %s238, 20
      %s240 = smul.addr %s239, 4
      %s241 = scalar_lea.vmem %s6, %s240
      %p242 = scmp.lt.s32.totalorder %s17, 1
      %s243 = scalar_select %p242, %s17, 1
      %s244 = smul.addr %s243, 20
      %s245 = smul.addr %s244, 4
      %s246 = scalar_lea.vmem %s0, %s245
      %p247 = scmp.lt.s32.totalorder %s17, 1
      %s248 = scalar_select %p247, %s17, 1
      %s249 = smul.addr %s248, 20
      %s250 = smul.addr %s249, 4
      %s251 = scalar_lea.vmem %s6, %s250
      %v253 = vld [vmem:[%s246] sm:$0xff]
      %v254 = vld [vmem:[%s246 + $0x8] sm:$0xff]
      %v255 = vld [vmem:[%s246 + $0x10] sm:$0xff]
      %v256 = vld [vmem:[%s246 + $0x18] sm:$0xff]
      %v257 = vld [vmem:[%s246 + $0x20] sm:$0xff]
      %v258 = vld [vmem:[%s246 + $0x28] sm:$0xff]
      %v259 = vld [vmem:[%s246 + $0x30] sm:$0xff]
      %v260 = vld [vmem:[%s246 + $0x38] sm:$0xff]
      %v261 = vld [vmem:[%s246 + $0x40] sm:$0xff]
      %v262 = vld [vmem:[%s246 + $0x48] sm:$0xff]
      %v273 = vunpack.c.l.b16 %v253
      %v274 = vunpack.c.h.b16 %v253
      %v275 = vunpack.c.l.b16 %v254
      %v276 = vunpack.c.h.b16 %v254
      %v277 = vunpack.c.l.b16 %v255
      %v278 = vunpack.c.h.b16 %v255
      %v279 = vunpack.c.l.b16 %v256
      %v280 = vunpack.c.h.b16 %v256
      %v281 = vunpack.c.l.b16 %v257
      %v282 = vunpack.c.h.b16 %v257
      %v283 = vunpack.c.l.b16 %v258
      %v284 = vunpack.c.h.b16 %v258
      %v285 = vunpack.c.l.b16 %v259
      %v286 = vunpack.c.h.b16 %v259
      %v287 = vunpack.c.l.b16 %v260
      %v288 = vunpack.c.h.b16 %v260
      %v289 = vunpack.c.l.b16 %v261
      %v290 = vunpack.c.h.b16 %v261
      %v291 = vunpack.c.l.b16 %v262
      %v292 = vunpack.c.h.b16 %v262
      %v293 = vpack.c.b16 %v283, %v273
      %v294 = vpack.c.b16 %v284, %v274
      %v295 = vpack.c.b16 %v285, %v275
      %v296 = vpack.c.b16 %v286, %v276
      %v297 = vpack.c.b16 %v287, %v277
      %v298 = vpack.c.b16 %v288, %v278
      %v299 = vpack.c.b16 %v289, %v279
      %v300 = vpack.c.b16 %v290, %v280
      %v301 = vpack.c.b16 %v291, %v281
      %v302 = vpack.c.b16 %v292, %v282
      %313 = vrot.lane.b32.xlu0 %v293, 127
      %v314 = vpop.permute.xlu0 %313
      %315 = vrot.lane.b32.xlu0 %v294, 127
      %v316 = vpop.permute.xlu0 %315
      %317 = vrot.lane.b32.xlu0 %v295, 127
      %v318 = vpop.permute.xlu0 %317
      %319 = vrot.lane.b32.xlu0 %v296, 127
      %v320 = vpop.permute.xlu0 %319
      %321 = vrot.lane.b32.xlu0 %v297, 127
      %v322 = vpop.permute.xlu0 %321
      %323 = vrot.lane.b32.xlu0 %v298, 127
      %v324 = vpop.permute.xlu0 %323
      %325 = vrot.lane.b32.xlu0 %v299, 127
      %v326 = vpop.permute.xlu0 %325
      %327 = vrot.lane.b32.xlu0 %v300, 127
      %v328 = vpop.permute.xlu0 %327
      %329 = vrot.lane.b32.xlu0 %v301, 127
      %v330 = vpop.permute.xlu0 %329
      %331 = vrot.lane.b32.xlu0 %v302, 127
      %v332 = vpop.permute.xlu0 %331
      %vm333 = vcmask 1039360
      %v334 = vsel %vm333, %v314, %v316
      %v335 = vsel %vm333, %v316, %v318
      %v336 = vsel %vm333, %v318, %v320
      %v337 = vsel %vm333, %v320, %v322
      %v338 = vsel %vm333, %v322, %v324
      %v339 = vsel %vm333, %v324, %v326
      %v340 = vsel %vm333, %v326, %v328
      %v341 = vsel %vm333, %v328, %v330
      %v342 = vsel %vm333, %v330, %v332
      %353 = vrot.lane.b32.xlu0 %v293, 126
      %v354 = vpop.permute.xlu0 %353
      %355 = vrot.lane.b32.xlu0 %v294, 126
      %v356 = vpop.permute.xlu0 %355
      %357 = vrot.lane.b32.xlu0 %v295, 126
      %v358 = vpop.permute.xlu0 %357
      %359 = vrot.lane.b32.xlu0 %v296, 126
      %v360 = vpop.permute.xlu0 %359
      %361 = vrot.lane.b32.xlu0 %v297, 126
      %v362 = vpop.permute.xlu0 %361
      %363 = vrot.lane.b32.xlu0 %v298, 126
      %v364 = vpop.permute.xlu0 %363
      %365 = vrot.lane.b32.xlu0 %v299, 126
      %v366 = vpop.permute.xlu0 %365
      %367 = vrot.lane.b32.xlu0 %v300, 126
      %v368 = vpop.permute.xlu0 %367
      %369 = vrot.lane.b32.xlu0 %v301, 126
      %v370 = vpop.permute.xlu0 %369
      %371 = vrot.lane.b32.xlu0 %v302, 126
      %v372 = vpop.permute.xlu0 %371
      %vm373 = vcmask 1031168
      %v374 = vsel %vm373, %v354, %v356
      %v375 = vsel %vm373, %v356, %v358
      %v376 = vsel %vm373, %v358, %v360
      %v377 = vsel %vm373, %v360, %v362
      %v378 = vsel %vm373, %v362, %v364
      %v379 = vsel %vm373, %v364, %v366
      %v380 = vsel %vm373, %v366, %v368
      %v381 = vsel %vm373, %v368, %v370
      %v382 = vsel %vm373, %v370, %v372
      %393 = vrot.lane.b32.xlu0 %v293, 94
      %v394 = vpop.permute.xlu0 %393
      %395 = vrot.lane.b32.xlu0 %v294, 94
      %v396 = vpop.permute.xlu0 %395
      %397 = vrot.lane.b32.xlu0 %v295, 94
      %v398 = vpop.permute.xlu0 %397
      %399 = vrot.lane.b32.xlu0 %v296, 94
      %v400 = vpop.permute.xlu0 %399
      %401 = vrot.lane.b32.xlu0 %v297, 94
      %v402 = vpop.permute.xlu0 %401
      %403 = vrot.lane.b32.xlu0 %v298, 94
      %v404 = vpop.permute.xlu0 %403
      %405 = vrot.lane.b32.xlu0 %v299, 94
      %v406 = vpop.permute.xlu0 %405
      %407 = vrot.lane.b32.xlu0 %v300, 94
      %v408 = vpop.permute.xlu0 %407
      %409 = vrot.lane.b32.xlu0 %v301, 94
      %v410 = vpop.permute.xlu0 %409
      %411 = vrot.lane.b32.xlu0 %v302, 94
      %v412 = vpop.permute.xlu0 %411
      %vm413 = vcmask 769024
      %v414 = vsel %vm413, %v394, %v396
      %v415 = vsel %vm413, %v396, %v398
      %v416 = vsel %vm413, %v398, %v400
      %v417 = vsel %vm413, %v400, %v402
      %v418 = vsel %vm413, %v402, %v404
      %v419 = vsel %vm413, %v404, %v406
      %v420 = vsel %vm413, %v406, %v408
      %v421 = vsel %vm413, %v408, %v410
      %v422 = vsel %vm413, %v410, %v412
      %433 = vrot.lane.b32.xlu0 %v293, 93
      %v434 = vpop.permute.xlu0 %433
      %435 = vrot.lane.b32.xlu0 %v294, 93
      %v436 = vpop.permute.xlu0 %435
      %437 = vrot.lane.b32.xlu0 %v295, 93
      %v438 = vpop.permute.xlu0 %437
      %439 = vrot.lane.b32.xlu0 %v296, 93
      %v440 = vpop.permute.xlu0 %439
      %441 = vrot.lane.b32.xlu0 %v297, 93
      %v442 = vpop.permute.xlu0 %441
      %443 = vrot.lane.b32.xlu0 %v298, 93
      %v444 = vpop.permute.xlu0 %443
      %445 = vrot.lane.b32.xlu0 %v299, 93
      %v446 = vpop.permute.xlu0 %445
      %447 = vrot.lane.b32.xlu0 %v300, 93
      %v448 = vpop.permute.xlu0 %447
      %449 = vrot.lane.b32.xlu0 %v301, 93
      %v450 = vpop.permute.xlu0 %449
      %451 = vrot.lane.b32.xlu0 %v302, 93
      %v452 = vpop.permute.xlu0 %451
      %vm453 = vcmask 760832
      %v454 = vsel %vm453, %v434, %v436
      %v455 = vsel %vm453, %v436, %v438
      %v456 = vsel %vm453, %v438, %v440
      %v457 = vsel %vm453, %v440, %v442
      %v458 = vsel %vm453, %v442, %v444
      %v459 = vsel %vm453, %v444, %v446
      %v460 = vsel %vm453, %v446, %v448
      %v461 = vsel %vm453, %v448, %v450
      %v462 = vsel %vm453, %v450, %v452
      %473 = vrot.lane.b32.xlu0 %v293, 92
      %v474 = vpop.permute.xlu0 %473
      %475 = vrot.lane.b32.xlu0 %v294, 92
      %v476 = vpop.permute.xlu0 %475
      %477 = vrot.lane.b32.xlu0 %v295, 92
      %v478 = vpop.permute.xlu0 %477
      %479 = vrot.lane.b32.xlu0 %v296, 92
      %v480 = vpop.permute.xlu0 %479
      %481 = vrot.lane.b32.xlu0 %v297, 92
      %v482 = vpop.permute.xlu0 %481
      %483 = vrot.lane.b32.xlu0 %v298, 92
      %v484 = vpop.permute.xlu0 %483
      %485 = vrot.lane.b32.xlu0 %v299, 92
      %v486 = vpop.permute.xlu0 %485
      %487 = vrot.lane.b32.xlu0 %v300, 92
      %v488 = vpop.permute.xlu0 %487
      %489 = vrot.lane.b32.xlu0 %v301, 92
      %v490 = vpop.permute.xlu0 %489
      %491 = vrot.lane.b32.xlu0 %v302, 92
      %v492 = vpop.permute.xlu0 %491
      %vm493 = vcmask 752640
      %v494 = vsel %vm493, %v474, %v476
      %v495 = vsel %vm493, %v476, %v478
      %v496 = vsel %vm493, %v478, %v480
      %v497 = vsel %vm493, %v480, %v482
      %v498 = vsel %vm493, %v482, %v484
      %v499 = vsel %vm493, %v484, %v486
      %v500 = vsel %vm493, %v486, %v488
      %v501 = vsel %vm493, %v488, %v490
      %v502 = vsel %vm493, %v490, %v492
      %513 = vrot.lane.b32.xlu0 %v293, 60
      %v514 = vpop.permute.xlu0 %513
      %515 = vrot.lane.b32.xlu0 %v294, 60
      %v516 = vpop.permute.xlu0 %515
      %517 = vrot.lane.b32.xlu0 %v295, 60
      %v518 = vpop.permute.xlu0 %517
      %519 = vrot.lane.b32.xlu0 %v296, 60
      %v520 = vpop.permute.xlu0 %519
      %521 = vrot.lane.b32.xlu0 %v297, 60
      %v522 = vpop.permute.xlu0 %521
      %523 = vrot.lane.b32.xlu0 %v298, 60
      %v524 = vpop.permute.xlu0 %523
      %525 = vrot.lane.b32.xlu0 %v299, 60
      %v526 = vpop.permute.xlu0 %525
      %527 = vrot.lane.b32.xlu0 %v300, 60
      %v528 = vpop.permute.xlu0 %527
      %529 = vrot.lane.b32.xlu0 %v301, 60
      %v530 = vpop.permute.xlu0 %529
      %531 = vrot.lane.b32.xlu0 %v302, 60
      %v532 = vpop.permute.xlu0 %531
      %vm533 = vcmask 490496
      %v534 = vsel %vm533, %v514, %v516
      %v535 = vsel %vm533, %v516, %v518
      %v536 = vsel %vm533, %v518, %v520
      %v537 = vsel %vm533, %v520, %v522
      %v538 = vsel %vm533, %v522, %v524
      %v539 = vsel %vm533, %v524, %v526
      %v540 = vsel %vm533, %v526, %v528
      %v541 = vsel %vm533, %v528, %v530
      %v542 = vsel %vm533, %v530, %v532
      %553 = vrot.lane.b32.xlu0 %v293, 59
      %v554 = vpop.permute.xlu0 %553
      %555 = vrot.lane.b32.xlu0 %v294, 59
      %v556 = vpop.permute.xlu0 %555
      %557 = vrot.lane.b32.xlu0 %v295, 59
      %v558 = vpop.permute.xlu0 %557
      %559 = vrot.lane.b32.xlu0 %v296, 59
      %v560 = vpop.permute.xlu0 %559
      %561 = vrot.lane.b32.xlu0 %v297, 59
      %v562 = vpop.permute.xlu0 %561
      %563 = vrot.lane.b32.xlu0 %v298, 59
      %v564 = vpop.permute.xlu0 %563
      %565 = vrot.lane.b32.xlu0 %v299, 59
      %v566 = vpop.permute.xlu0 %565
      %567 = vrot.lane.b32.xlu0 %v300, 59
      %v568 = vpop.permute.xlu0 %567
      %569 = vrot.lane.b32.xlu0 %v301, 59
      %v570 = vpop.permute.xlu0 %569
      %571 = vrot.lane.b32.xlu0 %v302, 59
      %v572 = vpop.permute.xlu0 %571
      %vm573 = vcmask 482304
      %v574 = vsel %vm573, %v554, %v556
      %v575 = vsel %vm573, %v556, %v558
      %v576 = vsel %vm573, %v558, %v560
      %v577 = vsel %vm573, %v560, %v562
      %v578 = vsel %vm573, %v562, %v564
      %v579 = vsel %vm573, %v564, %v566
      %v580 = vsel %vm573, %v566, %v568
      %v581 = vsel %vm573, %v568, %v570
      %v582 = vsel %vm573, %v570, %v572
      %593 = vrot.lane.b32.xlu0 %v293, 58
      %v594 = vpop.permute.xlu0 %593
      %595 = vrot.lane.b32.xlu0 %v294, 58
      %v596 = vpop.permute.xlu0 %595
      %597 = vrot.lane.b32.xlu0 %v295, 58
      %v598 = vpop.permute.xlu0 %597
      %599 = vrot.lane.b32.xlu0 %v296, 58
      %v600 = vpop.permute.xlu0 %599
      %601 = vrot.lane.b32.xlu0 %v297, 58
      %v602 = vpop.permute.xlu0 %601
      %603 = vrot.lane.b32.xlu0 %v298, 58
      %v604 = vpop.permute.xlu0 %603
      %605 = vrot.lane.b32.xlu0 %v299, 58
      %v606 = vpop.permute.xlu0 %605
      %607 = vrot.lane.b32.xlu0 %v300, 58
      %v608 = vpop.permute.xlu0 %607
      %609 = vrot.lane.b32.xlu0 %v301, 58
      %v610 = vpop.permute.xlu0 %609
      %611 = vrot.lane.b32.xlu0 %v302, 58
      %v612 = vpop.permute.xlu0 %611
      %vm613 = vcmask 474112
      %v614 = vsel %vm613, %v594, %v596
      %v615 = vsel %vm613, %v596, %v598
      %v616 = vsel %vm613, %v598, %v600
      %v617 = vsel %vm613, %v600, %v602
      %v618 = vsel %vm613, %v602, %v604
      %v619 = vsel %vm613, %v604, %v606
      %v620 = vsel %vm613, %v606, %v608
      %v621 = vsel %vm613, %v608, %v610
      %v622 = vsel %vm613, %v610, %v612
      %v633 = vld [vmem:[%s1] sm:$0xff]
      %v634 = vld [vmem:[%s1 + $0x8] sm:$0xff]
      %v635 = vld [vmem:[%s2] sm:$0xff]
      %v636 = vld [vmem:[%s2 + $0x8] sm:$0xff]
      %638 = vset.pattern.permute.xlu0 0
      %639 = vperm.xlu0 %638, %v635
      %v640 = vpop.permute.xlu0 %639
      %643 = vset.pattern.permute.xlu0 0
      %644 = vperm.xlu0 %643, %v636
      %v645 = vpop.permute.xlu0 %644
      %v649 = vunpack.c.l.b16 %v633
      %v650 = vunpack.c.h.b16 %v633
      %v651 = vunpack.c.l.b16 %v634
      %v652 = vunpack.c.h.b16 %v634
      %v653 = vpack.c.b16 %v651, %v649
      %v654 = vpack.c.b16 %v652, %v650
      %vm656 = vcmask 130048
      %v658 = vsel %vm656, %v654, 0
      %660 = vmatprep.subr.bf16.mxu0 %v294
      %661 = vmatpush1.bf16.msra.mxu0 %v293
      %662 = vmatprep.subr.bf16.mxu0 %v335
      %663 = vmatpush1.bf16.msra.mxu0 %v334
      %664 = vmatprep.subr.bf16.mxu0 %v375
      %665 = vmatpush1.bf16.msra.mxu0 %v374
      %666 = vmatprep.subr.bf16.mxu0 %v415
      %667 = vmatpush1.bf16.msra.mxu0 %v414
      %668 = vmatprep.subr.bf16.mxu0 %v455
      %669 = vmatpush1.bf16.msra.mxu0 %v454
      %670 = vmatprep.subr.bf16.mxu0 %v495
      %671 = vmatpush1.bf16.msra.mxu0 %v494
      %672 = vmatprep.subr.bf16.mxu0 %v535
      %673 = vmatpush1.bf16.msra.mxu0 %v534
      %674 = vmatprep.subr.bf16.mxu0 %v575
      %675 = vmatpush1.bf16.msra.mxu0 %v574
      %676 = vmatprep.subr.bf16.mxu0 %v615
      %677 = vmatpush1.bf16.msra.mxu0 %v614
      %678 = vmatprep.subr.bf16.mxu0 0
      %679 = vmatpush1.bf16.msra.mxu0 0
      %680 = vmatprep.subr.bf16.mxu0 0
      %681 = vmatpush1.bf16.msra.mxu0 0
      %682 = vmatprep.subr.bf16.mxu0 0
      %683 = vmatpush1.bf16.msra.mxu0 0
      %684 = vmatprep.subr.bf16.mxu0 0
      %685 = vmatpush1.bf16.msra.mxu0 0
      %686 = vmatprep.subr.bf16.mxu0 0
      %687 = vmatpush1.bf16.msra.mxu0 0
      %688 = vmatprep.subr.bf16.mxu0 0
      %689 = vmatpush1.bf16.msra.mxu0 0
      %690 = vmatprep.subr.bf16.mxu0 0
      %691 = vmatpush1.bf16.msra.mxu0 0
      %692 = vmatprep.mubr.bf16.mxu0 %v658
      %693 = vmatmul.mubr.bf16.gmra.mrb[0].mxu0 %v653
      %v694 = vpop.f32.mrb[0].mxu0
      %v695 = vadd.f32 %v640, %v694
      %v696 = vpop.f32.mrb[0].mxu0
      %v697 = vadd.f32 %v640, %v696
      %v698 = vpop.f32.mrb[0].mxu0
      %v699 = vadd.f32 %v645, %v698
      %v700 = vpop.f32.mrb[0].mxu0
      %v701 = vadd.f32 %v645, %v700
      %702 = vdwg.mxu0
      %703 = vmatprep.subr.bf16.mxu0 %v296
      %704 = vmatpush1.bf16.msra.mxu0 %v295
      %705 = vmatprep.subr.bf16.mxu0 %v337
      %706 = vmatpush1.bf16.msra.mxu0 %v336
      %707 = vmatprep.subr.bf16.mxu0 %v377
      %708 = vmatpush1.bf16.msra.mxu0 %v376
      %709 = vmatprep.subr.bf16.mxu0 %v417
      %710 = vmatpush1.bf16.msra.mxu0 %v416
      %711 = vmatprep.subr.bf16.mxu0 %v457
      %712 = vmatpush1.bf16.msra.mxu0 %v456
      %713 = vmatprep.subr.bf16.mxu0 %v497
      %714 = vmatpush1.bf16.msra.mxu0 %v496
      %715 = vmatprep.subr.bf16.mxu0 %v537
      %716 = vmatpush1.bf16.msra.mxu0 %v536
      %717 = vmatprep.subr.bf16.mxu0 %v577
      %718 = vmatpush1.bf16.msra.mxu0 %v576
      %719 = vmatprep.subr.bf16.mxu0 %v617
      %720 = vmatpush1.bf16.msra.mxu0 %v616
      %721 = vmatprep.subr.bf16.mxu0 0
      %722 = vmatpush1.bf16.msra.mxu0 0
      %723 = vmatprep.subr.bf16.mxu0 0
      %724 = vmatpush1.bf16.msra.mxu0 0
      %725 = vmatprep.subr.bf16.mxu0 0
      %726 = vmatpush1.bf16.msra.mxu0 0
      %727 = vmatprep.subr.bf16.mxu0 0
      %728 = vmatpush1.bf16.msra.mxu0 0
      %729 = vmatprep.subr.bf16.mxu0 0
      %730 = vmatpush1.bf16.msra.mxu0 0
      %731 = vmatprep.subr.bf16.mxu0 0
      %732 = vmatpush1.bf16.msra.mxu0 0
      %733 = vmatprep.subr.bf16.mxu0 0
      %734 = vmatpush1.bf16.msra.mxu0 0
      %735 = vmatprep.mubr.bf16.mxu0 %v658
      %736 = vmatmul.mubr.bf16.gmra.mrb[0].mxu0 %v653
      %v737 = vpop.f32.mrb[0].mxu0
      %v738 = vadd.f32 %v640, %v737
      %v739 = vpop.f32.mrb[0].mxu0
      %v740 = vadd.f32 %v640, %v739
      %v741 = vpop.f32.mrb[0].mxu0
      %v742 = vadd.f32 %v645, %v741
      %v743 = vpop.f32.mrb[0].mxu0
      %v744 = vadd.f32 %v645, %v743
      %745 = vdwg.mxu0
      %746 = vmatprep.subr.bf16.mxu0 %v298
      %747 = vmatpush1.bf16.msra.mxu0 %v297
      %748 = vmatprep.subr.bf16.mxu0 %v339
      %749 = vmatpush1.bf16.msra.mxu0 %v338
      %750 = vmatprep.subr.bf16.mxu0 %v379
      %751 = vmatpush1.bf16.msra.mxu0 %v378
      %752 = vmatprep.subr.bf16.mxu0 %v419
      %753 = vmatpush1.bf16.msra.mxu0 %v418
      %754 = vmatprep.subr.bf16.mxu0 %v459
      %755 = vmatpush1.bf16.msra.mxu0 %v458
      %756 = vmatprep.subr.bf16.mxu0 %v499
      %757 = vmatpush1.bf16.msra.mxu0 %v498
      %758 = vmatprep.subr.bf16.mxu0 %v539
      %759 = vmatpush1.bf16.msra.mxu0 %v538
      %760 = vmatprep.subr.bf16.mxu0 %v579
      %761 = vmatpush1.bf16.msra.mxu0 %v578
      %762 = vmatprep.subr.bf16.mxu0 %v619
      %763 = vmatpush1.bf16.msra.mxu0 %v618
      %764 = vmatprep.subr.bf16.mxu0 0
      %765 = vmatpush1.bf16.msra.mxu0 0
      %766 = vmatprep.subr.bf16.mxu0 0
      %767 = vmatpush1.bf16.msra.mxu0 0
      %768 = vmatprep.subr.bf16.mxu0 0
      %769 = vmatpush1.bf16.msra.mxu0 0
      %770 = vmatprep.subr.bf16.mxu0 0
      %771 = vmatpush1.bf16.msra.mxu0 0
      %772 = vmatprep.subr.bf16.mxu0 0
      %773 = vmatpush1.bf16.msra.mxu0 0
      %774 = vmatprep.subr.bf16.mxu0 0
      %775 = vmatpush1.bf16.msra.mxu0 0
      %776 = vmatprep.subr.bf16.mxu0 0
      %777 = vmatpush1.bf16.msra.mxu0 0
      %778 = vmatprep.mubr.bf16.mxu0 %v658
      %779 = vmatmul.mubr.bf16.gmra.mrb[0].mxu0 %v653
      %v780 = vpop.f32.mrb[0].mxu0
      %v781 = vadd.f32 %v640, %v780
      %v782 = vpop.f32.mrb[0].mxu0
      %v783 = vadd.f32 %v640, %v782
      %v784 = vpop.f32.mrb[0].mxu0
      %v785 = vadd.f32 %v645, %v784
      %v786 = vpop.f32.mrb[0].mxu0
      %v787 = vadd.f32 %v645, %v786
      %788 = vdwg.mxu0
      %789 = vmatprep.subr.bf16.mxu0 %v300
      %790 = vmatpush1.bf16.msra.mxu0 %v299
      %791 = vmatprep.subr.bf16.mxu0 %v341
      %792 = vmatpush1.bf16.msra.mxu0 %v340
      %793 = vmatprep.subr.bf16.mxu0 %v381
      %794 = vmatpush1.bf16.msra.mxu0 %v380
      %795 = vmatprep.subr.bf16.mxu0 %v421
      %796 = vmatpush1.bf16.msra.mxu0 %v420
      %797 = vmatprep.subr.bf16.mxu0 %v461
      %798 = vmatpush1.bf16.msra.mxu0 %v460
      %799 = vmatprep.subr.bf16.mxu0 %v501
      %800 = vmatpush1.bf16.msra.mxu0 %v500
      %801 = vmatprep.subr.bf16.mxu0 %v541
      %802 = vmatpush1.bf16.msra.mxu0 %v540
      %803 = vmatprep.subr.bf16.mxu0 %v581
      %804 = vmatpush1.bf16.msra.mxu0 %v580
      %805 = vmatprep.subr.bf16.mxu0 %v621
      %806 = vmatpush1.bf16.msra.mxu0 %v620
      %807 = vmatprep.subr.bf16.mxu0 0
      %808 = vmatpush1.bf16.msra.mxu0 0
      %809 = vmatprep.subr.bf16.mxu0 0
      %810 = vmatpush1.bf16.msra.mxu0 0
      %811 = vmatprep.subr.bf16.mxu0 0
      %812 = vmatpush1.bf16.msra.mxu0 0
      %813 = vmatprep.subr.bf16.mxu0 0
      %814 = vmatpush1.bf16.msra.mxu0 0
      %815 = vmatprep.subr.bf16.mxu0 0
      %816 = vmatpush1.bf16.msra.mxu0 0
      %817 = vmatprep.subr.bf16.mxu0 0
      %818 = vmatpush1.bf16.msra.mxu0 0
      %819 = vmatprep.subr.bf16.mxu0 0
      %820 = vmatpush1.bf16.msra.mxu0 0
      %821 = vmatprep.mubr.bf16.mxu0 %v658
      %822 = vmatmul.mubr.bf16.gmra.mrb[0].mxu0 %v653
      %v823 = vpop.f32.mrb[0].mxu0
      %v824 = vadd.f32 %v640, %v823
      %v825 = vpop.f32.mrb[0].mxu0
      %v826 = vadd.f32 %v640, %v825
      %v827 = vpop.f32.mrb[0].mxu0
      %v828 = vadd.f32 %v645, %v827
      %v829 = vpop.f32.mrb[0].mxu0
      %v830 = vadd.f32 %v645, %v829
      %831 = vdwg.mxu0
      %832 = vmatprep.subr.bf16.mxu0 %v302
      %833 = vmatpush1.bf16.msra.mxu0 %v301
      %834 = vmatprep.subr.bf16.mxu0 %v332
      %835 = vmatpush1.bf16.msra.mxu0 %v342
      %836 = vmatprep.subr.bf16.mxu0 %v372
      %837 = vmatpush1.bf16.msra.mxu0 %v382
      %838 = vmatprep.subr.bf16.mxu0 %v412
      %839 = vmatpush1.bf16.msra.mxu0 %v422
      %840 = vmatprep.subr.bf16.mxu0 %v452
      %841 = vmatpush1.bf16.msra.mxu0 %v462
      %842 = vmatprep.subr.bf16.mxu0 %v492
      %843 = vmatpush1.bf16.msra.mxu0 %v502
      %844 = vmatprep.subr.bf16.mxu0 %v532
      %845 = vmatpush1.bf16.msra.mxu0 %v542
      %846 = vmatprep.subr.bf16.mxu0 %v572
      %847 = vmatpush1.bf16.msra.mxu0 %v582
      %848 = vmatprep.subr.bf16.mxu0 %v612
      %849 = vmatpush1.bf16.msra.mxu0 %v622
      %850 = vmatprep.subr.bf16.mxu0 0
      %851 = vmatpush1.bf16.msra.mxu0 0
      %852 = vmatprep.subr.bf16.mxu0 0
      %853 = vmatpush1.bf16.msra.mxu0 0
      %854 = vmatprep.subr.bf16.mxu0 0
      %855 = vmatpush1.bf16.msra.mxu0 0
      %856 = vmatprep.subr.bf16.mxu0 0
      %857 = vmatpush1.bf16.msra.mxu0 0
      %858 = vmatprep.subr.bf16.mxu0 0
      %859 = vmatpush1.bf16.msra.mxu0 0
      %860 = vmatprep.subr.bf16.mxu0 0
      %861 = vmatpush1.bf16.msra.mxu0 0
      %862 = vmatprep.subr.bf16.mxu0 0
      %863 = vmatpush1.bf16.msra.mxu0 0
      %864 = vmatprep.mubr.bf16.mxu0 %v658
      %865 = vmatmul.mubr.bf16.gmra.mrb[0].mxu0 %v653
      %v866 = vpop.f32.mrb[0].mxu0
      %v867 = vadd.f32 %v640, %v866
      %v868 = vpop.f32.mrb[0].mxu0
      %v869 = vadd.f32 %v640, %v868
      %v870 = vpop.f32.mrb[0].mxu0
      %v871 = vadd.f32 %v645, %v870
      %v872 = vpop.f32.mrb[0].mxu0
      %v873 = vadd.f32 %v645, %v872
      %874 = vdwg.mxu0
      %v875 = vmax.f32 %v695, 0.0
      %v876 = vmax.f32 %v697, 0.0
      %v877 = vmax.f32 %v738, 0.0
      %v878 = vmax.f32 %v740, 0.0
      %v879 = vmax.f32 %v781, 0.0
      %v880 = vmax.f32 %v783, 0.0
      %v881 = vmax.f32 %v824, 0.0
      %v882 = vmax.f32 %v826, 0.0
      %v883 = vmax.f32 %v867, 0.0
      %v884 = vmax.f32 %v869, 0.0
      %v885 = vmax.f32 %v699, 0.0
      %v886 = vmax.f32 %v701, 0.0
      %v887 = vmax.f32 %v742, 0.0
      %v888 = vmax.f32 %v744, 0.0
      %v889 = vmax.f32 %v785, 0.0
      %v890 = vmax.f32 %v787, 0.0
      %v891 = vmax.f32 %v828, 0.0
      %v892 = vmax.f32 %v830, 0.0
      %v893 = vmax.f32 %v871, 0.0
      %v894 = vmax.f32 %v873, 0.0
      %v895 = vld [vmem:[%s5] sm:$0xff]
      %v896 = vld [vmem:[%s5 + $0x8] sm:$0x3]
      %v899 = vlaneseq
      %v900 = vshrl.u32 %v899, 7
      %v901 = vsub.s32 0, %v900
      %v902 = vrot.slane %v895, %v901
      %v903 = vlaneseq
      %v904 = vshrl.u32 %v903, 7
      %v905 = vsub.s32 1, %v904
      %v906 = vrot.slane %v895, %v905
      %v907 = vlaneseq
      %v908 = vshrl.u32 %v907, 7
      %v909 = vsub.s32 2, %v908
      %v910 = vrot.slane %v895, %v909
      %v911 = vlaneseq
      %v912 = vshrl.u32 %v911, 7
      %v913 = vsub.s32 3, %v912
      %v914 = vrot.slane %v895, %v913
      %v915 = vlaneseq
      %v916 = vshrl.u32 %v915, 7
      %v917 = vsub.s32 4, %v916
      %v918 = vrot.slane %v895, %v917
      %v919 = vlaneseq
      %v920 = vshrl.u32 %v919, 7
      %v921 = vsub.s32 5, %v920
      %v922 = vrot.slane %v895, %v921
      %v923 = vlaneseq
      %v924 = vshrl.u32 %v923, 7
      %v925 = vsub.s32 6, %v924
      %v926 = vrot.slane %v895, %v925
      %v927 = vlaneseq
      %v928 = vshrl.u32 %v927, 7
      %v929 = vsub.s32 7, %v928
      %v930 = vrot.slane %v895, %v929
      %v931 = vlaneseq
      %v932 = vshrl.u32 %v931, 7
      %v933 = vsub.s32 0, %v932
      %v934 = vrot.slane %v896, %v933
      %v935 = vlaneseq
      %v936 = vshrl.u32 %v935, 7
      %v937 = vsub.s32 1, %v936
      %v938 = vrot.slane %v896, %v937
      %v949 = vmul.f32 %v875, %v902
      %v950 = vmul.f32 %v876, %v906
      %v951 = vmul.f32 %v877, %v910
      %v952 = vmul.f32 %v878, %v914
      %v953 = vmul.f32 %v879, %v918
      %v954 = vmul.f32 %v880, %v922
      %v955 = vmul.f32 %v881, %v926
      %v956 = vmul.f32 %v882, %v930
      %v957 = vmul.f32 %v883, %v934
      %v958 = vmul.f32 %v884, %v938
      %v959 = vmul.f32 %v885, %v902
      %v960 = vmul.f32 %v886, %v906
      %v961 = vmul.f32 %v887, %v910
      %v962 = vmul.f32 %v888, %v914
      %v963 = vmul.f32 %v889, %v918
      %v964 = vmul.f32 %v890, %v922
      %v965 = vmul.f32 %v891, %v926
      %v966 = vmul.f32 %v892, %v930
      %v967 = vmul.f32 %v893, %v934
      %v968 = vmul.f32 %v894, %v938
      %v969 = vpack.c.bf16 %v959, %v949
      %v970 = vpack.c.bf16 %v960, %v950
      %v971 = vpack.c.bf16 %v961, %v951
      %v972 = vpack.c.bf16 %v962, %v952
      %v973 = vpack.c.bf16 %v963, %v953
      %v974 = vpack.c.bf16 %v964, %v954
      %v975 = vpack.c.bf16 %v965, %v955
      %v976 = vpack.c.bf16 %v966, %v956
      %v977 = vpack.c.bf16 %v967, %v957
      %v978 = vpack.c.bf16 %v968, %v958
      %989 = vrot.lane.b32.xlu0 %v969, 35
      %v990 = vpop.permute.xlu0 %989
      %991 = vrot.lane.b32.xlu0 %v970, 35
      %v992 = vpop.permute.xlu0 %991
      %993 = vrot.lane.b32.xlu0 %v971, 35
      %v994 = vpop.permute.xlu0 %993
      %995 = vrot.lane.b32.xlu0 %v972, 35
      %v996 = vpop.permute.xlu0 %995
      %997 = vrot.lane.b32.xlu0 %v973, 35
      %v998 = vpop.permute.xlu0 %997
      %999 = vrot.lane.b32.xlu0 %v974, 35
      %v1000 = vpop.permute.xlu0 %999
      %1001 = vrot.lane.b32.xlu0 %v975, 35
      %v1002 = vpop.permute.xlu0 %1001
      %1003 = vrot.lane.b32.xlu0 %v976, 35
      %v1004 = vpop.permute.xlu0 %1003
      %1005 = vrot.lane.b32.xlu0 %v977, 35
      %v1006 = vpop.permute.xlu0 %1005
      %1007 = vrot.lane.b32.xlu0 %v978, 35
      %v1008 = vpop.permute.xlu0 %1007
      %vm1009 = vcmask 285696
      %v1010 = vsel %vm1009, %v990, %v992
      %v1011 = vsel %vm1009, %v992, %v994
      %v1012 = vsel %vm1009, %v994, %v996
      %v1013 = vsel %vm1009, %v996, %v998
      %v1014 = vsel %vm1009, %v998, %v1000
      %v1015 = vsel %vm1009, %v1000, %v1002
      %v1016 = vsel %vm1009, %v1002, %v1004
      %v1017 = vsel %vm1009, %v1004, %v1006
      %v1018 = vsel %vm1009, %v1006, %v1008
      %vm1027 = vcmask 285696
      %v1030 = vsel %vm1027, 0, %v990
      %vm1032 = vcmask 318464
      %v1034 = vsel %vm1032, %v1018, 0
      %1038 = vrot.lane.b32.xlu0 %v1030, 127
      %v1039 = vpop.permute.xlu0 %1038
      %1040 = vrot.lane.b32.xlu0 %v1010, 127
      %v1041 = vpop.permute.xlu0 %1040
      %1042 = vrot.lane.b32.xlu0 %v1011, 127
      %v1043 = vpop.permute.xlu0 %1042
      %1044 = vrot.lane.b32.xlu0 %v1012, 127
      %v1045 = vpop.permute.xlu0 %1044
      %1046 = vrot.lane.b32.xlu0 %v1013, 127
      %v1047 = vpop.permute.xlu0 %1046
      %1048 = vrot.lane.b32.xlu0 %v1014, 127
      %v1049 = vpop.permute.xlu0 %1048
      %1050 = vrot.lane.b32.xlu0 %v1015, 127
      %v1051 = vpop.permute.xlu0 %1050
      %1052 = vrot.lane.b32.xlu0 %v1016, 127
      %v1053 = vpop.permute.xlu0 %1052
      %1054 = vrot.lane.b32.xlu0 %v1017, 127
      %v1055 = vpop.permute.xlu0 %1054
      %1056 = vrot.lane.b32.xlu0 %v1034, 127
      %v1057 = vpop.permute.xlu0 %1056
      %v1058 = vsel %vm333, %v1039, %v1041
      %v1059 = vsel %vm333, %v1041, %v1043
      %v1060 = vsel %vm333, %v1043, %v1045
      %v1061 = vsel %vm333, %v1045, %v1047
      %v1062 = vsel %vm333, %v1047, %v1049
      %v1063 = vsel %vm333, %v1049, %v1051
      %v1064 = vsel %vm333, %v1051, %v1053
      %v1065 = vsel %vm333, %v1053, %v1055
      %v1066 = vsel %vm333, %v1055, %v1057
      %1077 = vrot.lane.b32.xlu0 %v1030, 126
      %v1078 = vpop.permute.xlu0 %1077
      %1079 = vrot.lane.b32.xlu0 %v1010, 126
      %v1080 = vpop.permute.xlu0 %1079
      %1081 = vrot.lane.b32.xlu0 %v1011, 126
      %v1082 = vpop.permute.xlu0 %1081
      %1083 = vrot.lane.b32.xlu0 %v1012, 126
      %v1084 = vpop.permute.xlu0 %1083
      %1085 = vrot.lane.b32.xlu0 %v1013, 126
      %v1086 = vpop.permute.xlu0 %1085
      %1087 = vrot.lane.b32.xlu0 %v1014, 126
      %v1088 = vpop.permute.xlu0 %1087
      %1089 = vrot.lane.b32.xlu0 %v1015, 126
      %v1090 = vpop.permute.xlu0 %1089
      %1091 = vrot.lane.b32.xlu0 %v1016, 126
      %v1092 = vpop.permute.xlu0 %1091
      %1093 = vrot.lane.b32.xlu0 %v1017, 126
      %v1094 = vpop.permute.xlu0 %1093
      %1095 = vrot.lane.b32.xlu0 %v1034, 126
      %v1096 = vpop.permute.xlu0 %1095
      %v1097 = vsel %vm373, %v1078, %v1080
      %v1098 = vsel %vm373, %v1080, %v1082
      %v1099 = vsel %vm373, %v1082, %v1084
      %v1100 = vsel %vm373, %v1084, %v1086
      %v1101 = vsel %vm373, %v1086, %v1088
      %v1102 = vsel %vm373, %v1088, %v1090
      %v1103 = vsel %vm373, %v1090, %v1092
      %v1104 = vsel %vm373, %v1092, %v1094
      %v1105 = vsel %vm373, %v1094, %v1096
      %1116 = vrot.lane.b32.xlu0 %v1030, 94
      %v1117 = vpop.permute.xlu0 %1116
      %1118 = vrot.lane.b32.xlu0 %v1010, 94
      %v1119 = vpop.permute.xlu0 %1118
      %1120 = vrot.lane.b32.xlu0 %v1011, 94
      %v1121 = vpop.permute.xlu0 %1120
      %1122 = vrot.lane.b32.xlu0 %v1012, 94
      %v1123 = vpop.permute.xlu0 %1122
      %1124 = vrot.lane.b32.xlu0 %v1013, 94
      %v1125 = vpop.permute.xlu0 %1124
      %1126 = vrot.lane.b32.xlu0 %v1014, 94
      %v1127 = vpop.permute.xlu0 %1126
      %1128 = vrot.lane.b32.xlu0 %v1015, 94
      %v1129 = vpop.permute.xlu0 %1128
      %1130 = vrot.lane.b32.xlu0 %v1016, 94
      %v1131 = vpop.permute.xlu0 %1130
      %1132 = vrot.lane.b32.xlu0 %v1017, 94
      %v1133 = vpop.permute.xlu0 %1132
      %1134 = vrot.lane.b32.xlu0 %v1034, 94
      %v1135 = vpop.permute.xlu0 %1134
      %v1136 = vsel %vm413, %v1117, %v1119
      %v1137 = vsel %vm413, %v1119, %v1121
      %v1138 = vsel %vm413, %v1121, %v1123
      %v1139 = vsel %vm413, %v1123, %v1125
      %v1140 = vsel %vm413, %v1125, %v1127
      %v1141 = vsel %vm413, %v1127, %v1129
      %v1142 = vsel %vm413, %v1129, %v1131
      %v1143 = vsel %vm413, %v1131, %v1133
      %v1144 = vsel %vm413, %v1133, %v1135
      %1155 = vrot.lane.b32.xlu0 %v1030, 93
      %v1156 = vpop.permute.xlu0 %1155
      %1157 = vrot.lane.b32.xlu0 %v1010, 93
      %v1158 = vpop.permute.xlu0 %1157
      %1159 = vrot.lane.b32.xlu0 %v1011, 93
      %v1160 = vpop.permute.xlu0 %1159
      %1161 = vrot.lane.b32.xlu0 %v1012, 93
      %v1162 = vpop.permute.xlu0 %1161
      %1163 = vrot.lane.b32.xlu0 %v1013, 93
      %v1164 = vpop.permute.xlu0 %1163
      %1165 = vrot.lane.b32.xlu0 %v1014, 93
      %v1166 = vpop.permute.xlu0 %1165
      %1167 = vrot.lane.b32.xlu0 %v1015, 93
      %v1168 = vpop.permute.xlu0 %1167
      %1169 = vrot.lane.b32.xlu0 %v1016, 93
      %v1170 = vpop.permute.xlu0 %1169
      %1171 = vrot.lane.b32.xlu0 %v1017, 93
      %v1172 = vpop.permute.xlu0 %1171
      %1173 = vrot.lane.b32.xlu0 %v1034, 93
      %v1174 = vpop.permute.xlu0 %1173
      %v1175 = vsel %vm453, %v1156, %v1158
      %v1176 = vsel %vm453, %v1158, %v1160
      %v1177 = vsel %vm453, %v1160, %v1162
      %v1178 = vsel %vm453, %v1162, %v1164
      %v1179 = vsel %vm453, %v1164, %v1166
      %v1180 = vsel %vm453, %v1166, %v1168
      %v1181 = vsel %vm453, %v1168, %v1170
      %v1182 = vsel %vm453, %v1170, %v1172
      %v1183 = vsel %vm453, %v1172, %v1174
      %1194 = vrot.lane.b32.xlu0 %v1030, 92
      %v1195 = vpop.permute.xlu0 %1194
      %1196 = vrot.lane.b32.xlu0 %v1010, 92
      %v1197 = vpop.permute.xlu0 %1196
      %1198 = vrot.lane.b32.xlu0 %v1011, 92
      %v1199 = vpop.permute.xlu0 %1198
      %1200 = vrot.lane.b32.xlu0 %v1012, 92
      %v1201 = vpop.permute.xlu0 %1200
      %1202 = vrot.lane.b32.xlu0 %v1013, 92
      %v1203 = vpop.permute.xlu0 %1202
      %1204 = vrot.lane.b32.xlu0 %v1014, 92
      %v1205 = vpop.permute.xlu0 %1204
      %1206 = vrot.lane.b32.xlu0 %v1015, 92
      %v1207 = vpop.permute.xlu0 %1206
      %1208 = vrot.lane.b32.xlu0 %v1016, 92
      %v1209 = vpop.permute.xlu0 %1208
      %1210 = vrot.lane.b32.xlu0 %v1017, 92
      %v1211 = vpop.permute.xlu0 %1210
      %1212 = vrot.lane.b32.xlu0 %v1034, 92
      %v1213 = vpop.permute.xlu0 %1212
      %v1214 = vsel %vm493, %v1195, %v1197
      %v1215 = vsel %vm493, %v1197, %v1199
      %v1216 = vsel %vm493, %v1199, %v1201
      %v1217 = vsel %vm493, %v1201, %v1203
      %v1218 = vsel %vm493, %v1203, %v1205
      %v1219 = vsel %vm493, %v1205, %v1207
      %v1220 = vsel %vm493, %v1207, %v1209
      %v1221 = vsel %vm493, %v1209, %v1211
      %v1222 = vsel %vm493, %v1211, %v1213
      %1233 = vrot.lane.b32.xlu0 %v1030, 60
      %v1234 = vpop.permute.xlu0 %1233
      %1235 = vrot.lane.b32.xlu0 %v1010, 60
      %v1236 = vpop.permute.xlu0 %1235
      %1237 = vrot.lane.b32.xlu0 %v1011, 60
      %v1238 = vpop.permute.xlu0 %1237
      %1239 = vrot.lane.b32.xlu0 %v1012, 60
      %v1240 = vpop.permute.xlu0 %1239
      %1241 = vrot.lane.b32.xlu0 %v1013, 60
      %v1242 = vpop.permute.xlu0 %1241
      %1243 = vrot.lane.b32.xlu0 %v1014, 60
      %v1244 = vpop.permute.xlu0 %1243
      %1245 = vrot.lane.b32.xlu0 %v1015, 60
      %v1246 = vpop.permute.xlu0 %1245
      %1247 = vrot.lane.b32.xlu0 %v1016, 60
      %v1248 = vpop.permute.xlu0 %1247
      %1249 = vrot.lane.b32.xlu0 %v1017, 60
      %v1250 = vpop.permute.xlu0 %1249
      %1251 = vrot.lane.b32.xlu0 %v1034, 60
      %v1252 = vpop.permute.xlu0 %1251
      %v1253 = vsel %vm533, %v1234, %v1236
      %v1254 = vsel %vm533, %v1236, %v1238
      %v1255 = vsel %vm533, %v1238, %v1240
      %v1256 = vsel %vm533, %v1240, %v1242
      %v1257 = vsel %vm533, %v1242, %v1244
      %v1258 = vsel %vm533, %v1244, %v1246
      %v1259 = vsel %vm533, %v1246, %v1248
      %v1260 = vsel %vm533, %v1248, %v1250
      %v1261 = vsel %vm533, %v1250, %v1252
      %1272 = vrot.lane.b32.xlu0 %v1030, 59
      %v1273 = vpop.permute.xlu0 %1272
      %1274 = vrot.lane.b32.xlu0 %v1010, 59
      %v1275 = vpop.permute.xlu0 %1274
      %1276 = vrot.lane.b32.xlu0 %v1011, 59
      %v1277 = vpop.permute.xlu0 %1276
      %1278 = vrot.lane.b32.xlu0 %v1012, 59
      %v1279 = vpop.permute.xlu0 %1278
      %1280 = vrot.lane.b32.xlu0 %v1013, 59
      %v1281 = vpop.permute.xlu0 %1280
      %1282 = vrot.lane.b32.xlu0 %v1014, 59
      %v1283 = vpop.permute.xlu0 %1282
      %1284 = vrot.lane.b32.xlu0 %v1015, 59
      %v1285 = vpop.permute.xlu0 %1284
      %1286 = vrot.lane.b32.xlu0 %v1016, 59
      %v1287 = vpop.permute.xlu0 %1286
      %1288 = vrot.lane.b32.xlu0 %v1017, 59
      %v1289 = vpop.permute.xlu0 %1288
      %1290 = vrot.lane.b32.xlu0 %v1034, 59
      %v1291 = vpop.permute.xlu0 %1290
      %v1292 = vsel %vm573, %v1273, %v1275
      %v1293 = vsel %vm573, %v1275, %v1277
      %v1294 = vsel %vm573, %v1277, %v1279
      %v1295 = vsel %vm573, %v1279, %v1281
      %v1296 = vsel %vm573, %v1281, %v1283
      %v1297 = vsel %vm573, %v1283, %v1285
      %v1298 = vsel %vm573, %v1285, %v1287
      %v1299 = vsel %vm573, %v1287, %v1289
      %v1300 = vsel %vm573, %v1289, %v1291
      %1311 = vrot.lane.b32.xlu0 %v1030, 58
      %v1312 = vpop.permute.xlu0 %1311
      %1313 = vrot.lane.b32.xlu0 %v1010, 58
      %v1314 = vpop.permute.xlu0 %1313
      %1315 = vrot.lane.b32.xlu0 %v1011, 58
      %v1316 = vpop.permute.xlu0 %1315
      %1317 = vrot.lane.b32.xlu0 %v1012, 58
      %v1318 = vpop.permute.xlu0 %1317
      %1319 = vrot.lane.b32.xlu0 %v1013, 58
      %v1320 = vpop.permute.xlu0 %1319
      %1321 = vrot.lane.b32.xlu0 %v1014, 58
      %v1322 = vpop.permute.xlu0 %1321
      %1323 = vrot.lane.b32.xlu0 %v1015, 58
      %v1324 = vpop.permute.xlu0 %1323
      %1325 = vrot.lane.b32.xlu0 %v1016, 58
      %v1326 = vpop.permute.xlu0 %1325
      %1327 = vrot.lane.b32.xlu0 %v1017, 58
      %v1328 = vpop.permute.xlu0 %1327
      %1329 = vrot.lane.b32.xlu0 %v1034, 58
      %v1330 = vpop.permute.xlu0 %1329
      %v1331 = vsel %vm613, %v1312, %v1314
      %v1332 = vsel %vm613, %v1314, %v1316
      %v1333 = vsel %vm613, %v1316, %v1318
      %v1334 = vsel %vm613, %v1318, %v1320
      %v1335 = vsel %vm613, %v1320, %v1322
      %v1336 = vsel %vm613, %v1322, %v1324
      %v1337 = vsel %vm613, %v1324, %v1326
      %v1338 = vsel %vm613, %v1326, %v1328
      %v1339 = vsel %vm613, %v1328, %v1330
      %v1350 = vld [vmem:[%s3] sm:$0xff]
      %v1351 = vld [vmem:[%s3 + $0x8] sm:$0xff]
      %v1352 = vld [vmem:[%s4] sm:$0xff]
      %v1353 = vld [vmem:[%s4 + $0x8] sm:$0xff]
      %1355 = vset.pattern.permute.xlu0 0
      %1356 = vperm.xlu0 %1355, %v1352
      %v1357 = vpop.permute.xlu0 %1356
      %1360 = vset.pattern.permute.xlu0 0
      %1361 = vperm.xlu0 %1360, %v1353
      %v1362 = vpop.permute.xlu0 %1361
      %v1366 = vunpack.c.l.b16 %v1350
      %v1367 = vunpack.c.h.b16 %v1350
      %v1368 = vunpack.c.l.b16 %v1351
      %v1369 = vunpack.c.h.b16 %v1351
      %v1370 = vpack.c.b16 %v1368, %v1366
      %v1371 = vpack.c.b16 %v1369, %v1367
      %v1374 = vsel %vm656, %v1371, 0
      %1376 = vmatprep.subr.bf16.mxu0 %v1010
      %1377 = vmatpush1.bf16.msra.mxu0 %v1030
      %1378 = vmatprep.subr.bf16.mxu0 %v1059
      %1379 = vmatpush1.bf16.msra.mxu0 %v1058
      %1380 = vmatprep.subr.bf16.mxu0 %v1098
      %1381 = vmatpush1.bf16.msra.mxu0 %v1097
      %1382 = vmatprep.subr.bf16.mxu0 %v1137
      %1383 = vmatpush1.bf16.msra.mxu0 %v1136
      %1384 = vmatprep.subr.bf16.mxu0 %v1176
      %1385 = vmatpush1.bf16.msra.mxu0 %v1175
      %1386 = vmatprep.subr.bf16.mxu0 %v1215
      %1387 = vmatpush1.bf16.msra.mxu0 %v1214
      %1388 = vmatprep.subr.bf16.mxu0 %v1254
      %1389 = vmatpush1.bf16.msra.mxu0 %v1253
      %1390 = vmatprep.subr.bf16.mxu0 %v1293
      %1391 = vmatpush1.bf16.msra.mxu0 %v1292
      %1392 = vmatprep.subr.bf16.mxu0 %v1332
      %1393 = vmatpush1.bf16.msra.mxu0 %v1331
      %1394 = vmatprep.subr.bf16.mxu0 0
      %1395 = vmatpush1.bf16.msra.mxu0 0
      %1396 = vmatprep.subr.bf16.mxu0 0
      %1397 = vmatpush1.bf16.msra.mxu0 0
      %1398 = vmatprep.subr.bf16.mxu0 0
      %1399 = vmatpush1.bf16.msra.mxu0 0
      %1400 = vmatprep.subr.bf16.mxu0 0
      %1401 = vmatpush1.bf16.msra.mxu0 0
      %1402 = vmatprep.subr.bf16.mxu0 0
      %1403 = vmatpush1.bf16.msra.mxu0 0
      %1404 = vmatprep.subr.bf16.mxu0 0
      %1405 = vmatpush1.bf16.msra.mxu0 0
      %1406 = vmatprep.subr.bf16.mxu0 0
      %1407 = vmatpush1.bf16.msra.mxu0 0
      %1408 = vmatprep.mubr.bf16.mxu0 %v1374
      %1409 = vmatmul.mubr.bf16.gmra.mrb[0].mxu0 %v1370
      %v1410 = vpop.f32.mrb[0].mxu0
      %v1411 = vadd.f32 %v1357, %v1410
      %v1412 = vpop.f32.mrb[0].mxu0
      %v1413 = vadd.f32 %v1357, %v1412
      %v1414 = vpop.f32.mrb[0].mxu0
      %v1415 = vadd.f32 %v1362, %v1414
      %v1416 = vpop.f32.mrb[0].mxu0
      %v1417 = vadd.f32 %v1362, %v1416
      %1418 = vdwg.mxu0
      %1419 = vmatprep.subr.bf16.mxu0 %v1012
      %1420 = vmatpush1.bf16.msra.mxu0 %v1011
      %1421 = vmatprep.subr.bf16.mxu0 %v1061
      %1422 = vmatpush1.bf16.msra.mxu0 %v1060
      %1423 = vmatprep.subr.bf16.mxu0 %v1100
      %1424 = vmatpush1.bf16.msra.mxu0 %v1099
      %1425 = vmatprep.subr.bf16.mxu0 %v1139
      %1426 = vmatpush1.bf16.msra.mxu0 %v1138
      %1427 = vmatprep.subr.bf16.mxu0 %v1178
      %1428 = vmatpush1.bf16.msra.mxu0 %v1177
      %1429 = vmatprep.subr.bf16.mxu0 %v1217
      %1430 = vmatpush1.bf16.msra.mxu0 %v1216
      %1431 = vmatprep.subr.bf16.mxu0 %v1256
      %1432 = vmatpush1.bf16.msra.mxu0 %v1255
      %1433 = vmatprep.subr.bf16.mxu0 %v1295
      %1434 = vmatpush1.bf16.msra.mxu0 %v1294
      %1435 = vmatprep.subr.bf16.mxu0 %v1334
      %1436 = vmatpush1.bf16.msra.mxu0 %v1333
      %1437 = vmatprep.subr.bf16.mxu0 0
      %1438 = vmatpush1.bf16.msra.mxu0 0
      %1439 = vmatprep.subr.bf16.mxu0 0
      %1440 = vmatpush1.bf16.msra.mxu0 0
      %1441 = vmatprep.subr.bf16.mxu0 0
      %1442 = vmatpush1.bf16.msra.mxu0 0
      %1443 = vmatprep.subr.bf16.mxu0 0
      %1444 = vmatpush1.bf16.msra.mxu0 0
      %1445 = vmatprep.subr.bf16.mxu0 0
      %1446 = vmatpush1.bf16.msra.mxu0 0
      %1447 = vmatprep.subr.bf16.mxu0 0
      %1448 = vmatpush1.bf16.msra.mxu0 0
      %1449 = vmatprep.subr.bf16.mxu0 0
      %1450 = vmatpush1.bf16.msra.mxu0 0
      %1451 = vmatprep.mubr.bf16.mxu0 %v1374
      %1452 = vmatmul.mubr.bf16.gmra.mrb[0].mxu0 %v1370
      %v1453 = vpop.f32.mrb[0].mxu0
      %v1454 = vadd.f32 %v1357, %v1453
      %v1455 = vpop.f32.mrb[0].mxu0
      %v1456 = vadd.f32 %v1357, %v1455
      %v1457 = vpop.f32.mrb[0].mxu0
      %v1458 = vadd.f32 %v1362, %v1457
      %v1459 = vpop.f32.mrb[0].mxu0
      %v1460 = vadd.f32 %v1362, %v1459
      %1461 = vdwg.mxu0
      %1462 = vmatprep.subr.bf16.mxu0 %v1014
      %1463 = vmatpush1.bf16.msra.mxu0 %v1013
      %1464 = vmatprep.subr.bf16.mxu0 %v1063
      %1465 = vmatpush1.bf16.msra.mxu0 %v1062
      %1466 = vmatprep.subr.bf16.mxu0 %v1102
      %1467 = vmatpush1.bf16.msra.mxu0 %v1101
      %1468 = vmatprep.subr.bf16.mxu0 %v1141
      %1469 = vmatpush1.bf16.msra.mxu0 %v1140
      %1470 = vmatprep.subr.bf16.mxu0 %v1180
      %1471 = vmatpush1.bf16.msra.mxu0 %v1179
      %1472 = vmatprep.subr.bf16.mxu0 %v1219
      %1473 = vmatpush1.bf16.msra.mxu0 %v1218
      %1474 = vmatprep.subr.bf16.mxu0 %v1258
      %1475 = vmatpush1.bf16.msra.mxu0 %v1257
      %1476 = vmatprep.subr.bf16.mxu0 %v1297
      %1477 = vmatpush1.bf16.msra.mxu0 %v1296
      %1478 = vmatprep.subr.bf16.mxu0 %v1336
      %1479 = vmatpush1.bf16.msra.mxu0 %v1335
      %1480 = vmatprep.subr.bf16.mxu0 0
      %1481 = vmatpush1.bf16.msra.mxu0 0
      %1482 = vmatprep.subr.bf16.mxu0 0
      %1483 = vmatpush1.bf16.msra.mxu0 0
      %1484 = vmatprep.subr.bf16.mxu0 0
      %1485 = vmatpush1.bf16.msra.mxu0 0
      %1486 = vmatprep.subr.bf16.mxu0 0
      %1487 = vmatpush1.bf16.msra.mxu0 0
      %1488 = vmatprep.subr.bf16.mxu0 0
      %1489 = vmatpush1.bf16.msra.mxu0 0
      %1490 = vmatprep.subr.bf16.mxu0 0
      %1491 = vmatpush1.bf16.msra.mxu0 0
      %1492 = vmatprep.subr.bf16.mxu0 0
      %1493 = vmatpush1.bf16.msra.mxu0 0
      %1494 = vmatprep.mubr.bf16.mxu0 %v1374
      %1495 = vmatmul.mubr.bf16.gmra.mrb[0].mxu0 %v1370
      %v1496 = vpop.f32.mrb[0].mxu0
      %v1497 = vadd.f32 %v1357, %v1496
      %v1498 = vpop.f32.mrb[0].mxu0
      %v1499 = vadd.f32 %v1357, %v1498
      %v1500 = vpop.f32.mrb[0].mxu0
      %v1501 = vadd.f32 %v1362, %v1500
      %v1502 = vpop.f32.mrb[0].mxu0
      %v1503 = vadd.f32 %v1362, %v1502
      %1504 = vdwg.mxu0
      %1505 = vmatprep.subr.bf16.mxu0 %v1016
      %1506 = vmatpush1.bf16.msra.mxu0 %v1015
      %1507 = vmatprep.subr.bf16.mxu0 %v1065
      %1508 = vmatpush1.bf16.msra.mxu0 %v1064
      %1509 = vmatprep.subr.bf16.mxu0 %v1104
      %1510 = vmatpush1.bf16.msra.mxu0 %v1103
      %1511 = vmatprep.subr.bf16.mxu0 %v1143
      %1512 = vmatpush1.bf16.msra.mxu0 %v1142
      %1513 = vmatprep.subr.bf16.mxu0 %v1182
      %1514 = vmatpush1.bf16.msra.mxu0 %v1181
      %1515 = vmatprep.subr.bf16.mxu0 %v1221
      %1516 = vmatpush1.bf16.msra.mxu0 %v1220
      %1517 = vmatprep.subr.bf16.mxu0 %v1260
      %1518 = vmatpush1.bf16.msra.mxu0 %v1259
      %1519 = vmatprep.subr.bf16.mxu0 %v1299
      %1520 = vmatpush1.bf16.msra.mxu0 %v1298
      %1521 = vmatprep.subr.bf16.mxu0 %v1338
      %1522 = vmatpush1.bf16.msra.mxu0 %v1337
      %1523 = vmatprep.subr.bf16.mxu0 0
      %1524 = vmatpush1.bf16.msra.mxu0 0
      %1525 = vmatprep.subr.bf16.mxu0 0
      %1526 = vmatpush1.bf16.msra.mxu0 0
      %1527 = vmatprep.subr.bf16.mxu0 0
      %1528 = vmatpush1.bf16.msra.mxu0 0
      %1529 = vmatprep.subr.bf16.mxu0 0
      %1530 = vmatpush1.bf16.msra.mxu0 0
      %1531 = vmatprep.subr.bf16.mxu0 0
      %1532 = vmatpush1.bf16.msra.mxu0 0
      %1533 = vmatprep.subr.bf16.mxu0 0
      %1534 = vmatpush1.bf16.msra.mxu0 0
      %1535 = vmatprep.subr.bf16.mxu0 0
      %1536 = vmatpush1.bf16.msra.mxu0 0
      %1537 = vmatprep.mubr.bf16.mxu0 %v1374
      %1538 = vmatmul.mubr.bf16.gmra.mrb[0].mxu0 %v1370
      %v1539 = vpop.f32.mrb[0].mxu0
      %v1540 = vadd.f32 %v1357, %v1539
      %v1541 = vpop.f32.mrb[0].mxu0
      %v1542 = vadd.f32 %v1357, %v1541
      %v1543 = vpop.f32.mrb[0].mxu0
      %v1544 = vadd.f32 %v1362, %v1543
      %v1545 = vpop.f32.mrb[0].mxu0
      %v1546 = vadd.f32 %v1362, %v1545
      %1547 = vdwg.mxu0
      %1548 = vmatprep.subr.bf16.mxu0 %v1034
      %1549 = vmatpush1.bf16.msra.mxu0 %v1017
      %1550 = vmatprep.subr.bf16.mxu0 %v1057
      %1551 = vmatpush1.bf16.msra.mxu0 %v1066
      %1552 = vmatprep.subr.bf16.mxu0 %v1096
      %1553 = vmatpush1.bf16.msra.mxu0 %v1105
      %1554 = vmatprep.subr.bf16.mxu0 %v1135
      %1555 = vmatpush1.bf16.msra.mxu0 %v1144
      %1556 = vmatprep.subr.bf16.mxu0 %v1174
      %1557 = vmatpush1.bf16.msra.mxu0 %v1183
      %1558 = vmatprep.subr.bf16.mxu0 %v1213
      %1559 = vmatpush1.bf16.msra.mxu0 %v1222
      %1560 = vmatprep.subr.bf16.mxu0 %v1252
      %1561 = vmatpush1.bf16.msra.mxu0 %v1261
      %1562 = vmatprep.subr.bf16.mxu0 %v1291
      %1563 = vmatpush1.bf16.msra.mxu0 %v1300
      %1564 = vmatprep.subr.bf16.mxu0 %v1330
      %1565 = vmatpush1.bf16.msra.mxu0 %v1339
      %1566 = vmatprep.subr.bf16.mxu0 0
      %1567 = vmatpush1.bf16.msra.mxu0 0
      %1568 = vmatprep.subr.bf16.mxu0 0
      %1569 = vmatpush1.bf16.msra.mxu0 0
      %1570 = vmatprep.subr.bf16.mxu0 0
      %1571 = vmatpush1.bf16.msra.mxu0 0
      %1572 = vmatprep.subr.bf16.mxu0 0
      %1573 = vmatpush1.bf16.msra.mxu0 0
      %1574 = vmatprep.subr.bf16.mxu0 0
      %1575 = vmatpush1.bf16.msra.mxu0 0
      %1576 = vmatprep.subr.bf16.mxu0 0
      %1577 = vmatpush1.bf16.msra.mxu0 0
      %1578 = vmatprep.subr.bf16.mxu0 0
      %1579 = vmatpush1.bf16.msra.mxu0 0
      %1580 = vmatprep.mubr.bf16.mxu0 %v1374
      %1581 = vmatmul.mubr.bf16.gmra.mrb[0].mxu0 %v1370
      %v1582 = vpop.f32.mrb[0].mxu0
      %v1583 = vadd.f32 %v1357, %v1582
      %v1584 = vpop.f32.mrb[0].mxu0
      %v1585 = vadd.f32 %v1357, %v1584
      %v1586 = vpop.f32.mrb[0].mxu0
      %v1587 = vadd.f32 %v1362, %v1586
      %v1588 = vpop.f32.mrb[0].mxu0
      %v1589 = vadd.f32 %v1362, %v1588
      %1590 = vdwg.mxu0
      %v1591 = vpack.c.bf16 %v1415, %v1411
      %v1592 = vpack.c.bf16 %v1417, %v1413
      %v1593 = vpack.c.bf16 %v1458, %v1454
      %v1594 = vpack.c.bf16 %v1460, %v1456
      %v1595 = vpack.c.bf16 %v1501, %v1497
      %v1596 = vpack.c.bf16 %v1503, %v1499
      %v1597 = vpack.c.bf16 %v1544, %v1540
      %v1598 = vpack.c.bf16 %v1546, %v1542
      %v1599 = vpack.c.bf16 %v1587, %v1583
      %v1600 = vpack.c.bf16 %v1589, %v1585
      %vm1601 = vcmask 31744
      %v1603 = vsel %vm1601, %v1600, 0
      %v1614 = vunpack.c.l.b16 %v1591
      %v1615 = vunpack.c.l.b16 %v1592
      %v1616 = vunpack.c.l.b16 %v1593
      %v1617 = vunpack.c.l.b16 %v1594
      %v1618 = vunpack.c.l.b16 %v1595
      %v1619 = vunpack.c.l.b16 %v1596
      %v1620 = vunpack.c.l.b16 %v1597
      %v1621 = vunpack.c.l.b16 %v1598
      %v1622 = vunpack.c.l.b16 %v1599
      %v1623 = vunpack.c.l.b16 %v1603
      %v1624 = vunpack.c.h.b16 %v1591
      %v1625 = vunpack.c.h.b16 %v1592
      %v1626 = vunpack.c.h.b16 %v1593
      %v1627 = vunpack.c.h.b16 %v1594
      %v1628 = vunpack.c.h.b16 %v1595
      %v1629 = vunpack.c.h.b16 %v1596
      %v1630 = vunpack.c.h.b16 %v1597
      %v1631 = vunpack.c.h.b16 %v1598
      %v1632 = vunpack.c.h.b16 %v1599
      %v1633 = vunpack.c.h.b16 %v1603
      %v1634 = vpack.c.b16 %v1615, %v1614
      %v1635 = vpack.c.b16 %v1617, %v1616
      %v1636 = vpack.c.b16 %v1619, %v1618
      %v1637 = vpack.c.b16 %v1621, %v1620
      %v1638 = vpack.c.b16 %v1623, %v1622
      %v1639 = vpack.c.b16 %v1625, %v1624
      %v1640 = vpack.c.b16 %v1627, %v1626
      %v1641 = vpack.c.b16 %v1629, %v1628
      %v1642 = vpack.c.b16 %v1631, %v1630
      %v1643 = vpack.c.b16 %v1633, %v1632
      %1654 = vst [vmem:[%s251] sm:$0xff] %v1634
      %1655 = vst [vmem:[%s251 + $0x8] sm:$0xff] %v1635
      %1656 = vst [vmem:[%s251 + $0x10] sm:$0xff] %v1636
      %1657 = vst [vmem:[%s251 + $0x18] sm:$0xff] %v1637
      %1658 = vst [vmem:[%s251 + $0x20] sm:$0xff] %v1638
      %1659 = vst [vmem:[%s251 + $0x28] sm:$0xff] %v1639
      %1660 = vst [vmem:[%s251 + $0x30] sm:$0xff] %v1640
      %1661 = vst [vmem:[%s251 + $0x38] sm:$0xff] %v1641
      %1662 = vst [vmem:[%s251 + $0x40] sm:$0xff] %v1642
      %1663 = vst [vmem:[%s251 + $0x48] sm:$0xff] %v1643
      %p1664 = scmp.lt.s32.totalorder %s17, 1
      %s1665 = scalar_select %p1664, %s17, 1
      %s1666 = smul.addr %s1665, 20
      %s1667 = smul.addr %s1666, 4
      %s1668 = scalar_lea.vmem %s6, %s1667
      // Predicated region
      $region45: #{forward.23} parent=43 // pred_check
        %p1669 = pneg %p166
      $region46: #{forward.23} parent=43 // pred_check_branch
        %1671 = sbr.rel (%p1669) target = $region48
      $region47: #{forward.23} parent=43 // pred_region
        _
      $region48: #{forward.23} parent=43 // pred_fallthru
        _
    $region44: #{forward.23} parent=5 // pred_fallthru
      _
    %p1672 = scmp.le.s32.totalorder 2, %s12
    // Predicated region
    $region49: #{forward.23} parent=5 // pred_check
      %p1673 = pneg %p1672
    $region50: #{forward.23} parent=5 // pred_check_branch
      %1675 = sbr.rel (%p1673) target = $region52
    $region51: #{forward.23} parent=5 // pred_region
      %s1676 = ssub.s32 %s12, 2
      // Predicated region
      $region53: #{forward.23} parent=51 // pred_check
        %p1677 = pneg %p172
      $region54: #{forward.23} parent=51 // pred_check_branch
        %1679 = sbr.rel (%p1677) target = $region56
      $region55: #{forward.23} parent=51 // pred_region
        %p1680 = scmp.lt.s32.totalorder %s18, 1
        %s1681 = scalar_select %p1680, %s18, 1
        %s1682 = smul.addr %s1681, 20
        %s1683 = smul.addr %s1682, 4
        %s1684 = scalar_lea.vmem %s6, %s1683
      $region56: #{forward.23} parent=51 // pred_fallthru
        _
    $region52: #{forward.23} parent=5 // pred_fallthru
      _
  $region6: #{forward.23} parent=0 // loop_footer
    %s16 = sadd.s32 1, %s12
  $region7: #{forward.23} parent=0 // loop_footer_branch
    %11 = sbr.rel target = $region3
  $region8: #{forward.23} parent=0 // loop_exit
    _

</llo_original>
